<compile_context>
chip_gen: v5e
topology: v5e:2x2
jax: 0.10.0
libtpu: 0.0.40
codegen_flags: <defaults>
</compile_context>

<pallas_src>
import functools

import numpy as np
import jax
import jax.numpy as jnp
from jax import lax
from jax.experimental import pallas as pl
from jax.experimental.pallas import tpu as pltpu

NEG_SLOPE = 0.2   # LeakyReLU slope used by SimVP BasicConv2d
GN_GROUPS = 2     # GroupNorm(2, out_channels)
GN_EPS = 1e-5


def stride_generator(n, reverse=False):
    strides = [1, 2] * 10
    if reverse:
        return list(reversed(strides[:n]))
    return strides[:n]


# ----------------------------- static geometry ----------------------------- #

def _geometry(H, W, strides):
    """Per-layer static geometry for the fused kernel."""
    geo = []
    h, w = H, W
    for s in strides:
        Hp, Wp = h + 2, w + 2
        ho = (h - 1) // s + 1
        wo = (w - 1) // s + 1
        geo.append(dict(H=h, W=w, Hp=Hp, Wp=Wp, L=Hp * Wp, marg=Wp + 1,
                        s=s, Ho=ho, Wo=wo))
        h, w = ho, wo
    return geo


def _interior_mask(g):
    """(1, L) 0/1 mask of the interior (non-halo) positions of a padded grid."""
    m = np.zeros((g['Hp'], g['Wp']), np.float32)
    m[1:1 + g['H'], 1:1 + g['W']] = 1.0
    return jnp.asarray(m.reshape(1, g['L']))


def _col_selector(g):
    """(Wp, Wo) 0/1 matrix selecting the kept (strided) columns of one padded
    output row into a compact Wo-wide row."""
    sel = np.zeros((g['Wp'], g['Wo']), np.float32)
    for wo in range(g['Wo']):
        sel[1 + g['s'] * wo, wo] = 1.0
    return jnp.asarray(sel)


# ------------------------------ fused kernel ------------------------------- #

def _make_fused_kernel(geo, C):
    n_layers = len(geo)
    has_s2 = any(g['s'] > 1 for g in geo)
    Cg = C // GN_GROUPS

    def kernel(*refs):
        it = iter(refs)
        x_ref = next(it)                                        # (1, Cin_pad, Z0) bf16
        layer_refs = [tuple(next(it) for _ in range(5))         # w,b,gamma,beta,aux
                      for _ in range(n_layers)]
        enc_ref = next(it)                                      # (1, C, L0) f32
        lat_ref = next(it)                                      # (1, C, lat_len) f32
        z_refs = [next(it) for _ in range(n_layers - 1)]        # bf16 carries
        cmp_ref = next(it) if has_s2 else None                  # (C, maxcmp) f32

        # Channel -> group masks, (C, 1).
        ch = lax.broadcasted_iota(jnp.int32, (C, 1), 0)
        cm0 = (ch < Cg).astype(jnp.float32)
        cm1 = 1.0 - cm0

        def gn_affine(s_c, q_c, count, b, gm, bt):
            # Fold the conv bias analytically into the GroupNorm statistics and
            # return the single per-channel affine y = acc*scale_c + shift_c.
            nb = count * b
            sb = s_c + nb                               # sum of (acc + b)
            qb = q_c + 2.0 * b * s_c + nb * b           # sum of (acc + b)^2
            inv = 1.0 / (count * Cg)
            S0 = jnp.sum(sb * cm0, keepdims=True)       # (1, 1)
            S1 = jnp.sum(sb * cm1, keepdims=True)
            Q0 = jnp.sum(qb * cm0, keepdims=True)
            Q1 = jnp.sum(qb * cm1, keepdims=True)
            mu0 = S0 * inv
            mu1 = S1 * inv
            v0 = jnp.maximum(Q0 * inv - mu0 * mu0, 0.0)  # guard single-pass var
            v1 = jnp.maximum(Q1 * inv - mu1 * mu1, 0.0)
            r0 = lax.rsqrt(v0 + GN_EPS)
            r1 = lax.rsqrt(v1 + GN_EPS)
            mean_c = cm0 * mu0 + cm1 * mu1               # (C, 1)
            scale_c = (cm0 * r0 + cm1 * r1) * gm         # (C, 1)
            shift_c = (b - mean_c) * scale_c + bt        # (C, 1)
            return scale_c, shift_c

        def leaky(v):
            return jnp.where(v > 0, v, NEG_SLOPE * v)

        def conv_span(view, w_ref, g, base_row, length):
            # 3x3 conv over `length` consecutive flat positions starting at
            # padded row `base_row`: 9 accumulating MXU dots, no im2col.
            acc = None
            for t in range(9):
                ky, kx = divmod(t, 3)
                a = g['marg'] + (base_row + ky - 1) * g['Wp'] + (kx - 1)
                p = jnp.dot(w_ref[t], view(a, length),
                            preferred_element_type=jnp.float32)
                acc = p if acc is None else acc + p
            return acc

        def view_of(zr):
            return lambda a, ln: zr[:, a:a + ln]

        view = lambda a, ln: x_ref[0, :, a:a + ln]      # layer-0 input view

        for l in range(n_layers):
            g = geo[l]
            w_ref, b_ref, gm_ref, bt_ref, aux_ref = layer_refs[l]
            b = b_ref[...]
            gm = gm_ref[...]
            bt = bt_ref[...]
            last = (l == n_layers - 1)
            count = float(g['Ho'] * g['Wo'])

            if g['s'] == 1:
                acc = conv_span(view, w_ref, g, 0, g['L'])        # (C, L)
                keep = aux_ref[...] > 0.5                         # (1, L)
                am = jnp.where(keep, acc, 0.0)
                s_c = jnp.sum(am, axis=-1, keepdims=True)         # (C, 1)
                q_c = jnp.sum(am * am, axis=-1, keepdims=True)    # (C, 1)
                scale_c, shift_c = gn_affine(s_c, q_c, count, b, gm, bt)
                y = jnp.where(keep, leaky(acc * scale_c + shift_c), 0.0)

                if l == 0:
                    enc_ref[0] = y                                # (C, L0)
                if last:
                    lat_ref[0] = y
                else:
                    gnx = geo[l + 1]
                    zr = z_refs[l]
                    mrg, Ln = gnx['marg'], gnx['L']
                    # Re-zero only the tiny lane margins every step (the
                    # interior incl. halo ring is fully rewritten below); this
                    # stays correct under megacore grid partitioning.
                    zeros_m = jnp.zeros((C, mrg), zr.dtype)
                    zr[:, :mrg] = zeros_m
                    zr[:, mrg + Ln:] = zeros_m
                    zr[:, mrg:mrg + Ln] = y.astype(zr.dtype)
                    view = view_of(zr)
            else:
                Ho, Wo, s = g['Ho'], g['Wo'], g['s']
                # Conv only at kept output rows; tiny column-selector dot keeps
                # the strided columns -> compact (C, Ho*Wo), mask-free GN.
                for ho in range(Ho):
                    r = 1 + s * ho
                    acc_row = conv_span(view, w_ref, g, r, g['Wp'])   # (C, Wp)
                    kept = jnp.dot(acc_row, aux_ref[...],
                                   preferred_element_type=jnp.float32)  # (C, Wo)
                    cmp_ref[:, ho * Wo:(ho + 1) * Wo] = kept
                cmpv = cmp_ref[:, :Ho * Wo]
                s_c = jnp.sum(cmpv, axis=-1, keepdims=True)
                q_c = jnp.sum(cmpv * cmpv, axis=-1, keepdims=True)
                scale_c, shift_c = gn_affine(s_c, q_c, count, b, gm, bt)
                y = leaky(cmpv * scale_c + shift_c)                    # (C, Ho*Wo)

                if last:
                    lat_ref[0] = y
                else:
                    gnx = geo[l + 1]
                    zr = z_refs[l]
                    # Smallest carry buffer: full zero keeps ring + margins
                    # exactly zero every step, then scatter the kept rows into
                    # the interior of the next (smaller) padded grid.
                    zr[...] = jnp.zeros(zr.shape, zr.dtype)
                    for ho in range(Ho):
                        st = gnx['marg'] + (1 + ho) * gnx['Wp'] + 1
                        zr[:, st:st + Wo] = y[:, ho * Wo:(ho + 1) * Wo].astype(zr.dtype)
                    view = view_of(zr)

    return kernel


# ------------------------------ forward wrapper ---------------------------- #

def simvp_encoder(x_nchw, layer_params, strides):
    """Mirrors SimVPEncoder.forward: returns (latent, enc), both NCHW."""
    N, Cin0, H, W = x_nchw.shape
    C = layer_params[0][0].shape[0]
    n_layers = len(strides)
    assert len(layer_params) == n_layers and C % GN_GROUPS == 0
    assert strides[0] == 1, "SimVP's stride_generator always starts with stride 1"
    geo = _geometry(H, W, strides)
    g0, gl = geo[0], geo[-1]
    Cin_pad = ((Cin0 + 7) // 8) * 8

    # Layer-0 input: zero halo ring, flatten the padded grid onto lanes, add
    # +-(Wp+1) lane margins for the shifted-tap reads, pad channels to a
    # sublane multiple, and cast to bf16 (MXU operand dtype).
    xp = jnp.pad(x_nchw, ((0, 0), (0, 0), (1, 1), (1, 1)))
    xz = jnp.pad(xp.reshape(N, Cin0, g0['L']),
                 ((0, 0), (0, Cin_pad - Cin0), (g0['marg'], g0['marg'])))
    xz = xz.astype(jnp.bfloat16)
    Z0 = xz.shape[-1]

    inputs = [xz]
    in_specs = [pl.BlockSpec((1, Cin_pad, Z0), lambda n: (n, 0, 0))]
    for l in range(n_layers):
        w, b, gamma, beta = layer_params[l]
        cin = Cin0 if l == 0 else C
        # (Cout, 9*Cin) -> (9, Cout, Cin), pad layer-0 Cin, cast to bf16.
        wt = w.reshape(C, 9, cin).transpose(1, 0, 2)
        if l == 0 and Cin_pad != Cin0:
            wt = jnp.pad(wt, ((0, 0), (0, 0), (0, Cin_pad - Cin0)))
        wt = wt.astype(jnp.bfloat16)
        aux = _interior_mask(geo[l]) if geo[l]['s'] == 1 else _col_selector(geo[l])
        for arr in (wt, b, gamma, beta, aux):
            inputs.append(arr)
            in_specs.append(pl.BlockSpec(arr.shape,
                                         lambda n, nd=arr.ndim: (0,) * nd))

    lat_len = gl['Ho'] * gl['Wo'] if gl['s'] > 1 else gl['L']
    out_specs = [pl.BlockSpec((1, C, g0['L']), lambda n: (n, 0, 0)),
                 pl.BlockSpec((1, C, lat_len), lambda n: (n, 0, 0))]
    out_shape = (jax.ShapeDtypeStruct((N, C, g0['L']), jnp.float32),
                 jax.ShapeDtypeStruct((N, C, lat_len), jnp.float32))

    # Inter-layer carries in bf16 + one compact f32 scratch for stride-2 rows.
    scratch = [pltpu.VMEM((C, geo[l + 1]['L'] + 2 * geo[l + 1]['marg']),
                          jnp.bfloat16) for l in range(n_layers - 1)]
    s2_layers = [g for g in geo if g['s'] > 1]
    maxcmp = 0
    if s2_layers:
        maxcmp = ((max(g['Ho'] * g['Wo'] for g in s2_layers) + 127) // 128) * 128
        scratch.append(pltpu.VMEM((C, maxcmp), jnp.float32))

    # Scoped-VMEM budget sized to the actual resident buffers (+ headroom).
    def _nbytes(shape, dtype):
        return int(np.prod(shape)) * np.dtype(dtype).itemsize
    vmem_est = 2 * _nbytes((Cin_pad, Z0), jnp.bfloat16)
    vmem_est += 2 * sum(int(a.size) * a.dtype.itemsize for a in inputs[1:])
    vmem_est += 2 * _nbytes((C, g0['L']), jnp.float32)
    vmem_est += 2 * _nbytes((C, lat_len), jnp.float32)
    vmem_est += sum(_nbytes((C, geo[l + 1]['L'] + 2 * geo[l + 1]['marg']),
                            jnp.bfloat16) for l in range(n_layers - 1))
    if s2_layers:
        vmem_est += _nbytes((C, maxcmp), jnp.float32)
    vmem_limit = int(min(max(2 * vmem_est + (4 << 20), 16 << 20), 56 << 20))

    kernel = _make_fused_kernel(geo, C)

    enc_flat, lat_flat = pl.pallas_call(
        kernel,
        grid=(N,),
        in_specs=in_specs,
        out_specs=out_specs,
        out_shape=out_shape,
        scratch_shapes=scratch,
        compiler_params=pltpu.CompilerParams(
            dimension_semantics=("parallel",),       # batch across TensorCores
            vmem_limit_bytes=vmem_limit),
    )(*inputs)

    # Strip the halo ring: pure XLA layout glue; channels-first kernel layout
    # means the result is already NCHW. Stride-2 last layer is already compact.
    enc = enc_flat.reshape(N, C, g0['Hp'], g0['Wp'])[:, :, 1:1 + g0['H'], 1:1 + g0['W']]
    if gl['s'] > 1:
        lat = lat_flat.reshape(N, C, gl['Ho'], gl['Wo'])
    else:
        lat = lat_flat.reshape(N, C, gl['Hp'], gl['Wp'])[:, :, 1:1 + gl['H'], 1:1 + gl['W']]
    return lat, enc


# ----------------------------- params / reference -------------------------- #

def init_layer(key, Cin, Cout):
    kw, kb, kg, kbt = jax.random.split(key, 4)
    # w layout: (Cout, 9*Cin), column index = (ky*3 + kx)*Cin + cin.
    w = 0.1 * jax.random.normal(kw, (Cout, 9 * Cin), jnp.float32)
    b = 0.1 * jax.random.normal(kb, (Cout, 1), jnp.float32)
    gamma = 1.0 + 0.1 * jax.random.normal(kg, (Cout, 1), jnp.float32)
    beta = 0.1 * jax.random.normal(kbt, (Cout, 1), jnp.float32)
    return (w, b, gamma, beta)


def ref_conv_sc(x_nhwc, params, stride):
    """Plain-JAX reference for one ConvSC layer (NHWC in / NHWC out).
    Mirrors the kernel's bf16 MXU operands (bf16 weights/activations, f32
    accumulation); GroupNorm / LeakyReLU in f32."""
    w, b, gamma, beta = params
    Cout = w.shape[0]
    Cin = w.shape[1] // 9
    w_hwio = w.reshape(Cout, 3, 3, Cin).transpose(1, 2, 3, 0)
    xq = x_nhwc.astype(jnp.bfloat16).astype(jnp.float32)
    wq = w_hwio.astype(jnp.bfloat16).astype(jnp.float32)
    y = lax.conv_general_dilated(
        xq, wq, window_strides=(stride, stride),
        padding=((1, 1), (1, 1)),
        dimension_numbers=("NHWC", "HWIO", "NHWC"),
        precision=lax.Precision.HIGHEST)
    y = y + b.reshape(1, 1, 1, Cout)
    N, H, W, Cc = y.shape
    Cg = Cc // GN_GROUPS
    yg = y.reshape(N, H, W, GN_GROUPS, Cg)
    mean = yg.mean(axis=(1, 2, 4), keepdims=True)
    var = ((yg - mean) ** 2).mean(axis=(1, 2, 4), keepdims=True)
    yn = ((yg - mean) / jnp.sqrt(var + GN_EPS)).reshape(N, H, W, Cc)
    yn = yn * gamma.reshape(1, 1, 1, Cc) + beta.reshape(1, 1, 1, Cc)
    return jnp.where(yn > 0, yn, NEG_SLOPE * yn)


# --------------------------------- main ------------------------------------ #

if __name__ == "__main__":
    # TODO(synk): also benchmark at realistic SimVP sizes (H=W=64..128, C=64);
    # the toy size below is overhead-bound and only validates correctness.
    N, Cin, H, W = 2, 4, 16, 16
    inner = 8
    num_strides = 4
    strides = stride_generator(num_strides)            # [1, 2, 1, 2]

    key = jax.random.PRNGKey(0)
    keys = jax.random.split(key, num_strides + 1)
    x = jax.random.normal(keys[0], (N, Cin, H, W), jnp.float32)   # NCHW input

    params = [init_layer(keys[1], Cin, inner)]
    for i in range(1, num_strides):
        params.append(init_layer(keys[i + 1], inner, inner))

    fwd = jax.jit(functools.partial(simvp_encoder, strides=strides))
    latent, enc = fwd(x, params)
    jax.block_until_ready((latent, enc))

    # Pure-JAX reference for numerical validation.
    xh = jnp.transpose(x, (0, 2, 3, 1))
    r_enc = ref_conv_sc(xh, params[0], strides[0])
    r_lat = r_enc
    for p, s in zip(params[1:], strides[1:]):
        r_lat = ref_conv_sc(r_lat, p, s)
    r_enc = jnp.transpose(r_enc, (0, 3, 1, 2))
    r_lat = jnp.transpose(r_lat, (0, 3, 1, 2))

    assert enc.shape == (N, inner, H, W), enc.shape
    assert latent.shape == (N, inner, H // 4, W // 4), latent.shape
    assert jnp.allclose(enc, r_enc, atol=3e-3, rtol=3e-3), \
        float(jnp.max(jnp.abs(enc - r_enc)))
    assert jnp.allclose(latent, r_lat, atol=3e-3, rtol=3e-3), \
        float(jnp.max(jnp.abs(latent - r_lat)))
    print("KERNEL_OK")
</pallas_src>

<mosaic_0001>
module attributes {stable_mosaic.version = 11 : i64} {
  func.func @kernel(%arg0: i32, %arg1: memref<1x8x362xbf16, #tpu.memory_space<vmem>>, %arg2: memref<9x8x8xbf16, #tpu.memory_space<vmem>>, %arg3: memref<8x1xf32, #tpu.memory_space<vmem>>, %arg4: memref<8x1xf32, #tpu.memory_space<vmem>>, %arg5: memref<8x1xf32, #tpu.memory_space<vmem>>, %arg6: memref<1x324xf32, #tpu.memory_space<vmem>>, %arg7: memref<9x8x8xbf16, #tpu.memory_space<vmem>>, %arg8: memref<8x1xf32, #tpu.memory_space<vmem>>, %arg9: memref<8x1xf32, #tpu.memory_space<vmem>>, %arg10: memref<8x1xf32, #tpu.memory_space<vmem>>, %arg11: memref<18x8xf32, #tpu.memory_space<vmem>>, %arg12: memref<9x8x8xbf16, #tpu.memory_space<vmem>>, %arg13: memref<8x1xf32, #tpu.memory_space<vmem>>, %arg14: memref<8x1xf32, #tpu.memory_space<vmem>>, %arg15: memref<8x1xf32, #tpu.memory_space<vmem>>, %arg16: memref<1x100xf32, #tpu.memory_space<vmem>>, %arg17: memref<9x8x8xbf16, #tpu.memory_space<vmem>>, %arg18: memref<8x1xf32, #tpu.memory_space<vmem>>, %arg19: memref<8x1xf32, #tpu.memory_space<vmem>>, %arg20: memref<8x1xf32, #tpu.memory_space<vmem>>, %arg21: memref<10x4xf32, #tpu.memory_space<vmem>>, %arg22: memref<1x8x324xf32, #tpu.memory_space<vmem>>, %arg23: memref<1x8x16xf32, #tpu.memory_space<vmem>>, %arg24: memref<8x362xbf16, #tpu.memory_space<vmem>>, %arg25: memref<8x122xbf16, #tpu.memory_space<vmem>>, %arg26: memref<8x122xbf16, #tpu.memory_space<vmem>>, %arg27: memref<8x128xf32, #tpu.memory_space<vmem>>) attributes {dimension_semantics = [#tpu.dimension_semantics<parallel>], iteration_bounds = array<i64: 2>, scalar_prefetch = 0 : i64, scratch_operands = 4 : i64, tpu.core_type = #tpu.core_type<tc>, window_params = [{transform_indices = @transform_0, window_bounds = array<i64: 1, 8, 362>}, {pipeline_mode = #tpu.pipeline_mode<synchronous>, transform_indices = @transform_1, window_bounds = array<i64: 9, 8, 8>}, {pipeline_mode = #tpu.pipeline_mode<synchronous>, transform_indices = @transform_2, window_bounds = array<i64: 8, 1>}, {pipeline_mode = #tpu.pipeline_mode<synchronous>, transform_indices = @transform_3, window_bounds = array<i64: 8, 1>}, {pipeline_mode = #tpu.pipeline_mode<synchronous>, transform_indices = @transform_4, window_bounds = array<i64: 8, 1>}, {pipeline_mode = #tpu.pipeline_mode<synchronous>, transform_indices = @transform_5, window_bounds = array<i64: 1, 324>}, {pipeline_mode = #tpu.pipeline_mode<synchronous>, transform_indices = @transform_6, window_bounds = array<i64: 9, 8, 8>}, {pipeline_mode = #tpu.pipeline_mode<synchronous>, transform_indices = @transform_7, window_bounds = array<i64: 8, 1>}, {pipeline_mode = #tpu.pipeline_mode<synchronous>, transform_indices = @transform_8, window_bounds = array<i64: 8, 1>}, {pipeline_mode = #tpu.pipeline_mode<synchronous>, transform_indices = @transform_9, window_bounds = array<i64: 8, 1>}, {pipeline_mode = #tpu.pipeline_mode<synchronous>, transform_indices = @transform_10, window_bounds = array<i64: 18, 8>}, {pipeline_mode = #tpu.pipeline_mode<synchronous>, transform_indices = @transform_11, window_bounds = array<i64: 9, 8, 8>}, {pipeline_mode = #tpu.pipeline_mode<synchronous>, transform_indices = @transform_12, window_bounds = array<i64: 8, 1>}, {pipeline_mode = #tpu.pipeline_mode<synchronous>, transform_indices = @transform_13, window_bounds = array<i64: 8, 1>}, {pipeline_mode = #tpu.pipeline_mode<synchronous>, transform_indices = @transform_14, window_bounds = array<i64: 8, 1>}, {pipeline_mode = #tpu.pipeline_mode<synchronous>, transform_indices = @transform_15, window_bounds = array<i64: 1, 100>}, {pipeline_mode = #tpu.pipeline_mode<synchronous>, transform_indices = @transform_16, window_bounds = array<i64: 9, 8, 8>}, {pipeline_mode = #tpu.pipeline_mode<synchronous>, transform_indices = @transform_17, window_bounds = array<i64: 8, 1>}, {pipeline_mode = #tpu.pipeline_mode<synchronous>, transform_indices = @transform_18, window_bounds = array<i64: 8, 1>}, {pipeline_mode = #tpu.pipeline_mode<synchronous>, transform_indices = @transform_19, window_bounds = array<i64: 8, 1>}, {pipeline_mode = #tpu.pipeline_mode<synchronous>, transform_indices = @transform_20, window_bounds = array<i64: 10, 4>}, {transform_indices = @transform_21, window_bounds = array<i64: 1, 8, 324>}, {transform_indices = @transform_22, window_bounds = array<i64: 1, 8, 16>}]} {
    %0 = tpu.iota {dimensions = array<i32: 0>} : vector<8x1xi32>
    %c4_i32 = arith.constant 4 : i32
    %1 = vector.broadcast %c4_i32 : i32 to vector<8x1xi32>
    %2 = arith.cmpi slt, %0, %1 : vector<8x1xi32>
    %3 = arith.extui %2 : vector<8x1xi1> to vector<8x1xi32>
    %4 = arith.sitofp %3 : vector<8x1xi32> to vector<8x1xf32>
    %cst = arith.constant 1.000000e+00 : f32
    %5 = vector.broadcast %cst : f32 to vector<8x1xf32>
    %6 = arith.subf %5, %4 : vector<8x1xf32>
    %c0 = arith.constant 0 : index
    %c0_0 = arith.constant 0 : index
    %7 = vector.load %arg3[%c0, %c0_0] : memref<8x1xf32, #tpu.memory_space<vmem>>, vector<8x1xf32>
    %c0_1 = arith.constant 0 : index
    %c0_2 = arith.constant 0 : index
    %8 = vector.load %arg4[%c0_1, %c0_2] : memref<8x1xf32, #tpu.memory_space<vmem>>, vector<8x1xf32>
    %c0_3 = arith.constant 0 : index
    %c0_4 = arith.constant 0 : index
    %9 = vector.load %arg5[%c0_3, %c0_4] : memref<8x1xf32, #tpu.memory_space<vmem>>, vector<8x1xf32>
    %c0_5 = arith.constant 0 : index
    %c0_6 = arith.constant 0 : index
    %c0_7 = arith.constant 0 : index
    %10 = vector.load %arg2[%c0_5, %c0_6, %c0_7] : memref<9x8x8xbf16, #tpu.memory_space<vmem>>, vector<1x8x8xbf16>
    %11 = vector.shape_cast %10 : vector<1x8x8xbf16> to vector<8x8xbf16>
    %c0_8 = arith.constant 0 : index
    %c0_9 = arith.constant 0 : index
    %c0_10 = arith.constant 0 : index
    %12 = vector.load %arg1[%c0_8, %c0_9, %c0_10] : memref<1x8x362xbf16, #tpu.memory_space<vmem>>, vector<1x8x324xbf16>
    %13 = vector.shape_cast %12 : vector<1x8x324xbf16> to vector<8x324xbf16>
    %cst_11 = arith.constant dense<0.000000e+00> : vector<8x324xf32>
    %14 = tpu.matmul %11, %13, %cst_11 {dimension_numbers = #tpu.dot_dimension_numbers<[1], [0], [0], [1], [0, 0, 1, 1], [], []>} : vector<8x8xbf16>, vector<8x324xbf16>, vector<8x324xf32> -> vector<8x324xf32>
    %c1 = arith.constant 1 : index
    %c0_12 = arith.constant 0 : index
    %c0_13 = arith.constant 0 : index
    %15 = vector.load %arg2[%c1, %c0_12, %c0_13] : memref<9x8x8xbf16, #tpu.memory_space<vmem>>, vector<1x8x8xbf16>
    %16 = vector.shape_cast %15 : vector<1x8x8xbf16> to vector<8x8xbf16>
    %c0_14 = arith.constant 0 : index
    %c0_15 = arith.constant 0 : index
    %c1_16 = arith.constant 1 : index
    %17 = vector.load %arg1[%c0_14, %c0_15, %c1_16] : memref<1x8x362xbf16, #tpu.memory_space<vmem>>, vector<1x8x324xbf16>
    %18 = vector.shape_cast %17 : vector<1x8x324xbf16> to vector<8x324xbf16>
    %cst_17 = arith.constant dense<0.000000e+00> : vector<8x324xf32>
    %19 = tpu.matmul %16, %18, %cst_17 {dimension_numbers = #tpu.dot_dimension_numbers<[1], [0], [0], [1], [0, 0, 1, 1], [], []>} : vector<8x8xbf16>, vector<8x324xbf16>, vector<8x324xf32> -> vector<8x324xf32>
    %20 = arith.addf %14, %19 : vector<8x324xf32>
    %c2 = arith.constant 2 : index
    %c0_18 = arith.constant 0 : index
    %c0_19 = arith.constant 0 : index
    %21 = vector.load %arg2[%c2, %c0_18, %c0_19] : memref<9x8x8xbf16, #tpu.memory_space<vmem>>, vector<1x8x8xbf16>
    %22 = vector.shape_cast %21 : vector<1x8x8xbf16> to vector<8x8xbf16>
    %c0_20 = arith.constant 0 : index
    %c0_21 = arith.constant 0 : index
    %c2_22 = arith.constant 2 : index
    %23 = vector.load %arg1[%c0_20, %c0_21, %c2_22] : memref<1x8x362xbf16, #tpu.memory_space<vmem>>, vector<1x8x324xbf16>
    %24 = vector.shape_cast %23 : vector<1x8x324xbf16> to vector<8x324xbf16>
    %cst_23 = arith.constant dense<0.000000e+00> : vector<8x324xf32>
    %25 = tpu.matmul %22, %24, %cst_23 {dimension_numbers = #tpu.dot_dimension_numbers<[1], [0], [0], [1], [0, 0, 1, 1], [], []>} : vector<8x8xbf16>, vector<8x324xbf16>, vector<8x324xf32> -> vector<8x324xf32>
    %26 = arith.addf %20, %25 : vector<8x324xf32>
    %c3 = arith.constant 3 : index
    %c0_24 = arith.constant 0 : index
    %c0_25 = arith.constant 0 : index
    %27 = vector.load %arg2[%c3, %c0_24, %c0_25] : memref<9x8x8xbf16, #tpu.memory_space<vmem>>, vector<1x8x8xbf16>
    %28 = vector.shape_cast %27 : vector<1x8x8xbf16> to vector<8x8xbf16>
    %c0_26 = arith.constant 0 : index
    %c0_27 = arith.constant 0 : index
    %c18 = arith.constant 18 : index
    %29 = vector.load %arg1[%c0_26, %c0_27, %c18] : memref<1x8x362xbf16, #tpu.memory_space<vmem>>, vector<1x8x324xbf16>
    %30 = vector.shape_cast %29 : vector<1x8x324xbf16> to vector<8x324xbf16>
    %cst_28 = arith.constant dense<0.000000e+00> : vector<8x324xf32>
    %31 = tpu.matmul %28, %30, %cst_28 {dimension_numbers = #tpu.dot_dimension_numbers<[1], [0], [0], [1], [0, 0, 1, 1], [], []>} : vector<8x8xbf16>, vector<8x324xbf16>, vector<8x324xf32> -> vector<8x324xf32>
    %32 = arith.addf %26, %31 : vector<8x324xf32>
    %c4 = arith.constant 4 : index
    %c0_29 = arith.constant 0 : index
    %c0_30 = arith.constant 0 : index
    %33 = vector.load %arg2[%c4, %c0_29, %c0_30] : memref<9x8x8xbf16, #tpu.memory_space<vmem>>, vector<1x8x8xbf16>
    %34 = vector.shape_cast %33 : vector<1x8x8xbf16> to vector<8x8xbf16>
    %c0_31 = arith.constant 0 : index
    %c0_32 = arith.constant 0 : index
    %c19 = arith.constant 19 : index
    %35 = vector.load %arg1[%c0_31, %c0_32, %c19] : memref<1x8x362xbf16, #tpu.memory_space<vmem>>, vector<1x8x324xbf16>
    %36 = vector.shape_cast %35 : vector<1x8x324xbf16> to vector<8x324xbf16>
    %cst_33 = arith.constant dense<0.000000e+00> : vector<8x324xf32>
    %37 = tpu.matmul %34, %36, %cst_33 {dimension_numbers = #tpu.dot_dimension_numbers<[1], [0], [0], [1], [0, 0, 1, 1], [], []>} : vector<8x8xbf16>, vector<8x324xbf16>, vector<8x324xf32> -> vector<8x324xf32>
    %38 = arith.addf %32, %37 : vector<8x324xf32>
    %c5 = arith.constant 5 : index
    %c0_34 = arith.constant 0 : index
    %c0_35 = arith.constant 0 : index
    %39 = vector.load %arg2[%c5, %c0_34, %c0_35] : memref<9x8x8xbf16, #tpu.memory_space<vmem>>, vector<1x8x8xbf16>
    %40 = vector.shape_cast %39 : vector<1x8x8xbf16> to vector<8x8xbf16>
    %c0_36 = arith.constant 0 : index
    %c0_37 = arith.constant 0 : index
    %c20 = arith.constant 20 : index
    %41 = vector.load %arg1[%c0_36, %c0_37, %c20] : memref<1x8x362xbf16, #tpu.memory_space<vmem>>, vector<1x8x324xbf16>
    %42 = vector.shape_cast %41 : vector<1x8x324xbf16> to vector<8x324xbf16>
    %cst_38 = arith.constant dense<0.000000e+00> : vector<8x324xf32>
    %43 = tpu.matmul %40, %42, %cst_38 {dimension_numbers = #tpu.dot_dimension_numbers<[1], [0], [0], [1], [0, 0, 1, 1], [], []>} : vector<8x8xbf16>, vector<8x324xbf16>, vector<8x324xf32> -> vector<8x324xf32>
    %44 = arith.addf %38, %43 : vector<8x324xf32>
    %c6 = arith.constant 6 : index
    %c0_39 = arith.constant 0 : index
    %c0_40 = arith.constant 0 : index
    %45 = vector.load %arg2[%c6, %c0_39, %c0_40] : memref<9x8x8xbf16, #tpu.memory_space<vmem>>, vector<1x8x8xbf16>
    %46 = vector.shape_cast %45 : vector<1x8x8xbf16> to vector<8x8xbf16>
    %c0_41 = arith.constant 0 : index
    %c0_42 = arith.constant 0 : index
    %c36 = arith.constant 36 : index
    %47 = vector.load %arg1[%c0_41, %c0_42, %c36] : memref<1x8x362xbf16, #tpu.memory_space<vmem>>, vector<1x8x324xbf16>
    %48 = vector.shape_cast %47 : vector<1x8x324xbf16> to vector<8x324xbf16>
    %cst_43 = arith.constant dense<0.000000e+00> : vector<8x324xf32>
    %49 = tpu.matmul %46, %48, %cst_43 {dimension_numbers = #tpu.dot_dimension_numbers<[1], [0], [0], [1], [0, 0, 1, 1], [], []>} : vector<8x8xbf16>, vector<8x324xbf16>, vector<8x324xf32> -> vector<8x324xf32>
    %50 = arith.addf %44, %49 : vector<8x324xf32>
    %c7 = arith.constant 7 : index
    %c0_44 = arith.constant 0 : index
    %c0_45 = arith.constant 0 : index
    %51 = vector.load %arg2[%c7, %c0_44, %c0_45] : memref<9x8x8xbf16, #tpu.memory_space<vmem>>, vector<1x8x8xbf16>
    %52 = vector.shape_cast %51 : vector<1x8x8xbf16> to vector<8x8xbf16>
    %c0_46 = arith.constant 0 : index
    %c0_47 = arith.constant 0 : index
    %c37 = arith.constant 37 : index
    %53 = vector.load %arg1[%c0_46, %c0_47, %c37] : memref<1x8x362xbf16, #tpu.memory_space<vmem>>, vector<1x8x324xbf16>
    %54 = vector.shape_cast %53 : vector<1x8x324xbf16> to vector<8x324xbf16>
    %cst_48 = arith.constant dense<0.000000e+00> : vector<8x324xf32>
    %55 = tpu.matmul %52, %54, %cst_48 {dimension_numbers = #tpu.dot_dimension_numbers<[1], [0], [0], [1], [0, 0, 1, 1], [], []>} : vector<8x8xbf16>, vector<8x324xbf16>, vector<8x324xf32> -> vector<8x324xf32>
    %56 = arith.addf %50, %55 : vector<8x324xf32>
    %c8 = arith.constant 8 : index
    %c0_49 = arith.constant 0 : index
    %c0_50 = arith.constant 0 : index
    %57 = vector.load %arg2[%c8, %c0_49, %c0_50] : memref<9x8x8xbf16, #tpu.memory_space<vmem>>, vector<1x8x8xbf16>
    %58 = vector.shape_cast %57 : vector<1x8x8xbf16> to vector<8x8xbf16>
    %c0_51 = arith.constant 0 : index
    %c0_52 = arith.constant 0 : index
    %c38 = arith.constant 38 : index
    %59 = vector.load %arg1[%c0_51, %c0_52, %c38] : memref<1x8x362xbf16, #tpu.memory_space<vmem>>, vector<1x8x324xbf16>
    %60 = vector.shape_cast %59 : vector<1x8x324xbf16> to vector<8x324xbf16>
    %cst_53 = arith.constant dense<0.000000e+00> : vector<8x324xf32>
    %61 = tpu.matmul %58, %60, %cst_53 {dimension_numbers = #tpu.dot_dimension_numbers<[1], [0], [0], [1], [0, 0, 1, 1], [], []>} : vector<8x8xbf16>, vector<8x324xbf16>, vector<8x324xf32> -> vector<8x324xf32>
    %62 = arith.addf %56, %61 : vector<8x324xf32>
    %c0_54 = arith.constant 0 : index
    %c0_55 = arith.constant 0 : index
    %63 = vector.load %arg6[%c0_54, %c0_55] : memref<1x324xf32, #tpu.memory_space<vmem>>, vector<1x324xf32>
    %cst_56 = arith.constant 5.000000e-01 : f32
    %64 = vector.broadcast %cst_56 : f32 to vector<1x324xf32>
    %65 = arith.cmpf ogt, %63, %64 : vector<1x324xf32>
    %cst_57 = arith.constant 0.000000e+00 : f32
    %66 = vector.shape_cast %65 : vector<1x324xi1> to vector<1x324xi1>
    %67 = vector.broadcast %66 : vector<1x324xi1> to vector<8x324xi1>
    %68 = vector.broadcast %cst_57 : f32 to vector<8x324xf32>
    %69 = arith.select %67, %62, %68 : vector<8x324xi1>, vector<8x324xf32>
    %cst_58 = arith.constant dense<0.000000e+00> : vector<8xf32>
    %70 = vector.multi_reduction <add>, %69, %cst_58 [1] : vector<8x324xf32> to vector<8xf32>
    %71 = vector.shape_cast %70 : vector<8xf32> to vector<8x1xf32>
    %72 = arith.mulf %69, %69 : vector<8x324xf32>
    %cst_59 = arith.constant dense<0.000000e+00> : vector<8xf32>
    %73 = vector.multi_reduction <add>, %72, %cst_59 [1] : vector<8x324xf32> to vector<8xf32>
    %74 = vector.shape_cast %73 : vector<8xf32> to vector<8x1xf32>
    %cst_60 = arith.constant 2.560000e+02 : f32
    %75 = vector.broadcast %cst_60 : f32 to vector<8x1xf32>
    %76 = arith.mulf %75, %7 : vector<8x1xf32>
    %77 = arith.addf %71, %76 : vector<8x1xf32>
    %cst_61 = arith.constant 2.000000e+00 : f32
    %78 = vector.broadcast %cst_61 : f32 to vector<8x1xf32>
    %79 = arith.mulf %78, %7 : vector<8x1xf32>
    %80 = arith.mulf %79, %71 : vector<8x1xf32>
    %81 = arith.addf %74, %80 : vector<8x1xf32>
    %82 = arith.mulf %76, %7 : vector<8x1xf32>
    %83 = arith.addf %81, %82 : vector<8x1xf32>
    %84 = arith.mulf %77, %4 : vector<8x1xf32>
    %85 = vector.shape_cast %84 : vector<8x1xf32> to vector<1x8x1xf32>
    %cst_62 = arith.constant dense<0.000000e+00> : vector<1xf32>
    %86 = vector.multi_reduction <add>, %85, %cst_62 [1, 2] : vector<1x8x1xf32> to vector<1xf32>
    %87 = vector.shape_cast %86 : vector<1xf32> to vector<1x1x1xf32>
    %88 = vector.extract %87[0, 0, 0] : f32 from vector<1x1x1xf32>
    %89 = vector.broadcast %88 : f32 to vector<1x1xf32>
    %90 = arith.mulf %77, %6 : vector<8x1xf32>
    %91 = vector.shape_cast %90 : vector<8x1xf32> to vector<1x8x1xf32>
    %cst_63 = arith.constant dense<0.000000e+00> : vector<1xf32>
    %92 = vector.multi_reduction <add>, %91, %cst_63 [1, 2] : vector<1x8x1xf32> to vector<1xf32>
    %93 = vector.shape_cast %92 : vector<1xf32> to vector<1x1x1xf32>
    %94 = vector.extract %93[0, 0, 0] : f32 from vector<1x1x1xf32>
    %95 = vector.broadcast %94 : f32 to vector<1x1xf32>
    %96 = arith.mulf %83, %4 : vector<8x1xf32>
    %97 = vector.shape_cast %96 : vector<8x1xf32> to vector<1x8x1xf32>
    %cst_64 = arith.constant dense<0.000000e+00> : vector<1xf32>
    %98 = vector.multi_reduction <add>, %97, %cst_64 [1, 2] : vector<1x8x1xf32> to vector<1xf32>
    %99 = vector.shape_cast %98 : vector<1xf32> to vector<1x1x1xf32>
    %100 = vector.extract %99[0, 0, 0] : f32 from vector<1x1x1xf32>
    %101 = vector.broadcast %100 : f32 to vector<1x1xf32>
    %102 = arith.mulf %83, %6 : vector<8x1xf32>
    %103 = vector.shape_cast %102 : vector<8x1xf32> to vector<1x8x1xf32>
    %cst_65 = arith.constant dense<0.000000e+00> : vector<1xf32>
    %104 = vector.multi_reduction <add>, %103, %cst_65 [1, 2] : vector<1x8x1xf32> to vector<1xf32>
    %105 = vector.shape_cast %104 : vector<1xf32> to vector<1x1x1xf32>
    %106 = vector.extract %105[0, 0, 0] : f32 from vector<1x1x1xf32>
    %107 = vector.broadcast %106 : f32 to vector<1x1xf32>
    %cst_66 = arith.constant 9.765625E-4 : f32
    %108 = vector.broadcast %cst_66 : f32 to vector<1x1xf32>
    %109 = arith.mulf %89, %108 : vector<1x1xf32>
    %cst_67 = arith.constant 9.765625E-4 : f32
    %110 = vector.broadcast %cst_67 : f32 to vector<1x1xf32>
    %111 = arith.mulf %95, %110 : vector<1x1xf32>
    %cst_68 = arith.constant 9.765625E-4 : f32
    %112 = vector.broadcast %cst_68 : f32 to vector<1x1xf32>
    %113 = arith.mulf %101, %112 : vector<1x1xf32>
    %114 = arith.mulf %109, %109 : vector<1x1xf32>
    %115 = arith.subf %113, %114 : vector<1x1xf32>
    %cst_69 = arith.constant 0.000000e+00 : f32
    %116 = vector.broadcast %cst_69 : f32 to vector<1x1xf32>
    %117 = arith.maximumf %115, %116 : vector<1x1xf32>
    %cst_70 = arith.constant 9.765625E-4 : f32
    %118 = vector.broadcast %cst_70 : f32 to vector<1x1xf32>
    %119 = arith.mulf %107, %118 : vector<1x1xf32>
    %120 = arith.mulf %111, %111 : vector<1x1xf32>
    %121 = arith.subf %119, %120 : vector<1x1xf32>
    %cst_71 = arith.constant 0.000000e+00 : f32
    %122 = vector.broadcast %cst_71 : f32 to vector<1x1xf32>
    %123 = arith.maximumf %121, %122 : vector<1x1xf32>
    %cst_72 = arith.constant 9.99999974E-6 : f32
    %124 = vector.broadcast %cst_72 : f32 to vector<1x1xf32>
    %125 = arith.addf %117, %124 : vector<1x1xf32>
    %126 = math.rsqrt %125 : vector<1x1xf32>
    %cst_73 = arith.constant 9.99999974E-6 : f32
    %127 = vector.broadcast %cst_73 : f32 to vector<1x1xf32>
    %128 = arith.addf %123, %127 : vector<1x1xf32>
    %129 = math.rsqrt %128 : vector<1x1xf32>
    %130 = vector.broadcast %109 : vector<1x1xf32> to vector<8x1xf32>
    %131 = arith.mulf %4, %130 : vector<8x1xf32>
    %132 = vector.broadcast %111 : vector<1x1xf32> to vector<8x1xf32>
    %133 = arith.mulf %6, %132 : vector<8x1xf32>
    %134 = arith.addf %131, %133 : vector<8x1xf32>
    %135 = vector.broadcast %126 : vector<1x1xf32> to vector<8x1xf32>
    %136 = arith.mulf %4, %135 : vector<8x1xf32>
    %137 = vector.broadcast %129 : vector<1x1xf32> to vector<8x1xf32>
    %138 = arith.mulf %6, %137 : vector<8x1xf32>
    %139 = arith.addf %136, %138 : vector<8x1xf32>
    %140 = arith.mulf %139, %8 : vector<8x1xf32>
    %141 = arith.subf %7, %134 : vector<8x1xf32>
    %142 = arith.mulf %141, %140 : vector<8x1xf32>
    %143 = arith.addf %142, %9 : vector<8x1xf32>
    %144 = vector.broadcast %140 : vector<8x1xf32> to vector<8x324xf32>
    %145 = arith.mulf %62, %144 : vector<8x324xf32>
    %146 = vector.broadcast %143 : vector<8x1xf32> to vector<8x324xf32>
    %147 = arith.addf %145, %146 : vector<8x324xf32>
    %cst_74 = arith.constant 0.000000e+00 : f32
    %148 = vector.broadcast %cst_74 : f32 to vector<8x324xf32>
    %149 = arith.cmpf ogt, %147, %148 : vector<8x324xf32>
    %cst_75 = arith.constant 2.000000e-01 : f32
    %150 = vector.broadcast %cst_75 : f32 to vector<8x324xf32>
    %151 = arith.mulf %150, %147 : vector<8x324xf32>
    %152 = arith.select %149, %147, %151 : vector<8x324xi1>, vector<8x324xf32>
    %cst_76 = arith.constant 0.000000e+00 : f32
    %153 = vector.shape_cast %65 : vector<1x324xi1> to vector<1x324xi1>
    %154 = vector.broadcast %153 : vector<1x324xi1> to vector<8x324xi1>
    %155 = vector.broadcast %cst_76 : f32 to vector<8x324xf32>
    %156 = arith.select %154, %152, %155 : vector<8x324xi1>, vector<8x324xf32>
    %c0_77 = arith.constant 0 : index
    %c0_78 = arith.constant 0 : index
    %c0_79 = arith.constant 0 : index
    %157 = vector.load %arg22[%c0_77, %c0_78, %c0_79] : memref<1x8x324xf32, #tpu.memory_space<vmem>>, vector<1x8x324xf32>
    %158 = vector.shape_cast %157 : vector<1x8x324xf32> to vector<8x324xf32>
    %159 = vector.shape_cast %156 : vector<8x324xf32> to vector<1x8x324xf32>
    tpu.vector_store %arg22[%c0_77, %c0_78, %c0_79], %159 {strides = array<i32>} : memref<1x8x324xf32, #tpu.memory_space<vmem>>, vector<1x8x324xf32>,
    %cst_80 = arith.constant 0.000000e+00 : bf16
    %160 = vector.broadcast %cst_80 : bf16 to vector<8x19xbf16>
    %c0_81 = arith.constant 0 : index
    %c0_82 = arith.constant 0 : index
    %161 = vector.load %arg24[%c0_81, %c0_82] : memref<8x362xbf16, #tpu.memory_space<vmem>>, vector<8x19xbf16>
    tpu.vector_store %arg24[%c0_81, %c0_82], %160 {strides = array<i32>} : memref<8x362xbf16, #tpu.memory_space<vmem>>, vector<8x19xbf16>,
    %c0_83 = arith.constant 0 : index
    %c343 = arith.constant 343 : index
    %162 = vector.load %arg24[%c0_83, %c343] : memref<8x362xbf16, #tpu.memory_space<vmem>>, vector<8x19xbf16>
    tpu.vector_store %arg24[%c0_83, %c343], %160 {strides = array<i32>} : memref<8x362xbf16, #tpu.memory_space<vmem>>, vector<8x19xbf16>,
    %163 = arith.truncf %156 : vector<8x324xf32> to vector<8x324xbf16>
    %c0_84 = arith.constant 0 : index
    %c19_85 = arith.constant 19 : index
    %164 = vector.load %arg24[%c0_84, %c19_85] : memref<8x362xbf16, #tpu.memory_space<vmem>>, vector<8x324xbf16>
    tpu.vector_store %arg24[%c0_84, %c19_85], %163 {strides = array<i32>} : memref<8x362xbf16, #tpu.memory_space<vmem>>, vector<8x324xbf16>,
    %c0_86 = arith.constant 0 : index
    %c0_87 = arith.constant 0 : index
    %165 = vector.load %arg8[%c0_86, %c0_87] : memref<8x1xf32, #tpu.memory_space<vmem>>, vector<8x1xf32>
    %c0_88 = arith.constant 0 : index
    %c0_89 = arith.constant 0 : index
    %166 = vector.load %arg9[%c0_88, %c0_89] : memref<8x1xf32, #tpu.memory_space<vmem>>, vector<8x1xf32>
    %c0_90 = arith.constant 0 : index
    %c0_91 = arith.constant 0 : index
    %167 = vector.load %arg10[%c0_90, %c0_91] : memref<8x1xf32, #tpu.memory_space<vmem>>, vector<8x1xf32>
    %c0_92 = arith.constant 0 : index
    %c0_93 = arith.constant 0 : index
    %c0_94 = arith.constant 0 : index
    %168 = vector.load %arg7[%c0_92, %c0_93, %c0_94] : memref<9x8x8xbf16, #tpu.memory_space<vmem>>, vector<1x8x8xbf16>
    %169 = vector.shape_cast %168 : vector<1x8x8xbf16> to vector<8x8xbf16>
    %c0_95 = arith.constant 0 : index
    %c18_96 = arith.constant 18 : index
    %170 = vector.load %arg24[%c0_95, %c18_96] : memref<8x362xbf16, #tpu.memory_space<vmem>>, vector<8x18xbf16>
    %cst_97 = arith.constant dense<0.000000e+00> : vector<8x18xf32>
    %171 = tpu.matmul %169, %170, %cst_97 {dimension_numbers = #tpu.dot_dimension_numbers<[1], [0], [0], [1], [0, 0, 1, 1], [], []>} : vector<8x8xbf16>, vector<8x18xbf16>, vector<8x18xf32> -> vector<8x18xf32>
    %c1_98 = arith.constant 1 : index
    %c0_99 = arith.constant 0 : index
    %c0_100 = arith.constant 0 : index
    %172 = vector.load %arg7[%c1_98, %c0_99, %c0_100] : memref<9x8x8xbf16, #tpu.memory_space<vmem>>, vector<1x8x8xbf16>
    %173 = vector.shape_cast %172 : vector<1x8x8xbf16> to vector<8x8xbf16>
    %c0_101 = arith.constant 0 : index
    %c19_102 = arith.constant 19 : index
    %174 = vector.load %arg24[%c0_101, %c19_102] : memref<8x362xbf16, #tpu.memory_space<vmem>>, vector<8x18xbf16>
    %cst_103 = arith.constant dense<0.000000e+00> : vector<8x18xf32>
    %175 = tpu.matmul %173, %174, %cst_103 {dimension_numbers = #tpu.dot_dimension_numbers<[1], [0], [0], [1], [0, 0, 1, 1], [], []>} : vector<8x8xbf16>, vector<8x18xbf16>, vector<8x18xf32> -> vector<8x18xf32>
    %176 = arith.addf %171, %175 : vector<8x18xf32>
    %c2_104 = arith.constant 2 : index
    %c0_105 = arith.constant 0 : index
    %c0_106 = arith.constant 0 : index
    %177 = vector.load %arg7[%c2_104, %c0_105, %c0_106] : memref<9x8x8xbf16, #tpu.memory_space<vmem>>, vector<1x8x8xbf16>
    %178 = vector.shape_cast %177 : vector<1x8x8xbf16> to vector<8x8xbf16>
    %c0_107 = arith.constant 0 : index
    %c20_108 = arith.constant 20 : index
    %179 = vector.load %arg24[%c0_107, %c20_108] : memref<8x362xbf16, #tpu.memory_space<vmem>>, vector<8x18xbf16>
    %cst_109 = arith.constant dense<0.000000e+00> : vector<8x18xf32>
    %180 = tpu.matmul %178, %179, %cst_109 {dimension_numbers = #tpu.dot_dimension_numbers<[1], [0], [0], [1], [0, 0, 1, 1], [], []>} : vector<8x8xbf16>, vector<8x18xbf16>, vector<8x18xf32> -> vector<8x18xf32>
    %181 = arith.addf %176, %180 : vector<8x18xf32>
    %c3_110 = arith.constant 3 : index
    %c0_111 = arith.constant 0 : index
    %c0_112 = arith.constant 0 : index
    %182 = vector.load %arg7[%c3_110, %c0_111, %c0_112] : memref<9x8x8xbf16, #tpu.memory_space<vmem>>, vector<1x8x8xbf16>
    %183 = vector.shape_cast %182 : vector<1x8x8xbf16> to vector<8x8xbf16>
    %c0_113 = arith.constant 0 : index
    %c36_114 = arith.constant 36 : index
    %184 = vector.load %arg24[%c0_113, %c36_114] : memref<8x362xbf16, #tpu.memory_space<vmem>>, vector<8x18xbf16>
    %cst_115 = arith.constant dense<0.000000e+00> : vector<8x18xf32>
    %185 = tpu.matmul %183, %184, %cst_115 {dimension_numbers = #tpu.dot_dimension_numbers<[1], [0], [0], [1], [0, 0, 1, 1], [], []>} : vector<8x8xbf16>, vector<8x18xbf16>, vector<8x18xf32> -> vector<8x18xf32>
    %186 = arith.addf %181, %185 : vector<8x18xf32>
    %c4_116 = arith.constant 4 : index
    %c0_117 = arith.constant 0 : index
    %c0_118 = arith.constant 0 : index
    %187 = vector.load %arg7[%c4_116, %c0_117, %c0_118] : memref<9x8x8xbf16, #tpu.memory_space<vmem>>, vector<1x8x8xbf16>
    %188 = vector.shape_cast %187 : vector<1x8x8xbf16> to vector<8x8xbf16>
    %c0_119 = arith.constant 0 : index
    %c37_120 = arith.constant 37 : index
    %189 = vector.load %arg24[%c0_119, %c37_120] : memref<8x362xbf16, #tpu.memory_space<vmem>>, vector<8x18xbf16>
    %cst_121 = arith.constant dense<0.000000e+00> : vector<8x18xf32>
    %190 = tpu.matmul %188, %189, %cst_121 {dimension_numbers = #tpu.dot_dimension_numbers<[1], [0], [0], [1], [0, 0, 1, 1], [], []>} : vector<8x8xbf16>, vector<8x18xbf16>, vector<8x18xf32> -> vector<8x18xf32>
    %191 = arith.addf %186, %190 : vector<8x18xf32>
    %c5_122 = arith.constant 5 : index
    %c0_123 = arith.constant 0 : index
    %c0_124 = arith.constant 0 : index
    %192 = vector.load %arg7[%c5_122, %c0_123, %c0_124] : memref<9x8x8xbf16, #tpu.memory_space<vmem>>, vector<1x8x8xbf16>
    %193 = vector.shape_cast %192 : vector<1x8x8xbf16> to vector<8x8xbf16>
    %c0_125 = arith.constant 0 : index
    %c38_126 = arith.constant 38 : index
    %194 = vector.load %arg24[%c0_125, %c38_126] : memref<8x362xbf16, #tpu.memory_space<vmem>>, vector<8x18xbf16>
    %cst_127 = arith.constant dense<0.000000e+00> : vector<8x18xf32>
    %195 = tpu.matmul %193, %194, %cst_127 {dimension_numbers = #tpu.dot_dimension_numbers<[1], [0], [0], [1], [0, 0, 1, 1], [], []>} : vector<8x8xbf16>, vector<8x18xbf16>, vector<8x18xf32> -> vector<8x18xf32>
    %196 = arith.addf %191, %195 : vector<8x18xf32>
    %c6_128 = arith.constant 6 : index
    %c0_129 = arith.constant 0 : index
    %c0_130 = arith.constant 0 : index
    %197 = vector.load %arg7[%c6_128, %c0_129, %c0_130] : memref<9x8x8xbf16, #tpu.memory_space<vmem>>, vector<1x8x8xbf16>
    %198 = vector.shape_cast %197 : vector<1x8x8xbf16> to vector<8x8xbf16>
    %c0_131 = arith.constant 0 : index
    %c54 = arith.constant 54 : index
    %199 = vector.load %arg24[%c0_131, %c54] : memref<8x362xbf16, #tpu.memory_space<vmem>>, vector<8x18xbf16>
    %cst_132 = arith.constant dense<0.000000e+00> : vector<8x18xf32>
    %200 = tpu.matmul %198, %199, %cst_132 {dimension_numbers = #tpu.dot_dimension_numbers<[1], [0], [0], [1], [0, 0, 1, 1], [], []>} : vector<8x8xbf16>, vector<8x18xbf16>, vector<8x18xf32> -> vector<8x18xf32>
    %201 = arith.addf %196, %200 : vector<8x18xf32>
    %c7_133 = arith.constant 7 : index
    %c0_134 = arith.constant 0 : index
    %c0_135 = arith.constant 0 : index
    %202 = vector.load %arg7[%c7_133, %c0_134, %c0_135] : memref<9x8x8xbf16, #tpu.memory_space<vmem>>, vector<1x8x8xbf16>
    %203 = vector.shape_cast %202 : vector<1x8x8xbf16> to vector<8x8xbf16>
    %c0_136 = arith.constant 0 : index
    %c55 = arith.constant 55 : index
    %204 = vector.load %arg24[%c0_136, %c55] : memref<8x362xbf16, #tpu.memory_space<vmem>>, vector<8x18xbf16>
    %cst_137 = arith.constant dense<0.000000e+00> : vector<8x18xf32>
    %205 = tpu.matmul %203, %204, %cst_137 {dimension_numbers = #tpu.dot_dimension_numbers<[1], [0], [0], [1], [0, 0, 1, 1], [], []>} : vector<8x8xbf16>, vector<8x18xbf16>, vector<8x18xf32> -> vector<8x18xf32>
    %206 = arith.addf %201, %205 : vector<8x18xf32>
    %c8_138 = arith.constant 8 : index
    %c0_139 = arith.constant 0 : index
    %c0_140 = arith.constant 0 : index
    %207 = vector.load %arg7[%c8_138, %c0_139, %c0_140] : memref<9x8x8xbf16, #tpu.memory_space<vmem>>, vector<1x8x8xbf16>
    %208 = vector.shape_cast %207 : vector<1x8x8xbf16> to vector<8x8xbf16>
    %c0_141 = arith.constant 0 : index
    %c56 = arith.constant 56 : index
    %209 = vector.load %arg24[%c0_141, %c56] : memref<8x362xbf16, #tpu.memory_space<vmem>>, vector<8x18xbf16>
    %cst_142 = arith.constant dense<0.000000e+00> : vector<8x18xf32>
    %210 = tpu.matmul %208, %209, %cst_142 {dimension_numbers = #tpu.dot_dimension_numbers<[1], [0], [0], [1], [0, 0, 1, 1], [], []>} : vector<8x8xbf16>, vector<8x18xbf16>, vector<8x18xf32> -> vector<8x18xf32>
    %211 = arith.addf %206, %210 : vector<8x18xf32>
    %c0_143 = arith.constant 0 : index
    %c0_144 = arith.constant 0 : index
    %212 = vector.load %arg11[%c0_143, %c0_144] : memref<18x8xf32, #tpu.memory_space<vmem>>, vector<18x8xf32>
    %cst_145 = arith.constant dense<0.000000e+00> : vector<8x8xf32>
    %213 = tpu.matmul %211, %212, %cst_145 {dimension_numbers = #tpu.dot_dimension_numbers<[1], [0], [0], [1], [0, 0, 1, 1], [], []>} : vector<8x18xf32>, vector<18x8xf32>, vector<8x8xf32> -> vector<8x8xf32>
    %c0_146 = arith.constant 0 : index
    %c0_147 = arith.constant 0 : index
    %214 = vector.load %arg27[%c0_146, %c0_147] : memref<8x128xf32, #tpu.memory_space<vmem>>, vector<8x8xf32>
    tpu.vector_store %arg27[%c0_146, %c0_147], %213 {strides = array<i32>} : memref<8x128xf32, #tpu.memory_space<vmem>>, vector<8x8xf32>,
    %c0_148 = arith.constant 0 : index
    %c0_149 = arith.constant 0 : index
    %c0_150 = arith.constant 0 : index
    %215 = vector.load %arg7[%c0_148, %c0_149, %c0_150] : memref<9x8x8xbf16, #tpu.memory_space<vmem>>, vector<1x8x8xbf16>
    %216 = vector.shape_cast %215 : vector<1x8x8xbf16> to vector<8x8xbf16>
    %c0_151 = arith.constant 0 : index
    %c54_152 = arith.constant 54 : index
    %217 = vector.load %arg24[%c0_151, %c54_152] : memref<8x362xbf16, #tpu.memory_space<vmem>>, vector<8x18xbf16>
    %cst_153 = arith.constant dense<0.000000e+00> : vector<8x18xf32>
    %218 = tpu.matmul %216, %217, %cst_153 {dimension_numbers = #tpu.dot_dimension_numbers<[1], [0], [0], [1], [0, 0, 1, 1], [], []>} : vector<8x8xbf16>, vector<8x18xbf16>, vector<8x18xf32> -> vector<8x18xf32>
    %c1_154 = arith.constant 1 : index
    %c0_155 = arith.constant 0 : index
    %c0_156 = arith.constant 0 : index
    %219 = vector.load %arg7[%c1_154, %c0_155, %c0_156] : memref<9x8x8xbf16, #tpu.memory_space<vmem>>, vector<1x8x8xbf16>
    %220 = vector.shape_cast %219 : vector<1x8x8xbf16> to vector<8x8xbf16>
    %c0_157 = arith.constant 0 : index
    %c55_158 = arith.constant 55 : index
    %221 = vector.load %arg24[%c0_157, %c55_158] : memref<8x362xbf16, #tpu.memory_space<vmem>>, vector<8x18xbf16>
    %cst_159 = arith.constant dense<0.000000e+00> : vector<8x18xf32>
    %222 = tpu.matmul %220, %221, %cst_159 {dimension_numbers = #tpu.dot_dimension_numbers<[1], [0], [0], [1], [0, 0, 1, 1], [], []>} : vector<8x8xbf16>, vector<8x18xbf16>, vector<8x18xf32> -> vector<8x18xf32>
    %223 = arith.addf %218, %222 : vector<8x18xf32>
    %c2_160 = arith.constant 2 : index
    %c0_161 = arith.constant 0 : index
    %c0_162 = arith.constant 0 : index
    %224 = vector.load %arg7[%c2_160, %c0_161, %c0_162] : memref<9x8x8xbf16, #tpu.memory_space<vmem>>, vector<1x8x8xbf16>
    %225 = vector.shape_cast %224 : vector<1x8x8xbf16> to vector<8x8xbf16>
    %c0_163 = arith.constant 0 : index
    %c56_164 = arith.constant 56 : index
    %226 = vector.load %arg24[%c0_163, %c56_164] : memref<8x362xbf16, #tpu.memory_space<vmem>>, vector<8x18xbf16>
    %cst_165 = arith.constant dense<0.000000e+00> : vector<8x18xf32>
    %227 = tpu.matmul %225, %226, %cst_165 {dimension_numbers = #tpu.dot_dimension_numbers<[1], [0], [0], [1], [0, 0, 1, 1], [], []>} : vector<8x8xbf16>, vector<8x18xbf16>, vector<8x18xf32> -> vector<8x18xf32>
    %228 = arith.addf %223, %227 : vector<8x18xf32>
    %c3_166 = arith.constant 3 : index
    %c0_167 = arith.constant 0 : index
    %c0_168 = arith.constant 0 : index
    %229 = vector.load %arg7[%c3_166, %c0_167, %c0_168] : memref<9x8x8xbf16, #tpu.memory_space<vmem>>, vector<1x8x8xbf16>
    %230 = vector.shape_cast %229 : vector<1x8x8xbf16> to vector<8x8xbf16>
    %c0_169 = arith.constant 0 : index
    %c72 = arith.constant 72 : index
    %231 = vector.load %arg24[%c0_169, %c72] : memref<8x362xbf16, #tpu.memory_space<vmem>>, vector<8x18xbf16>
    %cst_170 = arith.constant dense<0.000000e+00> : vector<8x18xf32>
    %232 = tpu.matmul %230, %231, %cst_170 {dimension_numbers = #tpu.dot_dimension_numbers<[1], [0], [0], [1], [0, 0, 1, 1], [], []>} : vector<8x8xbf16>, vector<8x18xbf16>, vector<8x18xf32> -> vector<8x18xf32>
    %233 = arith.addf %228, %232 : vector<8x18xf32>
    %c4_171 = arith.constant 4 : index
    %c0_172 = arith.constant 0 : index
    %c0_173 = arith.constant 0 : index
    %234 = vector.load %arg7[%c4_171, %c0_172, %c0_173] : memref<9x8x8xbf16, #tpu.memory_space<vmem>>, vector<1x8x8xbf16>
    %235 = vector.shape_cast %234 : vector<1x8x8xbf16> to vector<8x8xbf16>
    %c0_174 = arith.constant 0 : index
    %c73 = arith.constant 73 : index
    %236 = vector.load %arg24[%c0_174, %c73] : memref<8x362xbf16, #tpu.memory_space<vmem>>, vector<8x18xbf16>
    %cst_175 = arith.constant dense<0.000000e+00> : vector<8x18xf32>
    %237 = tpu.matmul %235, %236, %cst_175 {dimension_numbers = #tpu.dot_dimension_numbers<[1], [0], [0], [1], [0, 0, 1, 1], [], []>} : vector<8x8xbf16>, vector<8x18xbf16>, vector<8x18xf32> -> vector<8x18xf32>
    %238 = arith.addf %233, %237 : vector<8x18xf32>
    %c5_176 = arith.constant 5 : index
    %c0_177 = arith.constant 0 : index
    %c0_178 = arith.constant 0 : index
    %239 = vector.load %arg7[%c5_176, %c0_177, %c0_178] : memref<9x8x8xbf16, #tpu.memory_space<vmem>>, vector<1x8x8xbf16>
    %240 = vector.shape_cast %239 : vector<1x8x8xbf16> to vector<8x8xbf16>
    %c0_179 = arith.constant 0 : index
    %c74 = arith.constant 74 : index
    %241 = vector.load %arg24[%c0_179, %c74] : memref<8x362xbf16, #tpu.memory_space<vmem>>, vector<8x18xbf16>
    %cst_180 = arith.constant dense<0.000000e+00> : vector<8x18xf32>
    %242 = tpu.matmul %240, %241, %cst_180 {dimension_numbers = #tpu.dot_dimension_numbers<[1], [0], [0], [1], [0, 0, 1, 1], [], []>} : vector<8x8xbf16>, vector<8x18xbf16>, vector<8x18xf32> -> vector<8x18xf32>
    %243 = arith.addf %238, %242 : vector<8x18xf32>
    %c6_181 = arith.constant 6 : index
    %c0_182 = arith.constant 0 : index
    %c0_183 = arith.constant 0 : index
    %244 = vector.load %arg7[%c6_181, %c0_182, %c0_183] : memref<9x8x8xbf16, #tpu.memory_space<vmem>>, vector<1x8x8xbf16>
    %245 = vector.shape_cast %244 : vector<1x8x8xbf16> to vector<8x8xbf16>
    %c0_184 = arith.constant 0 : index
    %c90 = arith.constant 90 : index
    %246 = vector.load %arg24[%c0_184, %c90] : memref<8x362xbf16, #tpu.memory_space<vmem>>, vector<8x18xbf16>
    %cst_185 = arith.constant dense<0.000000e+00> : vector<8x18xf32>
    %247 = tpu.matmul %245, %246, %cst_185 {dimension_numbers = #tpu.dot_dimension_numbers<[1], [0], [0], [1], [0, 0, 1, 1], [], []>} : vector<8x8xbf16>, vector<8x18xbf16>, vector<8x18xf32> -> vector<8x18xf32>
    %248 = arith.addf %243, %247 : vector<8x18xf32>
    %c7_186 = arith.constant 7 : index
    %c0_187 = arith.constant 0 : index
    %c0_188 = arith.constant 0 : index
    %249 = vector.load %arg7[%c7_186, %c0_187, %c0_188] : memref<9x8x8xbf16, #tpu.memory_space<vmem>>, vector<1x8x8xbf16>
    %250 = vector.shape_cast %249 : vector<1x8x8xbf16> to vector<8x8xbf16>
    %c0_189 = arith.constant 0 : index
    %c91 = arith.constant 91 : index
    %251 = vector.load %arg24[%c0_189, %c91] : memref<8x362xbf16, #tpu.memory_space<vmem>>, vector<8x18xbf16>
    %cst_190 = arith.constant dense<0.000000e+00> : vector<8x18xf32>
    %252 = tpu.matmul %250, %251, %cst_190 {dimension_numbers = #tpu.dot_dimension_numbers<[1], [0], [0], [1], [0, 0, 1, 1], [], []>} : vector<8x8xbf16>, vector<8x18xbf16>, vector<8x18xf32> -> vector<8x18xf32>
    %253 = arith.addf %248, %252 : vector<8x18xf32>
    %c8_191 = arith.constant 8 : index
    %c0_192 = arith.constant 0 : index
    %c0_193 = arith.constant 0 : index
    %254 = vector.load %arg7[%c8_191, %c0_192, %c0_193] : memref<9x8x8xbf16, #tpu.memory_space<vmem>>, vector<1x8x8xbf16>
    %255 = vector.shape_cast %254 : vector<1x8x8xbf16> to vector<8x8xbf16>
    %c0_194 = arith.constant 0 : index
    %c92 = arith.constant 92 : index
    %256 = vector.load %arg24[%c0_194, %c92] : memref<8x362xbf16, #tpu.memory_space<vmem>>, vector<8x18xbf16>
    %cst_195 = arith.constant dense<0.000000e+00> : vector<8x18xf32>
    %257 = tpu.matmul %255, %256, %cst_195 {dimension_numbers = #tpu.dot_dimension_numbers<[1], [0], [0], [1], [0, 0, 1, 1], [], []>} : vector<8x8xbf16>, vector<8x18xbf16>, vector<8x18xf32> -> vector<8x18xf32>
    %258 = arith.addf %253, %257 : vector<8x18xf32>
    %c0_196 = arith.constant 0 : index
    %c0_197 = arith.constant 0 : index
    %259 = vector.load %arg11[%c0_196, %c0_197] : memref<18x8xf32, #tpu.memory_space<vmem>>, vector<18x8xf32>
    %cst_198 = arith.constant dense<0.000000e+00> : vector<8x8xf32>
    %260 = tpu.matmul %258, %259, %cst_198 {dimension_numbers = #tpu.dot_dimension_numbers<[1], [0], [0], [1], [0, 0, 1, 1], [], []>} : vector<8x18xf32>, vector<18x8xf32>, vector<8x8xf32> -> vector<8x8xf32>
    %c0_199 = arith.constant 0 : index
    %c8_200 = arith.constant 8 : index
    %261 = vector.load %arg27[%c0_199, %c8_200] : memref<8x128xf32, #tpu.memory_space<vmem>>, vector<8x8xf32>
    tpu.vector_store %arg27[%c0_199, %c8_200], %260 {strides = array<i32>} : memref<8x128xf32, #tpu.memory_space<vmem>>, vector<8x8xf32>,
    %c0_201 = arith.constant 0 : index
    %c0_202 = arith.constant 0 : index
    %c0_203 = arith.constant 0 : index
    %262 = vector.load %arg7[%c0_201, %c0_202, %c0_203] : memref<9x8x8xbf16, #tpu.memory_space<vmem>>, vector<1x8x8xbf16>
    %263 = vector.shape_cast %262 : vector<1x8x8xbf16> to vector<8x8xbf16>
    %c0_204 = arith.constant 0 : index
    %c90_205 = arith.constant 90 : index
    %264 = vector.load %arg24[%c0_204, %c90_205] : memref<8x362xbf16, #tpu.memory_space<vmem>>, vector<8x18xbf16>
    %cst_206 = arith.constant dense<0.000000e+00> : vector<8x18xf32>
    %265 = tpu.matmul %263, %264, %cst_206 {dimension_numbers = #tpu.dot_dimension_numbers<[1], [0], [0], [1], [0, 0, 1, 1], [], []>} : vector<8x8xbf16>, vector<8x18xbf16>, vector<8x18xf32> -> vector<8x18xf32>
    %c1_207 = arith.constant 1 : index
    %c0_208 = arith.constant 0 : index
    %c0_209 = arith.constant 0 : index
    %266 = vector.load %arg7[%c1_207, %c0_208, %c0_209] : memref<9x8x8xbf16, #tpu.memory_space<vmem>>, vector<1x8x8xbf16>
    %267 = vector.shape_cast %266 : vector<1x8x8xbf16> to vector<8x8xbf16>
    %c0_210 = arith.constant 0 : index
    %c91_211 = arith.constant 91 : index
    %268 = vector.load %arg24[%c0_210, %c91_211] : memref<8x362xbf16, #tpu.memory_space<vmem>>, vector<8x18xbf16>
    %cst_212 = arith.constant dense<0.000000e+00> : vector<8x18xf32>
    %269 = tpu.matmul %267, %268, %cst_212 {dimension_numbers = #tpu.dot_dimension_numbers<[1], [0], [0], [1], [0, 0, 1, 1], [], []>} : vector<8x8xbf16>, vector<8x18xbf16>, vector<8x18xf32> -> vector<8x18xf32>
    %270 = arith.addf %265, %269 : vector<8x18xf32>
    %c2_213 = arith.constant 2 : index
    %c0_214 = arith.constant 0 : index
    %c0_215 = arith.constant 0 : index
    %271 = vector.load %arg7[%c2_213, %c0_214, %c0_215] : memref<9x8x8xbf16, #tpu.memory_space<vmem>>, vector<1x8x8xbf16>
    %272 = vector.shape_cast %271 : vector<1x8x8xbf16> to vector<8x8xbf16>
    %c0_216 = arith.constant 0 : index
    %c92_217 = arith.constant 92 : index
    %273 = vector.load %arg24[%c0_216, %c92_217] : memref<8x362xbf16, #tpu.memory_space<vmem>>, vector<8x18xbf16>
    %cst_218 = arith.constant dense<0.000000e+00> : vector<8x18xf32>
    %274 = tpu.matmul %272, %273, %cst_218 {dimension_numbers = #tpu.dot_dimension_numbers<[1], [0], [0], [1], [0, 0, 1, 1], [], []>} : vector<8x8xbf16>, vector<8x18xbf16>, vector<8x18xf32> -> vector<8x18xf32>
    %275 = arith.addf %270, %274 : vector<8x18xf32>
    %c3_219 = arith.constant 3 : index
    %c0_220 = arith.constant 0 : index
    %c0_221 = arith.constant 0 : index
    %276 = vector.load %arg7[%c3_219, %c0_220, %c0_221] : memref<9x8x8xbf16, #tpu.memory_space<vmem>>, vector<1x8x8xbf16>
    %277 = vector.shape_cast %276 : vector<1x8x8xbf16> to vector<8x8xbf16>
    %c0_222 = arith.constant 0 : index
    %c108 = arith.constant 108 : index
    %278 = vector.load %arg24[%c0_222, %c108] : memref<8x362xbf16, #tpu.memory_space<vmem>>, vector<8x18xbf16>
    %cst_223 = arith.constant dense<0.000000e+00> : vector<8x18xf32>
    %279 = tpu.matmul %277, %278, %cst_223 {dimension_numbers = #tpu.dot_dimension_numbers<[1], [0], [0], [1], [0, 0, 1, 1], [], []>} : vector<8x8xbf16>, vector<8x18xbf16>, vector<8x18xf32> -> vector<8x18xf32>
    %280 = arith.addf %275, %279 : vector<8x18xf32>
    %c4_224 = arith.constant 4 : index
    %c0_225 = arith.constant 0 : index
    %c0_226 = arith.constant 0 : index
    %281 = vector.load %arg7[%c4_224, %c0_225, %c0_226] : memref<9x8x8xbf16, #tpu.memory_space<vmem>>, vector<1x8x8xbf16>
    %282 = vector.shape_cast %281 : vector<1x8x8xbf16> to vector<8x8xbf16>
    %c0_227 = arith.constant 0 : index
    %c109 = arith.constant 109 : index
    %283 = vector.load %arg24[%c0_227, %c109] : memref<8x362xbf16, #tpu.memory_space<vmem>>, vector<8x18xbf16>
    %cst_228 = arith.constant dense<0.000000e+00> : vector<8x18xf32>
    %284 = tpu.matmul %282, %283, %cst_228 {dimension_numbers = #tpu.dot_dimension_numbers<[1], [0], [0], [1], [0, 0, 1, 1], [], []>} : vector<8x8xbf16>, vector<8x18xbf16>, vector<8x18xf32> -> vector<8x18xf32>
    %285 = arith.addf %280, %284 : vector<8x18xf32>
    %c5_229 = arith.constant 5 : index
    %c0_230 = arith.constant 0 : index
    %c0_231 = arith.constant 0 : index
    %286 = vector.load %arg7[%c5_229, %c0_230, %c0_231] : memref<9x8x8xbf16, #tpu.memory_space<vmem>>, vector<1x8x8xbf16>
    %287 = vector.shape_cast %286 : vector<1x8x8xbf16> to vector<8x8xbf16>
    %c0_232 = arith.constant 0 : index
    %c110 = arith.constant 110 : index
    %288 = vector.load %arg24[%c0_232, %c110] : memref<8x362xbf16, #tpu.memory_space<vmem>>, vector<8x18xbf16>
    %cst_233 = arith.constant dense<0.000000e+00> : vector<8x18xf32>
    %289 = tpu.matmul %287, %288, %cst_233 {dimension_numbers = #tpu.dot_dimension_numbers<[1], [0], [0], [1], [0, 0, 1, 1], [], []>} : vector<8x8xbf16>, vector<8x18xbf16>, vector<8x18xf32> -> vector<8x18xf32>
    %290 = arith.addf %285, %289 : vector<8x18xf32>
    %c6_234 = arith.constant 6 : index
    %c0_235 = arith.constant 0 : index
    %c0_236 = arith.constant 0 : index
    %291 = vector.load %arg7[%c6_234, %c0_235, %c0_236] : memref<9x8x8xbf16, #tpu.memory_space<vmem>>, vector<1x8x8xbf16>
    %292 = vector.shape_cast %291 : vector<1x8x8xbf16> to vector<8x8xbf16>
    %c0_237 = arith.constant 0 : index
    %c126 = arith.constant 126 : index
    %293 = vector.load %arg24[%c0_237, %c126] : memref<8x362xbf16, #tpu.memory_space<vmem>>, vector<8x18xbf16>
    %cst_238 = arith.constant dense<0.000000e+00> : vector<8x18xf32>
    %294 = tpu.matmul %292, %293, %cst_238 {dimension_numbers = #tpu.dot_dimension_numbers<[1], [0], [0], [1], [0, 0, 1, 1], [], []>} : vector<8x8xbf16>, vector<8x18xbf16>, vector<8x18xf32> -> vector<8x18xf32>
    %295 = arith.addf %290, %294 : vector<8x18xf32>
    %c7_239 = arith.constant 7 : index
    %c0_240 = arith.constant 0 : index
    %c0_241 = arith.constant 0 : index
    %296 = vector.load %arg7[%c7_239, %c0_240, %c0_241] : memref<9x8x8xbf16, #tpu.memory_space<vmem>>, vector<1x8x8xbf16>
    %297 = vector.shape_cast %296 : vector<1x8x8xbf16> to vector<8x8xbf16>
    %c0_242 = arith.constant 0 : index
    %c127 = arith.constant 127 : index
    %298 = vector.load %arg24[%c0_242, %c127] : memref<8x362xbf16, #tpu.memory_space<vmem>>, vector<8x18xbf16>
    %cst_243 = arith.constant dense<0.000000e+00> : vector<8x18xf32>
    %299 = tpu.matmul %297, %298, %cst_243 {dimension_numbers = #tpu.dot_dimension_numbers<[1], [0], [0], [1], [0, 0, 1, 1], [], []>} : vector<8x8xbf16>, vector<8x18xbf16>, vector<8x18xf32> -> vector<8x18xf32>
    %300 = arith.addf %295, %299 : vector<8x18xf32>
    %c8_244 = arith.constant 8 : index
    %c0_245 = arith.constant 0 : index
    %c0_246 = arith.constant 0 : index
    %301 = vector.load %arg7[%c8_244, %c0_245, %c0_246] : memref<9x8x8xbf16, #tpu.memory_space<vmem>>, vector<1x8x8xbf16>
    %302 = vector.shape_cast %301 : vector<1x8x8xbf16> to vector<8x8xbf16>
    %c0_247 = arith.constant 0 : index
    %c128 = arith.constant 128 : index
    %303 = vector.load %arg24[%c0_247, %c128] : memref<8x362xbf16, #tpu.memory_space<vmem>>, vector<8x18xbf16>
    %cst_248 = arith.constant dense<0.000000e+00> : vector<8x18xf32>
    %304 = tpu.matmul %302, %303, %cst_248 {dimension_numbers = #tpu.dot_dimension_numbers<[1], [0], [0], [1], [0, 0, 1, 1], [], []>} : vector<8x8xbf16>, vector<8x18xbf16>, vector<8x18xf32> -> vector<8x18xf32>
    %305 = arith.addf %300, %304 : vector<8x18xf32>
    %c0_249 = arith.constant 0 : index
    %c0_250 = arith.constant 0 : index
    %306 = vector.load %arg11[%c0_249, %c0_250] : memref<18x8xf32, #tpu.memory_space<vmem>>, vector<18x8xf32>
    %cst_251 = arith.constant dense<0.000000e+00> : vector<8x8xf32>
    %307 = tpu.matmul %305, %306, %cst_251 {dimension_numbers = #tpu.dot_dimension_numbers<[1], [0], [0], [1], [0, 0, 1, 1], [], []>} : vector<8x18xf32>, vector<18x8xf32>, vector<8x8xf32> -> vector<8x8xf32>
    %c0_252 = arith.constant 0 : index
    %c16 = arith.constant 16 : index
    %308 = vector.load %arg27[%c0_252, %c16] : memref<8x128xf32, #tpu.memory_space<vmem>>, vector<8x8xf32>
    tpu.vector_store %arg27[%c0_252, %c16], %307 {strides = array<i32>} : memref<8x128xf32, #tpu.memory_space<vmem>>, vector<8x8xf32>,
    %c0_253 = arith.constant 0 : index
    %c0_254 = arith.constant 0 : index
    %c0_255 = arith.constant 0 : index
    %309 = vector.load %arg7[%c0_253, %c0_254, %c0_255] : memref<9x8x8xbf16, #tpu.memory_space<vmem>>, vector<1x8x8xbf16>
    %310 = vector.shape_cast %309 : vector<1x8x8xbf16> to vector<8x8xbf16>
    %c0_256 = arith.constant 0 : index
    %c126_257 = arith.constant 126 : index
    %311 = vector.load %arg24[%c0_256, %c126_257] : memref<8x362xbf16, #tpu.memory_space<vmem>>, vector<8x18xbf16>
    %cst_258 = arith.constant dense<0.000000e+00> : vector<8x18xf32>
    %312 = tpu.matmul %310, %311, %cst_258 {dimension_numbers = #tpu.dot_dimension_numbers<[1], [0], [0], [1], [0, 0, 1, 1], [], []>} : vector<8x8xbf16>, vector<8x18xbf16>, vector<8x18xf32> -> vector<8x18xf32>
    %c1_259 = arith.constant 1 : index
    %c0_260 = arith.constant 0 : index
    %c0_261 = arith.constant 0 : index
    %313 = vector.load %arg7[%c1_259, %c0_260, %c0_261] : memref<9x8x8xbf16, #tpu.memory_space<vmem>>, vector<1x8x8xbf16>
    %314 = vector.shape_cast %313 : vector<1x8x8xbf16> to vector<8x8xbf16>
    %c0_262 = arith.constant 0 : index
    %c127_263 = arith.constant 127 : index
    %315 = vector.load %arg24[%c0_262, %c127_263] : memref<8x362xbf16, #tpu.memory_space<vmem>>, vector<8x18xbf16>
    %cst_264 = arith.constant dense<0.000000e+00> : vector<8x18xf32>
    %316 = tpu.matmul %314, %315, %cst_264 {dimension_numbers = #tpu.dot_dimension_numbers<[1], [0], [0], [1], [0, 0, 1, 1], [], []>} : vector<8x8xbf16>, vector<8x18xbf16>, vector<8x18xf32> -> vector<8x18xf32>
    %317 = arith.addf %312, %316 : vector<8x18xf32>
    %c2_265 = arith.constant 2 : index
    %c0_266 = arith.constant 0 : index
    %c0_267 = arith.constant 0 : index
    %318 = vector.load %arg7[%c2_265, %c0_266, %c0_267] : memref<9x8x8xbf16, #tpu.memory_space<vmem>>, vector<1x8x8xbf16>
    %319 = vector.shape_cast %318 : vector<1x8x8xbf16> to vector<8x8xbf16>
    %c0_268 = arith.constant 0 : index
    %c128_269 = arith.constant 128 : index
    %320 = vector.load %arg24[%c0_268, %c128_269] : memref<8x362xbf16, #tpu.memory_space<vmem>>, vector<8x18xbf16>
    %cst_270 = arith.constant dense<0.000000e+00> : vector<8x18xf32>
    %321 = tpu.matmul %319, %320, %cst_270 {dimension_numbers = #tpu.dot_dimension_numbers<[1], [0], [0], [1], [0, 0, 1, 1], [], []>} : vector<8x8xbf16>, vector<8x18xbf16>, vector<8x18xf32> -> vector<8x18xf32>
    %322 = arith.addf %317, %321 : vector<8x18xf32>
    %c3_271 = arith.constant 3 : index
    %c0_272 = arith.constant 0 : index
    %c0_273 = arith.constant 0 : index
    %323 = vector.load %arg7[%c3_271, %c0_272, %c0_273] : memref<9x8x8xbf16, #tpu.memory_space<vmem>>, vector<1x8x8xbf16>
    %324 = vector.shape_cast %323 : vector<1x8x8xbf16> to vector<8x8xbf16>
    %c0_274 = arith.constant 0 : index
    %c144 = arith.constant 144 : index
    %325 = vector.load %arg24[%c0_274, %c144] : memref<8x362xbf16, #tpu.memory_space<vmem>>, vector<8x18xbf16>
    %cst_275 = arith.constant dense<0.000000e+00> : vector<8x18xf32>
    %326 = tpu.matmul %324, %325, %cst_275 {dimension_numbers = #tpu.dot_dimension_numbers<[1], [0], [0], [1], [0, 0, 1, 1], [], []>} : vector<8x8xbf16>, vector<8x18xbf16>, vector<8x18xf32> -> vector<8x18xf32>
    %327 = arith.addf %322, %326 : vector<8x18xf32>
    %c4_276 = arith.constant 4 : index
    %c0_277 = arith.constant 0 : index
    %c0_278 = arith.constant 0 : index
    %328 = vector.load %arg7[%c4_276, %c0_277, %c0_278] : memref<9x8x8xbf16, #tpu.memory_space<vmem>>, vector<1x8x8xbf16>
    %329 = vector.shape_cast %328 : vector<1x8x8xbf16> to vector<8x8xbf16>
    %c0_279 = arith.constant 0 : index
    %c145 = arith.constant 145 : index
    %330 = vector.load %arg24[%c0_279, %c145] : memref<8x362xbf16, #tpu.memory_space<vmem>>, vector<8x18xbf16>
    %cst_280 = arith.constant dense<0.000000e+00> : vector<8x18xf32>
    %331 = tpu.matmul %329, %330, %cst_280 {dimension_numbers = #tpu.dot_dimension_numbers<[1], [0], [0], [1], [0, 0, 1, 1], [], []>} : vector<8x8xbf16>, vector<8x18xbf16>, vector<8x18xf32> -> vector<8x18xf32>
    %332 = arith.addf %327, %331 : vector<8x18xf32>
    %c5_281 = arith.constant 5 : index
    %c0_282 = arith.constant 0 : index
    %c0_283 = arith.constant 0 : index
    %333 = vector.load %arg7[%c5_281, %c0_282, %c0_283] : memref<9x8x8xbf16, #tpu.memory_space<vmem>>, vector<1x8x8xbf16>
    %334 = vector.shape_cast %333 : vector<1x8x8xbf16> to vector<8x8xbf16>
    %c0_284 = arith.constant 0 : index
    %c146 = arith.constant 146 : index
    %335 = vector.load %arg24[%c0_284, %c146] : memref<8x362xbf16, #tpu.memory_space<vmem>>, vector<8x18xbf16>
    %cst_285 = arith.constant dense<0.000000e+00> : vector<8x18xf32>
    %336 = tpu.matmul %334, %335, %cst_285 {dimension_numbers = #tpu.dot_dimension_numbers<[1], [0], [0], [1], [0, 0, 1, 1], [], []>} : vector<8x8xbf16>, vector<8x18xbf16>, vector<8x18xf32> -> vector<8x18xf32>
    %337 = arith.addf %332, %336 : vector<8x18xf32>
    %c6_286 = arith.constant 6 : index
    %c0_287 = arith.constant 0 : index
    %c0_288 = arith.constant 0 : index
    %338 = vector.load %arg7[%c6_286, %c0_287, %c0_288] : memref<9x8x8xbf16, #tpu.memory_space<vmem>>, vector<1x8x8xbf16>
    %339 = vector.shape_cast %338 : vector<1x8x8xbf16> to vector<8x8xbf16>
    %c0_289 = arith.constant 0 : index
    %c162 = arith.constant 162 : index
    %340 = vector.load %arg24[%c0_289, %c162] : memref<8x362xbf16, #tpu.memory_space<vmem>>, vector<8x18xbf16>
    %cst_290 = arith.constant dense<0.000000e+00> : vector<8x18xf32>
    %341 = tpu.matmul %339, %340, %cst_290 {dimension_numbers = #tpu.dot_dimension_numbers<[1], [0], [0], [1], [0, 0, 1, 1], [], []>} : vector<8x8xbf16>, vector<8x18xbf16>, vector<8x18xf32> -> vector<8x18xf32>
    %342 = arith.addf %337, %341 : vector<8x18xf32>
    %c7_291 = arith.constant 7 : index
    %c0_292 = arith.constant 0 : index
    %c0_293 = arith.constant 0 : index
    %343 = vector.load %arg7[%c7_291, %c0_292, %c0_293] : memref<9x8x8xbf16, #tpu.memory_space<vmem>>, vector<1x8x8xbf16>
    %344 = vector.shape_cast %343 : vector<1x8x8xbf16> to vector<8x8xbf16>
    %c0_294 = arith.constant 0 : index
    %c163 = arith.constant 163 : index
    %345 = vector.load %arg24[%c0_294, %c163] : memref<8x362xbf16, #tpu.memory_space<vmem>>, vector<8x18xbf16>
    %cst_295 = arith.constant dense<0.000000e+00> : vector<8x18xf32>
    %346 = tpu.matmul %344, %345, %cst_295 {dimension_numbers = #tpu.dot_dimension_numbers<[1], [0], [0], [1], [0, 0, 1, 1], [], []>} : vector<8x8xbf16>, vector<8x18xbf16>, vector<8x18xf32> -> vector<8x18xf32>
    %347 = arith.addf %342, %346 : vector<8x18xf32>
    %c8_296 = arith.constant 8 : index
    %c0_297 = arith.constant 0 : index
    %c0_298 = arith.constant 0 : index
    %348 = vector.load %arg7[%c8_296, %c0_297, %c0_298] : memref<9x8x8xbf16, #tpu.memory_space<vmem>>, vector<1x8x8xbf16>
    %349 = vector.shape_cast %348 : vector<1x8x8xbf16> to vector<8x8xbf16>
    %c0_299 = arith.constant 0 : index
    %c164 = arith.constant 164 : index
    %350 = vector.load %arg24[%c0_299, %c164] : memref<8x362xbf16, #tpu.memory_space<vmem>>, vector<8x18xbf16>
    %cst_300 = arith.constant dense<0.000000e+00> : vector<8x18xf32>
    %351 = tpu.matmul %349, %350, %cst_300 {dimension_numbers = #tpu.dot_dimension_numbers<[1], [0], [0], [1], [0, 0, 1, 1], [], []>} : vector<8x8xbf16>, vector<8x18xbf16>, vector<8x18xf32> -> vector<8x18xf32>
    %352 = arith.addf %347, %351 : vector<8x18xf32>
    %c0_301 = arith.constant 0 : index
    %c0_302 = arith.constant 0 : index
    %353 = vector.load %arg11[%c0_301, %c0_302] : memref<18x8xf32, #tpu.memory_space<vmem>>, vector<18x8xf32>
    %cst_303 = arith.constant dense<0.000000e+00> : vector<8x8xf32>
    %354 = tpu.matmul %352, %353, %cst_303 {dimension_numbers = #tpu.dot_dimension_numbers<[1], [0], [0], [1], [0, 0, 1, 1], [], []>} : vector<8x18xf32>, vector<18x8xf32>, vector<8x8xf32> -> vector<8x8xf32>
    %c0_304 = arith.constant 0 : index
    %c24 = arith.constant 24 : index
    %355 = vector.load %arg27[%c0_304, %c24] : memref<8x128xf32, #tpu.memory_space<vmem>>, vector<8x8xf32>
    tpu.vector_store %arg27[%c0_304, %c24], %354 {strides = array<i32>} : memref<8x128xf32, #tpu.memory_space<vmem>>, vector<8x8xf32>,
    %c0_305 = arith.constant 0 : index
    %c0_306 = arith.constant 0 : index
    %c0_307 = arith.constant 0 : index
    %356 = vector.load %arg7[%c0_305, %c0_306, %c0_307] : memref<9x8x8xbf16, #tpu.memory_space<vmem>>, vector<1x8x8xbf16>
    %357 = vector.shape_cast %356 : vector<1x8x8xbf16> to vector<8x8xbf16>
    %c0_308 = arith.constant 0 : index
    %c162_309 = arith.constant 162 : index
    %358 = vector.load %arg24[%c0_308, %c162_309] : memref<8x362xbf16, #tpu.memory_space<vmem>>, vector<8x18xbf16>
    %cst_310 = arith.constant dense<0.000000e+00> : vector<8x18xf32>
    %359 = tpu.matmul %357, %358, %cst_310 {dimension_numbers = #tpu.dot_dimension_numbers<[1], [0], [0], [1], [0, 0, 1, 1], [], []>} : vector<8x8xbf16>, vector<8x18xbf16>, vector<8x18xf32> -> vector<8x18xf32>
    %c1_311 = arith.constant 1 : index
    %c0_312 = arith.constant 0 : index
    %c0_313 = arith.constant 0 : index
    %360 = vector.load %arg7[%c1_311, %c0_312, %c0_313] : memref<9x8x8xbf16, #tpu.memory_space<vmem>>, vector<1x8x8xbf16>
    %361 = vector.shape_cast %360 : vector<1x8x8xbf16> to vector<8x8xbf16>
    %c0_314 = arith.constant 0 : index
    %c163_315 = arith.constant 163 : index
    %362 = vector.load %arg24[%c0_314, %c163_315] : memref<8x362xbf16, #tpu.memory_space<vmem>>, vector<8x18xbf16>
    %cst_316 = arith.constant dense<0.000000e+00> : vector<8x18xf32>
    %363 = tpu.matmul %361, %362, %cst_316 {dimension_numbers = #tpu.dot_dimension_numbers<[1], [0], [0], [1], [0, 0, 1, 1], [], []>} : vector<8x8xbf16>, vector<8x18xbf16>, vector<8x18xf32> -> vector<8x18xf32>
    %364 = arith.addf %359, %363 : vector<8x18xf32>
    %c2_317 = arith.constant 2 : index
    %c0_318 = arith.constant 0 : index
    %c0_319 = arith.constant 0 : index
    %365 = vector.load %arg7[%c2_317, %c0_318, %c0_319] : memref<9x8x8xbf16, #tpu.memory_space<vmem>>, vector<1x8x8xbf16>
    %366 = vector.shape_cast %365 : vector<1x8x8xbf16> to vector<8x8xbf16>
    %c0_320 = arith.constant 0 : index
    %c164_321 = arith.constant 164 : index
    %367 = vector.load %arg24[%c0_320, %c164_321] : memref<8x362xbf16, #tpu.memory_space<vmem>>, vector<8x18xbf16>
    %cst_322 = arith.constant dense<0.000000e+00> : vector<8x18xf32>
    %368 = tpu.matmul %366, %367, %cst_322 {dimension_numbers = #tpu.dot_dimension_numbers<[1], [0], [0], [1], [0, 0, 1, 1], [], []>} : vector<8x8xbf16>, vector<8x18xbf16>, vector<8x18xf32> -> vector<8x18xf32>
    %369 = arith.addf %364, %368 : vector<8x18xf32>
    %c3_323 = arith.constant 3 : index
    %c0_324 = arith.constant 0 : index
    %c0_325 = arith.constant 0 : index
    %370 = vector.load %arg7[%c3_323, %c0_324, %c0_325] : memref<9x8x8xbf16, #tpu.memory_space<vmem>>, vector<1x8x8xbf16>
    %371 = vector.shape_cast %370 : vector<1x8x8xbf16> to vector<8x8xbf16>
    %c0_326 = arith.constant 0 : index
    %c180 = arith.constant 180 : index
    %372 = vector.load %arg24[%c0_326, %c180] : memref<8x362xbf16, #tpu.memory_space<vmem>>, vector<8x18xbf16>
    %cst_327 = arith.constant dense<0.000000e+00> : vector<8x18xf32>
    %373 = tpu.matmul %371, %372, %cst_327 {dimension_numbers = #tpu.dot_dimension_numbers<[1], [0], [0], [1], [0, 0, 1, 1], [], []>} : vector<8x8xbf16>, vector<8x18xbf16>, vector<8x18xf32> -> vector<8x18xf32>
    %374 = arith.addf %369, %373 : vector<8x18xf32>
    %c4_328 = arith.constant 4 : index
    %c0_329 = arith.constant 0 : index
    %c0_330 = arith.constant 0 : index
    %375 = vector.load %arg7[%c4_328, %c0_329, %c0_330] : memref<9x8x8xbf16, #tpu.memory_space<vmem>>, vector<1x8x8xbf16>
    %376 = vector.shape_cast %375 : vector<1x8x8xbf16> to vector<8x8xbf16>
    %c0_331 = arith.constant 0 : index
    %c181 = arith.constant 181 : index
    %377 = vector.load %arg24[%c0_331, %c181] : memref<8x362xbf16, #tpu.memory_space<vmem>>, vector<8x18xbf16>
    %cst_332 = arith.constant dense<0.000000e+00> : vector<8x18xf32>
    %378 = tpu.matmul %376, %377, %cst_332 {dimension_numbers = #tpu.dot_dimension_numbers<[1], [0], [0], [1], [0, 0, 1, 1], [], []>} : vector<8x8xbf16>, vector<8x18xbf16>, vector<8x18xf32> -> vector<8x18xf32>
    %379 = arith.addf %374, %378 : vector<8x18xf32>
    %c5_333 = arith.constant 5 : index
    %c0_334 = arith.constant 0 : index
    %c0_335 = arith.constant 0 : index
    %380 = vector.load %arg7[%c5_333, %c0_334, %c0_335] : memref<9x8x8xbf16, #tpu.memory_space<vmem>>, vector<1x8x8xbf16>
    %381 = vector.shape_cast %380 : vector<1x8x8xbf16> to vector<8x8xbf16>
    %c0_336 = arith.constant 0 : index
    %c182 = arith.constant 182 : index
    %382 = vector.load %arg24[%c0_336, %c182] : memref<8x362xbf16, #tpu.memory_space<vmem>>, vector<8x18xbf16>
    %cst_337 = arith.constant dense<0.000000e+00> : vector<8x18xf32>
    %383 = tpu.matmul %381, %382, %cst_337 {dimension_numbers = #tpu.dot_dimension_numbers<[1], [0], [0], [1], [0, 0, 1, 1], [], []>} : vector<8x8xbf16>, vector<8x18xbf16>, vector<8x18xf32> -> vector<8x18xf32>
    %384 = arith.addf %379, %383 : vector<8x18xf32>
    %c6_338 = arith.constant 6 : index
    %c0_339 = arith.constant 0 : index
    %c0_340 = arith.constant 0 : index
    %385 = vector.load %arg7[%c6_338, %c0_339, %c0_340] : memref<9x8x8xbf16, #tpu.memory_space<vmem>>, vector<1x8x8xbf16>
    %386 = vector.shape_cast %385 : vector<1x8x8xbf16> to vector<8x8xbf16>
    %c0_341 = arith.constant 0 : index
    %c198 = arith.constant 198 : index
    %387 = vector.load %arg24[%c0_341, %c198] : memref<8x362xbf16, #tpu.memory_space<vmem>>, vector<8x18xbf16>
    %cst_342 = arith.constant dense<0.000000e+00> : vector<8x18xf32>
    %388 = tpu.matmul %386, %387, %cst_342 {dimension_numbers = #tpu.dot_dimension_numbers<[1], [0], [0], [1], [0, 0, 1, 1], [], []>} : vector<8x8xbf16>, vector<8x18xbf16>, vector<8x18xf32> -> vector<8x18xf32>
    %389 = arith.addf %384, %388 : vector<8x18xf32>
    %c7_343 = arith.constant 7 : index
    %c0_344 = arith.constant 0 : index
    %c0_345 = arith.constant 0 : index
    %390 = vector.load %arg7[%c7_343, %c0_344, %c0_345] : memref<9x8x8xbf16, #tpu.memory_space<vmem>>, vector<1x8x8xbf16>
    %391 = vector.shape_cast %390 : vector<1x8x8xbf16> to vector<8x8xbf16>
    %c0_346 = arith.constant 0 : index
    %c199 = arith.constant 199 : index
    %392 = vector.load %arg24[%c0_346, %c199] : memref<8x362xbf16, #tpu.memory_space<vmem>>, vector<8x18xbf16>
    %cst_347 = arith.constant dense<0.000000e+00> : vector<8x18xf32>
    %393 = tpu.matmul %391, %392, %cst_347 {dimension_numbers = #tpu.dot_dimension_numbers<[1], [0], [0], [1], [0, 0, 1, 1], [], []>} : vector<8x8xbf16>, vector<8x18xbf16>, vector<8x18xf32> -> vector<8x18xf32>
    %394 = arith.addf %389, %393 : vector<8x18xf32>
    %c8_348 = arith.constant 8 : index
    %c0_349 = arith.constant 0 : index
    %c0_350 = arith.constant 0 : index
    %395 = vector.load %arg7[%c8_348, %c0_349, %c0_350] : memref<9x8x8xbf16, #tpu.memory_space<vmem>>, vector<1x8x8xbf16>
    %396 = vector.shape_cast %395 : vector<1x8x8xbf16> to vector<8x8xbf16>
    %c0_351 = arith.constant 0 : index
    %c200 = arith.constant 200 : index
    %397 = vector.load %arg24[%c0_351, %c200] : memref<8x362xbf16, #tpu.memory_space<vmem>>, vector<8x18xbf16>
    %cst_352 = arith.constant dense<0.000000e+00> : vector<8x18xf32>
    %398 = tpu.matmul %396, %397, %cst_352 {dimension_numbers = #tpu.dot_dimension_numbers<[1], [0], [0], [1], [0, 0, 1, 1], [], []>} : vector<8x8xbf16>, vector<8x18xbf16>, vector<8x18xf32> -> vector<8x18xf32>
    %399 = arith.addf %394, %398 : vector<8x18xf32>
    %c0_353 = arith.constant 0 : index
    %c0_354 = arith.constant 0 : index
    %400 = vector.load %arg11[%c0_353, %c0_354] : memref<18x8xf32, #tpu.memory_space<vmem>>, vector<18x8xf32>
    %cst_355 = arith.constant dense<0.000000e+00> : vector<8x8xf32>
    %401 = tpu.matmul %399, %400, %cst_355 {dimension_numbers = #tpu.dot_dimension_numbers<[1], [0], [0], [1], [0, 0, 1, 1], [], []>} : vector<8x18xf32>, vector<18x8xf32>, vector<8x8xf32> -> vector<8x8xf32>
    %c0_356 = arith.constant 0 : index
    %c32 = arith.constant 32 : index
    %402 = vector.load %arg27[%c0_356, %c32] : memref<8x128xf32, #tpu.memory_space<vmem>>, vector<8x8xf32>
    tpu.vector_store %arg27[%c0_356, %c32], %401 {strides = array<i32>} : memref<8x128xf32, #tpu.memory_space<vmem>>, vector<8x8xf32>,
    %c0_357 = arith.constant 0 : index
    %c0_358 = arith.constant 0 : index
    %c0_359 = arith.constant 0 : index
    %403 = vector.load %arg7[%c0_357, %c0_358, %c0_359] : memref<9x8x8xbf16, #tpu.memory_space<vmem>>, vector<1x8x8xbf16>
    %404 = vector.shape_cast %403 : vector<1x8x8xbf16> to vector<8x8xbf16>
    %c0_360 = arith.constant 0 : index
    %c198_361 = arith.constant 198 : index
    %405 = vector.load %arg24[%c0_360, %c198_361] : memref<8x362xbf16, #tpu.memory_space<vmem>>, vector<8x18xbf16>
    %cst_362 = arith.constant dense<0.000000e+00> : vector<8x18xf32>
    %406 = tpu.matmul %404, %405, %cst_362 {dimension_numbers = #tpu.dot_dimension_numbers<[1], [0], [0], [1], [0, 0, 1, 1], [], []>} : vector<8x8xbf16>, vector<8x18xbf16>, vector<8x18xf32> -> vector<8x18xf32>
    %c1_363 = arith.constant 1 : index
    %c0_364 = arith.constant 0 : index
    %c0_365 = arith.constant 0 : index
    %407 = vector.load %arg7[%c1_363, %c0_364, %c0_365] : memref<9x8x8xbf16, #tpu.memory_space<vmem>>, vector<1x8x8xbf16>
    %408 = vector.shape_cast %407 : vector<1x8x8xbf16> to vector<8x8xbf16>
    %c0_366 = arith.constant 0 : index
    %c199_367 = arith.constant 199 : index
    %409 = vector.load %arg24[%c0_366, %c199_367] : memref<8x362xbf16, #tpu.memory_space<vmem>>, vector<8x18xbf16>
    %cst_368 = arith.constant dense<0.000000e+00> : vector<8x18xf32>
    %410 = tpu.matmul %408, %409, %cst_368 {dimension_numbers = #tpu.dot_dimension_numbers<[1], [0], [0], [1], [0, 0, 1, 1], [], []>} : vector<8x8xbf16>, vector<8x18xbf16>, vector<8x18xf32> -> vector<8x18xf32>
    %411 = arith.addf %406, %410 : vector<8x18xf32>
    %c2_369 = arith.constant 2 : index
    %c0_370 = arith.constant 0 : index
    %c0_371 = arith.constant 0 : index
    %412 = vector.load %arg7[%c2_369, %c0_370, %c0_371] : memref<9x8x8xbf16, #tpu.memory_space<vmem>>, vector<1x8x8xbf16>
    %413 = vector.shape_cast %412 : vector<1x8x8xbf16> to vector<8x8xbf16>
    %c0_372 = arith.constant 0 : index
    %c200_373 = arith.constant 200 : index
    %414 = vector.load %arg24[%c0_372, %c200_373] : memref<8x362xbf16, #tpu.memory_space<vmem>>, vector<8x18xbf16>
    %cst_374 = arith.constant dense<0.000000e+00> : vector<8x18xf32>
    %415 = tpu.matmul %413, %414, %cst_374 {dimension_numbers = #tpu.dot_dimension_numbers<[1], [0], [0], [1], [0, 0, 1, 1], [], []>} : vector<8x8xbf16>, vector<8x18xbf16>, vector<8x18xf32> -> vector<8x18xf32>
    %416 = arith.addf %411, %415 : vector<8x18xf32>
    %c3_375 = arith.constant 3 : index
    %c0_376 = arith.constant 0 : index
    %c0_377 = arith.constant 0 : index
    %417 = vector.load %arg7[%c3_375, %c0_376, %c0_377] : memref<9x8x8xbf16, #tpu.memory_space<vmem>>, vector<1x8x8xbf16>
    %418 = vector.shape_cast %417 : vector<1x8x8xbf16> to vector<8x8xbf16>
    %c0_378 = arith.constant 0 : index
    %c216 = arith.constant 216 : index
    %419 = vector.load %arg24[%c0_378, %c216] : memref<8x362xbf16, #tpu.memory_space<vmem>>, vector<8x18xbf16>
    %cst_379 = arith.constant dense<0.000000e+00> : vector<8x18xf32>
    %420 = tpu.matmul %418, %419, %cst_379 {dimension_numbers = #tpu.dot_dimension_numbers<[1], [0], [0], [1], [0, 0, 1, 1], [], []>} : vector<8x8xbf16>, vector<8x18xbf16>, vector<8x18xf32> -> vector<8x18xf32>
    %421 = arith.addf %416, %420 : vector<8x18xf32>
    %c4_380 = arith.constant 4 : index
    %c0_381 = arith.constant 0 : index
    %c0_382 = arith.constant 0 : index
    %422 = vector.load %arg7[%c4_380, %c0_381, %c0_382] : memref<9x8x8xbf16, #tpu.memory_space<vmem>>, vector<1x8x8xbf16>
    %423 = vector.shape_cast %422 : vector<1x8x8xbf16> to vector<8x8xbf16>
    %c0_383 = arith.constant 0 : index
    %c217 = arith.constant 217 : index
    %424 = vector.load %arg24[%c0_383, %c217] : memref<8x362xbf16, #tpu.memory_space<vmem>>, vector<8x18xbf16>
    %cst_384 = arith.constant dense<0.000000e+00> : vector<8x18xf32>
    %425 = tpu.matmul %423, %424, %cst_384 {dimension_numbers = #tpu.dot_dimension_numbers<[1], [0], [0], [1], [0, 0, 1, 1], [], []>} : vector<8x8xbf16>, vector<8x18xbf16>, vector<8x18xf32> -> vector<8x18xf32>
    %426 = arith.addf %421, %425 : vector<8x18xf32>
    %c5_385 = arith.constant 5 : index
    %c0_386 = arith.constant 0 : index
    %c0_387 = arith.constant 0 : index
    %427 = vector.load %arg7[%c5_385, %c0_386, %c0_387] : memref<9x8x8xbf16, #tpu.memory_space<vmem>>, vector<1x8x8xbf16>
    %428 = vector.shape_cast %427 : vector<1x8x8xbf16> to vector<8x8xbf16>
    %c0_388 = arith.constant 0 : index
    %c218 = arith.constant 218 : index
    %429 = vector.load %arg24[%c0_388, %c218] : memref<8x362xbf16, #tpu.memory_space<vmem>>, vector<8x18xbf16>
    %cst_389 = arith.constant dense<0.000000e+00> : vector<8x18xf32>
    %430 = tpu.matmul %428, %429, %cst_389 {dimension_numbers = #tpu.dot_dimension_numbers<[1], [0], [0], [1], [0, 0, 1, 1], [], []>} : vector<8x8xbf16>, vector<8x18xbf16>, vector<8x18xf32> -> vector<8x18xf32>
    %431 = arith.addf %426, %430 : vector<8x18xf32>
    %c6_390 = arith.constant 6 : index
    %c0_391 = arith.constant 0 : index
    %c0_392 = arith.constant 0 : index
    %432 = vector.load %arg7[%c6_390, %c0_391, %c0_392] : memref<9x8x8xbf16, #tpu.memory_space<vmem>>, vector<1x8x8xbf16>
    %433 = vector.shape_cast %432 : vector<1x8x8xbf16> to vector<8x8xbf16>
    %c0_393 = arith.constant 0 : index
    %c234 = arith.constant 234 : index
    %434 = vector.load %arg24[%c0_393, %c234] : memref<8x362xbf16, #tpu.memory_space<vmem>>, vector<8x18xbf16>
    %cst_394 = arith.constant dense<0.000000e+00> : vector<8x18xf32>
    %435 = tpu.matmul %433, %434, %cst_394 {dimension_numbers = #tpu.dot_dimension_numbers<[1], [0], [0], [1], [0, 0, 1, 1], [], []>} : vector<8x8xbf16>, vector<8x18xbf16>, vector<8x18xf32> -> vector<8x18xf32>
    %436 = arith.addf %431, %435 : vector<8x18xf32>
    %c7_395 = arith.constant 7 : index
    %c0_396 = arith.constant 0 : index
    %c0_397 = arith.constant 0 : index
    %437 = vector.load %arg7[%c7_395, %c0_396, %c0_397] : memref<9x8x8xbf16, #tpu.memory_space<vmem>>, vector<1x8x8xbf16>
    %438 = vector.shape_cast %437 : vector<1x8x8xbf16> to vector<8x8xbf16>
    %c0_398 = arith.constant 0 : index
    %c235 = arith.constant 235 : index
    %439 = vector.load %arg24[%c0_398, %c235] : memref<8x362xbf16, #tpu.memory_space<vmem>>, vector<8x18xbf16>
    %cst_399 = arith.constant dense<0.000000e+00> : vector<8x18xf32>
    %440 = tpu.matmul %438, %439, %cst_399 {dimension_numbers = #tpu.dot_dimension_numbers<[1], [0], [0], [1], [0, 0, 1, 1], [], []>} : vector<8x8xbf16>, vector<8x18xbf16>, vector<8x18xf32> -> vector<8x18xf32>
    %441 = arith.addf %436, %440 : vector<8x18xf32>
    %c8_400 = arith.constant 8 : index
    %c0_401 = arith.constant 0 : index
    %c0_402 = arith.constant 0 : index
    %442 = vector.load %arg7[%c8_400, %c0_401, %c0_402] : memref<9x8x8xbf16, #tpu.memory_space<vmem>>, vector<1x8x8xbf16>
    %443 = vector.shape_cast %442 : vector<1x8x8xbf16> to vector<8x8xbf16>
    %c0_403 = arith.constant 0 : index
    %c236 = arith.constant 236 : index
    %444 = vector.load %arg24[%c0_403, %c236] : memref<8x362xbf16, #tpu.memory_space<vmem>>, vector<8x18xbf16>
    %cst_404 = arith.constant dense<0.000000e+00> : vector<8x18xf32>
    %445 = tpu.matmul %443, %444, %cst_404 {dimension_numbers = #tpu.dot_dimension_numbers<[1], [0], [0], [1], [0, 0, 1, 1], [], []>} : vector<8x8xbf16>, vector<8x18xbf16>, vector<8x18xf32> -> vector<8x18xf32>
    %446 = arith.addf %441, %445 : vector<8x18xf32>
    %c0_405 = arith.constant 0 : index
    %c0_406 = arith.constant 0 : index
    %447 = vector.load %arg11[%c0_405, %c0_406] : memref<18x8xf32, #tpu.memory_space<vmem>>, vector<18x8xf32>
    %cst_407 = arith.constant dense<0.000000e+00> : vector<8x8xf32>
    %448 = tpu.matmul %446, %447, %cst_407 {dimension_numbers = #tpu.dot_dimension_numbers<[1], [0], [0], [1], [0, 0, 1, 1], [], []>} : vector<8x18xf32>, vector<18x8xf32>, vector<8x8xf32> -> vector<8x8xf32>
    %c0_408 = arith.constant 0 : index
    %c40 = arith.constant 40 : index
    %449 = vector.load %arg27[%c0_408, %c40] : memref<8x128xf32, #tpu.memory_space<vmem>>, vector<8x8xf32>
    tpu.vector_store %arg27[%c0_408, %c40], %448 {strides = array<i32>} : memref<8x128xf32, #tpu.memory_space<vmem>>, vector<8x8xf32>,
    %c0_409 = arith.constant 0 : index
    %c0_410 = arith.constant 0 : index
    %c0_411 = arith.constant 0 : index
    %450 = vector.load %arg7[%c0_409, %c0_410, %c0_411] : memref<9x8x8xbf16, #tpu.memory_space<vmem>>, vector<1x8x8xbf16>
    %451 = vector.shape_cast %450 : vector<1x8x8xbf16> to vector<8x8xbf16>
    %c0_412 = arith.constant 0 : index
    %c234_413 = arith.constant 234 : index
    %452 = vector.load %arg24[%c0_412, %c234_413] : memref<8x362xbf16, #tpu.memory_space<vmem>>, vector<8x18xbf16>
    %cst_414 = arith.constant dense<0.000000e+00> : vector<8x18xf32>
    %453 = tpu.matmul %451, %452, %cst_414 {dimension_numbers = #tpu.dot_dimension_numbers<[1], [0], [0], [1], [0, 0, 1, 1], [], []>} : vector<8x8xbf16>, vector<8x18xbf16>, vector<8x18xf32> -> vector<8x18xf32>
    %c1_415 = arith.constant 1 : index
    %c0_416 = arith.constant 0 : index
    %c0_417 = arith.constant 0 : index
    %454 = vector.load %arg7[%c1_415, %c0_416, %c0_417] : memref<9x8x8xbf16, #tpu.memory_space<vmem>>, vector<1x8x8xbf16>
    %455 = vector.shape_cast %454 : vector<1x8x8xbf16> to vector<8x8xbf16>
    %c0_418 = arith.constant 0 : index
    %c235_419 = arith.constant 235 : index
    %456 = vector.load %arg24[%c0_418, %c235_419] : memref<8x362xbf16, #tpu.memory_space<vmem>>, vector<8x18xbf16>
    %cst_420 = arith.constant dense<0.000000e+00> : vector<8x18xf32>
    %457 = tpu.matmul %455, %456, %cst_420 {dimension_numbers = #tpu.dot_dimension_numbers<[1], [0], [0], [1], [0, 0, 1, 1], [], []>} : vector<8x8xbf16>, vector<8x18xbf16>, vector<8x18xf32> -> vector<8x18xf32>
    %458 = arith.addf %453, %457 : vector<8x18xf32>
    %c2_421 = arith.constant 2 : index
    %c0_422 = arith.constant 0 : index
    %c0_423 = arith.constant 0 : index
    %459 = vector.load %arg7[%c2_421, %c0_422, %c0_423] : memref<9x8x8xbf16, #tpu.memory_space<vmem>>, vector<1x8x8xbf16>
    %460 = vector.shape_cast %459 : vector<1x8x8xbf16> to vector<8x8xbf16>
    %c0_424 = arith.constant 0 : index
    %c236_425 = arith.constant 236 : index
    %461 = vector.load %arg24[%c0_424, %c236_425] : memref<8x362xbf16, #tpu.memory_space<vmem>>, vector<8x18xbf16>
    %cst_426 = arith.constant dense<0.000000e+00> : vector<8x18xf32>
    %462 = tpu.matmul %460, %461, %cst_426 {dimension_numbers = #tpu.dot_dimension_numbers<[1], [0], [0], [1], [0, 0, 1, 1], [], []>} : vector<8x8xbf16>, vector<8x18xbf16>, vector<8x18xf32> -> vector<8x18xf32>
    %463 = arith.addf %458, %462 : vector<8x18xf32>
    %c3_427 = arith.constant 3 : index
    %c0_428 = arith.constant 0 : index
    %c0_429 = arith.constant 0 : index
    %464 = vector.load %arg7[%c3_427, %c0_428, %c0_429] : memref<9x8x8xbf16, #tpu.memory_space<vmem>>, vector<1x8x8xbf16>
    %465 = vector.shape_cast %464 : vector<1x8x8xbf16> to vector<8x8xbf16>
    %c0_430 = arith.constant 0 : index
    %c252 = arith.constant 252 : index
    %466 = vector.load %arg24[%c0_430, %c252] : memref<8x362xbf16, #tpu.memory_space<vmem>>, vector<8x18xbf16>
    %cst_431 = arith.constant dense<0.000000e+00> : vector<8x18xf32>
    %467 = tpu.matmul %465, %466, %cst_431 {dimension_numbers = #tpu.dot_dimension_numbers<[1], [0], [0], [1], [0, 0, 1, 1], [], []>} : vector<8x8xbf16>, vector<8x18xbf16>, vector<8x18xf32> -> vector<8x18xf32>
    %468 = arith.addf %463, %467 : vector<8x18xf32>
    %c4_432 = arith.constant 4 : index
    %c0_433 = arith.constant 0 : index
    %c0_434 = arith.constant 0 : index
    %469 = vector.load %arg7[%c4_432, %c0_433, %c0_434] : memref<9x8x8xbf16, #tpu.memory_space<vmem>>, vector<1x8x8xbf16>
    %470 = vector.shape_cast %469 : vector<1x8x8xbf16> to vector<8x8xbf16>
    %c0_435 = arith.constant 0 : index
    %c253 = arith.constant 253 : index
    %471 = vector.load %arg24[%c0_435, %c253] : memref<8x362xbf16, #tpu.memory_space<vmem>>, vector<8x18xbf16>
    %cst_436 = arith.constant dense<0.000000e+00> : vector<8x18xf32>
    %472 = tpu.matmul %470, %471, %cst_436 {dimension_numbers = #tpu.dot_dimension_numbers<[1], [0], [0], [1], [0, 0, 1, 1], [], []>} : vector<8x8xbf16>, vector<8x18xbf16>, vector<8x18xf32> -> vector<8x18xf32>
    %473 = arith.addf %468, %472 : vector<8x18xf32>
    %c5_437 = arith.constant 5 : index
    %c0_438 = arith.constant 0 : index
    %c0_439 = arith.constant 0 : index
    %474 = vector.load %arg7[%c5_437, %c0_438, %c0_439] : memref<9x8x8xbf16, #tpu.memory_space<vmem>>, vector<1x8x8xbf16>
    %475 = vector.shape_cast %474 : vector<1x8x8xbf16> to vector<8x8xbf16>
    %c0_440 = arith.constant 0 : index
    %c254 = arith.constant 254 : index
    %476 = vector.load %arg24[%c0_440, %c254] : memref<8x362xbf16, #tpu.memory_space<vmem>>, vector<8x18xbf16>
    %cst_441 = arith.constant dense<0.000000e+00> : vector<8x18xf32>
    %477 = tpu.matmul %475, %476, %cst_441 {dimension_numbers = #tpu.dot_dimension_numbers<[1], [0], [0], [1], [0, 0, 1, 1], [], []>} : vector<8x8xbf16>, vector<8x18xbf16>, vector<8x18xf32> -> vector<8x18xf32>
    %478 = arith.addf %473, %477 : vector<8x18xf32>
    %c6_442 = arith.constant 6 : index
    %c0_443 = arith.constant 0 : index
    %c0_444 = arith.constant 0 : index
    %479 = vector.load %arg7[%c6_442, %c0_443, %c0_444] : memref<9x8x8xbf16, #tpu.memory_space<vmem>>, vector<1x8x8xbf16>
    %480 = vector.shape_cast %479 : vector<1x8x8xbf16> to vector<8x8xbf16>
    %c0_445 = arith.constant 0 : index
    %c270 = arith.constant 270 : index
    %481 = vector.load %arg24[%c0_445, %c270] : memref<8x362xbf16, #tpu.memory_space<vmem>>, vector<8x18xbf16>
    %cst_446 = arith.constant dense<0.000000e+00> : vector<8x18xf32>
    %482 = tpu.matmul %480, %481, %cst_446 {dimension_numbers = #tpu.dot_dimension_numbers<[1], [0], [0], [1], [0, 0, 1, 1], [], []>} : vector<8x8xbf16>, vector<8x18xbf16>, vector<8x18xf32> -> vector<8x18xf32>
    %483 = arith.addf %478, %482 : vector<8x18xf32>
    %c7_447 = arith.constant 7 : index
    %c0_448 = arith.constant 0 : index
    %c0_449 = arith.constant 0 : index
    %484 = vector.load %arg7[%c7_447, %c0_448, %c0_449] : memref<9x8x8xbf16, #tpu.memory_space<vmem>>, vector<1x8x8xbf16>
    %485 = vector.shape_cast %484 : vector<1x8x8xbf16> to vector<8x8xbf16>
    %c0_450 = arith.constant 0 : index
    %c271 = arith.constant 271 : index
    %486 = vector.load %arg24[%c0_450, %c271] : memref<8x362xbf16, #tpu.memory_space<vmem>>, vector<8x18xbf16>
    %cst_451 = arith.constant dense<0.000000e+00> : vector<8x18xf32>
    %487 = tpu.matmul %485, %486, %cst_451 {dimension_numbers = #tpu.dot_dimension_numbers<[1], [0], [0], [1], [0, 0, 1, 1], [], []>} : vector<8x8xbf16>, vector<8x18xbf16>, vector<8x18xf32> -> vector<8x18xf32>
    %488 = arith.addf %483, %487 : vector<8x18xf32>
    %c8_452 = arith.constant 8 : index
    %c0_453 = arith.constant 0 : index
    %c0_454 = arith.constant 0 : index
    %489 = vector.load %arg7[%c8_452, %c0_453, %c0_454] : memref<9x8x8xbf16, #tpu.memory_space<vmem>>, vector<1x8x8xbf16>
    %490 = vector.shape_cast %489 : vector<1x8x8xbf16> to vector<8x8xbf16>
    %c0_455 = arith.constant 0 : index
    %c272 = arith.constant 272 : index
    %491 = vector.load %arg24[%c0_455, %c272] : memref<8x362xbf16, #tpu.memory_space<vmem>>, vector<8x18xbf16>
    %cst_456 = arith.constant dense<0.000000e+00> : vector<8x18xf32>
    %492 = tpu.matmul %490, %491, %cst_456 {dimension_numbers = #tpu.dot_dimension_numbers<[1], [0], [0], [1], [0, 0, 1, 1], [], []>} : vector<8x8xbf16>, vector<8x18xbf16>, vector<8x18xf32> -> vector<8x18xf32>
    %493 = arith.addf %488, %492 : vector<8x18xf32>
    %c0_457 = arith.constant 0 : index
    %c0_458 = arith.constant 0 : index
    %494 = vector.load %arg11[%c0_457, %c0_458] : memref<18x8xf32, #tpu.memory_space<vmem>>, vector<18x8xf32>
    %cst_459 = arith.constant dense<0.000000e+00> : vector<8x8xf32>
    %495 = tpu.matmul %493, %494, %cst_459 {dimension_numbers = #tpu.dot_dimension_numbers<[1], [0], [0], [1], [0, 0, 1, 1], [], []>} : vector<8x18xf32>, vector<18x8xf32>, vector<8x8xf32> -> vector<8x8xf32>
    %c0_460 = arith.constant 0 : index
    %c48 = arith.constant 48 : index
    %496 = vector.load %arg27[%c0_460, %c48] : memref<8x128xf32, #tpu.memory_space<vmem>>, vector<8x8xf32>
    tpu.vector_store %arg27[%c0_460, %c48], %495 {strides = array<i32>} : memref<8x128xf32, #tpu.memory_space<vmem>>, vector<8x8xf32>,
    %c0_461 = arith.constant 0 : index
    %c0_462 = arith.constant 0 : index
    %c0_463 = arith.constant 0 : index
    %497 = vector.load %arg7[%c0_461, %c0_462, %c0_463] : memref<9x8x8xbf16, #tpu.memory_space<vmem>>, vector<1x8x8xbf16>
    %498 = vector.shape_cast %497 : vector<1x8x8xbf16> to vector<8x8xbf16>
    %c0_464 = arith.constant 0 : index
    %c270_465 = arith.constant 270 : index
    %499 = vector.load %arg24[%c0_464, %c270_465] : memref<8x362xbf16, #tpu.memory_space<vmem>>, vector<8x18xbf16>
    %cst_466 = arith.constant dense<0.000000e+00> : vector<8x18xf32>
    %500 = tpu.matmul %498, %499, %cst_466 {dimension_numbers = #tpu.dot_dimension_numbers<[1], [0], [0], [1], [0, 0, 1, 1], [], []>} : vector<8x8xbf16>, vector<8x18xbf16>, vector<8x18xf32> -> vector<8x18xf32>
    %c1_467 = arith.constant 1 : index
    %c0_468 = arith.constant 0 : index
    %c0_469 = arith.constant 0 : index
    %501 = vector.load %arg7[%c1_467, %c0_468, %c0_469] : memref<9x8x8xbf16, #tpu.memory_space<vmem>>, vector<1x8x8xbf16>
    %502 = vector.shape_cast %501 : vector<1x8x8xbf16> to vector<8x8xbf16>
    %c0_470 = arith.constant 0 : index
    %c271_471 = arith.constant 271 : index
    %503 = vector.load %arg24[%c0_470, %c271_471] : memref<8x362xbf16, #tpu.memory_space<vmem>>, vector<8x18xbf16>
    %cst_472 = arith.constant dense<0.000000e+00> : vector<8x18xf32>
    %504 = tpu.matmul %502, %503, %cst_472 {dimension_numbers = #tpu.dot_dimension_numbers<[1], [0], [0], [1], [0, 0, 1, 1], [], []>} : vector<8x8xbf16>, vector<8x18xbf16>, vector<8x18xf32> -> vector<8x18xf32>
    %505 = arith.addf %500, %504 : vector<8x18xf32>
    %c2_473 = arith.constant 2 : index
    %c0_474 = arith.constant 0 : index
    %c0_475 = arith.constant 0 : index
    %506 = vector.load %arg7[%c2_473, %c0_474, %c0_475] : memref<9x8x8xbf16, #tpu.memory_space<vmem>>, vector<1x8x8xbf16>
    %507 = vector.shape_cast %506 : vector<1x8x8xbf16> to vector<8x8xbf16>
    %c0_476 = arith.constant 0 : index
    %c272_477 = arith.constant 272 : index
    %508 = vector.load %arg24[%c0_476, %c272_477] : memref<8x362xbf16, #tpu.memory_space<vmem>>, vector<8x18xbf16>
    %cst_478 = arith.constant dense<0.000000e+00> : vector<8x18xf32>
    %509 = tpu.matmul %507, %508, %cst_478 {dimension_numbers = #tpu.dot_dimension_numbers<[1], [0], [0], [1], [0, 0, 1, 1], [], []>} : vector<8x8xbf16>, vector<8x18xbf16>, vector<8x18xf32> -> vector<8x18xf32>
    %510 = arith.addf %505, %509 : vector<8x18xf32>
    %c3_479 = arith.constant 3 : index
    %c0_480 = arith.constant 0 : index
    %c0_481 = arith.constant 0 : index
    %511 = vector.load %arg7[%c3_479, %c0_480, %c0_481] : memref<9x8x8xbf16, #tpu.memory_space<vmem>>, vector<1x8x8xbf16>
    %512 = vector.shape_cast %511 : vector<1x8x8xbf16> to vector<8x8xbf16>
    %c0_482 = arith.constant 0 : index
    %c288 = arith.constant 288 : index
    %513 = vector.load %arg24[%c0_482, %c288] : memref<8x362xbf16, #tpu.memory_space<vmem>>, vector<8x18xbf16>
    %cst_483 = arith.constant dense<0.000000e+00> : vector<8x18xf32>
    %514 = tpu.matmul %512, %513, %cst_483 {dimension_numbers = #tpu.dot_dimension_numbers<[1], [0], [0], [1], [0, 0, 1, 1], [], []>} : vector<8x8xbf16>, vector<8x18xbf16>, vector<8x18xf32> -> vector<8x18xf32>
    %515 = arith.addf %510, %514 : vector<8x18xf32>
    %c4_484 = arith.constant 4 : index
    %c0_485 = arith.constant 0 : index
    %c0_486 = arith.constant 0 : index
    %516 = vector.load %arg7[%c4_484, %c0_485, %c0_486] : memref<9x8x8xbf16, #tpu.memory_space<vmem>>, vector<1x8x8xbf16>
    %517 = vector.shape_cast %516 : vector<1x8x8xbf16> to vector<8x8xbf16>
    %c0_487 = arith.constant 0 : index
    %c289 = arith.constant 289 : index
    %518 = vector.load %arg24[%c0_487, %c289] : memref<8x362xbf16, #tpu.memory_space<vmem>>, vector<8x18xbf16>
    %cst_488 = arith.constant dense<0.000000e+00> : vector<8x18xf32>
    %519 = tpu.matmul %517, %518, %cst_488 {dimension_numbers = #tpu.dot_dimension_numbers<[1], [0], [0], [1], [0, 0, 1, 1], [], []>} : vector<8x8xbf16>, vector<8x18xbf16>, vector<8x18xf32> -> vector<8x18xf32>
    %520 = arith.addf %515, %519 : vector<8x18xf32>
    %c5_489 = arith.constant 5 : index
    %c0_490 = arith.constant 0 : index
    %c0_491 = arith.constant 0 : index
    %521 = vector.load %arg7[%c5_489, %c0_490, %c0_491] : memref<9x8x8xbf16, #tpu.memory_space<vmem>>, vector<1x8x8xbf16>
    %522 = vector.shape_cast %521 : vector<1x8x8xbf16> to vector<8x8xbf16>
    %c0_492 = arith.constant 0 : index
    %c290 = arith.constant 290 : index
    %523 = vector.load %arg24[%c0_492, %c290] : memref<8x362xbf16, #tpu.memory_space<vmem>>, vector<8x18xbf16>
    %cst_493 = arith.constant dense<0.000000e+00> : vector<8x18xf32>
    %524 = tpu.matmul %522, %523, %cst_493 {dimension_numbers = #tpu.dot_dimension_numbers<[1], [0], [0], [1], [0, 0, 1, 1], [], []>} : vector<8x8xbf16>, vector<8x18xbf16>, vector<8x18xf32> -> vector<8x18xf32>
    %525 = arith.addf %520, %524 : vector<8x18xf32>
    %c6_494 = arith.constant 6 : index
    %c0_495 = arith.constant 0 : index
    %c0_496 = arith.constant 0 : index
    %526 = vector.load %arg7[%c6_494, %c0_495, %c0_496] : memref<9x8x8xbf16, #tpu.memory_space<vmem>>, vector<1x8x8xbf16>
    %527 = vector.shape_cast %526 : vector<1x8x8xbf16> to vector<8x8xbf16>
    %c0_497 = arith.constant 0 : index
    %c306 = arith.constant 306 : index
    %528 = vector.load %arg24[%c0_497, %c306] : memref<8x362xbf16, #tpu.memory_space<vmem>>, vector<8x18xbf16>
    %cst_498 = arith.constant dense<0.000000e+00> : vector<8x18xf32>
    %529 = tpu.matmul %527, %528, %cst_498 {dimension_numbers = #tpu.dot_dimension_numbers<[1], [0], [0], [1], [0, 0, 1, 1], [], []>} : vector<8x8xbf16>, vector<8x18xbf16>, vector<8x18xf32> -> vector<8x18xf32>
    %530 = arith.addf %525, %529 : vector<8x18xf32>
    %c7_499 = arith.constant 7 : index
    %c0_500 = arith.constant 0 : index
    %c0_501 = arith.constant 0 : index
    %531 = vector.load %arg7[%c7_499, %c0_500, %c0_501] : memref<9x8x8xbf16, #tpu.memory_space<vmem>>, vector<1x8x8xbf16>
    %532 = vector.shape_cast %531 : vector<1x8x8xbf16> to vector<8x8xbf16>
    %c0_502 = arith.constant 0 : index
    %c307 = arith.constant 307 : index
    %533 = vector.load %arg24[%c0_502, %c307] : memref<8x362xbf16, #tpu.memory_space<vmem>>, vector<8x18xbf16>
    %cst_503 = arith.constant dense<0.000000e+00> : vector<8x18xf32>
    %534 = tpu.matmul %532, %533, %cst_503 {dimension_numbers = #tpu.dot_dimension_numbers<[1], [0], [0], [1], [0, 0, 1, 1], [], []>} : vector<8x8xbf16>, vector<8x18xbf16>, vector<8x18xf32> -> vector<8x18xf32>
    %535 = arith.addf %530, %534 : vector<8x18xf32>
    %c8_504 = arith.constant 8 : index
    %c0_505 = arith.constant 0 : index
    %c0_506 = arith.constant 0 : index
    %536 = vector.load %arg7[%c8_504, %c0_505, %c0_506] : memref<9x8x8xbf16, #tpu.memory_space<vmem>>, vector<1x8x8xbf16>
    %537 = vector.shape_cast %536 : vector<1x8x8xbf16> to vector<8x8xbf16>
    %c0_507 = arith.constant 0 : index
    %c308 = arith.constant 308 : index
    %538 = vector.load %arg24[%c0_507, %c308] : memref<8x362xbf16, #tpu.memory_space<vmem>>, vector<8x18xbf16>
    %cst_508 = arith.constant dense<0.000000e+00> : vector<8x18xf32>
    %539 = tpu.matmul %537, %538, %cst_508 {dimension_numbers = #tpu.dot_dimension_numbers<[1], [0], [0], [1], [0, 0, 1, 1], [], []>} : vector<8x8xbf16>, vector<8x18xbf16>, vector<8x18xf32> -> vector<8x18xf32>
    %540 = arith.addf %535, %539 : vector<8x18xf32>
    %c0_509 = arith.constant 0 : index
    %c0_510 = arith.constant 0 : index
    %541 = vector.load %arg11[%c0_509, %c0_510] : memref<18x8xf32, #tpu.memory_space<vmem>>, vector<18x8xf32>
    %cst_511 = arith.constant dense<0.000000e+00> : vector<8x8xf32>
    %542 = tpu.matmul %540, %541, %cst_511 {dimension_numbers = #tpu.dot_dimension_numbers<[1], [0], [0], [1], [0, 0, 1, 1], [], []>} : vector<8x18xf32>, vector<18x8xf32>, vector<8x8xf32> -> vector<8x8xf32>
    %c0_512 = arith.constant 0 : index
    %c56_513 = arith.constant 56 : index
    %543 = vector.load %arg27[%c0_512, %c56_513] : memref<8x128xf32, #tpu.memory_space<vmem>>, vector<8x8xf32>
    tpu.vector_store %arg27[%c0_512, %c56_513], %542 {strides = array<i32>} : memref<8x128xf32, #tpu.memory_space<vmem>>, vector<8x8xf32>,
    %c0_514 = arith.constant 0 : index
    %c0_515 = arith.constant 0 : index
    %544 = vector.load %arg27[%c0_514, %c0_515] : memref<8x128xf32, #tpu.memory_space<vmem>>, vector<8x64xf32>
    %cst_516 = arith.constant dense<0.000000e+00> : vector<8xf32>
    %545 = vector.multi_reduction <add>, %544, %cst_516 [1] : vector<8x64xf32> to vector<8xf32>
    %546 = vector.shape_cast %545 : vector<8xf32> to vector<8x1xf32>
    %547 = arith.mulf %544, %544 : vector<8x64xf32>
    %cst_517 = arith.constant dense<0.000000e+00> : vector<8xf32>
    %548 = vector.multi_reduction <add>, %547, %cst_517 [1] : vector<8x64xf32> to vector<8xf32>
    %549 = vector.shape_cast %548 : vector<8xf32> to vector<8x1xf32>
    %cst_518 = arith.constant 6.400000e+01 : f32
    %550 = vector.broadcast %cst_518 : f32 to vector<8x1xf32>
    %551 = arith.mulf %550, %165 : vector<8x1xf32>
    %552 = arith.addf %546, %551 : vector<8x1xf32>
    %cst_519 = arith.constant 2.000000e+00 : f32
    %553 = vector.broadcast %cst_519 : f32 to vector<8x1xf32>
    %554 = arith.mulf %553, %165 : vector<8x1xf32>
    %555 = arith.mulf %554, %546 : vector<8x1xf32>
    %556 = arith.addf %549, %555 : vector<8x1xf32>
    %557 = arith.mulf %551, %165 : vector<8x1xf32>
    %558 = arith.addf %556, %557 : vector<8x1xf32>
    %559 = arith.mulf %552, %4 : vector<8x1xf32>
    %560 = vector.shape_cast %559 : vector<8x1xf32> to vector<1x8x1xf32>
    %cst_520 = arith.constant dense<0.000000e+00> : vector<1xf32>
    %561 = vector.multi_reduction <add>, %560, %cst_520 [1, 2] : vector<1x8x1xf32> to vector<1xf32>
    %562 = vector.shape_cast %561 : vector<1xf32> to vector<1x1x1xf32>
    %563 = vector.extract %562[0, 0, 0] : f32 from vector<1x1x1xf32>
    %564 = vector.broadcast %563 : f32 to vector<1x1xf32>
    %565 = arith.mulf %552, %6 : vector<8x1xf32>
    %566 = vector.shape_cast %565 : vector<8x1xf32> to vector<1x8x1xf32>
    %cst_521 = arith.constant dense<0.000000e+00> : vector<1xf32>
    %567 = vector.multi_reduction <add>, %566, %cst_521 [1, 2] : vector<1x8x1xf32> to vector<1xf32>
    %568 = vector.shape_cast %567 : vector<1xf32> to vector<1x1x1xf32>
    %569 = vector.extract %568[0, 0, 0] : f32 from vector<1x1x1xf32>
    %570 = vector.broadcast %569 : f32 to vector<1x1xf32>
    %571 = arith.mulf %558, %4 : vector<8x1xf32>
    %572 = vector.shape_cast %571 : vector<8x1xf32> to vector<1x8x1xf32>
    %cst_522 = arith.constant dense<0.000000e+00> : vector<1xf32>
    %573 = vector.multi_reduction <add>, %572, %cst_522 [1, 2] : vector<1x8x1xf32> to vector<1xf32>
    %574 = vector.shape_cast %573 : vector<1xf32> to vector<1x1x1xf32>
    %575 = vector.extract %574[0, 0, 0] : f32 from vector<1x1x1xf32>
    %576 = vector.broadcast %575 : f32 to vector<1x1xf32>
    %577 = arith.mulf %558, %6 : vector<8x1xf32>
    %578 = vector.shape_cast %577 : vector<8x1xf32> to vector<1x8x1xf32>
    %cst_523 = arith.constant dense<0.000000e+00> : vector<1xf32>
    %579 = vector.multi_reduction <add>, %578, %cst_523 [1, 2] : vector<1x8x1xf32> to vector<1xf32>
    %580 = vector.shape_cast %579 : vector<1xf32> to vector<1x1x1xf32>
    %581 = vector.extract %580[0, 0, 0] : f32 from vector<1x1x1xf32>
    %582 = vector.broadcast %581 : f32 to vector<1x1xf32>
    %cst_524 = arith.constant 3.906250e-03 : f32
    %583 = vector.broadcast %cst_524 : f32 to vector<1x1xf32>
    %584 = arith.mulf %564, %583 : vector<1x1xf32>
    %cst_525 = arith.constant 3.906250e-03 : f32
    %585 = vector.broadcast %cst_525 : f32 to vector<1x1xf32>
    %586 = arith.mulf %570, %585 : vector<1x1xf32>
    %cst_526 = arith.constant 3.906250e-03 : f32
    %587 = vector.broadcast %cst_526 : f32 to vector<1x1xf32>
    %588 = arith.mulf %576, %587 : vector<1x1xf32>
    %589 = arith.mulf %584, %584 : vector<1x1xf32>
    %590 = arith.subf %588, %589 : vector<1x1xf32>
    %cst_527 = arith.constant 0.000000e+00 : f32
    %591 = vector.broadcast %cst_527 : f32 to vector<1x1xf32>
    %592 = arith.maximumf %590, %591 : vector<1x1xf32>
    %cst_528 = arith.constant 3.906250e-03 : f32
    %593 = vector.broadcast %cst_528 : f32 to vector<1x1xf32>
    %594 = arith.mulf %582, %593 : vector<1x1xf32>
    %595 = arith.mulf %586, %586 : vector<1x1xf32>
    %596 = arith.subf %594, %595 : vector<1x1xf32>
    %cst_529 = arith.constant 0.000000e+00 : f32
    %597 = vector.broadcast %cst_529 : f32 to vector<1x1xf32>
    %598 = arith.maximumf %596, %597 : vector<1x1xf32>
    %cst_530 = arith.constant 9.99999974E-6 : f32
    %599 = vector.broadcast %cst_530 : f32 to vector<1x1xf32>
    %600 = arith.addf %592, %599 : vector<1x1xf32>
    %601 = math.rsqrt %600 : vector<1x1xf32>
    %cst_531 = arith.constant 9.99999974E-6 : f32
    %602 = vector.broadcast %cst_531 : f32 to vector<1x1xf32>
    %603 = arith.addf %598, %602 : vector<1x1xf32>
    %604 = math.rsqrt %603 : vector<1x1xf32>
    %605 = vector.broadcast %584 : vector<1x1xf32> to vector<8x1xf32>
    %606 = arith.mulf %4, %605 : vector<8x1xf32>
    %607 = vector.broadcast %586 : vector<1x1xf32> to vector<8x1xf32>
    %608 = arith.mulf %6, %607 : vector<8x1xf32>
    %609 = arith.addf %606, %608 : vector<8x1xf32>
    %610 = vector.broadcast %601 : vector<1x1xf32> to vector<8x1xf32>
    %611 = arith.mulf %4, %610 : vector<8x1xf32>
    %612 = vector.broadcast %604 : vector<1x1xf32> to vector<8x1xf32>
    %613 = arith.mulf %6, %612 : vector<8x1xf32>
    %614 = arith.addf %611, %613 : vector<8x1xf32>
    %615 = arith.mulf %614, %166 : vector<8x1xf32>
    %616 = arith.subf %165, %609 : vector<8x1xf32>
    %617 = arith.mulf %616, %615 : vector<8x1xf32>
    %618 = arith.addf %617, %167 : vector<8x1xf32>
    %619 = vector.broadcast %615 : vector<8x1xf32> to vector<8x64xf32>
    %620 = arith.mulf %544, %619 : vector<8x64xf32>
    %621 = vector.broadcast %618 : vector<8x1xf32> to vector<8x64xf32>
    %622 = arith.addf %620, %621 : vector<8x64xf32>
    %cst_532 = arith.constant 0.000000e+00 : f32
    %623 = vector.broadcast %cst_532 : f32 to vector<8x64xf32>
    %624 = arith.cmpf ogt, %622, %623 : vector<8x64xf32>
    %cst_533 = arith.constant 2.000000e-01 : f32
    %625 = vector.broadcast %cst_533 : f32 to vector<8x64xf32>
    %626 = arith.mulf %625, %622 : vector<8x64xf32>
    %627 = arith.select %624, %622, %626 : vector<8x64xi1>, vector<8x64xf32>
    %cst_534 = arith.constant 0.000000e+00 : bf16
    %628 = vector.broadcast %cst_534 : bf16 to vector<8x122xbf16>
    %c0_535 = arith.constant 0 : index
    %c0_536 = arith.constant 0 : index
    %629 = vector.load %arg25[%c0_535, %c0_536] : memref<8x122xbf16, #tpu.memory_space<vmem>>, vector<8x122xbf16>
    tpu.vector_store %arg25[%c0_535, %c0_536], %628 {strides = array<i32>} : memref<8x122xbf16, #tpu.memory_space<vmem>>, vector<8x122xbf16>,
    %630 = vector.extract_strided_slice %627 {offsets = [0, 0], sizes = [8, 8], strides = [1, 1]} : vector<8x64xf32> to vector<8x8xf32>
    %631 = arith.truncf %630 : vector<8x8xf32> to vector<8x8xbf16>
    %c0_537 = arith.constant 0 : index
    %c22 = arith.constant 22 : index
    %632 = vector.load %arg25[%c0_537, %c22] : memref<8x122xbf16, #tpu.memory_space<vmem>>, vector<8x8xbf16>
    tpu.vector_store %arg25[%c0_537, %c22], %631 {strides = array<i32>} : memref<8x122xbf16, #tpu.memory_space<vmem>>, vector<8x8xbf16>,
    %633 = vector.extract_strided_slice %627 {offsets = [0, 8], sizes = [8, 8], strides = [1, 1]} : vector<8x64xf32> to vector<8x8xf32>
    %634 = arith.truncf %633 : vector<8x8xf32> to vector<8x8xbf16>
    %c0_538 = arith.constant 0 : index
    %c32_539 = arith.constant 32 : index
    %635 = vector.load %arg25[%c0_538, %c32_539] : memref<8x122xbf16, #tpu.memory_space<vmem>>, vector<8x8xbf16>
    tpu.vector_store %arg25[%c0_538, %c32_539], %634 {strides = array<i32>} : memref<8x122xbf16, #tpu.memory_space<vmem>>, vector<8x8xbf16>,
    %636 = vector.extract_strided_slice %627 {offsets = [0, 16], sizes = [8, 8], strides = [1, 1]} : vector<8x64xf32> to vector<8x8xf32>
    %637 = arith.truncf %636 : vector<8x8xf32> to vector<8x8xbf16>
    %c0_540 = arith.constant 0 : index
    %c42 = arith.constant 42 : index
    %638 = vector.load %arg25[%c0_540, %c42] : memref<8x122xbf16, #tpu.memory_space<vmem>>, vector<8x8xbf16>
    tpu.vector_store %arg25[%c0_540, %c42], %637 {strides = array<i32>} : memref<8x122xbf16, #tpu.memory_space<vmem>>, vector<8x8xbf16>,
    %639 = vector.extract_strided_slice %627 {offsets = [0, 24], sizes = [8, 8], strides = [1, 1]} : vector<8x64xf32> to vector<8x8xf32>
    %640 = arith.truncf %639 : vector<8x8xf32> to vector<8x8xbf16>
    %c0_541 = arith.constant 0 : index
    %c52 = arith.constant 52 : index
    %641 = vector.load %arg25[%c0_541, %c52] : memref<8x122xbf16, #tpu.memory_space<vmem>>, vector<8x8xbf16>
    tpu.vector_store %arg25[%c0_541, %c52], %640 {strides = array<i32>} : memref<8x122xbf16, #tpu.memory_space<vmem>>, vector<8x8xbf16>,
    %642 = vector.extract_strided_slice %627 {offsets = [0, 32], sizes = [8, 8], strides = [1, 1]} : vector<8x64xf32> to vector<8x8xf32>
    %643 = arith.truncf %642 : vector<8x8xf32> to vector<8x8xbf16>
    %c0_542 = arith.constant 0 : index
    %c62 = arith.constant 62 : index
    %644 = vector.load %arg25[%c0_542, %c62] : memref<8x122xbf16, #tpu.memory_space<vmem>>, vector<8x8xbf16>
    tpu.vector_store %arg25[%c0_542, %c62], %643 {strides = array<i32>} : memref<8x122xbf16, #tpu.memory_space<vmem>>, vector<8x8xbf16>,
    %645 = vector.extract_strided_slice %627 {offsets = [0, 40], sizes = [8, 8], strides = [1, 1]} : vector<8x64xf32> to vector<8x8xf32>
    %646 = arith.truncf %645 : vector<8x8xf32> to vector<8x8xbf16>
    %c0_543 = arith.constant 0 : index
    %c72_544 = arith.constant 72 : index
    %647 = vector.load %arg25[%c0_543, %c72_544] : memref<8x122xbf16, #tpu.memory_space<vmem>>, vector<8x8xbf16>
    tpu.vector_store %arg25[%c0_543, %c72_544], %646 {strides = array<i32>} : memref<8x122xbf16, #tpu.memory_space<vmem>>, vector<8x8xbf16>,
    %648 = vector.extract_strided_slice %627 {offsets = [0, 48], sizes = [8, 8], strides = [1, 1]} : vector<8x64xf32> to vector<8x8xf32>
    %649 = arith.truncf %648 : vector<8x8xf32> to vector<8x8xbf16>
    %c0_545 = arith.constant 0 : index
    %c82 = arith.constant 82 : index
    %650 = vector.load %arg25[%c0_545, %c82] : memref<8x122xbf16, #tpu.memory_space<vmem>>, vector<8x8xbf16>
    tpu.vector_store %arg25[%c0_545, %c82], %649 {strides = array<i32>} : memref<8x122xbf16, #tpu.memory_space<vmem>>, vector<8x8xbf16>,
    %651 = vector.extract_strided_slice %627 {offsets = [0, 56], sizes = [8, 8], strides = [1, 1]} : vector<8x64xf32> to vector<8x8xf32>
    %652 = arith.truncf %651 : vector<8x8xf32> to vector<8x8xbf16>
    %c0_546 = arith.constant 0 : index
    %c92_547 = arith.constant 92 : index
    %653 = vector.load %arg25[%c0_546, %c92_547] : memref<8x122xbf16, #tpu.memory_space<vmem>>, vector<8x8xbf16>
    tpu.vector_store %arg25[%c0_546, %c92_547], %652 {strides = array<i32>} : memref<8x122xbf16, #tpu.memory_space<vmem>>, vector<8x8xbf16>,
    %c0_548 = arith.constant 0 : index
    %c0_549 = arith.constant 0 : index
    %654 = vector.load %arg13[%c0_548, %c0_549] : memref<8x1xf32, #tpu.memory_space<vmem>>, vector<8x1xf32>
    %c0_550 = arith.constant 0 : index
    %c0_551 = arith.constant 0 : index
    %655 = vector.load %arg14[%c0_550, %c0_551] : memref<8x1xf32, #tpu.memory_space<vmem>>, vector<8x1xf32>
    %c0_552 = arith.constant 0 : index
    %c0_553 = arith.constant 0 : index
    %656 = vector.load %arg15[%c0_552, %c0_553] : memref<8x1xf32, #tpu.memory_space<vmem>>, vector<8x1xf32>
    %c0_554 = arith.constant 0 : index
    %c0_555 = arith.constant 0 : index
    %c0_556 = arith.constant 0 : index
    %657 = vector.load %arg12[%c0_554, %c0_555, %c0_556] : memref<9x8x8xbf16, #tpu.memory_space<vmem>>, vector<1x8x8xbf16>
    %658 = vector.shape_cast %657 : vector<1x8x8xbf16> to vector<8x8xbf16>
    %c0_557 = arith.constant 0 : index
    %c0_558 = arith.constant 0 : index
    %659 = vector.load %arg25[%c0_557, %c0_558] : memref<8x122xbf16, #tpu.memory_space<vmem>>, vector<8x100xbf16>
    %cst_559 = arith.constant dense<0.000000e+00> : vector<8x100xf32>
    %660 = tpu.matmul %658, %659, %cst_559 {dimension_numbers = #tpu.dot_dimension_numbers<[1], [0], [0], [1], [0, 0, 1, 1], [], []>} : vector<8x8xbf16>, vector<8x100xbf16>, vector<8x100xf32> -> vector<8x100xf32>
    %c1_560 = arith.constant 1 : index
    %c0_561 = arith.constant 0 : index
    %c0_562 = arith.constant 0 : index
    %661 = vector.load %arg12[%c1_560, %c0_561, %c0_562] : memref<9x8x8xbf16, #tpu.memory_space<vmem>>, vector<1x8x8xbf16>
    %662 = vector.shape_cast %661 : vector<1x8x8xbf16> to vector<8x8xbf16>
    %c0_563 = arith.constant 0 : index
    %c1_564 = arith.constant 1 : index
    %663 = vector.load %arg25[%c0_563, %c1_564] : memref<8x122xbf16, #tpu.memory_space<vmem>>, vector<8x100xbf16>
    %cst_565 = arith.constant dense<0.000000e+00> : vector<8x100xf32>
    %664 = tpu.matmul %662, %663, %cst_565 {dimension_numbers = #tpu.dot_dimension_numbers<[1], [0], [0], [1], [0, 0, 1, 1], [], []>} : vector<8x8xbf16>, vector<8x100xbf16>, vector<8x100xf32> -> vector<8x100xf32>
    %665 = arith.addf %660, %664 : vector<8x100xf32>
    %c2_566 = arith.constant 2 : index
    %c0_567 = arith.constant 0 : index
    %c0_568 = arith.constant 0 : index
    %666 = vector.load %arg12[%c2_566, %c0_567, %c0_568] : memref<9x8x8xbf16, #tpu.memory_space<vmem>>, vector<1x8x8xbf16>
    %667 = vector.shape_cast %666 : vector<1x8x8xbf16> to vector<8x8xbf16>
    %c0_569 = arith.constant 0 : index
    %c2_570 = arith.constant 2 : index
    %668 = vector.load %arg25[%c0_569, %c2_570] : memref<8x122xbf16, #tpu.memory_space<vmem>>, vector<8x100xbf16>
    %cst_571 = arith.constant dense<0.000000e+00> : vector<8x100xf32>
    %669 = tpu.matmul %667, %668, %cst_571 {dimension_numbers = #tpu.dot_dimension_numbers<[1], [0], [0], [1], [0, 0, 1, 1], [], []>} : vector<8x8xbf16>, vector<8x100xbf16>, vector<8x100xf32> -> vector<8x100xf32>
    %670 = arith.addf %665, %669 : vector<8x100xf32>
    %c3_572 = arith.constant 3 : index
    %c0_573 = arith.constant 0 : index
    %c0_574 = arith.constant 0 : index
    %671 = vector.load %arg12[%c3_572, %c0_573, %c0_574] : memref<9x8x8xbf16, #tpu.memory_space<vmem>>, vector<1x8x8xbf16>
    %672 = vector.shape_cast %671 : vector<1x8x8xbf16> to vector<8x8xbf16>
    %c0_575 = arith.constant 0 : index
    %c10 = arith.constant 10 : index
    %673 = vector.load %arg25[%c0_575, %c10] : memref<8x122xbf16, #tpu.memory_space<vmem>>, vector<8x100xbf16>
    %cst_576 = arith.constant dense<0.000000e+00> : vector<8x100xf32>
    %674 = tpu.matmul %672, %673, %cst_576 {dimension_numbers = #tpu.dot_dimension_numbers<[1], [0], [0], [1], [0, 0, 1, 1], [], []>} : vector<8x8xbf16>, vector<8x100xbf16>, vector<8x100xf32> -> vector<8x100xf32>
    %675 = arith.addf %670, %674 : vector<8x100xf32>
    %c4_577 = arith.constant 4 : index
    %c0_578 = arith.constant 0 : index
    %c0_579 = arith.constant 0 : index
    %676 = vector.load %arg12[%c4_577, %c0_578, %c0_579] : memref<9x8x8xbf16, #tpu.memory_space<vmem>>, vector<1x8x8xbf16>
    %677 = vector.shape_cast %676 : vector<1x8x8xbf16> to vector<8x8xbf16>
    %c0_580 = arith.constant 0 : index
    %c11 = arith.constant 11 : index
    %678 = vector.load %arg25[%c0_580, %c11] : memref<8x122xbf16, #tpu.memory_space<vmem>>, vector<8x100xbf16>
    %cst_581 = arith.constant dense<0.000000e+00> : vector<8x100xf32>
    %679 = tpu.matmul %677, %678, %cst_581 {dimension_numbers = #tpu.dot_dimension_numbers<[1], [0], [0], [1], [0, 0, 1, 1], [], []>} : vector<8x8xbf16>, vector<8x100xbf16>, vector<8x100xf32> -> vector<8x100xf32>
    %680 = arith.addf %675, %679 : vector<8x100xf32>
    %c5_582 = arith.constant 5 : index
    %c0_583 = arith.constant 0 : index
    %c0_584 = arith.constant 0 : index
    %681 = vector.load %arg12[%c5_582, %c0_583, %c0_584] : memref<9x8x8xbf16, #tpu.memory_space<vmem>>, vector<1x8x8xbf16>
    %682 = vector.shape_cast %681 : vector<1x8x8xbf16> to vector<8x8xbf16>
    %c0_585 = arith.constant 0 : index
    %c12 = arith.constant 12 : index
    %683 = vector.load %arg25[%c0_585, %c12] : memref<8x122xbf16, #tpu.memory_space<vmem>>, vector<8x100xbf16>
    %cst_586 = arith.constant dense<0.000000e+00> : vector<8x100xf32>
    %684 = tpu.matmul %682, %683, %cst_586 {dimension_numbers = #tpu.dot_dimension_numbers<[1], [0], [0], [1], [0, 0, 1, 1], [], []>} : vector<8x8xbf16>, vector<8x100xbf16>, vector<8x100xf32> -> vector<8x100xf32>
    %685 = arith.addf %680, %684 : vector<8x100xf32>
    %c6_587 = arith.constant 6 : index
    %c0_588 = arith.constant 0 : index
    %c0_589 = arith.constant 0 : index
    %686 = vector.load %arg12[%c6_587, %c0_588, %c0_589] : memref<9x8x8xbf16, #tpu.memory_space<vmem>>, vector<1x8x8xbf16>
    %687 = vector.shape_cast %686 : vector<1x8x8xbf16> to vector<8x8xbf16>
    %c0_590 = arith.constant 0 : index
    %c20_591 = arith.constant 20 : index
    %688 = vector.load %arg25[%c0_590, %c20_591] : memref<8x122xbf16, #tpu.memory_space<vmem>>, vector<8x100xbf16>
    %cst_592 = arith.constant dense<0.000000e+00> : vector<8x100xf32>
    %689 = tpu.matmul %687, %688, %cst_592 {dimension_numbers = #tpu.dot_dimension_numbers<[1], [0], [0], [1], [0, 0, 1, 1], [], []>} : vector<8x8xbf16>, vector<8x100xbf16>, vector<8x100xf32> -> vector<8x100xf32>
    %690 = arith.addf %685, %689 : vector<8x100xf32>
    %c7_593 = arith.constant 7 : index
    %c0_594 = arith.constant 0 : index
    %c0_595 = arith.constant 0 : index
    %691 = vector.load %arg12[%c7_593, %c0_594, %c0_595] : memref<9x8x8xbf16, #tpu.memory_space<vmem>>, vector<1x8x8xbf16>
    %692 = vector.shape_cast %691 : vector<1x8x8xbf16> to vector<8x8xbf16>
    %c0_596 = arith.constant 0 : index
    %c21 = arith.constant 21 : index
    %693 = vector.load %arg25[%c0_596, %c21] : memref<8x122xbf16, #tpu.memory_space<vmem>>, vector<8x100xbf16>
    %cst_597 = arith.constant dense<0.000000e+00> : vector<8x100xf32>
    %694 = tpu.matmul %692, %693, %cst_597 {dimension_numbers = #tpu.dot_dimension_numbers<[1], [0], [0], [1], [0, 0, 1, 1], [], []>} : vector<8x8xbf16>, vector<8x100xbf16>, vector<8x100xf32> -> vector<8x100xf32>
    %695 = arith.addf %690, %694 : vector<8x100xf32>
    %c8_598 = arith.constant 8 : index
    %c0_599 = arith.constant 0 : index
    %c0_600 = arith.constant 0 : index
    %696 = vector.load %arg12[%c8_598, %c0_599, %c0_600] : memref<9x8x8xbf16, #tpu.memory_space<vmem>>, vector<1x8x8xbf16>
    %697 = vector.shape_cast %696 : vector<1x8x8xbf16> to vector<8x8xbf16>
    %c0_601 = arith.constant 0 : index
    %c22_602 = arith.constant 22 : index
    %698 = vector.load %arg25[%c0_601, %c22_602] : memref<8x122xbf16, #tpu.memory_space<vmem>>, vector<8x100xbf16>
    %cst_603 = arith.constant dense<0.000000e+00> : vector<8x100xf32>
    %699 = tpu.matmul %697, %698, %cst_603 {dimension_numbers = #tpu.dot_dimension_numbers<[1], [0], [0], [1], [0, 0, 1, 1], [], []>} : vector<8x8xbf16>, vector<8x100xbf16>, vector<8x100xf32> -> vector<8x100xf32>
    %700 = arith.addf %695, %699 : vector<8x100xf32>
    %c0_604 = arith.constant 0 : index
    %c0_605 = arith.constant 0 : index
    %701 = vector.load %arg16[%c0_604, %c0_605] : memref<1x100xf32, #tpu.memory_space<vmem>>, vector<1x100xf32>
    %cst_606 = arith.constant 5.000000e-01 : f32
    %702 = vector.broadcast %cst_606 : f32 to vector<1x100xf32>
    %703 = arith.cmpf ogt, %701, %702 : vector<1x100xf32>
    %cst_607 = arith.constant 0.000000e+00 : f32
    %704 = vector.shape_cast %703 : vector<1x100xi1> to vector<1x100xi1>
    %705 = vector.broadcast %704 : vector<1x100xi1> to vector<8x100xi1>
    %706 = vector.broadcast %cst_607 : f32 to vector<8x100xf32>
    %707 = arith.select %705, %700, %706 : vector<8x100xi1>, vector<8x100xf32>
    %cst_608 = arith.constant dense<0.000000e+00> : vector<8xf32>
    %708 = vector.multi_reduction <add>, %707, %cst_608 [1] : vector<8x100xf32> to vector<8xf32>
    %709 = vector.shape_cast %708 : vector<8xf32> to vector<8x1xf32>
    %710 = arith.mulf %707, %707 : vector<8x100xf32>
    %cst_609 = arith.constant dense<0.000000e+00> : vector<8xf32>
    %711 = vector.multi_reduction <add>, %710, %cst_609 [1] : vector<8x100xf32> to vector<8xf32>
    %712 = vector.shape_cast %711 : vector<8xf32> to vector<8x1xf32>
    %cst_610 = arith.constant 6.400000e+01 : f32
    %713 = vector.broadcast %cst_610 : f32 to vector<8x1xf32>
    %714 = arith.mulf %713, %654 : vector<8x1xf32>
    %715 = arith.addf %709, %714 : vector<8x1xf32>
    %cst_611 = arith.constant 2.000000e+00 : f32
    %716 = vector.broadcast %cst_611 : f32 to vector<8x1xf32>
    %717 = arith.mulf %716, %654 : vector<8x1xf32>
    %718 = arith.mulf %717, %709 : vector<8x1xf32>
    %719 = arith.addf %712, %718 : vector<8x1xf32>
    %720 = arith.mulf %714, %654 : vector<8x1xf32>
    %721 = arith.addf %719, %720 : vector<8x1xf32>
    %722 = arith.mulf %715, %4 : vector<8x1xf32>
    %723 = vector.shape_cast %722 : vector<8x1xf32> to vector<1x8x1xf32>
    %cst_612 = arith.constant dense<0.000000e+00> : vector<1xf32>
    %724 = vector.multi_reduction <add>, %723, %cst_612 [1, 2] : vector<1x8x1xf32> to vector<1xf32>
    %725 = vector.shape_cast %724 : vector<1xf32> to vector<1x1x1xf32>
    %726 = vector.extract %725[0, 0, 0] : f32 from vector<1x1x1xf32>
    %727 = vector.broadcast %726 : f32 to vector<1x1xf32>
    %728 = arith.mulf %715, %6 : vector<8x1xf32>
    %729 = vector.shape_cast %728 : vector<8x1xf32> to vector<1x8x1xf32>
    %cst_613 = arith.constant dense<0.000000e+00> : vector<1xf32>
    %730 = vector.multi_reduction <add>, %729, %cst_613 [1, 2] : vector<1x8x1xf32> to vector<1xf32>
    %731 = vector.shape_cast %730 : vector<1xf32> to vector<1x1x1xf32>
    %732 = vector.extract %731[0, 0, 0] : f32 from vector<1x1x1xf32>
    %733 = vector.broadcast %732 : f32 to vector<1x1xf32>
    %734 = arith.mulf %721, %4 : vector<8x1xf32>
    %735 = vector.shape_cast %734 : vector<8x1xf32> to vector<1x8x1xf32>
    %cst_614 = arith.constant dense<0.000000e+00> : vector<1xf32>
    %736 = vector.multi_reduction <add>, %735, %cst_614 [1, 2] : vector<1x8x1xf32> to vector<1xf32>
    %737 = vector.shape_cast %736 : vector<1xf32> to vector<1x1x1xf32>
    %738 = vector.extract %737[0, 0, 0] : f32 from vector<1x1x1xf32>
    %739 = vector.broadcast %738 : f32 to vector<1x1xf32>
    %740 = arith.mulf %721, %6 : vector<8x1xf32>
    %741 = vector.shape_cast %740 : vector<8x1xf32> to vector<1x8x1xf32>
    %cst_615 = arith.constant dense<0.000000e+00> : vector<1xf32>
    %742 = vector.multi_reduction <add>, %741, %cst_615 [1, 2] : vector<1x8x1xf32> to vector<1xf32>
    %743 = vector.shape_cast %742 : vector<1xf32> to vector<1x1x1xf32>
    %744 = vector.extract %743[0, 0, 0] : f32 from vector<1x1x1xf32>
    %745 = vector.broadcast %744 : f32 to vector<1x1xf32>
    %cst_616 = arith.constant 3.906250e-03 : f32
    %746 = vector.broadcast %cst_616 : f32 to vector<1x1xf32>
    %747 = arith.mulf %727, %746 : vector<1x1xf32>
    %cst_617 = arith.constant 3.906250e-03 : f32
    %748 = vector.broadcast %cst_617 : f32 to vector<1x1xf32>
    %749 = arith.mulf %733, %748 : vector<1x1xf32>
    %cst_618 = arith.constant 3.906250e-03 : f32
    %750 = vector.broadcast %cst_618 : f32 to vector<1x1xf32>
    %751 = arith.mulf %739, %750 : vector<1x1xf32>
    %752 = arith.mulf %747, %747 : vector<1x1xf32>
    %753 = arith.subf %751, %752 : vector<1x1xf32>
    %cst_619 = arith.constant 0.000000e+00 : f32
    %754 = vector.broadcast %cst_619 : f32 to vector<1x1xf32>
    %755 = arith.maximumf %753, %754 : vector<1x1xf32>
    %cst_620 = arith.constant 3.906250e-03 : f32
    %756 = vector.broadcast %cst_620 : f32 to vector<1x1xf32>
    %757 = arith.mulf %745, %756 : vector<1x1xf32>
    %758 = arith.mulf %749, %749 : vector<1x1xf32>
    %759 = arith.subf %757, %758 : vector<1x1xf32>
    %cst_621 = arith.constant 0.000000e+00 : f32
    %760 = vector.broadcast %cst_621 : f32 to vector<1x1xf32>
    %761 = arith.maximumf %759, %760 : vector<1x1xf32>
    %cst_622 = arith.constant 9.99999974E-6 : f32
    %762 = vector.broadcast %cst_622 : f32 to vector<1x1xf32>
    %763 = arith.addf %755, %762 : vector<1x1xf32>
    %764 = math.rsqrt %763 : vector<1x1xf32>
    %cst_623 = arith.constant 9.99999974E-6 : f32
    %765 = vector.broadcast %cst_623 : f32 to vector<1x1xf32>
    %766 = arith.addf %761, %765 : vector<1x1xf32>
    %767 = math.rsqrt %766 : vector<1x1xf32>
    %768 = vector.broadcast %747 : vector<1x1xf32> to vector<8x1xf32>
    %769 = arith.mulf %4, %768 : vector<8x1xf32>
    %770 = vector.broadcast %749 : vector<1x1xf32> to vector<8x1xf32>
    %771 = arith.mulf %6, %770 : vector<8x1xf32>
    %772 = arith.addf %769, %771 : vector<8x1xf32>
    %773 = vector.broadcast %764 : vector<1x1xf32> to vector<8x1xf32>
    %774 = arith.mulf %4, %773 : vector<8x1xf32>
    %775 = vector.broadcast %767 : vector<1x1xf32> to vector<8x1xf32>
    %776 = arith.mulf %6, %775 : vector<8x1xf32>
    %777 = arith.addf %774, %776 : vector<8x1xf32>
    %778 = arith.mulf %777, %655 : vector<8x1xf32>
    %779 = arith.subf %654, %772 : vector<8x1xf32>
    %780 = arith.mulf %779, %778 : vector<8x1xf32>
    %781 = arith.addf %780, %656 : vector<8x1xf32>
    %782 = vector.broadcast %778 : vector<8x1xf32> to vector<8x100xf32>
    %783 = arith.mulf %700, %782 : vector<8x100xf32>
    %784 = vector.broadcast %781 : vector<8x1xf32> to vector<8x100xf32>
    %785 = arith.addf %783, %784 : vector<8x100xf32>
    %cst_624 = arith.constant 0.000000e+00 : f32
    %786 = vector.broadcast %cst_624 : f32 to vector<8x100xf32>
    %787 = arith.cmpf ogt, %785, %786 : vector<8x100xf32>
    %cst_625 = arith.constant 2.000000e-01 : f32
    %788 = vector.broadcast %cst_625 : f32 to vector<8x100xf32>
    %789 = arith.mulf %788, %785 : vector<8x100xf32>
    %790 = arith.select %787, %785, %789 : vector<8x100xi1>, vector<8x100xf32>
    %cst_626 = arith.constant 0.000000e+00 : f32
    %791 = vector.shape_cast %703 : vector<1x100xi1> to vector<1x100xi1>
    %792 = vector.broadcast %791 : vector<1x100xi1> to vector<8x100xi1>
    %793 = vector.broadcast %cst_626 : f32 to vector<8x100xf32>
    %794 = arith.select %792, %790, %793 : vector<8x100xi1>, vector<8x100xf32>
    %cst_627 = arith.constant 0.000000e+00 : bf16
    %795 = vector.broadcast %cst_627 : bf16 to vector<8x11xbf16>
    %c0_628 = arith.constant 0 : index
    %c0_629 = arith.constant 0 : index
    %796 = vector.load %arg26[%c0_628, %c0_629] : memref<8x122xbf16, #tpu.memory_space<vmem>>, vector<8x11xbf16>
    tpu.vector_store %arg26[%c0_628, %c0_629], %795 {strides = array<i32>} : memref<8x122xbf16, #tpu.memory_space<vmem>>, vector<8x11xbf16>,
    %c0_630 = arith.constant 0 : index
    %c111 = arith.constant 111 : index
    %797 = vector.load %arg26[%c0_630, %c111] : memref<8x122xbf16, #tpu.memory_space<vmem>>, vector<8x11xbf16>
    tpu.vector_store %arg26[%c0_630, %c111], %795 {strides = array<i32>} : memref<8x122xbf16, #tpu.memory_space<vmem>>, vector<8x11xbf16>,
    %798 = arith.truncf %794 : vector<8x100xf32> to vector<8x100xbf16>
    %c0_631 = arith.constant 0 : index
    %c11_632 = arith.constant 11 : index
    %799 = vector.load %arg26[%c0_631, %c11_632] : memref<8x122xbf16, #tpu.memory_space<vmem>>, vector<8x100xbf16>
    tpu.vector_store %arg26[%c0_631, %c11_632], %798 {strides = array<i32>} : memref<8x122xbf16, #tpu.memory_space<vmem>>, vector<8x100xbf16>,
    %c0_633 = arith.constant 0 : index
    %c0_634 = arith.constant 0 : index
    %800 = vector.load %arg18[%c0_633, %c0_634] : memref<8x1xf32, #tpu.memory_space<vmem>>, vector<8x1xf32>
    %c0_635 = arith.constant 0 : index
    %c0_636 = arith.constant 0 : index
    %801 = vector.load %arg19[%c0_635, %c0_636] : memref<8x1xf32, #tpu.memory_space<vmem>>, vector<8x1xf32>
    %c0_637 = arith.constant 0 : index
    %c0_638 = arith.constant 0 : index
    %802 = vector.load %arg20[%c0_637, %c0_638] : memref<8x1xf32, #tpu.memory_space<vmem>>, vector<8x1xf32>
    %c0_639 = arith.constant 0 : index
    %c0_640 = arith.constant 0 : index
    %c0_641 = arith.constant 0 : index
    %803 = vector.load %arg17[%c0_639, %c0_640, %c0_641] : memref<9x8x8xbf16, #tpu.memory_space<vmem>>, vector<1x8x8xbf16>
    %804 = vector.shape_cast %803 : vector<1x8x8xbf16> to vector<8x8xbf16>
    %c0_642 = arith.constant 0 : index
    %c10_643 = arith.constant 10 : index
    %805 = vector.load %arg26[%c0_642, %c10_643] : memref<8x122xbf16, #tpu.memory_space<vmem>>, vector<8x10xbf16>
    %cst_644 = arith.constant dense<0.000000e+00> : vector<8x10xf32>
    %806 = tpu.matmul %804, %805, %cst_644 {dimension_numbers = #tpu.dot_dimension_numbers<[1], [0], [0], [1], [0, 0, 1, 1], [], []>} : vector<8x8xbf16>, vector<8x10xbf16>, vector<8x10xf32> -> vector<8x10xf32>
    %c1_645 = arith.constant 1 : index
    %c0_646 = arith.constant 0 : index
    %c0_647 = arith.constant 0 : index
    %807 = vector.load %arg17[%c1_645, %c0_646, %c0_647] : memref<9x8x8xbf16, #tpu.memory_space<vmem>>, vector<1x8x8xbf16>
    %808 = vector.shape_cast %807 : vector<1x8x8xbf16> to vector<8x8xbf16>
    %c0_648 = arith.constant 0 : index
    %c11_649 = arith.constant 11 : index
    %809 = vector.load %arg26[%c0_648, %c11_649] : memref<8x122xbf16, #tpu.memory_space<vmem>>, vector<8x10xbf16>
    %cst_650 = arith.constant dense<0.000000e+00> : vector<8x10xf32>
    %810 = tpu.matmul %808, %809, %cst_650 {dimension_numbers = #tpu.dot_dimension_numbers<[1], [0], [0], [1], [0, 0, 1, 1], [], []>} : vector<8x8xbf16>, vector<8x10xbf16>, vector<8x10xf32> -> vector<8x10xf32>
    %811 = arith.addf %806, %810 : vector<8x10xf32>
    %c2_651 = arith.constant 2 : index
    %c0_652 = arith.constant 0 : index
    %c0_653 = arith.constant 0 : index
    %812 = vector.load %arg17[%c2_651, %c0_652, %c0_653] : memref<9x8x8xbf16, #tpu.memory_space<vmem>>, vector<1x8x8xbf16>
    %813 = vector.shape_cast %812 : vector<1x8x8xbf16> to vector<8x8xbf16>
    %c0_654 = arith.constant 0 : index
    %c12_655 = arith.constant 12 : index
    %814 = vector.load %arg26[%c0_654, %c12_655] : memref<8x122xbf16, #tpu.memory_space<vmem>>, vector<8x10xbf16>
    %cst_656 = arith.constant dense<0.000000e+00> : vector<8x10xf32>
    %815 = tpu.matmul %813, %814, %cst_656 {dimension_numbers = #tpu.dot_dimension_numbers<[1], [0], [0], [1], [0, 0, 1, 1], [], []>} : vector<8x8xbf16>, vector<8x10xbf16>, vector<8x10xf32> -> vector<8x10xf32>
    %816 = arith.addf %811, %815 : vector<8x10xf32>
    %c3_657 = arith.constant 3 : index
    %c0_658 = arith.constant 0 : index
    %c0_659 = arith.constant 0 : index
    %817 = vector.load %arg17[%c3_657, %c0_658, %c0_659] : memref<9x8x8xbf16, #tpu.memory_space<vmem>>, vector<1x8x8xbf16>
    %818 = vector.shape_cast %817 : vector<1x8x8xbf16> to vector<8x8xbf16>
    %c0_660 = arith.constant 0 : index
    %c20_661 = arith.constant 20 : index
    %819 = vector.load %arg26[%c0_660, %c20_661] : memref<8x122xbf16, #tpu.memory_space<vmem>>, vector<8x10xbf16>
    %cst_662 = arith.constant dense<0.000000e+00> : vector<8x10xf32>
    %820 = tpu.matmul %818, %819, %cst_662 {dimension_numbers = #tpu.dot_dimension_numbers<[1], [0], [0], [1], [0, 0, 1, 1], [], []>} : vector<8x8xbf16>, vector<8x10xbf16>, vector<8x10xf32> -> vector<8x10xf32>
    %821 = arith.addf %816, %820 : vector<8x10xf32>
    %c4_663 = arith.constant 4 : index
    %c0_664 = arith.constant 0 : index
    %c0_665 = arith.constant 0 : index
    %822 = vector.load %arg17[%c4_663, %c0_664, %c0_665] : memref<9x8x8xbf16, #tpu.memory_space<vmem>>, vector<1x8x8xbf16>
    %823 = vector.shape_cast %822 : vector<1x8x8xbf16> to vector<8x8xbf16>
    %c0_666 = arith.constant 0 : index
    %c21_667 = arith.constant 21 : index
    %824 = vector.load %arg26[%c0_666, %c21_667] : memref<8x122xbf16, #tpu.memory_space<vmem>>, vector<8x10xbf16>
    %cst_668 = arith.constant dense<0.000000e+00> : vector<8x10xf32>
    %825 = tpu.matmul %823, %824, %cst_668 {dimension_numbers = #tpu.dot_dimension_numbers<[1], [0], [0], [1], [0, 0, 1, 1], [], []>} : vector<8x8xbf16>, vector<8x10xbf16>, vector<8x10xf32> -> vector<8x10xf32>
    %826 = arith.addf %821, %825 : vector<8x10xf32>
    %c5_669 = arith.constant 5 : index
    %c0_670 = arith.constant 0 : index
    %c0_671 = arith.constant 0 : index
    %827 = vector.load %arg17[%c5_669, %c0_670, %c0_671] : memref<9x8x8xbf16, #tpu.memory_space<vmem>>, vector<1x8x8xbf16>
    %828 = vector.shape_cast %827 : vector<1x8x8xbf16> to vector<8x8xbf16>
    %c0_672 = arith.constant 0 : index
    %c22_673 = arith.constant 22 : index
    %829 = vector.load %arg26[%c0_672, %c22_673] : memref<8x122xbf16, #tpu.memory_space<vmem>>, vector<8x10xbf16>
    %cst_674 = arith.constant dense<0.000000e+00> : vector<8x10xf32>
    %830 = tpu.matmul %828, %829, %cst_674 {dimension_numbers = #tpu.dot_dimension_numbers<[1], [0], [0], [1], [0, 0, 1, 1], [], []>} : vector<8x8xbf16>, vector<8x10xbf16>, vector<8x10xf32> -> vector<8x10xf32>
    %831 = arith.addf %826, %830 : vector<8x10xf32>
    %c6_675 = arith.constant 6 : index
    %c0_676 = arith.constant 0 : index
    %c0_677 = arith.constant 0 : index
    %832 = vector.load %arg17[%c6_675, %c0_676, %c0_677] : memref<9x8x8xbf16, #tpu.memory_space<vmem>>, vector<1x8x8xbf16>
    %833 = vector.shape_cast %832 : vector<1x8x8xbf16> to vector<8x8xbf16>
    %c0_678 = arith.constant 0 : index
    %c30 = arith.constant 30 : index
    %834 = vector.load %arg26[%c0_678, %c30] : memref<8x122xbf16, #tpu.memory_space<vmem>>, vector<8x10xbf16>
    %cst_679 = arith.constant dense<0.000000e+00> : vector<8x10xf32>
    %835 = tpu.matmul %833, %834, %cst_679 {dimension_numbers = #tpu.dot_dimension_numbers<[1], [0], [0], [1], [0, 0, 1, 1], [], []>} : vector<8x8xbf16>, vector<8x10xbf16>, vector<8x10xf32> -> vector<8x10xf32>
    %836 = arith.addf %831, %835 : vector<8x10xf32>
    %c7_680 = arith.constant 7 : index
    %c0_681 = arith.constant 0 : index
    %c0_682 = arith.constant 0 : index
    %837 = vector.load %arg17[%c7_680, %c0_681, %c0_682] : memref<9x8x8xbf16, #tpu.memory_space<vmem>>, vector<1x8x8xbf16>
    %838 = vector.shape_cast %837 : vector<1x8x8xbf16> to vector<8x8xbf16>
    %c0_683 = arith.constant 0 : index
    %c31 = arith.constant 31 : index
    %839 = vector.load %arg26[%c0_683, %c31] : memref<8x122xbf16, #tpu.memory_space<vmem>>, vector<8x10xbf16>
    %cst_684 = arith.constant dense<0.000000e+00> : vector<8x10xf32>
    %840 = tpu.matmul %838, %839, %cst_684 {dimension_numbers = #tpu.dot_dimension_numbers<[1], [0], [0], [1], [0, 0, 1, 1], [], []>} : vector<8x8xbf16>, vector<8x10xbf16>, vector<8x10xf32> -> vector<8x10xf32>
    %841 = arith.addf %836, %840 : vector<8x10xf32>
    %c8_685 = arith.constant 8 : index
    %c0_686 = arith.constant 0 : index
    %c0_687 = arith.constant 0 : index
    %842 = vector.load %arg17[%c8_685, %c0_686, %c0_687] : memref<9x8x8xbf16, #tpu.memory_space<vmem>>, vector<1x8x8xbf16>
    %843 = vector.shape_cast %842 : vector<1x8x8xbf16> to vector<8x8xbf16>
    %c0_688 = arith.constant 0 : index
    %c32_689 = arith.constant 32 : index
    %844 = vector.load %arg26[%c0_688, %c32_689] : memref<8x122xbf16, #tpu.memory_space<vmem>>, vector<8x10xbf16>
    %cst_690 = arith.constant dense<0.000000e+00> : vector<8x10xf32>
    %845 = tpu.matmul %843, %844, %cst_690 {dimension_numbers = #tpu.dot_dimension_numbers<[1], [0], [0], [1], [0, 0, 1, 1], [], []>} : vector<8x8xbf16>, vector<8x10xbf16>, vector<8x10xf32> -> vector<8x10xf32>
    %846 = arith.addf %841, %845 : vector<8x10xf32>
    %c0_691 = arith.constant 0 : index
    %c0_692 = arith.constant 0 : index
    %847 = vector.load %arg21[%c0_691, %c0_692] : memref<10x4xf32, #tpu.memory_space<vmem>>, vector<10x4xf32>
    %cst_693 = arith.constant dense<0.000000e+00> : vector<8x4xf32>
    %848 = tpu.matmul %846, %847, %cst_693 {dimension_numbers = #tpu.dot_dimension_numbers<[1], [0], [0], [1], [0, 0, 1, 1], [], []>} : vector<8x10xf32>, vector<10x4xf32>, vector<8x4xf32> -> vector<8x4xf32>
    %c0_694 = arith.constant 0 : index
    %c0_695 = arith.constant 0 : index
    %849 = vector.load %arg27[%c0_694, %c0_695] : memref<8x128xf32, #tpu.memory_space<vmem>>, vector<8x4xf32>
    tpu.vector_store %arg27[%c0_694, %c0_695], %848 {strides = array<i32>} : memref<8x128xf32, #tpu.memory_space<vmem>>, vector<8x4xf32>,
    %c0_696 = arith.constant 0 : index
    %c0_697 = arith.constant 0 : index
    %c0_698 = arith.constant 0 : index
    %850 = vector.load %arg17[%c0_696, %c0_697, %c0_698] : memref<9x8x8xbf16, #tpu.memory_space<vmem>>, vector<1x8x8xbf16>
    %851 = vector.shape_cast %850 : vector<1x8x8xbf16> to vector<8x8xbf16>
    %c0_699 = arith.constant 0 : index
    %c30_700 = arith.constant 30 : index
    %852 = vector.load %arg26[%c0_699, %c30_700] : memref<8x122xbf16, #tpu.memory_space<vmem>>, vector<8x10xbf16>
    %cst_701 = arith.constant dense<0.000000e+00> : vector<8x10xf32>
    %853 = tpu.matmul %851, %852, %cst_701 {dimension_numbers = #tpu.dot_dimension_numbers<[1], [0], [0], [1], [0, 0, 1, 1], [], []>} : vector<8x8xbf16>, vector<8x10xbf16>, vector<8x10xf32> -> vector<8x10xf32>
    %c1_702 = arith.constant 1 : index
    %c0_703 = arith.constant 0 : index
    %c0_704 = arith.constant 0 : index
    %854 = vector.load %arg17[%c1_702, %c0_703, %c0_704] : memref<9x8x8xbf16, #tpu.memory_space<vmem>>, vector<1x8x8xbf16>
    %855 = vector.shape_cast %854 : vector<1x8x8xbf16> to vector<8x8xbf16>
    %c0_705 = arith.constant 0 : index
    %c31_706 = arith.constant 31 : index
    %856 = vector.load %arg26[%c0_705, %c31_706] : memref<8x122xbf16, #tpu.memory_space<vmem>>, vector<8x10xbf16>
    %cst_707 = arith.constant dense<0.000000e+00> : vector<8x10xf32>
    %857 = tpu.matmul %855, %856, %cst_707 {dimension_numbers = #tpu.dot_dimension_numbers<[1], [0], [0], [1], [0, 0, 1, 1], [], []>} : vector<8x8xbf16>, vector<8x10xbf16>, vector<8x10xf32> -> vector<8x10xf32>
    %858 = arith.addf %853, %857 : vector<8x10xf32>
    %c2_708 = arith.constant 2 : index
    %c0_709 = arith.constant 0 : index
    %c0_710 = arith.constant 0 : index
    %859 = vector.load %arg17[%c2_708, %c0_709, %c0_710] : memref<9x8x8xbf16, #tpu.memory_space<vmem>>, vector<1x8x8xbf16>
    %860 = vector.shape_cast %859 : vector<1x8x8xbf16> to vector<8x8xbf16>
    %c0_711 = arith.constant 0 : index
    %c32_712 = arith.constant 32 : index
    %861 = vector.load %arg26[%c0_711, %c32_712] : memref<8x122xbf16, #tpu.memory_space<vmem>>, vector<8x10xbf16>
    %cst_713 = arith.constant dense<0.000000e+00> : vector<8x10xf32>
    %862 = tpu.matmul %860, %861, %cst_713 {dimension_numbers = #tpu.dot_dimension_numbers<[1], [0], [0], [1], [0, 0, 1, 1], [], []>} : vector<8x8xbf16>, vector<8x10xbf16>, vector<8x10xf32> -> vector<8x10xf32>
    %863 = arith.addf %858, %862 : vector<8x10xf32>
    %c3_714 = arith.constant 3 : index
    %c0_715 = arith.constant 0 : index
    %c0_716 = arith.constant 0 : index
    %864 = vector.load %arg17[%c3_714, %c0_715, %c0_716] : memref<9x8x8xbf16, #tpu.memory_space<vmem>>, vector<1x8x8xbf16>
    %865 = vector.shape_cast %864 : vector<1x8x8xbf16> to vector<8x8xbf16>
    %c0_717 = arith.constant 0 : index
    %c40_718 = arith.constant 40 : index
    %866 = vector.load %arg26[%c0_717, %c40_718] : memref<8x122xbf16, #tpu.memory_space<vmem>>, vector<8x10xbf16>
    %cst_719 = arith.constant dense<0.000000e+00> : vector<8x10xf32>
    %867 = tpu.matmul %865, %866, %cst_719 {dimension_numbers = #tpu.dot_dimension_numbers<[1], [0], [0], [1], [0, 0, 1, 1], [], []>} : vector<8x8xbf16>, vector<8x10xbf16>, vector<8x10xf32> -> vector<8x10xf32>
    %868 = arith.addf %863, %867 : vector<8x10xf32>
    %c4_720 = arith.constant 4 : index
    %c0_721 = arith.constant 0 : index
    %c0_722 = arith.constant 0 : index
    %869 = vector.load %arg17[%c4_720, %c0_721, %c0_722] : memref<9x8x8xbf16, #tpu.memory_space<vmem>>, vector<1x8x8xbf16>
    %870 = vector.shape_cast %869 : vector<1x8x8xbf16> to vector<8x8xbf16>
    %c0_723 = arith.constant 0 : index
    %c41 = arith.constant 41 : index
    %871 = vector.load %arg26[%c0_723, %c41] : memref<8x122xbf16, #tpu.memory_space<vmem>>, vector<8x10xbf16>
    %cst_724 = arith.constant dense<0.000000e+00> : vector<8x10xf32>
    %872 = tpu.matmul %870, %871, %cst_724 {dimension_numbers = #tpu.dot_dimension_numbers<[1], [0], [0], [1], [0, 0, 1, 1], [], []>} : vector<8x8xbf16>, vector<8x10xbf16>, vector<8x10xf32> -> vector<8x10xf32>
    %873 = arith.addf %868, %872 : vector<8x10xf32>
    %c5_725 = arith.constant 5 : index
    %c0_726 = arith.constant 0 : index
    %c0_727 = arith.constant 0 : index
    %874 = vector.load %arg17[%c5_725, %c0_726, %c0_727] : memref<9x8x8xbf16, #tpu.memory_space<vmem>>, vector<1x8x8xbf16>
    %875 = vector.shape_cast %874 : vector<1x8x8xbf16> to vector<8x8xbf16>
    %c0_728 = arith.constant 0 : index
    %c42_729 = arith.constant 42 : index
    %876 = vector.load %arg26[%c0_728, %c42_729] : memref<8x122xbf16, #tpu.memory_space<vmem>>, vector<8x10xbf16>
    %cst_730 = arith.constant dense<0.000000e+00> : vector<8x10xf32>
    %877 = tpu.matmul %875, %876, %cst_730 {dimension_numbers = #tpu.dot_dimension_numbers<[1], [0], [0], [1], [0, 0, 1, 1], [], []>} : vector<8x8xbf16>, vector<8x10xbf16>, vector<8x10xf32> -> vector<8x10xf32>
    %878 = arith.addf %873, %877 : vector<8x10xf32>
    %c6_731 = arith.constant 6 : index
    %c0_732 = arith.constant 0 : index
    %c0_733 = arith.constant 0 : index
    %879 = vector.load %arg17[%c6_731, %c0_732, %c0_733] : memref<9x8x8xbf16, #tpu.memory_space<vmem>>, vector<1x8x8xbf16>
    %880 = vector.shape_cast %879 : vector<1x8x8xbf16> to vector<8x8xbf16>
    %c0_734 = arith.constant 0 : index
    %c50 = arith.constant 50 : index
    %881 = vector.load %arg26[%c0_734, %c50] : memref<8x122xbf16, #tpu.memory_space<vmem>>, vector<8x10xbf16>
    %cst_735 = arith.constant dense<0.000000e+00> : vector<8x10xf32>
    %882 = tpu.matmul %880, %881, %cst_735 {dimension_numbers = #tpu.dot_dimension_numbers<[1], [0], [0], [1], [0, 0, 1, 1], [], []>} : vector<8x8xbf16>, vector<8x10xbf16>, vector<8x10xf32> -> vector<8x10xf32>
    %883 = arith.addf %878, %882 : vector<8x10xf32>
    %c7_736 = arith.constant 7 : index
    %c0_737 = arith.constant 0 : index
    %c0_738 = arith.constant 0 : index
    %884 = vector.load %arg17[%c7_736, %c0_737, %c0_738] : memref<9x8x8xbf16, #tpu.memory_space<vmem>>, vector<1x8x8xbf16>
    %885 = vector.shape_cast %884 : vector<1x8x8xbf16> to vector<8x8xbf16>
    %c0_739 = arith.constant 0 : index
    %c51 = arith.constant 51 : index
    %886 = vector.load %arg26[%c0_739, %c51] : memref<8x122xbf16, #tpu.memory_space<vmem>>, vector<8x10xbf16>
    %cst_740 = arith.constant dense<0.000000e+00> : vector<8x10xf32>
    %887 = tpu.matmul %885, %886, %cst_740 {dimension_numbers = #tpu.dot_dimension_numbers<[1], [0], [0], [1], [0, 0, 1, 1], [], []>} : vector<8x8xbf16>, vector<8x10xbf16>, vector<8x10xf32> -> vector<8x10xf32>
    %888 = arith.addf %883, %887 : vector<8x10xf32>
    %c8_741 = arith.constant 8 : index
    %c0_742 = arith.constant 0 : index
    %c0_743 = arith.constant 0 : index
    %889 = vector.load %arg17[%c8_741, %c0_742, %c0_743] : memref<9x8x8xbf16, #tpu.memory_space<vmem>>, vector<1x8x8xbf16>
    %890 = vector.shape_cast %889 : vector<1x8x8xbf16> to vector<8x8xbf16>
    %c0_744 = arith.constant 0 : index
    %c52_745 = arith.constant 52 : index
    %891 = vector.load %arg26[%c0_744, %c52_745] : memref<8x122xbf16, #tpu.memory_space<vmem>>, vector<8x10xbf16>
    %cst_746 = arith.constant dense<0.000000e+00> : vector<8x10xf32>
    %892 = tpu.matmul %890, %891, %cst_746 {dimension_numbers = #tpu.dot_dimension_numbers<[1], [0], [0], [1], [0, 0, 1, 1], [], []>} : vector<8x8xbf16>, vector<8x10xbf16>, vector<8x10xf32> -> vector<8x10xf32>
    %893 = arith.addf %888, %892 : vector<8x10xf32>
    %c0_747 = arith.constant 0 : index
    %c0_748 = arith.constant 0 : index
    %894 = vector.load %arg21[%c0_747, %c0_748] : memref<10x4xf32, #tpu.memory_space<vmem>>, vector<10x4xf32>
    %cst_749 = arith.constant dense<0.000000e+00> : vector<8x4xf32>
    %895 = tpu.matmul %893, %894, %cst_749 {dimension_numbers = #tpu.dot_dimension_numbers<[1], [0], [0], [1], [0, 0, 1, 1], [], []>} : vector<8x10xf32>, vector<10x4xf32>, vector<8x4xf32> -> vector<8x4xf32>
    %c0_750 = arith.constant 0 : index
    %c4_751 = arith.constant 4 : index
    %896 = vector.load %arg27[%c0_750, %c4_751] : memref<8x128xf32, #tpu.memory_space<vmem>>, vector<8x4xf32>
    tpu.vector_store %arg27[%c0_750, %c4_751], %895 {strides = array<i32>} : memref<8x128xf32, #tpu.memory_space<vmem>>, vector<8x4xf32>,
    %c0_752 = arith.constant 0 : index
    %c0_753 = arith.constant 0 : index
    %c0_754 = arith.constant 0 : index
    %897 = vector.load %arg17[%c0_752, %c0_753, %c0_754] : memref<9x8x8xbf16, #tpu.memory_space<vmem>>, vector<1x8x8xbf16>
    %898 = vector.shape_cast %897 : vector<1x8x8xbf16> to vector<8x8xbf16>
    %c0_755 = arith.constant 0 : index
    %c50_756 = arith.constant 50 : index
    %899 = vector.load %arg26[%c0_755, %c50_756] : memref<8x122xbf16, #tpu.memory_space<vmem>>, vector<8x10xbf16>
    %cst_757 = arith.constant dense<0.000000e+00> : vector<8x10xf32>
    %900 = tpu.matmul %898, %899, %cst_757 {dimension_numbers = #tpu.dot_dimension_numbers<[1], [0], [0], [1], [0, 0, 1, 1], [], []>} : vector<8x8xbf16>, vector<8x10xbf16>, vector<8x10xf32> -> vector<8x10xf32>
    %c1_758 = arith.constant 1 : index
    %c0_759 = arith.constant 0 : index
    %c0_760 = arith.constant 0 : index
    %901 = vector.load %arg17[%c1_758, %c0_759, %c0_760] : memref<9x8x8xbf16, #tpu.memory_space<vmem>>, vector<1x8x8xbf16>
    %902 = vector.shape_cast %901 : vector<1x8x8xbf16> to vector<8x8xbf16>
    %c0_761 = arith.constant 0 : index
    %c51_762 = arith.constant 51 : index
    %903 = vector.load %arg26[%c0_761, %c51_762] : memref<8x122xbf16, #tpu.memory_space<vmem>>, vector<8x10xbf16>
    %cst_763 = arith.constant dense<0.000000e+00> : vector<8x10xf32>
    %904 = tpu.matmul %902, %903, %cst_763 {dimension_numbers = #tpu.dot_dimension_numbers<[1], [0], [0], [1], [0, 0, 1, 1], [], []>} : vector<8x8xbf16>, vector<8x10xbf16>, vector<8x10xf32> -> vector<8x10xf32>
    %905 = arith.addf %900, %904 : vector<8x10xf32>
    %c2_764 = arith.constant 2 : index
    %c0_765 = arith.constant 0 : index
    %c0_766 = arith.constant 0 : index
    %906 = vector.load %arg17[%c2_764, %c0_765, %c0_766] : memref<9x8x8xbf16, #tpu.memory_space<vmem>>, vector<1x8x8xbf16>
    %907 = vector.shape_cast %906 : vector<1x8x8xbf16> to vector<8x8xbf16>
    %c0_767 = arith.constant 0 : index
    %c52_768 = arith.constant 52 : index
    %908 = vector.load %arg26[%c0_767, %c52_768] : memref<8x122xbf16, #tpu.memory_space<vmem>>, vector<8x10xbf16>
    %cst_769 = arith.constant dense<0.000000e+00> : vector<8x10xf32>
    %909 = tpu.matmul %907, %908, %cst_769 {dimension_numbers = #tpu.dot_dimension_numbers<[1], [0], [0], [1], [0, 0, 1, 1], [], []>} : vector<8x8xbf16>, vector<8x10xbf16>, vector<8x10xf32> -> vector<8x10xf32>
    %910 = arith.addf %905, %909 : vector<8x10xf32>
    %c3_770 = arith.constant 3 : index
    %c0_771 = arith.constant 0 : index
    %c0_772 = arith.constant 0 : index
    %911 = vector.load %arg17[%c3_770, %c0_771, %c0_772] : memref<9x8x8xbf16, #tpu.memory_space<vmem>>, vector<1x8x8xbf16>
    %912 = vector.shape_cast %911 : vector<1x8x8xbf16> to vector<8x8xbf16>
    %c0_773 = arith.constant 0 : index
    %c60 = arith.constant 60 : index
    %913 = vector.load %arg26[%c0_773, %c60] : memref<8x122xbf16, #tpu.memory_space<vmem>>, vector<8x10xbf16>
    %cst_774 = arith.constant dense<0.000000e+00> : vector<8x10xf32>
    %914 = tpu.matmul %912, %913, %cst_774 {dimension_numbers = #tpu.dot_dimension_numbers<[1], [0], [0], [1], [0, 0, 1, 1], [], []>} : vector<8x8xbf16>, vector<8x10xbf16>, vector<8x10xf32> -> vector<8x10xf32>
    %915 = arith.addf %910, %914 : vector<8x10xf32>
    %c4_775 = arith.constant 4 : index
    %c0_776 = arith.constant 0 : index
    %c0_777 = arith.constant 0 : index
    %916 = vector.load %arg17[%c4_775, %c0_776, %c0_777] : memref<9x8x8xbf16, #tpu.memory_space<vmem>>, vector<1x8x8xbf16>
    %917 = vector.shape_cast %916 : vector<1x8x8xbf16> to vector<8x8xbf16>
    %c0_778 = arith.constant 0 : index
    %c61 = arith.constant 61 : index
    %918 = vector.load %arg26[%c0_778, %c61] : memref<8x122xbf16, #tpu.memory_space<vmem>>, vector<8x10xbf16>
    %cst_779 = arith.constant dense<0.000000e+00> : vector<8x10xf32>
    %919 = tpu.matmul %917, %918, %cst_779 {dimension_numbers = #tpu.dot_dimension_numbers<[1], [0], [0], [1], [0, 0, 1, 1], [], []>} : vector<8x8xbf16>, vector<8x10xbf16>, vector<8x10xf32> -> vector<8x10xf32>
    %920 = arith.addf %915, %919 : vector<8x10xf32>
    %c5_780 = arith.constant 5 : index
    %c0_781 = arith.constant 0 : index
    %c0_782 = arith.constant 0 : index
    %921 = vector.load %arg17[%c5_780, %c0_781, %c0_782] : memref<9x8x8xbf16, #tpu.memory_space<vmem>>, vector<1x8x8xbf16>
    %922 = vector.shape_cast %921 : vector<1x8x8xbf16> to vector<8x8xbf16>
    %c0_783 = arith.constant 0 : index
    %c62_784 = arith.constant 62 : index
    %923 = vector.load %arg26[%c0_783, %c62_784] : memref<8x122xbf16, #tpu.memory_space<vmem>>, vector<8x10xbf16>
    %cst_785 = arith.constant dense<0.000000e+00> : vector<8x10xf32>
    %924 = tpu.matmul %922, %923, %cst_785 {dimension_numbers = #tpu.dot_dimension_numbers<[1], [0], [0], [1], [0, 0, 1, 1], [], []>} : vector<8x8xbf16>, vector<8x10xbf16>, vector<8x10xf32> -> vector<8x10xf32>
    %925 = arith.addf %920, %924 : vector<8x10xf32>
    %c6_786 = arith.constant 6 : index
    %c0_787 = arith.constant 0 : index
    %c0_788 = arith.constant 0 : index
    %926 = vector.load %arg17[%c6_786, %c0_787, %c0_788] : memref<9x8x8xbf16, #tpu.memory_space<vmem>>, vector<1x8x8xbf16>
    %927 = vector.shape_cast %926 : vector<1x8x8xbf16> to vector<8x8xbf16>
    %c0_789 = arith.constant 0 : index
    %c70 = arith.constant 70 : index
    %928 = vector.load %arg26[%c0_789, %c70] : memref<8x122xbf16, #tpu.memory_space<vmem>>, vector<8x10xbf16>
    %cst_790 = arith.constant dense<0.000000e+00> : vector<8x10xf32>
    %929 = tpu.matmul %927, %928, %cst_790 {dimension_numbers = #tpu.dot_dimension_numbers<[1], [0], [0], [1], [0, 0, 1, 1], [], []>} : vector<8x8xbf16>, vector<8x10xbf16>, vector<8x10xf32> -> vector<8x10xf32>
    %930 = arith.addf %925, %929 : vector<8x10xf32>
    %c7_791 = arith.constant 7 : index
    %c0_792 = arith.constant 0 : index
    %c0_793 = arith.constant 0 : index
    %931 = vector.load %arg17[%c7_791, %c0_792, %c0_793] : memref<9x8x8xbf16, #tpu.memory_space<vmem>>, vector<1x8x8xbf16>
    %932 = vector.shape_cast %931 : vector<1x8x8xbf16> to vector<8x8xbf16>
    %c0_794 = arith.constant 0 : index
    %c71 = arith.constant 71 : index
    %933 = vector.load %arg26[%c0_794, %c71] : memref<8x122xbf16, #tpu.memory_space<vmem>>, vector<8x10xbf16>
    %cst_795 = arith.constant dense<0.000000e+00> : vector<8x10xf32>
    %934 = tpu.matmul %932, %933, %cst_795 {dimension_numbers = #tpu.dot_dimension_numbers<[1], [0], [0], [1], [0, 0, 1, 1], [], []>} : vector<8x8xbf16>, vector<8x10xbf16>, vector<8x10xf32> -> vector<8x10xf32>
    %935 = arith.addf %930, %934 : vector<8x10xf32>
    %c8_796 = arith.constant 8 : index
    %c0_797 = arith.constant 0 : index
    %c0_798 = arith.constant 0 : index
    %936 = vector.load %arg17[%c8_796, %c0_797, %c0_798] : memref<9x8x8xbf16, #tpu.memory_space<vmem>>, vector<1x8x8xbf16>
    %937 = vector.shape_cast %936 : vector<1x8x8xbf16> to vector<8x8xbf16>
    %c0_799 = arith.constant 0 : index
    %c72_800 = arith.constant 72 : index
    %938 = vector.load %arg26[%c0_799, %c72_800] : memref<8x122xbf16, #tpu.memory_space<vmem>>, vector<8x10xbf16>
    %cst_801 = arith.constant dense<0.000000e+00> : vector<8x10xf32>
    %939 = tpu.matmul %937, %938, %cst_801 {dimension_numbers = #tpu.dot_dimension_numbers<[1], [0], [0], [1], [0, 0, 1, 1], [], []>} : vector<8x8xbf16>, vector<8x10xbf16>, vector<8x10xf32> -> vector<8x10xf32>
    %940 = arith.addf %935, %939 : vector<8x10xf32>
    %c0_802 = arith.constant 0 : index
    %c0_803 = arith.constant 0 : index
    %941 = vector.load %arg21[%c0_802, %c0_803] : memref<10x4xf32, #tpu.memory_space<vmem>>, vector<10x4xf32>
    %cst_804 = arith.constant dense<0.000000e+00> : vector<8x4xf32>
    %942 = tpu.matmul %940, %941, %cst_804 {dimension_numbers = #tpu.dot_dimension_numbers<[1], [0], [0], [1], [0, 0, 1, 1], [], []>} : vector<8x10xf32>, vector<10x4xf32>, vector<8x4xf32> -> vector<8x4xf32>
    %c0_805 = arith.constant 0 : index
    %c8_806 = arith.constant 8 : index
    %943 = vector.load %arg27[%c0_805, %c8_806] : memref<8x128xf32, #tpu.memory_space<vmem>>, vector<8x4xf32>
    tpu.vector_store %arg27[%c0_805, %c8_806], %942 {strides = array<i32>} : memref<8x128xf32, #tpu.memory_space<vmem>>, vector<8x4xf32>,
    %c0_807 = arith.constant 0 : index
    %c0_808 = arith.constant 0 : index
    %c0_809 = arith.constant 0 : index
    %944 = vector.load %arg17[%c0_807, %c0_808, %c0_809] : memref<9x8x8xbf16, #tpu.memory_space<vmem>>, vector<1x8x8xbf16>
    %945 = vector.shape_cast %944 : vector<1x8x8xbf16> to vector<8x8xbf16>
    %c0_810 = arith.constant 0 : index
    %c70_811 = arith.constant 70 : index
    %946 = vector.load %arg26[%c0_810, %c70_811] : memref<8x122xbf16, #tpu.memory_space<vmem>>, vector<8x10xbf16>
    %cst_812 = arith.constant dense<0.000000e+00> : vector<8x10xf32>
    %947 = tpu.matmul %945, %946, %cst_812 {dimension_numbers = #tpu.dot_dimension_numbers<[1], [0], [0], [1], [0, 0, 1, 1], [], []>} : vector<8x8xbf16>, vector<8x10xbf16>, vector<8x10xf32> -> vector<8x10xf32>
    %c1_813 = arith.constant 1 : index
    %c0_814 = arith.constant 0 : index
    %c0_815 = arith.constant 0 : index
    %948 = vector.load %arg17[%c1_813, %c0_814, %c0_815] : memref<9x8x8xbf16, #tpu.memory_space<vmem>>, vector<1x8x8xbf16>
    %949 = vector.shape_cast %948 : vector<1x8x8xbf16> to vector<8x8xbf16>
    %c0_816 = arith.constant 0 : index
    %c71_817 = arith.constant 71 : index
    %950 = vector.load %arg26[%c0_816, %c71_817] : memref<8x122xbf16, #tpu.memory_space<vmem>>, vector<8x10xbf16>
    %cst_818 = arith.constant dense<0.000000e+00> : vector<8x10xf32>
    %951 = tpu.matmul %949, %950, %cst_818 {dimension_numbers = #tpu.dot_dimension_numbers<[1], [0], [0], [1], [0, 0, 1, 1], [], []>} : vector<8x8xbf16>, vector<8x10xbf16>, vector<8x10xf32> -> vector<8x10xf32>
    %952 = arith.addf %947, %951 : vector<8x10xf32>
    %c2_819 = arith.constant 2 : index
    %c0_820 = arith.constant 0 : index
    %c0_821 = arith.constant 0 : index
    %953 = vector.load %arg17[%c2_819, %c0_820, %c0_821] : memref<9x8x8xbf16, #tpu.memory_space<vmem>>, vector<1x8x8xbf16>
    %954 = vector.shape_cast %953 : vector<1x8x8xbf16> to vector<8x8xbf16>
    %c0_822 = arith.constant 0 : index
    %c72_823 = arith.constant 72 : index
    %955 = vector.load %arg26[%c0_822, %c72_823] : memref<8x122xbf16, #tpu.memory_space<vmem>>, vector<8x10xbf16>
    %cst_824 = arith.constant dense<0.000000e+00> : vector<8x10xf32>
    %956 = tpu.matmul %954, %955, %cst_824 {dimension_numbers = #tpu.dot_dimension_numbers<[1], [0], [0], [1], [0, 0, 1, 1], [], []>} : vector<8x8xbf16>, vector<8x10xbf16>, vector<8x10xf32> -> vector<8x10xf32>
    %957 = arith.addf %952, %956 : vector<8x10xf32>
    %c3_825 = arith.constant 3 : index
    %c0_826 = arith.constant 0 : index
    %c0_827 = arith.constant 0 : index
    %958 = vector.load %arg17[%c3_825, %c0_826, %c0_827] : memref<9x8x8xbf16, #tpu.memory_space<vmem>>, vector<1x8x8xbf16>
    %959 = vector.shape_cast %958 : vector<1x8x8xbf16> to vector<8x8xbf16>
    %c0_828 = arith.constant 0 : index
    %c80 = arith.constant 80 : index
    %960 = vector.load %arg26[%c0_828, %c80] : memref<8x122xbf16, #tpu.memory_space<vmem>>, vector<8x10xbf16>
    %cst_829 = arith.constant dense<0.000000e+00> : vector<8x10xf32>
    %961 = tpu.matmul %959, %960, %cst_829 {dimension_numbers = #tpu.dot_dimension_numbers<[1], [0], [0], [1], [0, 0, 1, 1], [], []>} : vector<8x8xbf16>, vector<8x10xbf16>, vector<8x10xf32> -> vector<8x10xf32>
    %962 = arith.addf %957, %961 : vector<8x10xf32>
    %c4_830 = arith.constant 4 : index
    %c0_831 = arith.constant 0 : index
    %c0_832 = arith.constant 0 : index
    %963 = vector.load %arg17[%c4_830, %c0_831, %c0_832] : memref<9x8x8xbf16, #tpu.memory_space<vmem>>, vector<1x8x8xbf16>
    %964 = vector.shape_cast %963 : vector<1x8x8xbf16> to vector<8x8xbf16>
    %c0_833 = arith.constant 0 : index
    %c81 = arith.constant 81 : index
    %965 = vector.load %arg26[%c0_833, %c81] : memref<8x122xbf16, #tpu.memory_space<vmem>>, vector<8x10xbf16>
    %cst_834 = arith.constant dense<0.000000e+00> : vector<8x10xf32>
    %966 = tpu.matmul %964, %965, %cst_834 {dimension_numbers = #tpu.dot_dimension_numbers<[1], [0], [0], [1], [0, 0, 1, 1], [], []>} : vector<8x8xbf16>, vector<8x10xbf16>, vector<8x10xf32> -> vector<8x10xf32>
    %967 = arith.addf %962, %966 : vector<8x10xf32>
    %c5_835 = arith.constant 5 : index
    %c0_836 = arith.constant 0 : index
    %c0_837 = arith.constant 0 : index
    %968 = vector.load %arg17[%c5_835, %c0_836, %c0_837] : memref<9x8x8xbf16, #tpu.memory_space<vmem>>, vector<1x8x8xbf16>
    %969 = vector.shape_cast %968 : vector<1x8x8xbf16> to vector<8x8xbf16>
    %c0_838 = arith.constant 0 : index
    %c82_839 = arith.constant 82 : index
    %970 = vector.load %arg26[%c0_838, %c82_839] : memref<8x122xbf16, #tpu.memory_space<vmem>>, vector<8x10xbf16>
    %cst_840 = arith.constant dense<0.000000e+00> : vector<8x10xf32>
    %971 = tpu.matmul %969, %970, %cst_840 {dimension_numbers = #tpu.dot_dimension_numbers<[1], [0], [0], [1], [0, 0, 1, 1], [], []>} : vector<8x8xbf16>, vector<8x10xbf16>, vector<8x10xf32> -> vector<8x10xf32>
    %972 = arith.addf %967, %971 : vector<8x10xf32>
    %c6_841 = arith.constant 6 : index
    %c0_842 = arith.constant 0 : index
    %c0_843 = arith.constant 0 : index
    %973 = vector.load %arg17[%c6_841, %c0_842, %c0_843] : memref<9x8x8xbf16, #tpu.memory_space<vmem>>, vector<1x8x8xbf16>
    %974 = vector.shape_cast %973 : vector<1x8x8xbf16> to vector<8x8xbf16>
    %c0_844 = arith.constant 0 : index
    %c90_845 = arith.constant 90 : index
    %975 = vector.load %arg26[%c0_844, %c90_845] : memref<8x122xbf16, #tpu.memory_space<vmem>>, vector<8x10xbf16>
    %cst_846 = arith.constant dense<0.000000e+00> : vector<8x10xf32>
    %976 = tpu.matmul %974, %975, %cst_846 {dimension_numbers = #tpu.dot_dimension_numbers<[1], [0], [0], [1], [0, 0, 1, 1], [], []>} : vector<8x8xbf16>, vector<8x10xbf16>, vector<8x10xf32> -> vector<8x10xf32>
    %977 = arith.addf %972, %976 : vector<8x10xf32>
    %c7_847 = arith.constant 7 : index
    %c0_848 = arith.constant 0 : index
    %c0_849 = arith.constant 0 : index
    %978 = vector.load %arg17[%c7_847, %c0_848, %c0_849] : memref<9x8x8xbf16, #tpu.memory_space<vmem>>, vector<1x8x8xbf16>
    %979 = vector.shape_cast %978 : vector<1x8x8xbf16> to vector<8x8xbf16>
    %c0_850 = arith.constant 0 : index
    %c91_851 = arith.constant 91 : index
    %980 = vector.load %arg26[%c0_850, %c91_851] : memref<8x122xbf16, #tpu.memory_space<vmem>>, vector<8x10xbf16>
    %cst_852 = arith.constant dense<0.000000e+00> : vector<8x10xf32>
    %981 = tpu.matmul %979, %980, %cst_852 {dimension_numbers = #tpu.dot_dimension_numbers<[1], [0], [0], [1], [0, 0, 1, 1], [], []>} : vector<8x8xbf16>, vector<8x10xbf16>, vector<8x10xf32> -> vector<8x10xf32>
    %982 = arith.addf %977, %981 : vector<8x10xf32>
    %c8_853 = arith.constant 8 : index
    %c0_854 = arith.constant 0 : index
    %c0_855 = arith.constant 0 : index
    %983 = vector.load %arg17[%c8_853, %c0_854, %c0_855] : memref<9x8x8xbf16, #tpu.memory_space<vmem>>, vector<1x8x8xbf16>
    %984 = vector.shape_cast %983 : vector<1x8x8xbf16> to vector<8x8xbf16>
    %c0_856 = arith.constant 0 : index
    %c92_857 = arith.constant 92 : index
    %985 = vector.load %arg26[%c0_856, %c92_857] : memref<8x122xbf16, #tpu.memory_space<vmem>>, vector<8x10xbf16>
    %cst_858 = arith.constant dense<0.000000e+00> : vector<8x10xf32>
    %986 = tpu.matmul %984, %985, %cst_858 {dimension_numbers = #tpu.dot_dimension_numbers<[1], [0], [0], [1], [0, 0, 1, 1], [], []>} : vector<8x8xbf16>, vector<8x10xbf16>, vector<8x10xf32> -> vector<8x10xf32>
    %987 = arith.addf %982, %986 : vector<8x10xf32>
    %c0_859 = arith.constant 0 : index
    %c0_860 = arith.constant 0 : index
    %988 = vector.load %arg21[%c0_859, %c0_860] : memref<10x4xf32, #tpu.memory_space<vmem>>, vector<10x4xf32>
    %cst_861 = arith.constant dense<0.000000e+00> : vector<8x4xf32>
    %989 = tpu.matmul %987, %988, %cst_861 {dimension_numbers = #tpu.dot_dimension_numbers<[1], [0], [0], [1], [0, 0, 1, 1], [], []>} : vector<8x10xf32>, vector<10x4xf32>, vector<8x4xf32> -> vector<8x4xf32>
    %c0_862 = arith.constant 0 : index
    %c12_863 = arith.constant 12 : index
    %990 = vector.load %arg27[%c0_862, %c12_863] : memref<8x128xf32, #tpu.memory_space<vmem>>, vector<8x4xf32>
    tpu.vector_store %arg27[%c0_862, %c12_863], %989 {strides = array<i32>} : memref<8x128xf32, #tpu.memory_space<vmem>>, vector<8x4xf32>,
    %c0_864 = arith.constant 0 : index
    %c0_865 = arith.constant 0 : index
    %991 = vector.load %arg27[%c0_864, %c0_865] : memref<8x128xf32, #tpu.memory_space<vmem>>, vector<8x16xf32>
    %cst_866 = arith.constant dense<0.000000e+00> : vector<8xf32>
    %992 = vector.multi_reduction <add>, %991, %cst_866 [1] : vector<8x16xf32> to vector<8xf32>
    %993 = vector.shape_cast %992 : vector<8xf32> to vector<8x1xf32>
    %994 = arith.mulf %991, %991 : vector<8x16xf32>
    %cst_867 = arith.constant dense<0.000000e+00> : vector<8xf32>
    %995 = vector.multi_reduction <add>, %994, %cst_867 [1] : vector<8x16xf32> to vector<8xf32>
    %996 = vector.shape_cast %995 : vector<8xf32> to vector<8x1xf32>
    %cst_868 = arith.constant 1.600000e+01 : f32
    %997 = vector.broadcast %cst_868 : f32 to vector<8x1xf32>
    %998 = arith.mulf %997, %800 : vector<8x1xf32>
    %999 = arith.addf %993, %998 : vector<8x1xf32>
    %cst_869 = arith.constant 2.000000e+00 : f32
    %1000 = vector.broadcast %cst_869 : f32 to vector<8x1xf32>
    %1001 = arith.mulf %1000, %800 : vector<8x1xf32>
    %1002 = arith.mulf %1001, %993 : vector<8x1xf32>
    %1003 = arith.addf %996, %1002 : vector<8x1xf32>
    %1004 = arith.mulf %998, %800 : vector<8x1xf32>
    %1005 = arith.addf %1003, %1004 : vector<8x1xf32>
    %1006 = arith.mulf %999, %4 : vector<8x1xf32>
    %1007 = vector.shape_cast %1006 : vector<8x1xf32> to vector<1x8x1xf32>
    %cst_870 = arith.constant dense<0.000000e+00> : vector<1xf32>
    %1008 = vector.multi_reduction <add>, %1007, %cst_870 [1, 2] : vector<1x8x1xf32> to vector<1xf32>
    %1009 = vector.shape_cast %1008 : vector<1xf32> to vector<1x1x1xf32>
    %1010 = vector.extract %1009[0, 0, 0] : f32 from vector<1x1x1xf32>
    %1011 = vector.broadcast %1010 : f32 to vector<1x1xf32>
    %1012 = arith.mulf %999, %6 : vector<8x1xf32>
    %1013 = vector.shape_cast %1012 : vector<8x1xf32> to vector<1x8x1xf32>
    %cst_871 = arith.constant dense<0.000000e+00> : vector<1xf32>
    %1014 = vector.multi_reduction <add>, %1013, %cst_871 [1, 2] : vector<1x8x1xf32> to vector<1xf32>
    %1015 = vector.shape_cast %1014 : vector<1xf32> to vector<1x1x1xf32>
    %1016 = vector.extract %1015[0, 0, 0] : f32 from vector<1x1x1xf32>
    %1017 = vector.broadcast %1016 : f32 to vector<1x1xf32>
    %1018 = arith.mulf %1005, %4 : vector<8x1xf32>
    %1019 = vector.shape_cast %1018 : vector<8x1xf32> to vector<1x8x1xf32>
    %cst_872 = arith.constant dense<0.000000e+00> : vector<1xf32>
    %1020 = vector.multi_reduction <add>, %1019, %cst_872 [1, 2] : vector<1x8x1xf32> to vector<1xf32>
    %1021 = vector.shape_cast %1020 : vector<1xf32> to vector<1x1x1xf32>
    %1022 = vector.extract %1021[0, 0, 0] : f32 from vector<1x1x1xf32>
    %1023 = vector.broadcast %1022 : f32 to vector<1x1xf32>
    %1024 = arith.mulf %1005, %6 : vector<8x1xf32>
    %1025 = vector.shape_cast %1024 : vector<8x1xf32> to vector<1x8x1xf32>
    %cst_873 = arith.constant dense<0.000000e+00> : vector<1xf32>
    %1026 = vector.multi_reduction <add>, %1025, %cst_873 [1, 2] : vector<1x8x1xf32> to vector<1xf32>
    %1027 = vector.shape_cast %1026 : vector<1xf32> to vector<1x1x1xf32>
    %1028 = vector.extract %1027[0, 0, 0] : f32 from vector<1x1x1xf32>
    %1029 = vector.broadcast %1028 : f32 to vector<1x1xf32>
    %cst_874 = arith.constant 1.562500e-02 : f32
    %1030 = vector.broadcast %cst_874 : f32 to vector<1x1xf32>
    %1031 = arith.mulf %1011, %1030 : vector<1x1xf32>
    %cst_875 = arith.constant 1.562500e-02 : f32
    %1032 = vector.broadcast %cst_875 : f32 to vector<1x1xf32>
    %1033 = arith.mulf %1017, %1032 : vector<1x1xf32>
    %cst_876 = arith.constant 1.562500e-02 : f32
    %1034 = vector.broadcast %cst_876 : f32 to vector<1x1xf32>
    %1035 = arith.mulf %1023, %1034 : vector<1x1xf32>
    %1036 = arith.mulf %1031, %1031 : vector<1x1xf32>
    %1037 = arith.subf %1035, %1036 : vector<1x1xf32>
    %cst_877 = arith.constant 0.000000e+00 : f32
    %1038 = vector.broadcast %cst_877 : f32 to vector<1x1xf32>
    %1039 = arith.maximumf %1037, %1038 : vector<1x1xf32>
    %cst_878 = arith.constant 1.562500e-02 : f32
    %1040 = vector.broadcast %cst_878 : f32 to vector<1x1xf32>
    %1041 = arith.mulf %1029, %1040 : vector<1x1xf32>
    %1042 = arith.mulf %1033, %1033 : vector<1x1xf32>
    %1043 = arith.subf %1041, %1042 : vector<1x1xf32>
    %cst_879 = arith.constant 0.000000e+00 : f32
    %1044 = vector.broadcast %cst_879 : f32 to vector<1x1xf32>
    %1045 = arith.maximumf %1043, %1044 : vector<1x1xf32>
    %cst_880 = arith.constant 9.99999974E-6 : f32
    %1046 = vector.broadcast %cst_880 : f32 to vector<1x1xf32>
    %1047 = arith.addf %1039, %1046 : vector<1x1xf32>
    %1048 = math.rsqrt %1047 : vector<1x1xf32>
    %cst_881 = arith.constant 9.99999974E-6 : f32
    %1049 = vector.broadcast %cst_881 : f32 to vector<1x1xf32>
    %1050 = arith.addf %1045, %1049 : vector<1x1xf32>
    %1051 = math.rsqrt %1050 : vector<1x1xf32>
    %1052 = vector.broadcast %1031 : vector<1x1xf32> to vector<8x1xf32>
    %1053 = arith.mulf %4, %1052 : vector<8x1xf32>
    %1054 = vector.broadcast %1033 : vector<1x1xf32> to vector<8x1xf32>
    %1055 = arith.mulf %6, %1054 : vector<8x1xf32>
    %1056 = arith.addf %1053, %1055 : vector<8x1xf32>
    %1057 = vector.broadcast %1048 : vector<1x1xf32> to vector<8x1xf32>
    %1058 = arith.mulf %4, %1057 : vector<8x1xf32>
    %1059 = vector.broadcast %1051 : vector<1x1xf32> to vector<8x1xf32>
    %1060 = arith.mulf %6, %1059 : vector<8x1xf32>
    %1061 = arith.addf %1058, %1060 : vector<8x1xf32>
    %1062 = arith.mulf %1061, %801 : vector<8x1xf32>
    %1063 = arith.subf %800, %1056 : vector<8x1xf32>
    %1064 = arith.mulf %1063, %1062 : vector<8x1xf32>
    %1065 = arith.addf %1064, %802 : vector<8x1xf32>
    %1066 = vector.broadcast %1062 : vector<8x1xf32> to vector<8x16xf32>
    %1067 = arith.mulf %991, %1066 : vector<8x16xf32>
    %1068 = vector.broadcast %1065 : vector<8x1xf32> to vector<8x16xf32>
    %1069 = arith.addf %1067, %1068 : vector<8x16xf32>
    %cst_882 = arith.constant 0.000000e+00 : f32
    %1070 = vector.broadcast %cst_882 : f32 to vector<8x16xf32>
    %1071 = arith.cmpf ogt, %1069, %1070 : vector<8x16xf32>
    %cst_883 = arith.constant 2.000000e-01 : f32
    %1072 = vector.broadcast %cst_883 : f32 to vector<8x16xf32>
    %1073 = arith.mulf %1072, %1069 : vector<8x16xf32>
    %1074 = arith.select %1071, %1069, %1073 : vector<8x16xi1>, vector<8x16xf32>
    %c0_884 = arith.constant 0 : index
    %c0_885 = arith.constant 0 : index
    %c0_886 = arith.constant 0 : index
    %1075 = vector.load %arg23[%c0_884, %c0_885, %c0_886] : memref<1x8x16xf32, #tpu.memory_space<vmem>>, vector<1x8x16xf32>
    %1076 = vector.shape_cast %1075 : vector<1x8x16xf32> to vector<8x16xf32>
    %1077 = vector.shape_cast %1074 : vector<8x16xf32> to vector<1x8x16xf32>
    tpu.vector_store %arg23[%c0_884, %c0_885, %c0_886], %1077 {strides = array<i32>} : memref<1x8x16xf32, #tpu.memory_space<vmem>>, vector<1x8x16xf32>,
    return
  }
  func.func @transform_0(%arg0: i32) -> (i32, i32, i32) {
    %c0_i32 = arith.constant 0 : i32
    %c0_i32_0 = arith.constant 0 : i32
    %c0_i32_1 = arith.constant 0 : i32
    return %arg0, %c0_i32, %c0_i32_0 : i32, i32, i32
  }
  func.func @transform_1(%arg0: i32) -> (i32, i32, i32) {
    %c0_i32 = arith.constant 0 : i32
    %c0_i32_0 = arith.constant 0 : i32
    %c0_i32_1 = arith.constant 0 : i32
    %c0_i32_2 = arith.constant 0 : i32
    return %c0_i32, %c0_i32_0, %c0_i32_1 : i32, i32, i32
  }
  func.func @transform_2(%arg0: i32) -> (i32, i32) {
    %c0_i32 = arith.constant 0 : i32
    %c0_i32_0 = arith.constant 0 : i32
    %c0_i32_1 = arith.constant 0 : i32
    return %c0_i32, %c0_i32_0 : i32, i32
  }
  func.func @transform_3(%arg0: i32) -> (i32, i32) {
    %c0_i32 = arith.constant 0 : i32
    %c0_i32_0 = arith.constant 0 : i32
    %c0_i32_1 = arith.constant 0 : i32
    return %c0_i32, %c0_i32_0 : i32, i32
  }
  func.func @transform_4(%arg0: i32) -> (i32, i32) {
    %c0_i32 = arith.constant 0 : i32
    %c0_i32_0 = arith.constant 0 : i32
    %c0_i32_1 = arith.constant 0 : i32
    return %c0_i32, %c0_i32_0 : i32, i32
  }
  func.func @transform_5(%arg0: i32) -> (i32, i32) {
    %c0_i32 = arith.constant 0 : i32
    %c0_i32_0 = arith.constant 0 : i32
    %c0_i32_1 = arith.constant 0 : i32
    return %c0_i32, %c0_i32_0 : i32, i32
  }
  func.func @transform_6(%arg0: i32) -> (i32, i32, i32) {
    %c0_i32 = arith.constant 0 : i32
    %c0_i32_0 = arith.constant 0 : i32
    %c0_i32_1 = arith.constant 0 : i32
    %c0_i32_2 = arith.constant 0 : i32
    return %c0_i32, %c0_i32_0, %c0_i32_1 : i32, i32, i32
  }
  func.func @transform_7(%arg0: i32) -> (i32, i32) {
    %c0_i32 = arith.constant 0 : i32
    %c0_i32_0 = arith.constant 0 : i32
    %c0_i32_1 = arith.constant 0 : i32
    return %c0_i32, %c0_i32_0 : i32, i32
  }
  func.func @transform_8(%arg0: i32) -> (i32, i32) {
    %c0_i32 = arith.constant 0 : i32
    %c0_i32_0 = arith.constant 0 : i32
    %c0_i32_1 = arith.constant 0 : i32
    return %c0_i32, %c0_i32_0 : i32, i32
  }
  func.func @transform_9(%arg0: i32) -> (i32, i32) {
    %c0_i32 = arith.constant 0 : i32
    %c0_i32_0 = arith.constant 0 : i32
    %c0_i32_1 = arith.constant 0 : i32
    return %c0_i32, %c0_i32_0 : i32, i32
  }
  func.func @transform_10(%arg0: i32) -> (i32, i32) {
    %c0_i32 = arith.constant 0 : i32
    %c0_i32_0 = arith.constant 0 : i32
    %c0_i32_1 = arith.constant 0 : i32
    return %c0_i32, %c0_i32_0 : i32, i32
  }
  func.func @transform_11(%arg0: i32) -> (i32, i32, i32) {
    %c0_i32 = arith.constant 0 : i32
    %c0_i32_0 = arith.constant 0 : i32
    %c0_i32_1 = arith.constant 0 : i32
    %c0_i32_2 = arith.constant 0 : i32
    return %c0_i32, %c0_i32_0, %c0_i32_1 : i32, i32, i32
  }
  func.func @transform_12(%arg0: i32) -> (i32, i32) {
    %c0_i32 = arith.constant 0 : i32
    %c0_i32_0 = arith.constant 0 : i32
    %c0_i32_1 = arith.constant 0 : i32
    return %c0_i32, %c0_i32_0 : i32, i32
  }
  func.func @transform_13(%arg0: i32) -> (i32, i32) {
    %c0_i32 = arith.constant 0 : i32
    %c0_i32_0 = arith.constant 0 : i32
    %c0_i32_1 = arith.constant 0 : i32
    return %c0_i32, %c0_i32_0 : i32, i32
  }
  func.func @transform_14(%arg0: i32) -> (i32, i32) {
    %c0_i32 = arith.constant 0 : i32
    %c0_i32_0 = arith.constant 0 : i32
    %c0_i32_1 = arith.constant 0 : i32
    return %c0_i32, %c0_i32_0 : i32, i32
  }
  func.func @transform_15(%arg0: i32) -> (i32, i32) {
    %c0_i32 = arith.constant 0 : i32
    %c0_i32_0 = arith.constant 0 : i32
    %c0_i32_1 = arith.constant 0 : i32
    return %c0_i32, %c0_i32_0 : i32, i32
  }
  func.func @transform_16(%arg0: i32) -> (i32, i32, i32) {
    %c0_i32 = arith.constant 0 : i32
    %c0_i32_0 = arith.constant 0 : i32
    %c0_i32_1 = arith.constant 0 : i32
    %c0_i32_2 = arith.constant 0 : i32
    return %c0_i32, %c0_i32_0, %c0_i32_1 : i32, i32, i32
  }
  func.func @transform_17(%arg0: i32) -> (i32, i32) {
    %c0_i32 = arith.constant 0 : i32
    %c0_i32_0 = arith.constant 0 : i32
    %c0_i32_1 = arith.constant 0 : i32
    return %c0_i32, %c0_i32_0 : i32, i32
  }
  func.func @transform_18(%arg0: i32) -> (i32, i32) {
    %c0_i32 = arith.constant 0 : i32
    %c0_i32_0 = arith.constant 0 : i32
    %c0_i32_1 = arith.constant 0 : i32
    return %c0_i32, %c0_i32_0 : i32, i32
  }
  func.func @transform_19(%arg0: i32) -> (i32, i32) {
    %c0_i32 = arith.constant 0 : i32
    %c0_i32_0 = arith.constant 0 : i32
    %c0_i32_1 = arith.constant 0 : i32
    return %c0_i32, %c0_i32_0 : i32, i32
  }
  func.func @transform_20(%arg0: i32) -> (i32, i32) {
    %c0_i32 = arith.constant 0 : i32
    %c0_i32_0 = arith.constant 0 : i32
    %c0_i32_1 = arith.constant 0 : i32
    return %c0_i32, %c0_i32_0 : i32, i32
  }
  func.func @transform_21(%arg0: i32) -> (i32, i32, i32) {
    %c0_i32 = arith.constant 0 : i32
    %c0_i32_0 = arith.constant 0 : i32
    %c0_i32_1 = arith.constant 0 : i32
    return %arg0, %c0_i32, %c0_i32_0 : i32, i32, i32
  }
  func.func @transform_22(%arg0: i32) -> (i32, i32, i32) {
    %c0_i32 = arith.constant 0 : i32
    %c0_i32_0 = arith.constant 0 : i32
    %c0_i32_1 = arith.constant 0 : i32
    return %arg0, %c0_i32, %c0_i32_0 : i32, i32, i32
  }
}

</mosaic_0001>

<llo_original>
// kernel: simvp_encoder.1
$region0: #{simvp_encoder.1}
  #allocation0 [shape = 'u32[]', space=smem, size = 0x4, offset = 0x4, fixed_abs, tag = 'smem constant byte address 0x4 - core index']
  #allocation1 [shape = 'u32[72,128]{1,0:T(1,128)}', space=vmem, size = 0x9000, scoped, tag = 'internal scratch']
  #allocation2 [shape = 'bf16[8,362]{1,0:T(8,128)(2,1)}', space=vmem, size = 0x1800, scoped, tag = 'scratch operand']
  #allocation3 [shape = 'bf16[8,122]{1,0:T(8,128)(2,1)}', space=vmem, size = 0x800, scoped, tag = 'scratch operand']
  #allocation4 [shape = 'bf16[8,122]{1,0:T(8,128)(2,1)}', space=vmem, size = 0x800, scoped, tag = 'scratch operand']
  #allocation5 [shape = 'f32[8,128]{1,0:T(8,128)}', space=vmem, size = 0x1000, scoped, tag = 'scratch operand']
  %s0 = inlined_call_operand.vmem [shape: bf16[2,8,362], index: 0, kind: input, shape index: {}]
  %s1 = inlined_call_operand.vmem [shape: bf16[9,8,8], index: 1, kind: input, shape index: {}]
  %s2 = inlined_call_operand.vmem [shape: f32[8,1], index: 2, kind: input, shape index: {}]
  %s3 = inlined_call_operand.vmem [shape: f32[8,1], index: 3, kind: input, shape index: {}]
  %s4 = inlined_call_operand.vmem [shape: f32[8,1], index: 4, kind: input, shape index: {}]
  %s5 = inlined_call_operand.vmem [shape: f32[1,324], index: 5, kind: input, shape index: {}]
  %s6 = inlined_call_operand.vmem [shape: bf16[9,8,8], index: 6, kind: input, shape index: {}]
  %s7 = inlined_call_operand.vmem [shape: f32[8,1], index: 7, kind: input, shape index: {}]
  %s8 = inlined_call_operand.vmem [shape: f32[8,1], index: 8, kind: input, shape index: {}]
  %s9 = inlined_call_operand.vmem [shape: f32[8,1], index: 9, kind: input, shape index: {}]
  %s10 = inlined_call_operand.vmem [shape: f32[18,8], index: 10, kind: input, shape index: {}]
  %s11 = inlined_call_operand.vmem [shape: bf16[9,8,8], index: 11, kind: input, shape index: {}]
  %s12 = inlined_call_operand.vmem [shape: f32[8,1], index: 12, kind: input, shape index: {}]
  %s13 = inlined_call_operand.vmem [shape: f32[8,1], index: 13, kind: input, shape index: {}]
  %s14 = inlined_call_operand.vmem [shape: f32[8,1], index: 14, kind: input, shape index: {}]
  %s15 = inlined_call_operand.vmem [shape: f32[1,100], index: 15, kind: input, shape index: {}]
  %s16 = inlined_call_operand.vmem [shape: bf16[9,8,8], index: 16, kind: input, shape index: {}]
  %s17 = inlined_call_operand.vmem [shape: f32[8,1], index: 17, kind: input, shape index: {}]
  %s18 = inlined_call_operand.vmem [shape: f32[8,1], index: 18, kind: input, shape index: {}]
  %s19 = inlined_call_operand.vmem [shape: f32[8,1], index: 19, kind: input, shape index: {}]
  %s20 = inlined_call_operand.vmem [shape: f32[10,4], index: 20, kind: input, shape index: {}]
  %s21 = inlined_call_operand.vmem [shape: f32[2,8,324], index: 21, kind: output, shape index: {0}]
  %s22 = inlined_call_operand.vmem [shape: f32[2,8,16], index: 22, kind: output, shape index: {1}]
  %23 = xla_tuple %s21, %s22
  %s24 = sld [smem:[#allocation0]]
  $region125: #{simvp_encoder.1} parent=0
    _
  %s26 = ssub.s32 1, %s24
  %s27 = scalar_select 0, %s26, %s24
  loop: start=0, step=1, limit=4
  $region2: #{simvp_encoder.1} parent=0 // loop_pre_header
    _
  $region3: #{simvp_encoder.1} parent=0 // loop_header
    %s29 = sphi 0, %s33
    %p30 = scmp.ge.s32.totalorder %s29, 4
    %s39 = sphi 0, %s41
    %s42 = sphi 0, %s39
    %s43 = sphi 0, %s42
    %s59 = sphi 0, %s43
    %s63 = sphi 0, %s63
    %s65 = sphi 0, %s63
    %s66 = sphi 0, %s65
    %s80 = sphi 0, %s66
    %s84 = sphi 0, %s84
    %s86 = sphi 0, %s84
    %s87 = sphi 0, %s86
    %s101 = sphi 0, %s87
    %s105 = sphi 0, %s105
    %s107 = sphi 0, %s105
    %s108 = sphi 0, %s107
    %s122 = sphi 0, %s108
    %s126 = sphi 0, %s126
    %s128 = sphi 0, %s126
    %s129 = sphi 0, %s128
    %s143 = sphi 0, %s129
    %s147 = sphi 0, %s147
    %s149 = sphi 0, %s147
    %s150 = sphi 0, %s149
    %s164 = sphi 0, %s150
    %s168 = sphi 0, %s168
    %s170 = sphi 0, %s168
    %s171 = sphi 0, %s170
    %s185 = sphi 0, %s171
    %s189 = sphi 0, %s189
    %s191 = sphi 0, %s189
    %s192 = sphi 0, %s191
    %s206 = sphi 0, %s192
    %s210 = sphi 0, %s210
    %s212 = sphi 0, %s210
    %s213 = sphi 0, %s212
    %s227 = sphi 0, %s213
    %s231 = sphi 0, %s231
    %s233 = sphi 0, %s231
    %s234 = sphi 0, %s233
    %s248 = sphi 0, %s234
    %s252 = sphi 0, %s252
    %s254 = sphi 0, %s252
    %s255 = sphi 0, %s254
    %s269 = sphi 0, %s255
    %s273 = sphi 0, %s273
    %s275 = sphi 0, %s273
    %s276 = sphi 0, %s275
    %s290 = sphi 0, %s276
    %s294 = sphi 0, %s294
    %s296 = sphi 0, %s294
    %s297 = sphi 0, %s296
    %s311 = sphi 0, %s297
    %s315 = sphi 0, %s315
    %s317 = sphi 0, %s315
    %s318 = sphi 0, %s317
    %s332 = sphi 0, %s318
    %s336 = sphi 0, %s336
    %s338 = sphi 0, %s336
    %s339 = sphi 0, %s338
    %s353 = sphi 0, %s339
    %s357 = sphi 0, %s357
    %s359 = sphi 0, %s357
    %s360 = sphi 0, %s359
    %s374 = sphi 0, %s360
    %s378 = sphi 0, %s378
    %s380 = sphi 0, %s378
    %s381 = sphi 0, %s380
    %s395 = sphi 0, %s381
    %s399 = sphi 0, %s399
    %s401 = sphi 0, %s399
    %s402 = sphi 0, %s401
    %s416 = sphi 0, %s402
    %s420 = sphi 0, %s420
    %s422 = sphi 0, %s420
    %s423 = sphi 0, %s422
    %s437 = sphi 0, %s423
    %s441 = sphi 0, %s441
    %s443 = sphi 0, %s441
    %s444 = sphi 0, %s443
    %s458 = sphi 0, %s444
    %s462 = sphi 0, %s462
    %s464 = sphi 0, %s462
    %s465 = sphi 0, %s464
    %s479 = sphi 0, %s465
    %s485 = sphi 0, %s487
    %s488 = sphi 0, %s485
    %s489 = sphi 0, %s488
    %s505 = sphi 0, %s489
    %s511 = sphi 0, %s513
    %s514 = sphi 0, %s511
    %s515 = sphi 0, %s514
    %s531 = sphi 0, %s515
  $region4: #{simvp_encoder.1} parent=0 // loop_header_branch
    %32 = sbr.rel (%p30) target = $region8
  $region5: #{simvp_encoder.1} parent=0 // loop_body
    %s34 = ssub.s32 %s29, 1
    %s35 = ssub.s32 %s29, 2
    %s36 = sadd.s32 %s29, 1
    %s37 = ssub.s32 %s29, %s36
    %p38 = scmp.eq.s32.totalorder %s37, 0
    %s40 = sadd.s32 %s39, 1
    %s41 = scalar_select %p38, %s39, %s40
    %p44 = pneg %p38
    %p45 = scmp.eq.s32.totalorder %s29, 1
    %p46 = por %p44, %p45
    %p47 = scmp.ne.s32.totalorder %s39, %s42
    %p48 = scmp.eq.s32.totalorder %s29, 0
    %p49 = por %p47, %p48
    %p50 = scmp.ne.s32.totalorder %s39, %s42
    %p51 = scmp.eq.s32.totalorder %s34, 1
    %p52 = por %p50, %p51
    %p53 = scmp.ne.s32.totalorder %s42, %s43
    %p54 = scmp.eq.s32.totalorder %s34, 0
    %p55 = por %p53, %p54
    %p56 = scmp.ne.s32.totalorder %s42, %s43
    %p57 = scmp.eq.s32.totalorder %s35, 1
    %p58 = por %p56, %p57
    %p60 = scmp.ne.s32.totalorder %s43, %s59
    %p61 = scmp.eq.s32.totalorder %s35, 0
    %p62 = por %p60, %p61
    %s64 = sadd.s32 %s63, 1
    %p67 = scmp.eq.s32.totalorder %s29, 1
    %p68 = scmp.ne.s32.totalorder %s63, %s65
    %p69 = scmp.eq.s32.totalorder %s29, 0
    %p70 = por %p68, %p69
    %p71 = scmp.ne.s32.totalorder %s63, %s65
    %p72 = scmp.eq.s32.totalorder %s34, 1
    %p73 = por %p71, %p72
    %p74 = scmp.ne.s32.totalorder %s65, %s66
    %p75 = scmp.eq.s32.totalorder %s34, 0
    %p76 = por %p74, %p75
    %p77 = scmp.ne.s32.totalorder %s65, %s66
    %p78 = scmp.eq.s32.totalorder %s35, 1
    %p79 = por %p77, %p78
    %p81 = scmp.ne.s32.totalorder %s66, %s80
    %p82 = scmp.eq.s32.totalorder %s35, 0
    %p83 = por %p81, %p82
    %s85 = sadd.s32 %s84, 1
    %p88 = scmp.eq.s32.totalorder %s29, 1
    %p89 = scmp.ne.s32.totalorder %s84, %s86
    %p90 = scmp.eq.s32.totalorder %s29, 0
    %p91 = por %p89, %p90
    %p92 = scmp.ne.s32.totalorder %s84, %s86
    %p93 = scmp.eq.s32.totalorder %s34, 1
    %p94 = por %p92, %p93
    %p95 = scmp.ne.s32.totalorder %s86, %s87
    %p96 = scmp.eq.s32.totalorder %s34, 0
    %p97 = por %p95, %p96
    %p98 = scmp.ne.s32.totalorder %s86, %s87
    %p99 = scmp.eq.s32.totalorder %s35, 1
    %p100 = por %p98, %p99
    %p102 = scmp.ne.s32.totalorder %s87, %s101
    %p103 = scmp.eq.s32.totalorder %s35, 0
    %p104 = por %p102, %p103
    %s106 = sadd.s32 %s105, 1
    %p109 = scmp.eq.s32.totalorder %s29, 1
    %p110 = scmp.ne.s32.totalorder %s105, %s107
    %p111 = scmp.eq.s32.totalorder %s29, 0
    %p112 = por %p110, %p111
    %p113 = scmp.ne.s32.totalorder %s105, %s107
    %p114 = scmp.eq.s32.totalorder %s34, 1
    %p115 = por %p113, %p114
    %p116 = scmp.ne.s32.totalorder %s107, %s108
    %p117 = scmp.eq.s32.totalorder %s34, 0
    %p118 = por %p116, %p117
    %p119 = scmp.ne.s32.totalorder %s107, %s108
    %p120 = scmp.eq.s32.totalorder %s35, 1
    %p121 = por %p119, %p120
    %p123 = scmp.ne.s32.totalorder %s108, %s122
    %p124 = scmp.eq.s32.totalorder %s35, 0
    %p125 = por %p123, %p124
    %s127 = sadd.s32 %s126, 1
    %p130 = scmp.eq.s32.totalorder %s29, 1
    %p131 = scmp.ne.s32.totalorder %s126, %s128
    %p132 = scmp.eq.s32.totalorder %s29, 0
    %p133 = por %p131, %p132
    %p134 = scmp.ne.s32.totalorder %s126, %s128
    %p135 = scmp.eq.s32.totalorder %s34, 1
    %p136 = por %p134, %p135
    %p137 = scmp.ne.s32.totalorder %s128, %s129
    %p138 = scmp.eq.s32.totalorder %s34, 0
    %p139 = por %p137, %p138
    %p140 = scmp.ne.s32.totalorder %s128, %s129
    %p141 = scmp.eq.s32.totalorder %s35, 1
    %p142 = por %p140, %p141
    %p144 = scmp.ne.s32.totalorder %s129, %s143
    %p145 = scmp.eq.s32.totalorder %s35, 0
    %p146 = por %p144, %p145
    %s148 = sadd.s32 %s147, 1
    %p151 = scmp.eq.s32.totalorder %s29, 1
    %p152 = scmp.ne.s32.totalorder %s147, %s149
    %p153 = scmp.eq.s32.totalorder %s29, 0
    %p154 = por %p152, %p153
    %p155 = scmp.ne.s32.totalorder %s147, %s149
    %p156 = scmp.eq.s32.totalorder %s34, 1
    %p157 = por %p155, %p156
    %p158 = scmp.ne.s32.totalorder %s149, %s150
    %p159 = scmp.eq.s32.totalorder %s34, 0
    %p160 = por %p158, %p159
    %p161 = scmp.ne.s32.totalorder %s149, %s150
    %p162 = scmp.eq.s32.totalorder %s35, 1
    %p163 = por %p161, %p162
    %p165 = scmp.ne.s32.totalorder %s150, %s164
    %p166 = scmp.eq.s32.totalorder %s35, 0
    %p167 = por %p165, %p166
    %s169 = sadd.s32 %s168, 1
    %p172 = scmp.eq.s32.totalorder %s29, 1
    %p173 = scmp.ne.s32.totalorder %s168, %s170
    %p174 = scmp.eq.s32.totalorder %s29, 0
    %p175 = por %p173, %p174
    %p176 = scmp.ne.s32.totalorder %s168, %s170
    %p177 = scmp.eq.s32.totalorder %s34, 1
    %p178 = por %p176, %p177
    %p179 = scmp.ne.s32.totalorder %s170, %s171
    %p180 = scmp.eq.s32.totalorder %s34, 0
    %p181 = por %p179, %p180
    %p182 = scmp.ne.s32.totalorder %s170, %s171
    %p183 = scmp.eq.s32.totalorder %s35, 1
    %p184 = por %p182, %p183
    %p186 = scmp.ne.s32.totalorder %s171, %s185
    %p187 = scmp.eq.s32.totalorder %s35, 0
    %p188 = por %p186, %p187
    %s190 = sadd.s32 %s189, 1
    %p193 = scmp.eq.s32.totalorder %s29, 1
    %p194 = scmp.ne.s32.totalorder %s189, %s191
    %p195 = scmp.eq.s32.totalorder %s29, 0
    %p196 = por %p194, %p195
    %p197 = scmp.ne.s32.totalorder %s189, %s191
    %p198 = scmp.eq.s32.totalorder %s34, 1
    %p199 = por %p197, %p198
    %p200 = scmp.ne.s32.totalorder %s191, %s192
    %p201 = scmp.eq.s32.totalorder %s34, 0
    %p202 = por %p200, %p201
    %p203 = scmp.ne.s32.totalorder %s191, %s192
    %p204 = scmp.eq.s32.totalorder %s35, 1
    %p205 = por %p203, %p204
    %p207 = scmp.ne.s32.totalorder %s192, %s206
    %p208 = scmp.eq.s32.totalorder %s35, 0
    %p209 = por %p207, %p208
    %s211 = sadd.s32 %s210, 1
    %p214 = scmp.eq.s32.totalorder %s29, 1
    %p215 = scmp.ne.s32.totalorder %s210, %s212
    %p216 = scmp.eq.s32.totalorder %s29, 0
    %p217 = por %p215, %p216
    %p218 = scmp.ne.s32.totalorder %s210, %s212
    %p219 = scmp.eq.s32.totalorder %s34, 1
    %p220 = por %p218, %p219
    %p221 = scmp.ne.s32.totalorder %s212, %s213
    %p222 = scmp.eq.s32.totalorder %s34, 0
    %p223 = por %p221, %p222
    %p224 = scmp.ne.s32.totalorder %s212, %s213
    %p225 = scmp.eq.s32.totalorder %s35, 1
    %p226 = por %p224, %p225
    %p228 = scmp.ne.s32.totalorder %s213, %s227
    %p229 = scmp.eq.s32.totalorder %s35, 0
    %p230 = por %p228, %p229
    %s232 = sadd.s32 %s231, 1
    %p235 = scmp.eq.s32.totalorder %s29, 1
    %p236 = scmp.ne.s32.totalorder %s231, %s233
    %p237 = scmp.eq.s32.totalorder %s29, 0
    %p238 = por %p236, %p237
    %p239 = scmp.ne.s32.totalorder %s231, %s233
    %p240 = scmp.eq.s32.totalorder %s34, 1
    %p241 = por %p239, %p240
    %p242 = scmp.ne.s32.totalorder %s233, %s234
    %p243 = scmp.eq.s32.totalorder %s34, 0
    %p244 = por %p242, %p243
    %p245 = scmp.ne.s32.totalorder %s233, %s234
    %p246 = scmp.eq.s32.totalorder %s35, 1
    %p247 = por %p245, %p246
    %p249 = scmp.ne.s32.totalorder %s234, %s248
    %p250 = scmp.eq.s32.totalorder %s35, 0
    %p251 = por %p249, %p250
    %s253 = sadd.s32 %s252, 1
    %p256 = scmp.eq.s32.totalorder %s29, 1
    %p257 = scmp.ne.s32.totalorder %s252, %s254
    %p258 = scmp.eq.s32.totalorder %s29, 0
    %p259 = por %p257, %p258
    %p260 = scmp.ne.s32.totalorder %s252, %s254
    %p261 = scmp.eq.s32.totalorder %s34, 1
    %p262 = por %p260, %p261
    %p263 = scmp.ne.s32.totalorder %s254, %s255
    %p264 = scmp.eq.s32.totalorder %s34, 0
    %p265 = por %p263, %p264
    %p266 = scmp.ne.s32.totalorder %s254, %s255
    %p267 = scmp.eq.s32.totalorder %s35, 1
    %p268 = por %p266, %p267
    %p270 = scmp.ne.s32.totalorder %s255, %s269
    %p271 = scmp.eq.s32.totalorder %s35, 0
    %p272 = por %p270, %p271
    %s274 = sadd.s32 %s273, 1
    %p277 = scmp.eq.s32.totalorder %s29, 1
    %p278 = scmp.ne.s32.totalorder %s273, %s275
    %p279 = scmp.eq.s32.totalorder %s29, 0
    %p280 = por %p278, %p279
    %p281 = scmp.ne.s32.totalorder %s273, %s275
    %p282 = scmp.eq.s32.totalorder %s34, 1
    %p283 = por %p281, %p282
    %p284 = scmp.ne.s32.totalorder %s275, %s276
    %p285 = scmp.eq.s32.totalorder %s34, 0
    %p286 = por %p284, %p285
    %p287 = scmp.ne.s32.totalorder %s275, %s276
    %p288 = scmp.eq.s32.totalorder %s35, 1
    %p289 = por %p287, %p288
    %p291 = scmp.ne.s32.totalorder %s276, %s290
    %p292 = scmp.eq.s32.totalorder %s35, 0
    %p293 = por %p291, %p292
    %s295 = sadd.s32 %s294, 1
    %p298 = scmp.eq.s32.totalorder %s29, 1
    %p299 = scmp.ne.s32.totalorder %s294, %s296
    %p300 = scmp.eq.s32.totalorder %s29, 0
    %p301 = por %p299, %p300
    %p302 = scmp.ne.s32.totalorder %s294, %s296
    %p303 = scmp.eq.s32.totalorder %s34, 1
    %p304 = por %p302, %p303
    %p305 = scmp.ne.s32.totalorder %s296, %s297
    %p306 = scmp.eq.s32.totalorder %s34, 0
    %p307 = por %p305, %p306
    %p308 = scmp.ne.s32.totalorder %s296, %s297
    %p309 = scmp.eq.s32.totalorder %s35, 1
    %p310 = por %p308, %p309
    %p312 = scmp.ne.s32.totalorder %s297, %s311
    %p313 = scmp.eq.s32.totalorder %s35, 0
    %p314 = por %p312, %p313
    %s316 = sadd.s32 %s315, 1
    %p319 = scmp.eq.s32.totalorder %s29, 1
    %p320 = scmp.ne.s32.totalorder %s315, %s317
    %p321 = scmp.eq.s32.totalorder %s29, 0
    %p322 = por %p320, %p321
    %p323 = scmp.ne.s32.totalorder %s315, %s317
    %p324 = scmp.eq.s32.totalorder %s34, 1
    %p325 = por %p323, %p324
    %p326 = scmp.ne.s32.totalorder %s317, %s318
    %p327 = scmp.eq.s32.totalorder %s34, 0
    %p328 = por %p326, %p327
    %p329 = scmp.ne.s32.totalorder %s317, %s318
    %p330 = scmp.eq.s32.totalorder %s35, 1
    %p331 = por %p329, %p330
    %p333 = scmp.ne.s32.totalorder %s318, %s332
    %p334 = scmp.eq.s32.totalorder %s35, 0
    %p335 = por %p333, %p334
    %s337 = sadd.s32 %s336, 1
    %p340 = scmp.eq.s32.totalorder %s29, 1
    %p341 = scmp.ne.s32.totalorder %s336, %s338
    %p342 = scmp.eq.s32.totalorder %s29, 0
    %p343 = por %p341, %p342
    %p344 = scmp.ne.s32.totalorder %s336, %s338
    %p345 = scmp.eq.s32.totalorder %s34, 1
    %p346 = por %p344, %p345
    %p347 = scmp.ne.s32.totalorder %s338, %s339
    %p348 = scmp.eq.s32.totalorder %s34, 0
    %p349 = por %p347, %p348
    %p350 = scmp.ne.s32.totalorder %s338, %s339
    %p351 = scmp.eq.s32.totalorder %s35, 1
    %p352 = por %p350, %p351
    %p354 = scmp.ne.s32.totalorder %s339, %s353
    %p355 = scmp.eq.s32.totalorder %s35, 0
    %p356 = por %p354, %p355
    %s358 = sadd.s32 %s357, 1
    %p361 = scmp.eq.s32.totalorder %s29, 1
    %p362 = scmp.ne.s32.totalorder %s357, %s359
    %p363 = scmp.eq.s32.totalorder %s29, 0
    %p364 = por %p362, %p363
    %p365 = scmp.ne.s32.totalorder %s357, %s359
    %p366 = scmp.eq.s32.totalorder %s34, 1
    %p367 = por %p365, %p366
    %p368 = scmp.ne.s32.totalorder %s359, %s360
    %p369 = scmp.eq.s32.totalorder %s34, 0
    %p370 = por %p368, %p369
    %p371 = scmp.ne.s32.totalorder %s359, %s360
    %p372 = scmp.eq.s32.totalorder %s35, 1
    %p373 = por %p371, %p372
    %p375 = scmp.ne.s32.totalorder %s360, %s374
    %p376 = scmp.eq.s32.totalorder %s35, 0
    %p377 = por %p375, %p376
    %s379 = sadd.s32 %s378, 1
    %p382 = scmp.eq.s32.totalorder %s29, 1
    %p383 = scmp.ne.s32.totalorder %s378, %s380
    %p384 = scmp.eq.s32.totalorder %s29, 0
    %p385 = por %p383, %p384
    %p386 = scmp.ne.s32.totalorder %s378, %s380
    %p387 = scmp.eq.s32.totalorder %s34, 1
    %p388 = por %p386, %p387
    %p389 = scmp.ne.s32.totalorder %s380, %s381
    %p390 = scmp.eq.s32.totalorder %s34, 0
    %p391 = por %p389, %p390
    %p392 = scmp.ne.s32.totalorder %s380, %s381
    %p393 = scmp.eq.s32.totalorder %s35, 1
    %p394 = por %p392, %p393
    %p396 = scmp.ne.s32.totalorder %s381, %s395
    %p397 = scmp.eq.s32.totalorder %s35, 0
    %p398 = por %p396, %p397
    %s400 = sadd.s32 %s399, 1
    %p403 = scmp.eq.s32.totalorder %s29, 1
    %p404 = scmp.ne.s32.totalorder %s399, %s401
    %p405 = scmp.eq.s32.totalorder %s29, 0
    %p406 = por %p404, %p405
    %p407 = scmp.ne.s32.totalorder %s399, %s401
    %p408 = scmp.eq.s32.totalorder %s34, 1
    %p409 = por %p407, %p408
    %p410 = scmp.ne.s32.totalorder %s401, %s402
    %p411 = scmp.eq.s32.totalorder %s34, 0
    %p412 = por %p410, %p411
    %p413 = scmp.ne.s32.totalorder %s401, %s402
    %p414 = scmp.eq.s32.totalorder %s35, 1
    %p415 = por %p413, %p414
    %p417 = scmp.ne.s32.totalorder %s402, %s416
    %p418 = scmp.eq.s32.totalorder %s35, 0
    %p419 = por %p417, %p418
    %s421 = sadd.s32 %s420, 1
    %p424 = scmp.eq.s32.totalorder %s29, 1
    %p425 = scmp.ne.s32.totalorder %s420, %s422
    %p426 = scmp.eq.s32.totalorder %s29, 0
    %p427 = por %p425, %p426
    %p428 = scmp.ne.s32.totalorder %s420, %s422
    %p429 = scmp.eq.s32.totalorder %s34, 1
    %p430 = por %p428, %p429
    %p431 = scmp.ne.s32.totalorder %s422, %s423
    %p432 = scmp.eq.s32.totalorder %s34, 0
    %p433 = por %p431, %p432
    %p434 = scmp.ne.s32.totalorder %s422, %s423
    %p435 = scmp.eq.s32.totalorder %s35, 1
    %p436 = por %p434, %p435
    %p438 = scmp.ne.s32.totalorder %s423, %s437
    %p439 = scmp.eq.s32.totalorder %s35, 0
    %p440 = por %p438, %p439
    %s442 = sadd.s32 %s441, 1
    %p445 = scmp.eq.s32.totalorder %s29, 1
    %p446 = scmp.ne.s32.totalorder %s441, %s443
    %p447 = scmp.eq.s32.totalorder %s29, 0
    %p448 = por %p446, %p447
    %p449 = scmp.ne.s32.totalorder %s441, %s443
    %p450 = scmp.eq.s32.totalorder %s34, 1
    %p451 = por %p449, %p450
    %p452 = scmp.ne.s32.totalorder %s443, %s444
    %p453 = scmp.eq.s32.totalorder %s34, 0
    %p454 = por %p452, %p453
    %p455 = scmp.ne.s32.totalorder %s443, %s444
    %p456 = scmp.eq.s32.totalorder %s35, 1
    %p457 = por %p455, %p456
    %p459 = scmp.ne.s32.totalorder %s444, %s458
    %p460 = scmp.eq.s32.totalorder %s35, 0
    %p461 = por %p459, %p460
    %s463 = sadd.s32 %s462, 1
    %p466 = scmp.eq.s32.totalorder %s29, 1
    %p467 = scmp.ne.s32.totalorder %s462, %s464
    %p468 = scmp.eq.s32.totalorder %s29, 0
    %p469 = por %p467, %p468
    %p470 = scmp.ne.s32.totalorder %s462, %s464
    %p471 = scmp.eq.s32.totalorder %s34, 1
    %p472 = por %p470, %p471
    %p473 = scmp.ne.s32.totalorder %s464, %s465
    %p474 = scmp.eq.s32.totalorder %s34, 0
    %p475 = por %p473, %p474
    %p476 = scmp.ne.s32.totalorder %s464, %s465
    %p477 = scmp.eq.s32.totalorder %s35, 1
    %p478 = por %p476, %p477
    %p480 = scmp.ne.s32.totalorder %s465, %s479
    %p481 = scmp.eq.s32.totalorder %s35, 0
    %p482 = por %p480, %p481
    %s483 = ssub.s32 %s29, %s36
    %p484 = scmp.eq.s32.totalorder %s483, 0
    %s486 = sadd.s32 %s485, 1
    %s487 = scalar_select %p484, %s485, %s486
    %p490 = pneg %p484
    %p491 = scmp.eq.s32.totalorder %s29, 1
    %p492 = por %p490, %p491
    %p493 = scmp.ne.s32.totalorder %s485, %s488
    %p494 = scmp.eq.s32.totalorder %s29, 0
    %p495 = por %p493, %p494
    %p496 = scmp.ne.s32.totalorder %s485, %s488
    %p497 = scmp.eq.s32.totalorder %s34, 1
    %p498 = por %p496, %p497
    %p499 = scmp.ne.s32.totalorder %s488, %s489
    %p500 = scmp.eq.s32.totalorder %s34, 0
    %p501 = por %p499, %p500
    %p502 = scmp.ne.s32.totalorder %s488, %s489
    %p503 = scmp.eq.s32.totalorder %s35, 1
    %p504 = por %p502, %p503
    %p506 = scmp.ne.s32.totalorder %s489, %s505
    %p507 = scmp.eq.s32.totalorder %s35, 0
    %p508 = por %p506, %p507
    %s509 = ssub.s32 %s29, %s36
    %p510 = scmp.eq.s32.totalorder %s509, 0
    %s512 = sadd.s32 %s511, 1
    %s513 = scalar_select %p510, %s511, %s512
    %p516 = pneg %p510
    %p517 = scmp.eq.s32.totalorder %s29, 1
    %p518 = por %p516, %p517
    %p519 = scmp.ne.s32.totalorder %s511, %s514
    %p520 = scmp.eq.s32.totalorder %s29, 0
    %p521 = por %p519, %p520
    %p522 = scmp.ne.s32.totalorder %s511, %s514
    %p523 = scmp.eq.s32.totalorder %s34, 1
    %p524 = por %p522, %p523
    %p525 = scmp.ne.s32.totalorder %s514, %s515
    %p526 = scmp.eq.s32.totalorder %s34, 0
    %p527 = por %p525, %p526
    %p528 = scmp.ne.s32.totalorder %s514, %s515
    %p529 = scmp.eq.s32.totalorder %s35, 1
    %p530 = por %p528, %p529
    %p532 = scmp.ne.s32.totalorder %s515, %s531
    %p533 = scmp.eq.s32.totalorder %s35, 0
    %p534 = por %p532, %p533
    %p535 = scmp.le.s32.totalorder 1, %s29
    %p536 = scmp.lt.s32.totalorder %s29, 3
    %p537 = pnand %p535, %p536
    %p538 = pneg %p537
    // Predicated region
    $region9: #{simvp_encoder.1} parent=5 // pred_check
      _
    $region10: #{simvp_encoder.1} parent=5 // pred_check_branch
      %540 = sbr.rel (%p537) target = $region12
    $region11: #{simvp_encoder.1} parent=5 // pred_region
      %s541 = ssub.s32 %s29, 1
      // Predicated region
      $region13: #{simvp_encoder.1} parent=11 // pred_check
        %p542 = pneg %p76
      $region14: #{simvp_encoder.1} parent=11 // pred_check_branch
        %544 = sbr.rel (%p542) target = $region16
      $region15: #{simvp_encoder.1} parent=11 // pred_region
        _
      $region16: #{simvp_encoder.1} parent=11 // pred_fallthru
        _
      // Predicated region
      $region17: #{simvp_encoder.1} parent=11 // pred_check
        %p545 = pneg %p97
      $region18: #{simvp_encoder.1} parent=11 // pred_check_branch
        %547 = sbr.rel (%p545) target = $region20
      $region19: #{simvp_encoder.1} parent=11 // pred_region
        _
      $region20: #{simvp_encoder.1} parent=11 // pred_fallthru
        _
      // Predicated region
      $region21: #{simvp_encoder.1} parent=11 // pred_check
        %p548 = pneg %p118
      $region22: #{simvp_encoder.1} parent=11 // pred_check_branch
        %550 = sbr.rel (%p548) target = $region24
      $region23: #{simvp_encoder.1} parent=11 // pred_region
        _
      $region24: #{simvp_encoder.1} parent=11 // pred_fallthru
        _
      // Predicated region
      $region25: #{simvp_encoder.1} parent=11 // pred_check
        %p551 = pneg %p139
      $region26: #{simvp_encoder.1} parent=11 // pred_check_branch
        %553 = sbr.rel (%p551) target = $region28
      $region27: #{simvp_encoder.1} parent=11 // pred_region
        _
      $region28: #{simvp_encoder.1} parent=11 // pred_fallthru
        _
      // Predicated region
      $region29: #{simvp_encoder.1} parent=11 // pred_check
        %p554 = pneg %p160
      $region30: #{simvp_encoder.1} parent=11 // pred_check_branch
        %556 = sbr.rel (%p554) target = $region32
      $region31: #{simvp_encoder.1} parent=11 // pred_region
        _
      $region32: #{simvp_encoder.1} parent=11 // pred_fallthru
        _
      // Predicated region
      $region33: #{simvp_encoder.1} parent=11 // pred_check
        %p557 = pneg %p181
      $region34: #{simvp_encoder.1} parent=11 // pred_check_branch
        %559 = sbr.rel (%p557) target = $region36
      $region35: #{simvp_encoder.1} parent=11 // pred_region
        _
      $region36: #{simvp_encoder.1} parent=11 // pred_fallthru
        _
      // Predicated region
      $region37: #{simvp_encoder.1} parent=11 // pred_check
        %p560 = pneg %p202
      $region38: #{simvp_encoder.1} parent=11 // pred_check_branch
        %562 = sbr.rel (%p560) target = $region40
      $region39: #{simvp_encoder.1} parent=11 // pred_region
        _
      $region40: #{simvp_encoder.1} parent=11 // pred_fallthru
        _
      // Predicated region
      $region41: #{simvp_encoder.1} parent=11 // pred_check
        %p563 = pneg %p223
      $region42: #{simvp_encoder.1} parent=11 // pred_check_branch
        %565 = sbr.rel (%p563) target = $region44
      $region43: #{simvp_encoder.1} parent=11 // pred_region
        _
      $region44: #{simvp_encoder.1} parent=11 // pred_fallthru
        _
      // Predicated region
      $region45: #{simvp_encoder.1} parent=11 // pred_check
        %p566 = pneg %p244
      $region46: #{simvp_encoder.1} parent=11 // pred_check_branch
        %568 = sbr.rel (%p566) target = $region48
      $region47: #{simvp_encoder.1} parent=11 // pred_region
        _
      $region48: #{simvp_encoder.1} parent=11 // pred_fallthru
        _
      // Predicated region
      $region49: #{simvp_encoder.1} parent=11 // pred_check
        %p569 = pneg %p265
      $region50: #{simvp_encoder.1} parent=11 // pred_check_branch
        %571 = sbr.rel (%p569) target = $region52
      $region51: #{simvp_encoder.1} parent=11 // pred_region
        _
      $region52: #{simvp_encoder.1} parent=11 // pred_fallthru
        _
      // Predicated region
      $region53: #{simvp_encoder.1} parent=11 // pred_check
        %p572 = pneg %p286
      $region54: #{simvp_encoder.1} parent=11 // pred_check_branch
        %574 = sbr.rel (%p572) target = $region56
      $region55: #{simvp_encoder.1} parent=11 // pred_region
        _
      $region56: #{simvp_encoder.1} parent=11 // pred_fallthru
        _
      // Predicated region
      $region57: #{simvp_encoder.1} parent=11 // pred_check
        %p575 = pneg %p307
      $region58: #{simvp_encoder.1} parent=11 // pred_check_branch
        %577 = sbr.rel (%p575) target = $region60
      $region59: #{simvp_encoder.1} parent=11 // pred_region
        _
      $region60: #{simvp_encoder.1} parent=11 // pred_fallthru
        _
      // Predicated region
      $region61: #{simvp_encoder.1} parent=11 // pred_check
        %p578 = pneg %p328
      $region62: #{simvp_encoder.1} parent=11 // pred_check_branch
        %580 = sbr.rel (%p578) target = $region64
      $region63: #{simvp_encoder.1} parent=11 // pred_region
        _
      $region64: #{simvp_encoder.1} parent=11 // pred_fallthru
        _
      // Predicated region
      $region65: #{simvp_encoder.1} parent=11 // pred_check
        %p581 = pneg %p349
      $region66: #{simvp_encoder.1} parent=11 // pred_check_branch
        %583 = sbr.rel (%p581) target = $region68
      $region67: #{simvp_encoder.1} parent=11 // pred_region
        _
      $region68: #{simvp_encoder.1} parent=11 // pred_fallthru
        _
      // Predicated region
      $region69: #{simvp_encoder.1} parent=11 // pred_check
        %p584 = pneg %p370
      $region70: #{simvp_encoder.1} parent=11 // pred_check_branch
        %586 = sbr.rel (%p584) target = $region72
      $region71: #{simvp_encoder.1} parent=11 // pred_region
        _
      $region72: #{simvp_encoder.1} parent=11 // pred_fallthru
        _
      // Predicated region
      $region73: #{simvp_encoder.1} parent=11 // pred_check
        %p587 = pneg %p391
      $region74: #{simvp_encoder.1} parent=11 // pred_check_branch
        %589 = sbr.rel (%p587) target = $region76
      $region75: #{simvp_encoder.1} parent=11 // pred_region
        _
      $region76: #{simvp_encoder.1} parent=11 // pred_fallthru
        _
      // Predicated region
      $region77: #{simvp_encoder.1} parent=11 // pred_check
        %p590 = pneg %p412
      $region78: #{simvp_encoder.1} parent=11 // pred_check_branch
        %592 = sbr.rel (%p590) target = $region80
      $region79: #{simvp_encoder.1} parent=11 // pred_region
        _
      $region80: #{simvp_encoder.1} parent=11 // pred_fallthru
        _
      // Predicated region
      $region81: #{simvp_encoder.1} parent=11 // pred_check
        %p593 = pneg %p433
      $region82: #{simvp_encoder.1} parent=11 // pred_check_branch
        %595 = sbr.rel (%p593) target = $region84
      $region83: #{simvp_encoder.1} parent=11 // pred_region
        _
      $region84: #{simvp_encoder.1} parent=11 // pred_fallthru
        _
      // Predicated region
      $region85: #{simvp_encoder.1} parent=11 // pred_check
        %p596 = pneg %p454
      $region86: #{simvp_encoder.1} parent=11 // pred_check_branch
        %598 = sbr.rel (%p596) target = $region88
      $region87: #{simvp_encoder.1} parent=11 // pred_region
        _
      $region88: #{simvp_encoder.1} parent=11 // pred_fallthru
        _
      // Predicated region
      $region89: #{simvp_encoder.1} parent=11 // pred_check
        %p599 = pneg %p475
      $region90: #{simvp_encoder.1} parent=11 // pred_check_branch
        %601 = sbr.rel (%p599) target = $region92
      $region91: #{simvp_encoder.1} parent=11 // pred_region
        _
      $region92: #{simvp_encoder.1} parent=11 // pred_fallthru
        _
    $region12: #{simvp_encoder.1} parent=5 // pred_fallthru
      _
    %p602 = scmp.lt.s32.totalorder %s29, 2
    // Predicated region
    $region93: #{simvp_encoder.1} parent=5 // pred_check
      %p603 = pneg %p602
    $region94: #{simvp_encoder.1} parent=5 // pred_check_branch
      %605 = sbr.rel (%p603) target = $region96
    $region95: #{simvp_encoder.1} parent=5 // pred_region
      // Predicated region
      $region97: #{simvp_encoder.1} parent=95 // pred_check
        %p606 = pneg %p49
      $region98: #{simvp_encoder.1} parent=95 // pred_check_branch
        %608 = sbr.rel (%p606) target = $region100
      $region99: #{simvp_encoder.1} parent=95 // pred_region
        %p609 = scmp.lt.s32.totalorder %s29, 1
        %s610 = scalar_select %p609, %s29, 1
        %s611 = smul.addr %s610, 3
        %s612 = smul.addr %s611, 4
        %s613 = scalar_lea.vmem %s0, %s612
      $region100: #{simvp_encoder.1} parent=95 // pred_fallthru
        _
    $region96: #{simvp_encoder.1} parent=5 // pred_fallthru
      _
    %p614 = scmp.le.s32.totalorder 1, %s29
    %p615 = scmp.lt.s32.totalorder %s29, 3
    %p616 = pnand %p614, %p615
    %p617 = pneg %p616
    // Predicated region
    $region101: #{simvp_encoder.1} parent=5 // pred_check
      _
    $region102: #{simvp_encoder.1} parent=5 // pred_check_branch
      %619 = sbr.rel (%p616) target = $region104
    $region103: #{simvp_encoder.1} parent=5 // pred_region
      %s620 = ssub.s32 %s29, 1
      %p621 = scmp.lt.s32.totalorder %s34, 1
      %s622 = scalar_select %p621, %s34, 1
      %s623 = smul.addr %s622, 3
      %s624 = smul.addr %s623, 4
      %s625 = scalar_lea.vmem %s0, %s624
      %p626 = pneg %p55
      %p627 = pneg %p52
      %p628 = pneg %p76
      %p629 = pneg %p73
      %p630 = pneg %p97
      %p631 = pneg %p94
      %p632 = pneg %p118
      %p633 = pneg %p115
      %p634 = pneg %p139
      %p635 = pneg %p136
      %p636 = pneg %p160
      %p637 = pneg %p157
      %p638 = pneg %p181
      %p639 = pneg %p178
      %p640 = pneg %p202
      %p641 = pneg %p199
      %p642 = pneg %p223
      %p643 = pneg %p220
      %p644 = pneg %p244
      %p645 = pneg %p241
      %p646 = pneg %p265
      %p647 = pneg %p262
      %p648 = pneg %p286
      %p649 = pneg %p283
      %p650 = pneg %p307
      %p651 = pneg %p304
      %p652 = pneg %p328
      %p653 = pneg %p325
      %p654 = pneg %p349
      %p655 = pneg %p346
      %p656 = pneg %p370
      %p657 = pneg %p367
      %p658 = pneg %p391
      %p659 = pneg %p388
      %p660 = pneg %p412
      %p661 = pneg %p409
      %p662 = pneg %p433
      %p663 = pneg %p430
      %p664 = pneg %p454
      %p665 = pneg %p451
      %p666 = pneg %p475
      %p667 = pneg %p472
      %p668 = pneg %p501
      %p669 = pneg %p498
      %p670 = scmp.lt.s32.totalorder %s34, 1
      %s671 = scalar_select %p670, %s34, 1
      %s672 = smul.addr %s671, 3
      %s673 = smul.addr %s672, 8
      %s674 = scalar_lea.vmem %s21, %s673
      %p675 = pneg %p527
      %p676 = pneg %p524
      %p677 = scmp.lt.s32.totalorder %s34, 1
      %s678 = scalar_select %p677, %s34, 1
      %s679 = smul.addr %s678, 8
      %s680 = scalar_lea.vmem %s22, %s679
      %p681 = scmp.lt.s32.totalorder %s34, 1
      %s682 = scalar_select %p681, %s34, 1
      %s683 = smul.addr %s682, 3
      %s684 = smul.addr %s683, 4
      %s685 = scalar_lea.vmem %s0, %s684
      %p686 = scmp.lt.s32.totalorder %s34, 1
      %s687 = scalar_select %p686, %s34, 1
      %s688 = smul.addr %s687, 3
      %s689 = smul.addr %s688, 8
      %s690 = scalar_lea.vmem %s21, %s689
      %p691 = scmp.lt.s32.totalorder %s34, 1
      %s692 = scalar_select %p691, %s34, 1
      %s693 = smul.addr %s692, 8
      %s694 = scalar_lea.vmem %s22, %s693
      %v696 = vlaneseq
      %v697 = vshrl.u32 %v696, 7
      %vm698 = vcmp.lt.s32.totalorder %v697, 4
      %v699 = vsel %vm698, 1, 0
      %v700 = vcvt.s32.f32 %v699
      %v701 = vsub.f32 1.0, %v700
      %v702 = vld [vmem:[%s2] sm:$0xff]
      %v703 = vld [vmem:[%s3] sm:$0xff]
      %v704 = vld [vmem:[%s4] sm:$0xff]
      %v705 = vld [vmem:[%s1] sm:$0xf]
      %v706 = vld [vmem:[%s685] sm:$0xff]
      %v707 = vld [vmem:[%s685 + $0x8] sm:$0xf]
      %s708 = scalar_lea.vmem %s1, 4
      %v709 = vld [vmem:[%s708] sm:$0xf]
      %v712 = vunpack.c.l.b16 %v706
      %v713 = vunpack.c.h.b16 %v706
      %v714 = vunpack.c.l.b16 %v707
      %v715 = vpack.c.b16 %v712, %v712
      %v716 = vpack.c.b16 %v713, %v713
      %v717 = vpack.c.b16 %v714, %v714
      %718 = vrot.lane.b32.xlu0 %v715, 127
      %v719 = vpop.permute.xlu0 %718
      %720 = vrot.lane.b32.xlu0 %v716, 127
      %v721 = vpop.permute.xlu0 %720
      %722 = vrot.lane.b32.xlu0 %v717, 127
      %v723 = vpop.permute.xlu0 %722
      %vm724 = vcmask 1039360
      %v725 = vsel %vm724, %v719, %v721
      %v726 = vsel %vm724, %v721, %v723
      %vm727 = vcmask 64512
      %v729 = vsel %vm727, %v709, 0
      %vm731 = vcmask 1043456
      %v733 = vsel %vm731, %v725, 0
      %v736 = vsel %vm731, %v726, 0
      %v739 = vsel %vm731, %v723, 0
      %741 = vmatpush.bf16.msra.mxu0 0
      %742 = vmatpush.bf16.msra.mxu0 0
      %743 = vmatpush.bf16.msra.mxu0 0
      %744 = vmatpush.bf16.msra.mxu0 0
      %745 = vmatpush.bf16.msra.mxu0 0
      %746 = vmatpush.bf16.msra.mxu0 0
      %747 = vmatpush.bf16.msra.mxu0 0
      %748 = vmatpush.bf16.msra.mxu0 %v733
      %749 = vmatmul.bf16.gmra.mxu0 %v729
      %v750 = vpop.f32.mrf.mxu0
      %v751 = vadd.f32 0.0, %v750
      %v752 = vpop.f32.mrf.mxu0
      %753 = vdwg.mxu0
      %754 = vmatpush.bf16.msra.mxu0 0
      %755 = vmatpush.bf16.msra.mxu0 0
      %756 = vmatpush.bf16.msra.mxu0 0
      %757 = vmatpush.bf16.msra.mxu0 0
      %758 = vmatpush.bf16.msra.mxu0 0
      %759 = vmatpush.bf16.msra.mxu0 0
      %760 = vmatpush.bf16.msra.mxu0 0
      %761 = vmatpush.bf16.msra.mxu0 %v736
      %762 = vmatmul.bf16.gmra.mxu0 %v729
      %v763 = vpop.f32.mrf.mxu0
      %v764 = vadd.f32 0.0, %v763
      %v765 = vpop.f32.mrf.mxu0
      %766 = vdwg.mxu0
      %767 = vmatpush.bf16.msra.mxu0 0
      %768 = vmatpush.bf16.msra.mxu0 0
      %769 = vmatpush.bf16.msra.mxu0 0
      %770 = vmatpush.bf16.msra.mxu0 0
      %771 = vmatpush.bf16.msra.mxu0 0
      %772 = vmatpush.bf16.msra.mxu0 0
      %773 = vmatpush.bf16.msra.mxu0 0
      %774 = vmatpush.bf16.msra.mxu0 %v739
      %775 = vmatmul.bf16.gmra.mxu0 %v729
      %v776 = vpop.f32.mrf.mxu0
      %v777 = vadd.f32 0.0, %v776
      %v778 = vpop.f32.mrf.mxu0
      %779 = vdwg.mxu0
      %v781 = vsel %vm727, %v705, 0
      %v784 = vsel %vm731, %v715, 0
      %v787 = vsel %vm731, %v716, 0
      %v790 = vsel %vm731, %v717, 0
      %792 = vmatpush.bf16.msra.mxu0 0
      %793 = vmatpush.bf16.msra.mxu0 0
      %794 = vmatpush.bf16.msra.mxu0 0
      %795 = vmatpush.bf16.msra.mxu0 0
      %796 = vmatpush.bf16.msra.mxu0 0
      %797 = vmatpush.bf16.msra.mxu0 0
      %798 = vmatpush.bf16.msra.mxu0 0
      %799 = vmatpush.bf16.msra.mxu0 %v784
      %800 = vmatmul.bf16.gmra.mxu0 %v781
      %v801 = vpop.f32.mrf.mxu0
      %v802 = vadd.f32 %v751, %v801
      %v803 = vpop.f32.mrf.mxu0
      %804 = vdwg.mxu0
      %805 = vmatpush.bf16.msra.mxu0 0
      %806 = vmatpush.bf16.msra.mxu0 0
      %807 = vmatpush.bf16.msra.mxu0 0
      %808 = vmatpush.bf16.msra.mxu0 0
      %809 = vmatpush.bf16.msra.mxu0 0
      %810 = vmatpush.bf16.msra.mxu0 0
      %811 = vmatpush.bf16.msra.mxu0 0
      %812 = vmatpush.bf16.msra.mxu0 %v787
      %813 = vmatmul.bf16.gmra.mxu0 %v781
      %v814 = vpop.f32.mrf.mxu0
      %v815 = vadd.f32 %v764, %v814
      %v816 = vpop.f32.mrf.mxu0
      %817 = vdwg.mxu0
      %818 = vmatpush.bf16.msra.mxu0 0
      %819 = vmatpush.bf16.msra.mxu0 0
      %820 = vmatpush.bf16.msra.mxu0 0
      %821 = vmatpush.bf16.msra.mxu0 0
      %822 = vmatpush.bf16.msra.mxu0 0
      %823 = vmatpush.bf16.msra.mxu0 0
      %824 = vmatpush.bf16.msra.mxu0 0
      %825 = vmatpush.bf16.msra.mxu0 %v790
      %826 = vmatmul.bf16.gmra.mxu0 %v781
      %v827 = vpop.f32.mrf.mxu0
      %v828 = vadd.f32 %v777, %v827
      %v829 = vpop.f32.mrf.mxu0
      %830 = vdwg.mxu0
      %s831 = scalar_lea.vmem %s1, 8
      %v832 = vld [vmem:[%s831] sm:$0xf]
      %833 = vrot.lane.b32.xlu0 %v715, 126
      %v834 = vpop.permute.xlu0 %833
      %835 = vrot.lane.b32.xlu0 %v716, 126
      %v836 = vpop.permute.xlu0 %835
      %837 = vrot.lane.b32.xlu0 %v717, 126
      %v838 = vpop.permute.xlu0 %837
      %vm839 = vcmask 1031168
      %v840 = vsel %vm839, %v834, %v836
      %v841 = vsel %vm839, %v836, %v838
      %v843 = vsel %vm727, %v832, 0
      %v846 = vsel %vm731, %v840, 0
      %v849 = vsel %vm731, %v841, 0
      %v852 = vsel %vm731, %v838, 0
      %854 = vmatpush.bf16.msra.mxu0 0
      %855 = vmatpush.bf16.msra.mxu0 0
      %856 = vmatpush.bf16.msra.mxu0 0
      %857 = vmatpush.bf16.msra.mxu0 0
      %858 = vmatpush.bf16.msra.mxu0 0
      %859 = vmatpush.bf16.msra.mxu0 0
      %860 = vmatpush.bf16.msra.mxu0 0
      %861 = vmatpush.bf16.msra.mxu0 %v846
      %862 = vmatmul.bf16.gmra.mxu0 %v843
      %v863 = vpop.f32.mrf.mxu0
      %v864 = vadd.f32 0.0, %v863
      %v865 = vpop.f32.mrf.mxu0
      %866 = vdwg.mxu0
      %867 = vmatpush.bf16.msra.mxu0 0
      %868 = vmatpush.bf16.msra.mxu0 0
      %869 = vmatpush.bf16.msra.mxu0 0
      %870 = vmatpush.bf16.msra.mxu0 0
      %871 = vmatpush.bf16.msra.mxu0 0
      %872 = vmatpush.bf16.msra.mxu0 0
      %873 = vmatpush.bf16.msra.mxu0 0
      %874 = vmatpush.bf16.msra.mxu0 %v849
      %875 = vmatmul.bf16.gmra.mxu0 %v843
      %v876 = vpop.f32.mrf.mxu0
      %v877 = vadd.f32 0.0, %v876
      %v878 = vpop.f32.mrf.mxu0
      %879 = vdwg.mxu0
      %880 = vmatpush.bf16.msra.mxu0 0
      %881 = vmatpush.bf16.msra.mxu0 0
      %882 = vmatpush.bf16.msra.mxu0 0
      %883 = vmatpush.bf16.msra.mxu0 0
      %884 = vmatpush.bf16.msra.mxu0 0
      %885 = vmatpush.bf16.msra.mxu0 0
      %886 = vmatpush.bf16.msra.mxu0 0
      %887 = vmatpush.bf16.msra.mxu0 %v852
      %888 = vmatmul.bf16.gmra.mxu0 %v843
      %v889 = vpop.f32.mrf.mxu0
      %v890 = vadd.f32 0.0, %v889
      %v891 = vpop.f32.mrf.mxu0
      %892 = vdwg.mxu0
      %v893 = vadd.f32 %v802, %v864
      %v894 = vadd.f32 %v815, %v877
      %v895 = vadd.f32 %v828, %v890
      %s896 = scalar_lea.vmem %s1, 12
      %v897 = vld [vmem:[%s896] sm:$0xf]
      %898 = vrot.lane.b32.xlu0 %v715, 110
      %v899 = vpop.permute.xlu0 %898
      %900 = vrot.lane.b32.xlu0 %v716, 110
      %v901 = vpop.permute.xlu0 %900
      %902 = vrot.lane.b32.xlu0 %v717, 110
      %v903 = vpop.permute.xlu0 %902
      %vm904 = vcmask 900096
      %v905 = vsel %vm904, %v899, %v901
      %v906 = vsel %vm904, %v901, %v903
      %v908 = vsel %vm727, %v897, 0
      %v911 = vsel %vm731, %v905, 0
      %v914 = vsel %vm731, %v906, 0
      %v917 = vsel %vm731, %v903, 0
      %919 = vmatpush.bf16.msra.mxu0 0
      %920 = vmatpush.bf16.msra.mxu0 0
      %921 = vmatpush.bf16.msra.mxu0 0
      %922 = vmatpush.bf16.msra.mxu0 0
      %923 = vmatpush.bf16.msra.mxu0 0
      %924 = vmatpush.bf16.msra.mxu0 0
      %925 = vmatpush.bf16.msra.mxu0 0
      %926 = vmatpush.bf16.msra.mxu0 %v911
      %927 = vmatmul.bf16.gmra.mxu0 %v908
      %v928 = vpop.f32.mrf.mxu0
      %v929 = vadd.f32 0.0, %v928
      %v930 = vpop.f32.mrf.mxu0
      %931 = vdwg.mxu0
      %932 = vmatpush.bf16.msra.mxu0 0
      %933 = vmatpush.bf16.msra.mxu0 0
      %934 = vmatpush.bf16.msra.mxu0 0
      %935 = vmatpush.bf16.msra.mxu0 0
      %936 = vmatpush.bf16.msra.mxu0 0
      %937 = vmatpush.bf16.msra.mxu0 0
      %938 = vmatpush.bf16.msra.mxu0 0
      %939 = vmatpush.bf16.msra.mxu0 %v914
      %940 = vmatmul.bf16.gmra.mxu0 %v908
      %v941 = vpop.f32.mrf.mxu0
      %v942 = vadd.f32 0.0, %v941
      %v943 = vpop.f32.mrf.mxu0
      %944 = vdwg.mxu0
      %945 = vmatpush.bf16.msra.mxu0 0
      %946 = vmatpush.bf16.msra.mxu0 0
      %947 = vmatpush.bf16.msra.mxu0 0
      %948 = vmatpush.bf16.msra.mxu0 0
      %949 = vmatpush.bf16.msra.mxu0 0
      %950 = vmatpush.bf16.msra.mxu0 0
      %951 = vmatpush.bf16.msra.mxu0 0
      %952 = vmatpush.bf16.msra.mxu0 %v917
      %953 = vmatmul.bf16.gmra.mxu0 %v908
      %v954 = vpop.f32.mrf.mxu0
      %v955 = vadd.f32 0.0, %v954
      %v956 = vpop.f32.mrf.mxu0
      %957 = vdwg.mxu0
      %v958 = vadd.f32 %v893, %v929
      %v959 = vadd.f32 %v894, %v942
      %v960 = vadd.f32 %v895, %v955
      %s961 = scalar_lea.vmem %s1, 16
      %v962 = vld [vmem:[%s961] sm:$0xf]
      %963 = vrot.lane.b32.xlu0 %v715, 109
      %v964 = vpop.permute.xlu0 %963
      %965 = vrot.lane.b32.xlu0 %v716, 109
      %v966 = vpop.permute.xlu0 %965
      %967 = vrot.lane.b32.xlu0 %v717, 109
      %v968 = vpop.permute.xlu0 %967
      %vm969 = vcmask 891904
      %v970 = vsel %vm969, %v964, %v966
      %v971 = vsel %vm969, %v966, %v968
      %v973 = vsel %vm727, %v962, 0
      %v976 = vsel %vm731, %v970, 0
      %v979 = vsel %vm731, %v971, 0
      %v982 = vsel %vm731, %v968, 0
      %984 = vmatpush.bf16.msra.mxu0 0
      %985 = vmatpush.bf16.msra.mxu0 0
      %986 = vmatpush.bf16.msra.mxu0 0
      %987 = vmatpush.bf16.msra.mxu0 0
      %988 = vmatpush.bf16.msra.mxu0 0
      %989 = vmatpush.bf16.msra.mxu0 0
      %990 = vmatpush.bf16.msra.mxu0 0
      %991 = vmatpush.bf16.msra.mxu0 %v976
      %992 = vmatmul.bf16.gmra.mxu0 %v973
      %v993 = vpop.f32.mrf.mxu0
      %v994 = vadd.f32 0.0, %v993
      %v995 = vpop.f32.mrf.mxu0
      %996 = vdwg.mxu0
      %997 = vmatpush.bf16.msra.mxu0 0
      %998 = vmatpush.bf16.msra.mxu0 0
      %999 = vmatpush.bf16.msra.mxu0 0
      %1000 = vmatpush.bf16.msra.mxu0 0
      %1001 = vmatpush.bf16.msra.mxu0 0
      %1002 = vmatpush.bf16.msra.mxu0 0
      %1003 = vmatpush.bf16.msra.mxu0 0
      %1004 = vmatpush.bf16.msra.mxu0 %v979
      %1005 = vmatmul.bf16.gmra.mxu0 %v973
      %v1006 = vpop.f32.mrf.mxu0
      %v1007 = vadd.f32 0.0, %v1006
      %v1008 = vpop.f32.mrf.mxu0
      %1009 = vdwg.mxu0
      %1010 = vmatpush.bf16.msra.mxu0 0
      %1011 = vmatpush.bf16.msra.mxu0 0
      %1012 = vmatpush.bf16.msra.mxu0 0
      %1013 = vmatpush.bf16.msra.mxu0 0
      %1014 = vmatpush.bf16.msra.mxu0 0
      %1015 = vmatpush.bf16.msra.mxu0 0
      %1016 = vmatpush.bf16.msra.mxu0 0
      %1017 = vmatpush.bf16.msra.mxu0 %v982
      %1018 = vmatmul.bf16.gmra.mxu0 %v973
      %v1019 = vpop.f32.mrf.mxu0
      %v1020 = vadd.f32 0.0, %v1019
      %v1021 = vpop.f32.mrf.mxu0
      %1022 = vdwg.mxu0
      %v1023 = vadd.f32 %v958, %v994
      %v1024 = vadd.f32 %v959, %v1007
      %v1025 = vadd.f32 %v960, %v1020
      %s1026 = scalar_lea.vmem %s1, 20
      %v1027 = vld [vmem:[%s1026] sm:$0xf]
      %1028 = vrot.lane.b32.xlu0 %v715, 108
      %v1029 = vpop.permute.xlu0 %1028
      %1030 = vrot.lane.b32.xlu0 %v716, 108
      %v1031 = vpop.permute.xlu0 %1030
      %1032 = vrot.lane.b32.xlu0 %v717, 108
      %v1033 = vpop.permute.xlu0 %1032
      %vm1034 = vcmask 883712
      %v1035 = vsel %vm1034, %v1029, %v1031
      %v1036 = vsel %vm1034, %v1031, %v1033
      %v1038 = vsel %vm727, %v1027, 0
      %v1041 = vsel %vm731, %v1035, 0
      %v1044 = vsel %vm731, %v1036, 0
      %v1047 = vsel %vm731, %v1033, 0
      %1049 = vmatpush.bf16.msra.mxu0 0
      %1050 = vmatpush.bf16.msra.mxu0 0
      %1051 = vmatpush.bf16.msra.mxu0 0
      %1052 = vmatpush.bf16.msra.mxu0 0
      %1053 = vmatpush.bf16.msra.mxu0 0
      %1054 = vmatpush.bf16.msra.mxu0 0
      %1055 = vmatpush.bf16.msra.mxu0 0
      %1056 = vmatpush.bf16.msra.mxu0 %v1041
      %1057 = vmatmul.bf16.gmra.mxu0 %v1038
      %v1058 = vpop.f32.mrf.mxu0
      %v1059 = vadd.f32 0.0, %v1058
      %v1060 = vpop.f32.mrf.mxu0
      %1061 = vdwg.mxu0
      %1062 = vmatpush.bf16.msra.mxu0 0
      %1063 = vmatpush.bf16.msra.mxu0 0
      %1064 = vmatpush.bf16.msra.mxu0 0
      %1065 = vmatpush.bf16.msra.mxu0 0
      %1066 = vmatpush.bf16.msra.mxu0 0
      %1067 = vmatpush.bf16.msra.mxu0 0
      %1068 = vmatpush.bf16.msra.mxu0 0
      %1069 = vmatpush.bf16.msra.mxu0 %v1044
      %1070 = vmatmul.bf16.gmra.mxu0 %v1038
      %v1071 = vpop.f32.mrf.mxu0
      %v1072 = vadd.f32 0.0, %v1071
      %v1073 = vpop.f32.mrf.mxu0
      %1074 = vdwg.mxu0
      %1075 = vmatpush.bf16.msra.mxu0 0
      %1076 = vmatpush.bf16.msra.mxu0 0
      %1077 = vmatpush.bf16.msra.mxu0 0
      %1078 = vmatpush.bf16.msra.mxu0 0
      %1079 = vmatpush.bf16.msra.mxu0 0
      %1080 = vmatpush.bf16.msra.mxu0 0
      %1081 = vmatpush.bf16.msra.mxu0 0
      %1082 = vmatpush.bf16.msra.mxu0 %v1047
      %1083 = vmatmul.bf16.gmra.mxu0 %v1038
      %v1084 = vpop.f32.mrf.mxu0
      %v1085 = vadd.f32 0.0, %v1084
      %v1086 = vpop.f32.mrf.mxu0
      %1087 = vdwg.mxu0
      %v1088 = vadd.f32 %v1023, %v1059
      %v1089 = vadd.f32 %v1024, %v1072
      %v1090 = vadd.f32 %v1025, %v1085
      %s1091 = scalar_lea.vmem %s1, 24
      %v1092 = vld [vmem:[%s1091] sm:$0xf]
      %1093 = vrot.lane.b32.xlu0 %v715, 92
      %v1094 = vpop.permute.xlu0 %1093
      %1095 = vrot.lane.b32.xlu0 %v716, 92
      %v1096 = vpop.permute.xlu0 %1095
      %1097 = vrot.lane.b32.xlu0 %v717, 92
      %v1098 = vpop.permute.xlu0 %1097
      %vm1099 = vcmask 752640
      %v1100 = vsel %vm1099, %v1094, %v1096
      %v1101 = vsel %vm1099, %v1096, %v1098
      %v1103 = vsel %vm727, %v1092, 0
      %v1106 = vsel %vm731, %v1100, 0
      %v1109 = vsel %vm731, %v1101, 0
      %v1112 = vsel %vm731, %v1098, 0
      %1114 = vmatpush.bf16.msra.mxu0 0
      %1115 = vmatpush.bf16.msra.mxu0 0
      %1116 = vmatpush.bf16.msra.mxu0 0
      %1117 = vmatpush.bf16.msra.mxu0 0
      %1118 = vmatpush.bf16.msra.mxu0 0
      %1119 = vmatpush.bf16.msra.mxu0 0
      %1120 = vmatpush.bf16.msra.mxu0 0
      %1121 = vmatpush.bf16.msra.mxu0 %v1106
      %1122 = vmatmul.bf16.gmra.mxu0 %v1103
      %v1123 = vpop.f32.mrf.mxu0
      %v1124 = vadd.f32 0.0, %v1123
      %v1125 = vpop.f32.mrf.mxu0
      %1126 = vdwg.mxu0
      %1127 = vmatpush.bf16.msra.mxu0 0
      %1128 = vmatpush.bf16.msra.mxu0 0
      %1129 = vmatpush.bf16.msra.mxu0 0
      %1130 = vmatpush.bf16.msra.mxu0 0
      %1131 = vmatpush.bf16.msra.mxu0 0
      %1132 = vmatpush.bf16.msra.mxu0 0
      %1133 = vmatpush.bf16.msra.mxu0 0
      %1134 = vmatpush.bf16.msra.mxu0 %v1109
      %1135 = vmatmul.bf16.gmra.mxu0 %v1103
      %v1136 = vpop.f32.mrf.mxu0
      %v1137 = vadd.f32 0.0, %v1136
      %v1138 = vpop.f32.mrf.mxu0
      %1139 = vdwg.mxu0
      %1140 = vmatpush.bf16.msra.mxu0 0
      %1141 = vmatpush.bf16.msra.mxu0 0
      %1142 = vmatpush.bf16.msra.mxu0 0
      %1143 = vmatpush.bf16.msra.mxu0 0
      %1144 = vmatpush.bf16.msra.mxu0 0
      %1145 = vmatpush.bf16.msra.mxu0 0
      %1146 = vmatpush.bf16.msra.mxu0 0
      %1147 = vmatpush.bf16.msra.mxu0 %v1112
      %1148 = vmatmul.bf16.gmra.mxu0 %v1103
      %v1149 = vpop.f32.mrf.mxu0
      %v1150 = vadd.f32 0.0, %v1149
      %v1151 = vpop.f32.mrf.mxu0
      %1152 = vdwg.mxu0
      %v1153 = vadd.f32 %v1088, %v1124
      %v1154 = vadd.f32 %v1089, %v1137
      %v1155 = vadd.f32 %v1090, %v1150
      %s1156 = scalar_lea.vmem %s1, 28
      %v1157 = vld [vmem:[%s1156] sm:$0xf]
      %1158 = vrot.lane.b32.xlu0 %v715, 91
      %v1159 = vpop.permute.xlu0 %1158
      %1160 = vrot.lane.b32.xlu0 %v716, 91
      %v1161 = vpop.permute.xlu0 %1160
      %1162 = vrot.lane.b32.xlu0 %v717, 91
      %v1163 = vpop.permute.xlu0 %1162
      %vm1164 = vcmask 744448
      %v1165 = vsel %vm1164, %v1159, %v1161
      %v1166 = vsel %vm1164, %v1161, %v1163
      %v1168 = vsel %vm727, %v1157, 0
      %v1171 = vsel %vm731, %v1165, 0
      %v1174 = vsel %vm731, %v1166, 0
      %v1177 = vsel %vm731, %v1163, 0
      %1179 = vmatpush.bf16.msra.mxu0 0
      %1180 = vmatpush.bf16.msra.mxu0 0
      %1181 = vmatpush.bf16.msra.mxu0 0
      %1182 = vmatpush.bf16.msra.mxu0 0
      %1183 = vmatpush.bf16.msra.mxu0 0
      %1184 = vmatpush.bf16.msra.mxu0 0
      %1185 = vmatpush.bf16.msra.mxu0 0
      %1186 = vmatpush.bf16.msra.mxu0 %v1171
      %1187 = vmatmul.bf16.gmra.mxu0 %v1168
      %v1188 = vpop.f32.mrf.mxu0
      %v1189 = vadd.f32 0.0, %v1188
      %v1190 = vpop.f32.mrf.mxu0
      %1191 = vdwg.mxu0
      %1192 = vmatpush.bf16.msra.mxu0 0
      %1193 = vmatpush.bf16.msra.mxu0 0
      %1194 = vmatpush.bf16.msra.mxu0 0
      %1195 = vmatpush.bf16.msra.mxu0 0
      %1196 = vmatpush.bf16.msra.mxu0 0
      %1197 = vmatpush.bf16.msra.mxu0 0
      %1198 = vmatpush.bf16.msra.mxu0 0
      %1199 = vmatpush.bf16.msra.mxu0 %v1174
      %1200 = vmatmul.bf16.gmra.mxu0 %v1168
      %v1201 = vpop.f32.mrf.mxu0
      %v1202 = vadd.f32 0.0, %v1201
      %v1203 = vpop.f32.mrf.mxu0
      %1204 = vdwg.mxu0
      %1205 = vmatpush.bf16.msra.mxu0 0
      %1206 = vmatpush.bf16.msra.mxu0 0
      %1207 = vmatpush.bf16.msra.mxu0 0
      %1208 = vmatpush.bf16.msra.mxu0 0
      %1209 = vmatpush.bf16.msra.mxu0 0
      %1210 = vmatpush.bf16.msra.mxu0 0
      %1211 = vmatpush.bf16.msra.mxu0 0
      %1212 = vmatpush.bf16.msra.mxu0 %v1177
      %1213 = vmatmul.bf16.gmra.mxu0 %v1168
      %v1214 = vpop.f32.mrf.mxu0
      %v1215 = vadd.f32 0.0, %v1214
      %v1216 = vpop.f32.mrf.mxu0
      %1217 = vdwg.mxu0
      %v1218 = vadd.f32 %v1153, %v1189
      %v1219 = vadd.f32 %v1154, %v1202
      %v1220 = vadd.f32 %v1155, %v1215
      %s1221 = scalar_lea.vmem %s1, 32
      %v1222 = vld [vmem:[%s1221] sm:$0xf]
      %1223 = vrot.lane.b32.xlu0 %v715, 90
      %v1224 = vpop.permute.xlu0 %1223
      %1225 = vrot.lane.b32.xlu0 %v716, 90
      %v1226 = vpop.permute.xlu0 %1225
      %1227 = vrot.lane.b32.xlu0 %v717, 90
      %v1228 = vpop.permute.xlu0 %1227
      %vm1229 = vcmask 736256
      %v1230 = vsel %vm1229, %v1224, %v1226
      %v1231 = vsel %vm1229, %v1226, %v1228
      %v1233 = vsel %vm727, %v1222, 0
      %v1236 = vsel %vm731, %v1230, 0
      %v1239 = vsel %vm731, %v1231, 0
      %v1242 = vsel %vm731, %v1228, 0
      %1244 = vmatpush.bf16.msra.mxu0 0
      %1245 = vmatpush.bf16.msra.mxu0 0
      %1246 = vmatpush.bf16.msra.mxu0 0
      %1247 = vmatpush.bf16.msra.mxu0 0
      %1248 = vmatpush.bf16.msra.mxu0 0
      %1249 = vmatpush.bf16.msra.mxu0 0
      %1250 = vmatpush.bf16.msra.mxu0 0
      %1251 = vmatpush.bf16.msra.mxu0 %v1236
      %1252 = vmatmul.bf16.gmra.mxu0 %v1233
      %v1253 = vpop.f32.mrf.mxu0
      %v1254 = vadd.f32 0.0, %v1253
      %v1255 = vpop.f32.mrf.mxu0
      %1256 = vdwg.mxu0
      %1257 = vmatpush.bf16.msra.mxu0 0
      %1258 = vmatpush.bf16.msra.mxu0 0
      %1259 = vmatpush.bf16.msra.mxu0 0
      %1260 = vmatpush.bf16.msra.mxu0 0
      %1261 = vmatpush.bf16.msra.mxu0 0
      %1262 = vmatpush.bf16.msra.mxu0 0
      %1263 = vmatpush.bf16.msra.mxu0 0
      %1264 = vmatpush.bf16.msra.mxu0 %v1239
      %1265 = vmatmul.bf16.gmra.mxu0 %v1233
      %v1266 = vpop.f32.mrf.mxu0
      %v1267 = vadd.f32 0.0, %v1266
      %v1268 = vpop.f32.mrf.mxu0
      %1269 = vdwg.mxu0
      %1270 = vmatpush.bf16.msra.mxu0 0
      %1271 = vmatpush.bf16.msra.mxu0 0
      %1272 = vmatpush.bf16.msra.mxu0 0
      %1273 = vmatpush.bf16.msra.mxu0 0
      %1274 = vmatpush.bf16.msra.mxu0 0
      %1275 = vmatpush.bf16.msra.mxu0 0
      %1276 = vmatpush.bf16.msra.mxu0 0
      %1277 = vmatpush.bf16.msra.mxu0 %v1242
      %1278 = vmatmul.bf16.gmra.mxu0 %v1233
      %v1279 = vpop.f32.mrf.mxu0
      %v1280 = vadd.f32 0.0, %v1279
      %v1281 = vpop.f32.mrf.mxu0
      %1282 = vdwg.mxu0
      %v1283 = vadd.f32 %v1218, %v1254
      %v1284 = vadd.f32 %v1219, %v1267
      %v1285 = vadd.f32 %v1220, %v1280
      %v1286 = vld [vmem:[%s5] sm:$0x7]
      %vm1287 = vcmp.gt.f32.partialorder %v1286, 0.5
      %v1288 = vsel %vm1287, 1, 0
      %v1289 = vperm.slane %v1288, 0
      %v1290 = vperm.slane %v1288, 1
      %v1291 = vperm.slane %v1288, 2
      %vm1292 = vcmp.eq.s32.totalorder %v1289, 1
      %vm1293 = vcmp.eq.s32.totalorder %v1290, 1
      %vm1294 = vcmp.eq.s32.totalorder %v1291, 1
      %v1295 = vsel %vm1292, %v1283, 0.0
      %v1296 = vsel %vm1293, %v1284, 0.0
      %v1297 = vsel %vm1294, %v1285, 0.0
      %v1298 = vadd.f32 %v1295, %v1296
      %vm1299 = vcmask 556032
      %v1300 = vsel %vm1299, %v1297, 0.0
      %v1301 = vadd.f32 %v1298, %v1300
      %1302 = vadd.xlane.f32.xlu0 %v1301
      %v1303 = vpop.xlane.xlu0 %1302
      %v1304 = vmul.f32 %v1295, %v1295
      %v1305 = vmul.f32 %v1296, %v1296
      %v1306 = vmul.f32 %v1297, %v1297
      %v1307 = vadd.f32 %v1304, %v1305
      %v1308 = vsel %vm1299, %v1306, 0.0
      %v1309 = vadd.f32 %v1307, %v1308
      %1310 = vadd.xlane.f32.xlu0 %v1309
      %v1311 = vpop.xlane.xlu0 %1310
      %v1312 = vmul.f32 %v702, 256.0
      %v1313 = vadd.f32 %v1303, %v1312
      %v1314 = vmul.f32 %v702, 2.0
      %v1315 = vmul.f32 %v1314, %v1303
      %v1316 = vadd.f32 %v1311, %v1315
      %v1317 = vmul.f32 %v1312, %v702
      %v1318 = vadd.f32 %v1316, %v1317
      %v1319 = vmul.f32 %v1313, %v700
      %vm1320 = vcmask 7168
      %v1321 = vsel %vm1320, %v1319, 0.0
      %1322 = vadd.xlane.f32.xlu0 %v1321
      %v1323 = vpop.xlane.xlu0 %1322
      %v1324 = vrot.slane %v1323, 4
      %v1325 = vadd.f32 %v1323, %v1324
      %v1326 = vrot.slane %v1325, 2
      %v1327 = vadd.f32 %v1325, %v1326
      %v1328 = vrot.slane %v1327, 1
      %v1329 = vadd.f32 %v1327, %v1328
      %s1330 = vtos %v1329
      %v1331 = vstv %s1330
      %v1332 = vmul.f32 %v1313, %v701
      %v1333 = vsel %vm1320, %v1332, 0.0
      %1334 = vadd.xlane.f32.xlu0 %v1333
      %v1335 = vpop.xlane.xlu0 %1334
      %v1336 = vrot.slane %v1335, 4
      %v1337 = vadd.f32 %v1335, %v1336
      %v1338 = vrot.slane %v1337, 2
      %v1339 = vadd.f32 %v1337, %v1338
      %v1340 = vrot.slane %v1339, 1
      %v1341 = vadd.f32 %v1339, %v1340
      %s1342 = vtos %v1341
      %v1343 = vstv %s1342
      %v1344 = vmul.f32 %v1318, %v700
      %v1345 = vsel %vm1320, %v1344, 0.0
      %1346 = vadd.xlane.f32.xlu0 %v1345
      %v1347 = vpop.xlane.xlu0 %1346
      %v1348 = vrot.slane %v1347, 4
      %v1349 = vadd.f32 %v1347, %v1348
      %v1350 = vrot.slane %v1349, 2
      %v1351 = vadd.f32 %v1349, %v1350
      %v1352 = vrot.slane %v1351, 1
      %v1353 = vadd.f32 %v1351, %v1352
      %s1354 = vtos %v1353
      %v1355 = vstv %s1354
      %v1356 = vmul.f32 %v1318, %v701
      %v1357 = vsel %vm1320, %v1356, 0.0
      %1358 = vadd.xlane.f32.xlu0 %v1357
      %v1359 = vpop.xlane.xlu0 %1358
      %v1360 = vrot.slane %v1359, 4
      %v1361 = vadd.f32 %v1359, %v1360
      %v1362 = vrot.slane %v1361, 2
      %v1363 = vadd.f32 %v1361, %v1362
      %v1364 = vrot.slane %v1363, 1
      %v1365 = vadd.f32 %v1363, %v1364
      %s1366 = vtos %v1365
      %v1367 = vstv %s1366
      %v1368 = vmul.f32 %v1331, 0.0009765625
      %v1369 = vmul.f32 %v1343, 0.0009765625
      %v1370 = vmul.f32 %v1355, 0.0009765625
      %v1371 = vmul.f32 %v1368, %v1368
      %v1372 = vsub.f32 %v1370, %v1371
      %v1373 = vmax.f32 %v1372, 0.0
      %v1374 = vmul.f32 %v1367, 0.0009765625
      %v1375 = vmul.f32 %v1369, %v1369
      %v1376 = vsub.f32 %v1374, %v1375
      %v1377 = vmax.f32 %v1376, 0.0
      %v1378 = vadd.f32 %v1373, 1e-05
      %v1379 = vrsqrt.pop %v1378
      %v1380 = vmul.f32 %v1379, %v1378
      %v1381 = vmul.f32 %v1380, %v1379
      %v1382 = vmul.f32 0.5, %v1381
      %v1383 = vsub.f32 1.5, %v1382
      %v1384 = vmul.f32 %v1379, %v1383
      %vm1385 = vweird.f32 %v1378
      %vm1386 = vweird.f32 %v1379
      %vm1387 = vmor %vm1385, %vm1386
      %v1388 = vsel %vm1387, %v1379, %v1384
      %v1389 = vadd.f32 %v1377, 1e-05
      %v1390 = vrsqrt.pop %v1389
      %v1391 = vmul.f32 %v1390, %v1389
      %v1392 = vmul.f32 %v1391, %v1390
      %v1393 = vmul.f32 0.5, %v1392
      %v1394 = vsub.f32 1.5, %v1393
      %v1395 = vmul.f32 %v1390, %v1394
      %vm1396 = vweird.f32 %v1389
      %vm1397 = vweird.f32 %v1390
      %vm1398 = vmor %vm1396, %vm1397
      %v1399 = vsel %vm1398, %v1390, %v1395
      %v1400 = vmul.f32 %v700, %v1368
      %v1401 = vmul.f32 %v701, %v1369
      %v1402 = vadd.f32 %v1400, %v1401
      %v1403 = vmul.f32 %v700, %v1388
      %v1404 = vmul.f32 %v701, %v1399
      %v1405 = vadd.f32 %v1403, %v1404
      %v1406 = vmul.f32 %v1405, %v703
      %v1407 = vsub.f32 %v702, %v1402
      %v1408 = vmul.f32 %v1407, %v1406
      %v1409 = vadd.f32 %v1408, %v704
      %1411 = vset.pattern.permute.xlu0 0
      %1412 = vperm.xlu0 %1411, %v1406
      %v1413 = vpop.permute.xlu0 %1412
      %v1415 = vmul.f32 %v1283, %v1413
      %v1416 = vmul.f32 %v1284, %v1413
      %v1417 = vmul.f32 %v1285, %v1413
      %1419 = vset.pattern.permute.xlu0 0
      %1420 = vperm.xlu0 %1419, %v1409
      %v1421 = vpop.permute.xlu0 %1420
      %v1423 = vadd.f32 %v1415, %v1421
      %v1424 = vadd.f32 %v1416, %v1421
      %v1425 = vadd.f32 %v1417, %v1421
      %vm1426 = vcmp.gt.f32.partialorder %v1423, 0.0
      %vm1427 = vcmp.gt.f32.partialorder %v1424, 0.0
      %vm1428 = vcmp.gt.f32.partialorder %v1425, 0.0
      %v1429 = vmul.f32 %v1423, 0.2
      %v1430 = vmul.f32 %v1424, 0.2
      %v1431 = vmul.f32 %v1425, 0.2
      %v1432 = vsel %vm1426, %v1423, %v1429
      %v1433 = vsel %vm1427, %v1424, %v1430
      %v1434 = vsel %vm1428, %v1425, %v1431
      %v1435 = vsel %vm1292, %v1432, 0.0
      %v1436 = vsel %vm1293, %v1433, 0.0
      %v1437 = vsel %vm1294, %v1434, 0.0
      %1438 = vst [vmem:[%s690] sm:$0xff] %v1435
      %1439 = vst [vmem:[%s690 + $0x8] sm:$0xff] %v1436
      %1440 = vst.msk [vmem:[%s690 + $0x10] sm:$0xff] %vm1299, %v1437
      %vm1441 = vcmask 150528
      %1442 = vst.msk [vmem:[#allocation2] sm:$0xf] %vm1441, 0
      %vm1443 = vcmask 863928
      %1444 = vst.msk [vmem:[#allocation2 + $0x8] sm:$0xf] %vm1443, 0
      %v1445 = vpack.c.bf16 %v1436, %v1435
      %v1446 = vpack.c.bf16 %v1437, %v1437
      %1449 = vrot.lane.b32.xlu0 %v1445, 19
      %v1450 = vpop.permute.xlu0 %1449
      %1451 = vrot.lane.b32.xlu0 %v1446, 19
      %v1452 = vpop.permute.xlu0 %1451
      %v1453 = vrot.slane %v1450, 4
      %vm1454 = vcmask 154624
      %v1455 = vsel %vm1454, %v1453, %v1450
      %v1456 = vsel %vm1454, %v1453, %v1452
      %vm1459 = vcmask 1043608
      %vm1460 = vcmask 1047556
      %vm1461 = vmor %vm1460, %vm1459
      %1462 = vst.msk [vmem:[#allocation2] sm:$0xff] %vm1461, %v1455
      %vm1463 = vcmask 707584
      %1464 = vst.msk [vmem:[#allocation2 + $0x8] sm:$0xf] %vm1463, %v1456
      %v1465 = vld [vmem:[%s7] sm:$0xff]
      %v1466 = vld [vmem:[%s8] sm:$0xff]
      %v1467 = vld [vmem:[%s9] sm:$0xff]
      %v1468 = vld [vmem:[%s6] sm:$0xf]
      %v1469 = vld [vmem:[#allocation2] sm:$0xf]
      %s1470 = scalar_lea.vmem %s6, 4
      %v1471 = vld [vmem:[%s1470] sm:$0xf]
      %v1473 = vunpack.c.l.b16 %v1469
      %v1474 = vpack.c.b16 %v1473, %v1473
      %1475 = vrot.lane.b32.xlu0 %v1474, 109
      %v1476 = vpop.permute.xlu0 %1475
      %v1478 = vsel %vm727, %v1471, 0
      %v1481 = vsel %vm731, %v1476, 0
      %1483 = vmatpush.bf16.msra.mxu0 0
      %1484 = vmatpush.bf16.msra.mxu0 0
      %1485 = vmatpush.bf16.msra.mxu0 0
      %1486 = vmatpush.bf16.msra.mxu0 0
      %1487 = vmatpush.bf16.msra.mxu0 0
      %1488 = vmatpush.bf16.msra.mxu0 0
      %1489 = vmatpush.bf16.msra.mxu0 0
      %1490 = vmatpush.bf16.msra.mxu0 %v1481
      %1491 = vmatmul.bf16.gmra.mxu0 %v1478
      %v1492 = vpop.f32.mrf.mxu0
      %v1493 = vadd.f32 0.0, %v1492
      %v1494 = vpop.f32.mrf.mxu0
      %1495 = vdwg.mxu0
      %1496 = vrot.lane.b32.xlu0 %v1474, 110
      %v1497 = vpop.permute.xlu0 %1496
      %v1499 = vsel %vm727, %v1468, 0
      %v1502 = vsel %vm731, %v1497, 0
      %1504 = vmatpush.bf16.msra.mxu0 0
      %1505 = vmatpush.bf16.msra.mxu0 0
      %1506 = vmatpush.bf16.msra.mxu0 0
      %1507 = vmatpush.bf16.msra.mxu0 0
      %1508 = vmatpush.bf16.msra.mxu0 0
      %1509 = vmatpush.bf16.msra.mxu0 0
      %1510 = vmatpush.bf16.msra.mxu0 0
      %1511 = vmatpush.bf16.msra.mxu0 %v1502
      %1512 = vmatmul.bf16.gmra.mxu0 %v1499
      %v1513 = vpop.f32.mrf.mxu0
      %v1514 = vadd.f32 %v1493, %v1513
      %v1515 = vpop.f32.mrf.mxu0
      %1516 = vdwg.mxu0
      %s1517 = scalar_lea.vmem %s6, 8
      %v1518 = vld [vmem:[%s1517] sm:$0xf]
      %1519 = vrot.lane.b32.xlu0 %v1474, 108
      %v1520 = vpop.permute.xlu0 %1519
      %v1522 = vsel %vm727, %v1518, 0
      %v1525 = vsel %vm731, %v1520, 0
      %1527 = vmatpush.bf16.msra.mxu0 0
      %1528 = vmatpush.bf16.msra.mxu0 0
      %1529 = vmatpush.bf16.msra.mxu0 0
      %1530 = vmatpush.bf16.msra.mxu0 0
      %1531 = vmatpush.bf16.msra.mxu0 0
      %1532 = vmatpush.bf16.msra.mxu0 0
      %1533 = vmatpush.bf16.msra.mxu0 0
      %1534 = vmatpush.bf16.msra.mxu0 %v1525
      %1535 = vmatmul.bf16.gmra.mxu0 %v1522
      %v1536 = vpop.f32.mrf.mxu0
      %v1537 = vadd.f32 0.0, %v1536
      %v1538 = vpop.f32.mrf.mxu0
      %1539 = vdwg.mxu0
      %v1540 = vadd.f32 %v1514, %v1537
      %s1541 = scalar_lea.vmem %s6, 12
      %v1542 = vld [vmem:[%s1541] sm:$0xf]
      %1543 = vrot.lane.b32.xlu0 %v1474, 92
      %v1544 = vpop.permute.xlu0 %1543
      %v1546 = vsel %vm727, %v1542, 0
      %v1549 = vsel %vm731, %v1544, 0
      %1551 = vmatpush.bf16.msra.mxu0 0
      %1552 = vmatpush.bf16.msra.mxu0 0
      %1553 = vmatpush.bf16.msra.mxu0 0
      %1554 = vmatpush.bf16.msra.mxu0 0
      %1555 = vmatpush.bf16.msra.mxu0 0
      %1556 = vmatpush.bf16.msra.mxu0 0
      %1557 = vmatpush.bf16.msra.mxu0 0
      %1558 = vmatpush.bf16.msra.mxu0 %v1549
      %1559 = vmatmul.bf16.gmra.mxu0 %v1546
      %v1560 = vpop.f32.mrf.mxu0
      %v1561 = vadd.f32 0.0, %v1560
      %v1562 = vpop.f32.mrf.mxu0
      %1563 = vdwg.mxu0
      %v1564 = vadd.f32 %v1540, %v1561
      %s1565 = scalar_lea.vmem %s6, 16
      %v1566 = vld [vmem:[%s1565] sm:$0xf]
      %1567 = vrot.lane.b32.xlu0 %v1474, 91
      %v1568 = vpop.permute.xlu0 %1567
      %v1570 = vsel %vm727, %v1566, 0
      %v1573 = vsel %vm731, %v1568, 0
      %1575 = vmatpush.bf16.msra.mxu0 0
      %1576 = vmatpush.bf16.msra.mxu0 0
      %1577 = vmatpush.bf16.msra.mxu0 0
      %1578 = vmatpush.bf16.msra.mxu0 0
      %1579 = vmatpush.bf16.msra.mxu0 0
      %1580 = vmatpush.bf16.msra.mxu0 0
      %1581 = vmatpush.bf16.msra.mxu0 0
      %1582 = vmatpush.bf16.msra.mxu0 %v1573
      %1583 = vmatmul.bf16.gmra.mxu0 %v1570
      %v1584 = vpop.f32.mrf.mxu0
      %v1585 = vadd.f32 0.0, %v1584
      %v1586 = vpop.f32.mrf.mxu0
      %1587 = vdwg.mxu0
      %v1588 = vadd.f32 %v1564, %v1585
      %s1589 = scalar_lea.vmem %s6, 20
      %v1590 = vld [vmem:[%s1589] sm:$0xf]
      %1591 = vrot.lane.b32.xlu0 %v1474, 90
      %v1592 = vpop.permute.xlu0 %1591
      %v1594 = vsel %vm727, %v1590, 0
      %v1597 = vsel %vm731, %v1592, 0
      %1599 = vmatpush.bf16.msra.mxu0 0
      %1600 = vmatpush.bf16.msra.mxu0 0
      %1601 = vmatpush.bf16.msra.mxu0 0
      %1602 = vmatpush.bf16.msra.mxu0 0
      %1603 = vmatpush.bf16.msra.mxu0 0
      %1604 = vmatpush.bf16.msra.mxu0 0
      %1605 = vmatpush.bf16.msra.mxu0 0
      %1606 = vmatpush.bf16.msra.mxu0 %v1597
      %1607 = vmatmul.bf16.gmra.mxu0 %v1594
      %v1608 = vpop.f32.mrf.mxu0
      %v1609 = vadd.f32 0.0, %v1608
      %v1610 = vpop.f32.mrf.mxu0
      %1611 = vdwg.mxu0
      %v1612 = vadd.f32 %v1588, %v1609
      %s1613 = scalar_lea.vmem %s6, 24
      %v1614 = vld [vmem:[%s1613] sm:$0xf]
      %1615 = vrot.lane.b32.xlu0 %v1474, 74
      %v1616 = vpop.permute.xlu0 %1615
      %v1618 = vsel %vm727, %v1614, 0
      %v1621 = vsel %vm731, %v1616, 0
      %1623 = vmatpush.bf16.msra.mxu0 0
      %1624 = vmatpush.bf16.msra.mxu0 0
      %1625 = vmatpush.bf16.msra.mxu0 0
      %1626 = vmatpush.bf16.msra.mxu0 0
      %1627 = vmatpush.bf16.msra.mxu0 0
      %1628 = vmatpush.bf16.msra.mxu0 0
      %1629 = vmatpush.bf16.msra.mxu0 0
      %1630 = vmatpush.bf16.msra.mxu0 %v1621
      %1631 = vmatmul.bf16.gmra.mxu0 %v1618
      %v1632 = vpop.f32.mrf.mxu0
      %v1633 = vadd.f32 0.0, %v1632
      %v1634 = vpop.f32.mrf.mxu0
      %1635 = vdwg.mxu0
      %v1636 = vadd.f32 %v1612, %v1633
      %s1637 = scalar_lea.vmem %s6, 28
      %v1638 = vld [vmem:[%s1637] sm:$0xf]
      %1639 = vrot.lane.b32.xlu0 %v1474, 73
      %v1640 = vpop.permute.xlu0 %1639
      %v1642 = vsel %vm727, %v1638, 0
      %v1645 = vsel %vm731, %v1640, 0
      %1647 = vmatpush.bf16.msra.mxu0 0
      %1648 = vmatpush.bf16.msra.mxu0 0
      %1649 = vmatpush.bf16.msra.mxu0 0
      %1650 = vmatpush.bf16.msra.mxu0 0
      %1651 = vmatpush.bf16.msra.mxu0 0
      %1652 = vmatpush.bf16.msra.mxu0 0
      %1653 = vmatpush.bf16.msra.mxu0 0
      %1654 = vmatpush.bf16.msra.mxu0 %v1645
      %1655 = vmatmul.bf16.gmra.mxu0 %v1642
      %v1656 = vpop.f32.mrf.mxu0
      %v1657 = vadd.f32 0.0, %v1656
      %v1658 = vpop.f32.mrf.mxu0
      %1659 = vdwg.mxu0
      %v1660 = vadd.f32 %v1636, %v1657
      %s1661 = scalar_lea.vmem %s6, 32
      %v1662 = vld [vmem:[%s1661] sm:$0xf]
      %1663 = vrot.lane.b32.xlu0 %v1474, 72
      %v1664 = vpop.permute.xlu0 %1663
      %v1666 = vsel %vm727, %v1662, 0
      %v1669 = vsel %vm731, %v1664, 0
      %1671 = vmatpush.bf16.msra.mxu0 0
      %1672 = vmatpush.bf16.msra.mxu0 0
      %1673 = vmatpush.bf16.msra.mxu0 0
      %1674 = vmatpush.bf16.msra.mxu0 0
      %1675 = vmatpush.bf16.msra.mxu0 0
      %1676 = vmatpush.bf16.msra.mxu0 0
      %1677 = vmatpush.bf16.msra.mxu0 0
      %1678 = vmatpush.bf16.msra.mxu0 %v1669
      %1679 = vmatmul.bf16.gmra.mxu0 %v1666
      %v1680 = vpop.f32.mrf.mxu0
      %v1681 = vadd.f32 0.0, %v1680
      %v1682 = vpop.f32.mrf.mxu0
      %1683 = vdwg.mxu0
      %v1684 = vadd.f32 %v1660, %v1681
      %v1685 = vld [vmem:[%s10] sm:$0xff]
      %v1686 = vld [vmem:[%s10 + $0x8] sm:$0xff]
      %v1687 = vld [vmem:[%s10 + $0x10] sm:$0x3]
      %vm1688 = vcmask 146432
      %v1690 = vsel %vm1688, %v1684, 0
      %vm1692 = vcmask 1041408
      %v1694 = vsel %vm1692, %v1687, 0
      %1696 = vmatpush.msra.mxu0 0.0
      %1697 = vmatpush.msra.mxu0 0.0
      %1698 = vmatpush.msra.mxu0 0.0
      %1699 = vmatpush.msra.mxu0 0.0
      %1700 = vmatpush.msra.mxu0 0.0
      %1701 = vmatpush.msra.mxu0 0.0
      %1702 = vmatpush.msra.mxu0 0.0
      %1703 = vmatpush.msra.mxu0 0.0
      %1704 = vmatpush.msra.mxu0 0.0
      %1705 = vmatpush.msra.mxu0 0.0
      %1706 = vmatpush.msra.mxu0 0.0
      %1707 = vmatpush.msra.mxu0 0.0
      %1708 = vmatpush.msra.mxu0 0.0
      %1709 = vmatpush.msra.mxu0 %v1694
      %1710 = vmatpush.msra.mxu0 %v1686
      %1711 = vmatpush.msra.mxu0 %v1685
      %1712 = vmatmul.f32.gmra.mxu0 %v1690
      %v1713 = vpop.f32.mrf.mxu0
      %v1714 = vadd.f32 0.0, %v1713
      %1715 = vdwg.mxu0
      %1716 = vst.msk [vmem:[#allocation5] sm:$0xff] %vm727, %v1714
      %v1717 = vld [vmem:[%s6] sm:$0xf]
      %v1718 = vld [vmem:[#allocation2] sm:$0xf]
      %v1719 = vld [vmem:[%s1470] sm:$0xf]
      %v1721 = vunpack.c.l.b16 %v1718
      %v1722 = vpack.c.b16 %v1721, %v1721
      %1723 = vrot.lane.b32.xlu0 %v1722, 73
      %v1724 = vpop.permute.xlu0 %1723
      %v1726 = vsel %vm727, %v1719, 0
      %v1729 = vsel %vm731, %v1724, 0
      %1731 = vmatpush.bf16.msra.mxu0 0
      %1732 = vmatpush.bf16.msra.mxu0 0
      %1733 = vmatpush.bf16.msra.mxu0 0
      %1734 = vmatpush.bf16.msra.mxu0 0
      %1735 = vmatpush.bf16.msra.mxu0 0
      %1736 = vmatpush.bf16.msra.mxu0 0
      %1737 = vmatpush.bf16.msra.mxu0 0
      %1738 = vmatpush.bf16.msra.mxu0 %v1729
      %1739 = vmatmul.bf16.gmra.mxu0 %v1726
      %v1740 = vpop.f32.mrf.mxu0
      %v1741 = vadd.f32 0.0, %v1740
      %v1742 = vpop.f32.mrf.mxu0
      %1743 = vdwg.mxu0
      %1744 = vrot.lane.b32.xlu0 %v1722, 74
      %v1745 = vpop.permute.xlu0 %1744
      %v1747 = vsel %vm727, %v1717, 0
      %v1750 = vsel %vm731, %v1745, 0
      %1752 = vmatpush.bf16.msra.mxu0 0
      %1753 = vmatpush.bf16.msra.mxu0 0
      %1754 = vmatpush.bf16.msra.mxu0 0
      %1755 = vmatpush.bf16.msra.mxu0 0
      %1756 = vmatpush.bf16.msra.mxu0 0
      %1757 = vmatpush.bf16.msra.mxu0 0
      %1758 = vmatpush.bf16.msra.mxu0 0
      %1759 = vmatpush.bf16.msra.mxu0 %v1750
      %1760 = vmatmul.bf16.gmra.mxu0 %v1747
      %v1761 = vpop.f32.mrf.mxu0
      %v1762 = vadd.f32 %v1741, %v1761
      %v1763 = vpop.f32.mrf.mxu0
      %1764 = vdwg.mxu0
      %v1765 = vld [vmem:[%s1517] sm:$0xf]
      %1766 = vrot.lane.b32.xlu0 %v1722, 72
      %v1767 = vpop.permute.xlu0 %1766
      %v1769 = vsel %vm727, %v1765, 0
      %v1772 = vsel %vm731, %v1767, 0
      %1774 = vmatpush.bf16.msra.mxu0 0
      %1775 = vmatpush.bf16.msra.mxu0 0
      %1776 = vmatpush.bf16.msra.mxu0 0
      %1777 = vmatpush.bf16.msra.mxu0 0
      %1778 = vmatpush.bf16.msra.mxu0 0
      %1779 = vmatpush.bf16.msra.mxu0 0
      %1780 = vmatpush.bf16.msra.mxu0 0
      %1781 = vmatpush.bf16.msra.mxu0 %v1772
      %1782 = vmatmul.bf16.gmra.mxu0 %v1769
      %v1783 = vpop.f32.mrf.mxu0
      %v1784 = vadd.f32 0.0, %v1783
      %v1785 = vpop.f32.mrf.mxu0
      %1786 = vdwg.mxu0
      %v1787 = vadd.f32 %v1762, %v1784
      %v1788 = vld [vmem:[%s1541] sm:$0xf]
      %1789 = vrot.lane.b32.xlu0 %v1722, 56
      %v1790 = vpop.permute.xlu0 %1789
      %v1792 = vsel %vm727, %v1788, 0
      %v1795 = vsel %vm731, %v1790, 0
      %1797 = vmatpush.bf16.msra.mxu0 0
      %1798 = vmatpush.bf16.msra.mxu0 0
      %1799 = vmatpush.bf16.msra.mxu0 0
      %1800 = vmatpush.bf16.msra.mxu0 0
      %1801 = vmatpush.bf16.msra.mxu0 0
      %1802 = vmatpush.bf16.msra.mxu0 0
      %1803 = vmatpush.bf16.msra.mxu0 0
      %1804 = vmatpush.bf16.msra.mxu0 %v1795
      %1805 = vmatmul.bf16.gmra.mxu0 %v1792
      %v1806 = vpop.f32.mrf.mxu0
      %v1807 = vadd.f32 0.0, %v1806
      %v1808 = vpop.f32.mrf.mxu0
      %1809 = vdwg.mxu0
      %v1810 = vadd.f32 %v1787, %v1807
      %v1811 = vld [vmem:[%s1565] sm:$0xf]
      %1812 = vrot.lane.b32.xlu0 %v1722, 55
      %v1813 = vpop.permute.xlu0 %1812
      %v1815 = vsel %vm727, %v1811, 0
      %v1818 = vsel %vm731, %v1813, 0
      %1820 = vmatpush.bf16.msra.mxu0 0
      %1821 = vmatpush.bf16.msra.mxu0 0
      %1822 = vmatpush.bf16.msra.mxu0 0
      %1823 = vmatpush.bf16.msra.mxu0 0
      %1824 = vmatpush.bf16.msra.mxu0 0
      %1825 = vmatpush.bf16.msra.mxu0 0
      %1826 = vmatpush.bf16.msra.mxu0 0
      %1827 = vmatpush.bf16.msra.mxu0 %v1818
      %1828 = vmatmul.bf16.gmra.mxu0 %v1815
      %v1829 = vpop.f32.mrf.mxu0
      %v1830 = vadd.f32 0.0, %v1829
      %v1831 = vpop.f32.mrf.mxu0
      %1832 = vdwg.mxu0
      %v1833 = vadd.f32 %v1810, %v1830
      %v1834 = vld [vmem:[%s1589] sm:$0xf]
      %1835 = vrot.lane.b32.xlu0 %v1722, 54
      %v1836 = vpop.permute.xlu0 %1835
      %v1838 = vsel %vm727, %v1834, 0
      %v1841 = vsel %vm731, %v1836, 0
      %1843 = vmatpush.bf16.msra.mxu0 0
      %1844 = vmatpush.bf16.msra.mxu0 0
      %1845 = vmatpush.bf16.msra.mxu0 0
      %1846 = vmatpush.bf16.msra.mxu0 0
      %1847 = vmatpush.bf16.msra.mxu0 0
      %1848 = vmatpush.bf16.msra.mxu0 0
      %1849 = vmatpush.bf16.msra.mxu0 0
      %1850 = vmatpush.bf16.msra.mxu0 %v1841
      %1851 = vmatmul.bf16.gmra.mxu0 %v1838
      %v1852 = vpop.f32.mrf.mxu0
      %v1853 = vadd.f32 0.0, %v1852
      %v1854 = vpop.f32.mrf.mxu0
      %1855 = vdwg.mxu0
      %v1856 = vadd.f32 %v1833, %v1853
      %v1857 = vld [vmem:[%s1613] sm:$0xf]
      %1858 = vrot.lane.b32.xlu0 %v1722, 38
      %v1859 = vpop.permute.xlu0 %1858
      %v1861 = vsel %vm727, %v1857, 0
      %v1864 = vsel %vm731, %v1859, 0
      %1866 = vmatpush.bf16.msra.mxu0 0
      %1867 = vmatpush.bf16.msra.mxu0 0
      %1868 = vmatpush.bf16.msra.mxu0 0
      %1869 = vmatpush.bf16.msra.mxu0 0
      %1870 = vmatpush.bf16.msra.mxu0 0
      %1871 = vmatpush.bf16.msra.mxu0 0
      %1872 = vmatpush.bf16.msra.mxu0 0
      %1873 = vmatpush.bf16.msra.mxu0 %v1864
      %1874 = vmatmul.bf16.gmra.mxu0 %v1861
      %v1875 = vpop.f32.mrf.mxu0
      %v1876 = vadd.f32 0.0, %v1875
      %v1877 = vpop.f32.mrf.mxu0
      %1878 = vdwg.mxu0
      %v1879 = vadd.f32 %v1856, %v1876
      %v1880 = vld [vmem:[%s1637] sm:$0xf]
      %1881 = vrot.lane.b32.xlu0 %v1722, 37
      %v1882 = vpop.permute.xlu0 %1881
      %v1884 = vsel %vm727, %v1880, 0
      %v1887 = vsel %vm731, %v1882, 0
      %1889 = vmatpush.bf16.msra.mxu0 0
      %1890 = vmatpush.bf16.msra.mxu0 0
      %1891 = vmatpush.bf16.msra.mxu0 0
      %1892 = vmatpush.bf16.msra.mxu0 0
      %1893 = vmatpush.bf16.msra.mxu0 0
      %1894 = vmatpush.bf16.msra.mxu0 0
      %1895 = vmatpush.bf16.msra.mxu0 0
      %1896 = vmatpush.bf16.msra.mxu0 %v1887
      %1897 = vmatmul.bf16.gmra.mxu0 %v1884
      %v1898 = vpop.f32.mrf.mxu0
      %v1899 = vadd.f32 0.0, %v1898
      %v1900 = vpop.f32.mrf.mxu0
      %1901 = vdwg.mxu0
      %v1902 = vadd.f32 %v1879, %v1899
      %v1903 = vld [vmem:[%s1661] sm:$0xf]
      %1904 = vrot.lane.b32.xlu0 %v1722, 36
      %v1905 = vpop.permute.xlu0 %1904
      %v1907 = vsel %vm727, %v1903, 0
      %v1910 = vsel %vm731, %v1905, 0
      %1912 = vmatpush.bf16.msra.mxu0 0
      %1913 = vmatpush.bf16.msra.mxu0 0
      %1914 = vmatpush.bf16.msra.mxu0 0
      %1915 = vmatpush.bf16.msra.mxu0 0
      %1916 = vmatpush.bf16.msra.mxu0 0
      %1917 = vmatpush.bf16.msra.mxu0 0
      %1918 = vmatpush.bf16.msra.mxu0 0
      %1919 = vmatpush.bf16.msra.mxu0 %v1910
      %1920 = vmatmul.bf16.gmra.mxu0 %v1907
      %v1921 = vpop.f32.mrf.mxu0
      %v1922 = vadd.f32 0.0, %v1921
      %v1923 = vpop.f32.mrf.mxu0
      %1924 = vdwg.mxu0
      %v1925 = vadd.f32 %v1902, %v1922
      %v1926 = vld [vmem:[%s10] sm:$0xff]
      %v1927 = vld [vmem:[%s10 + $0x8] sm:$0xff]
      %v1928 = vld [vmem:[%s10 + $0x10] sm:$0x3]
      %v1930 = vsel %vm1688, %v1925, 0
      %v1933 = vsel %vm1692, %v1928, 0
      %1935 = vmatpush.msra.mxu0 0.0
      %1936 = vmatpush.msra.mxu0 0.0
      %1937 = vmatpush.msra.mxu0 0.0
      %1938 = vmatpush.msra.mxu0 0.0
      %1939 = vmatpush.msra.mxu0 0.0
      %1940 = vmatpush.msra.mxu0 0.0
      %1941 = vmatpush.msra.mxu0 0.0
      %1942 = vmatpush.msra.mxu0 0.0
      %1943 = vmatpush.msra.mxu0 0.0
      %1944 = vmatpush.msra.mxu0 0.0
      %1945 = vmatpush.msra.mxu0 0.0
      %1946 = vmatpush.msra.mxu0 0.0
      %1947 = vmatpush.msra.mxu0 0.0
      %1948 = vmatpush.msra.mxu0 %v1933
      %1949 = vmatpush.msra.mxu0 %v1927
      %1950 = vmatpush.msra.mxu0 %v1926
      %1951 = vmatmul.f32.gmra.mxu0 %v1930
      %v1952 = vpop.f32.mrf.mxu0
      %v1953 = vadd.f32 0.0, %v1952
      %1954 = vdwg.mxu0
      %1956 = vrot.lane.b32.xlu0 %v1953, 8
      %v1957 = vpop.permute.xlu0 %1956
      %vm1959 = vcmask 130112
      %1960 = vst.msk [vmem:[#allocation5] sm:$0xff] %vm1959, %v1957
      %v1961 = vld [vmem:[%s6] sm:$0xf]
      %v1962 = vld [vmem:[#allocation2] sm:$0xf]
      %v1963 = vld [vmem:[%s1470] sm:$0xf]
      %v1965 = vunpack.c.l.b16 %v1962
      %v1966 = vpack.c.b16 %v1965, %v1965
      %1967 = vrot.lane.b32.xlu0 %v1966, 37
      %v1968 = vpop.permute.xlu0 %1967
      %v1970 = vsel %vm727, %v1963, 0
      %v1973 = vsel %vm731, %v1968, 0
      %1975 = vmatpush.bf16.msra.mxu0 0
      %1976 = vmatpush.bf16.msra.mxu0 0
      %1977 = vmatpush.bf16.msra.mxu0 0
      %1978 = vmatpush.bf16.msra.mxu0 0
      %1979 = vmatpush.bf16.msra.mxu0 0
      %1980 = vmatpush.bf16.msra.mxu0 0
      %1981 = vmatpush.bf16.msra.mxu0 0
      %1982 = vmatpush.bf16.msra.mxu0 %v1973
      %1983 = vmatmul.bf16.gmra.mxu0 %v1970
      %v1984 = vpop.f32.mrf.mxu0
      %v1985 = vadd.f32 0.0, %v1984
      %v1986 = vpop.f32.mrf.mxu0
      %1987 = vdwg.mxu0
      %1988 = vrot.lane.b32.xlu0 %v1966, 38
      %v1989 = vpop.permute.xlu0 %1988
      %v1991 = vsel %vm727, %v1961, 0
      %v1994 = vsel %vm731, %v1989, 0
      %1996 = vmatpush.bf16.msra.mxu0 0
      %1997 = vmatpush.bf16.msra.mxu0 0
      %1998 = vmatpush.bf16.msra.mxu0 0
      %1999 = vmatpush.bf16.msra.mxu0 0
      %2000 = vmatpush.bf16.msra.mxu0 0
      %2001 = vmatpush.bf16.msra.mxu0 0
      %2002 = vmatpush.bf16.msra.mxu0 0
      %2003 = vmatpush.bf16.msra.mxu0 %v1994
      %2004 = vmatmul.bf16.gmra.mxu0 %v1991
      %v2005 = vpop.f32.mrf.mxu0
      %v2006 = vadd.f32 %v1985, %v2005
      %v2007 = vpop.f32.mrf.mxu0
      %2008 = vdwg.mxu0
      %v2009 = vld [vmem:[%s1517] sm:$0xf]
      %2010 = vrot.lane.b32.xlu0 %v1966, 36
      %v2011 = vpop.permute.xlu0 %2010
      %v2013 = vsel %vm727, %v2009, 0
      %v2016 = vsel %vm731, %v2011, 0
      %2018 = vmatpush.bf16.msra.mxu0 0
      %2019 = vmatpush.bf16.msra.mxu0 0
      %2020 = vmatpush.bf16.msra.mxu0 0
      %2021 = vmatpush.bf16.msra.mxu0 0
      %2022 = vmatpush.bf16.msra.mxu0 0
      %2023 = vmatpush.bf16.msra.mxu0 0
      %2024 = vmatpush.bf16.msra.mxu0 0
      %2025 = vmatpush.bf16.msra.mxu0 %v2016
      %2026 = vmatmul.bf16.gmra.mxu0 %v2013
      %v2027 = vpop.f32.mrf.mxu0
      %v2028 = vadd.f32 0.0, %v2027
      %v2029 = vpop.f32.mrf.mxu0
      %2030 = vdwg.mxu0
      %v2031 = vadd.f32 %v2006, %v2028
      %v2032 = vld [vmem:[%s1541] sm:$0xf]
      %2033 = vrot.lane.b32.xlu0 %v1966, 20
      %v2034 = vpop.permute.xlu0 %2033
      %v2036 = vsel %vm727, %v2032, 0
      %v2039 = vsel %vm731, %v2034, 0
      %2041 = vmatpush.bf16.msra.mxu0 0
      %2042 = vmatpush.bf16.msra.mxu0 0
      %2043 = vmatpush.bf16.msra.mxu0 0
      %2044 = vmatpush.bf16.msra.mxu0 0
      %2045 = vmatpush.bf16.msra.mxu0 0
      %2046 = vmatpush.bf16.msra.mxu0 0
      %2047 = vmatpush.bf16.msra.mxu0 0
      %2048 = vmatpush.bf16.msra.mxu0 %v2039
      %2049 = vmatmul.bf16.gmra.mxu0 %v2036
      %v2050 = vpop.f32.mrf.mxu0
      %v2051 = vadd.f32 0.0, %v2050
      %v2052 = vpop.f32.mrf.mxu0
      %2053 = vdwg.mxu0
      %v2054 = vadd.f32 %v2031, %v2051
      %v2055 = vld [vmem:[%s1565] sm:$0xf]
      %2056 = vrot.lane.b32.xlu0 %v1966, 19
      %v2057 = vpop.permute.xlu0 %2056
      %v2059 = vsel %vm727, %v2055, 0
      %v2062 = vsel %vm731, %v2057, 0
      %2064 = vmatpush.bf16.msra.mxu0 0
      %2065 = vmatpush.bf16.msra.mxu0 0
      %2066 = vmatpush.bf16.msra.mxu0 0
      %2067 = vmatpush.bf16.msra.mxu0 0
      %2068 = vmatpush.bf16.msra.mxu0 0
      %2069 = vmatpush.bf16.msra.mxu0 0
      %2070 = vmatpush.bf16.msra.mxu0 0
      %2071 = vmatpush.bf16.msra.mxu0 %v2062
      %2072 = vmatmul.bf16.gmra.mxu0 %v2059
      %v2073 = vpop.f32.mrf.mxu0
      %v2074 = vadd.f32 0.0, %v2073
      %v2075 = vpop.f32.mrf.mxu0
      %2076 = vdwg.mxu0
      %v2077 = vadd.f32 %v2054, %v2074
      %v2078 = vld [vmem:[%s1589] sm:$0xf]
      %2079 = vrot.lane.b32.xlu0 %v1966, 18
      %v2080 = vpop.permute.xlu0 %2079
      %v2082 = vsel %vm727, %v2078, 0
      %v2085 = vsel %vm731, %v2080, 0
      %2087 = vmatpush.bf16.msra.mxu0 0
      %2088 = vmatpush.bf16.msra.mxu0 0
      %2089 = vmatpush.bf16.msra.mxu0 0
      %2090 = vmatpush.bf16.msra.mxu0 0
      %2091 = vmatpush.bf16.msra.mxu0 0
      %2092 = vmatpush.bf16.msra.mxu0 0
      %2093 = vmatpush.bf16.msra.mxu0 0
      %2094 = vmatpush.bf16.msra.mxu0 %v2085
      %2095 = vmatmul.bf16.gmra.mxu0 %v2082
      %v2096 = vpop.f32.mrf.mxu0
      %v2097 = vadd.f32 0.0, %v2096
      %v2098 = vpop.f32.mrf.mxu0
      %2099 = vdwg.mxu0
      %v2100 = vadd.f32 %v2077, %v2097
      %v2101 = vld [vmem:[%s1613] sm:$0xf]
      %v2102 = vld [vmem:[#allocation2] sm:$0xff]
      %v2104 = vunpack.c.l.b16 %v2102
      %v2105 = vunpack.c.h.b16 %v2102
      %v2106 = vpack.c.b16 %v2104, %v2104
      %v2107 = vpack.c.b16 %v2105, %v2105
      %2108 = vrot.lane.b32.xlu0 %v2106, 2
      %v2109 = vpop.permute.xlu0 %2108
      %2110 = vrot.lane.b32.xlu0 %v2107, 2
      %v2111 = vpop.permute.xlu0 %2110
      %vm2112 = vcmask 15360
      %v2113 = vsel %vm2112, %v2109, %v2111
      %v2115 = vsel %vm727, %v2101, 0
      %v2118 = vsel %vm731, %v2113, 0
      %2120 = vmatpush.bf16.msra.mxu0 0
      %2121 = vmatpush.bf16.msra.mxu0 0
      %2122 = vmatpush.bf16.msra.mxu0 0
      %2123 = vmatpush.bf16.msra.mxu0 0
      %2124 = vmatpush.bf16.msra.mxu0 0
      %2125 = vmatpush.bf16.msra.mxu0 0
      %2126 = vmatpush.bf16.msra.mxu0 0
      %2127 = vmatpush.bf16.msra.mxu0 %v2118
      %2128 = vmatmul.bf16.gmra.mxu0 %v2115
      %v2129 = vpop.f32.mrf.mxu0
      %v2130 = vadd.f32 0.0, %v2129
      %v2131 = vpop.f32.mrf.mxu0
      %2132 = vdwg.mxu0
      %v2133 = vadd.f32 %v2100, %v2130
      %v2134 = vld [vmem:[%s1637] sm:$0xf]
      %2135 = vrot.lane.b32.xlu0 %v2106, 1
      %v2136 = vpop.permute.xlu0 %2135
      %2137 = vrot.lane.b32.xlu0 %v2107, 1
      %v2138 = vpop.permute.xlu0 %2137
      %vm2139 = vcmask 7168
      %v2140 = vsel %vm2139, %v2136, %v2138
      %v2142 = vsel %vm727, %v2134, 0
      %v2145 = vsel %vm731, %v2140, 0
      %2147 = vmatpush.bf16.msra.mxu0 0
      %2148 = vmatpush.bf16.msra.mxu0 0
      %2149 = vmatpush.bf16.msra.mxu0 0
      %2150 = vmatpush.bf16.msra.mxu0 0
      %2151 = vmatpush.bf16.msra.mxu0 0
      %2152 = vmatpush.bf16.msra.mxu0 0
      %2153 = vmatpush.bf16.msra.mxu0 0
      %2154 = vmatpush.bf16.msra.mxu0 %v2145
      %2155 = vmatmul.bf16.gmra.mxu0 %v2142
      %v2156 = vpop.f32.mrf.mxu0
      %v2157 = vadd.f32 0.0, %v2156
      %v2158 = vpop.f32.mrf.mxu0
      %2159 = vdwg.mxu0
      %v2160 = vadd.f32 %v2133, %v2157
      %v2161 = vld [vmem:[%s1661] sm:$0xf]
      %v2162 = vld [vmem:[#allocation2 + $0x4] sm:$0xf]
      %v2164 = vsel %vm727, %v2161, 0
      %v2167 = vsel %vm731, %v2162, 0
      %2169 = vmatpush.bf16.msra.mxu0 0
      %2170 = vmatpush.bf16.msra.mxu0 0
      %2171 = vmatpush.bf16.msra.mxu0 0
      %2172 = vmatpush.bf16.msra.mxu0 0
      %2173 = vmatpush.bf16.msra.mxu0 0
      %2174 = vmatpush.bf16.msra.mxu0 0
      %2175 = vmatpush.bf16.msra.mxu0 0
      %2176 = vmatpush.bf16.msra.mxu0 %v2167
      %2177 = vmatmul.bf16.gmra.mxu0 %v2164
      %v2178 = vpop.f32.mrf.mxu0
      %v2179 = vadd.f32 0.0, %v2178
      %v2180 = vpop.f32.mrf.mxu0
      %2181 = vdwg.mxu0
      %v2182 = vadd.f32 %v2160, %v2179
      %v2183 = vld [vmem:[%s10] sm:$0xff]
      %v2184 = vld [vmem:[%s10 + $0x8] sm:$0xff]
      %v2185 = vld [vmem:[%s10 + $0x10] sm:$0x3]
      %v2187 = vsel %vm1688, %v2182, 0
      %v2190 = vsel %vm1692, %v2185, 0
      %2192 = vmatpush.msra.mxu0 0.0
      %2193 = vmatpush.msra.mxu0 0.0
      %2194 = vmatpush.msra.mxu0 0.0
      %2195 = vmatpush.msra.mxu0 0.0
      %2196 = vmatpush.msra.mxu0 0.0
      %2197 = vmatpush.msra.mxu0 0.0
      %2198 = vmatpush.msra.mxu0 0.0
      %2199 = vmatpush.msra.mxu0 0.0
      %2200 = vmatpush.msra.mxu0 0.0
      %2201 = vmatpush.msra.mxu0 0.0
      %2202 = vmatpush.msra.mxu0 0.0
      %2203 = vmatpush.msra.mxu0 0.0
      %2204 = vmatpush.msra.mxu0 0.0
      %2205 = vmatpush.msra.mxu0 %v2190
      %2206 = vmatpush.msra.mxu0 %v2184
      %2207 = vmatpush.msra.mxu0 %v2183
      %2208 = vmatmul.f32.gmra.mxu0 %v2187
      %v2209 = vpop.f32.mrf.mxu0
      %v2210 = vadd.f32 0.0, %v2209
      %2211 = vdwg.mxu0
      %2213 = vrot.lane.b32.xlu0 %v2210, 16
      %v2214 = vpop.permute.xlu0 %2213
      %vm2216 = vcmask 195712
      %2217 = vst.msk [vmem:[#allocation5] sm:$0xff] %vm2216, %v2214
      %v2218 = vld [vmem:[%s6] sm:$0xf]
      %v2219 = vld [vmem:[#allocation2] sm:$0xff]
      %v2220 = vld [vmem:[%s1470] sm:$0xf]
      %v2222 = vunpack.c.l.b16 %v2219
      %v2223 = vunpack.c.h.b16 %v2219
      %v2224 = vpack.c.b16 %v2222, %v2222
      %v2225 = vpack.c.b16 %v2223, %v2223
      %2226 = vrot.lane.b32.xlu0 %v2224, 1
      %v2227 = vpop.permute.xlu0 %2226
      %2228 = vrot.lane.b32.xlu0 %v2225, 1
      %v2229 = vpop.permute.xlu0 %2228
      %v2230 = vsel %vm2139, %v2227, %v2229
      %v2232 = vsel %vm727, %v2220, 0
      %v2235 = vsel %vm731, %v2230, 0
      %2237 = vmatpush.bf16.msra.mxu0 0
      %2238 = vmatpush.bf16.msra.mxu0 0
      %2239 = vmatpush.bf16.msra.mxu0 0
      %2240 = vmatpush.bf16.msra.mxu0 0
      %2241 = vmatpush.bf16.msra.mxu0 0
      %2242 = vmatpush.bf16.msra.mxu0 0
      %2243 = vmatpush.bf16.msra.mxu0 0
      %2244 = vmatpush.bf16.msra.mxu0 %v2235
      %2245 = vmatmul.bf16.gmra.mxu0 %v2232
      %v2246 = vpop.f32.mrf.mxu0
      %v2247 = vadd.f32 0.0, %v2246
      %v2248 = vpop.f32.mrf.mxu0
      %2249 = vdwg.mxu0
      %2250 = vrot.lane.b32.xlu0 %v2224, 2
      %v2251 = vpop.permute.xlu0 %2250
      %2252 = vrot.lane.b32.xlu0 %v2225, 2
      %v2253 = vpop.permute.xlu0 %2252
      %v2254 = vsel %vm2112, %v2251, %v2253
      %v2256 = vsel %vm727, %v2218, 0
      %v2259 = vsel %vm731, %v2254, 0
      %2261 = vmatpush.bf16.msra.mxu0 0
      %2262 = vmatpush.bf16.msra.mxu0 0
      %2263 = vmatpush.bf16.msra.mxu0 0
      %2264 = vmatpush.bf16.msra.mxu0 0
      %2265 = vmatpush.bf16.msra.mxu0 0
      %2266 = vmatpush.bf16.msra.mxu0 0
      %2267 = vmatpush.bf16.msra.mxu0 0
      %2268 = vmatpush.bf16.msra.mxu0 %v2259
      %2269 = vmatmul.bf16.gmra.mxu0 %v2256
      %v2270 = vpop.f32.mrf.mxu0
      %v2271 = vadd.f32 %v2247, %v2270
      %v2272 = vpop.f32.mrf.mxu0
      %2273 = vdwg.mxu0
      %v2274 = vld [vmem:[%s1517] sm:$0xf]
      %v2275 = vld [vmem:[#allocation2 + $0x4] sm:$0xf]
      %v2277 = vsel %vm727, %v2274, 0
      %v2280 = vsel %vm731, %v2275, 0
      %2282 = vmatpush.bf16.msra.mxu0 0
      %2283 = vmatpush.bf16.msra.mxu0 0
      %2284 = vmatpush.bf16.msra.mxu0 0
      %2285 = vmatpush.bf16.msra.mxu0 0
      %2286 = vmatpush.bf16.msra.mxu0 0
      %2287 = vmatpush.bf16.msra.mxu0 0
      %2288 = vmatpush.bf16.msra.mxu0 0
      %2289 = vmatpush.bf16.msra.mxu0 %v2280
      %2290 = vmatmul.bf16.gmra.mxu0 %v2277
      %v2291 = vpop.f32.mrf.mxu0
      %v2292 = vadd.f32 0.0, %v2291
      %v2293 = vpop.f32.mrf.mxu0
      %2294 = vdwg.mxu0
      %v2295 = vadd.f32 %v2271, %v2292
      %v2296 = vld [vmem:[%s1541] sm:$0xf]
      %v2298 = vunpack.c.l.b16 %v2275
      %v2299 = vpack.c.b16 %v2298, %v2298
      %2300 = vrot.lane.b32.xlu0 %v2299, 112
      %v2301 = vpop.permute.xlu0 %2300
      %v2303 = vsel %vm727, %v2296, 0
      %v2306 = vsel %vm731, %v2301, 0
      %2308 = vmatpush.bf16.msra.mxu0 0
      %2309 = vmatpush.bf16.msra.mxu0 0
      %2310 = vmatpush.bf16.msra.mxu0 0
      %2311 = vmatpush.bf16.msra.mxu0 0
      %2312 = vmatpush.bf16.msra.mxu0 0
      %2313 = vmatpush.bf16.msra.mxu0 0
      %2314 = vmatpush.bf16.msra.mxu0 0
      %2315 = vmatpush.bf16.msra.mxu0 %v2306
      %2316 = vmatmul.bf16.gmra.mxu0 %v2303
      %v2317 = vpop.f32.mrf.mxu0
      %v2318 = vadd.f32 0.0, %v2317
      %v2319 = vpop.f32.mrf.mxu0
      %2320 = vdwg.mxu0
      %v2321 = vadd.f32 %v2295, %v2318
      %v2322 = vld [vmem:[%s1565] sm:$0xf]
      %2323 = vrot.lane.b32.xlu0 %v2299, 111
      %v2324 = vpop.permute.xlu0 %2323
      %v2326 = vsel %vm727, %v2322, 0
      %v2329 = vsel %vm731, %v2324, 0
      %2331 = vmatpush.bf16.msra.mxu0 0
      %2332 = vmatpush.bf16.msra.mxu0 0
      %2333 = vmatpush.bf16.msra.mxu0 0
      %2334 = vmatpush.bf16.msra.mxu0 0
      %2335 = vmatpush.bf16.msra.mxu0 0
      %2336 = vmatpush.bf16.msra.mxu0 0
      %2337 = vmatpush.bf16.msra.mxu0 0
      %2338 = vmatpush.bf16.msra.mxu0 %v2329
      %2339 = vmatmul.bf16.gmra.mxu0 %v2326
      %v2340 = vpop.f32.mrf.mxu0
      %v2341 = vadd.f32 0.0, %v2340
      %v2342 = vpop.f32.mrf.mxu0
      %2343 = vdwg.mxu0
      %v2344 = vadd.f32 %v2321, %v2341
      %v2345 = vld [vmem:[%s1589] sm:$0xf]
      %2346 = vrot.lane.b32.xlu0 %v2299, 110
      %v2347 = vpop.permute.xlu0 %2346
      %v2349 = vsel %vm727, %v2345, 0
      %v2352 = vsel %vm731, %v2347, 0
      %2354 = vmatpush.bf16.msra.mxu0 0
      %2355 = vmatpush.bf16.msra.mxu0 0
      %2356 = vmatpush.bf16.msra.mxu0 0
      %2357 = vmatpush.bf16.msra.mxu0 0
      %2358 = vmatpush.bf16.msra.mxu0 0
      %2359 = vmatpush.bf16.msra.mxu0 0
      %2360 = vmatpush.bf16.msra.mxu0 0
      %2361 = vmatpush.bf16.msra.mxu0 %v2352
      %2362 = vmatmul.bf16.gmra.mxu0 %v2349
      %v2363 = vpop.f32.mrf.mxu0
      %v2364 = vadd.f32 0.0, %v2363
      %v2365 = vpop.f32.mrf.mxu0
      %2366 = vdwg.mxu0
      %v2367 = vadd.f32 %v2344, %v2364
      %v2368 = vld [vmem:[%s1613] sm:$0xf]
      %2369 = vrot.lane.b32.xlu0 %v2299, 94
      %v2370 = vpop.permute.xlu0 %2369
      %v2372 = vsel %vm727, %v2368, 0
      %v2375 = vsel %vm731, %v2370, 0
      %2377 = vmatpush.bf16.msra.mxu0 0
      %2378 = vmatpush.bf16.msra.mxu0 0
      %2379 = vmatpush.bf16.msra.mxu0 0
      %2380 = vmatpush.bf16.msra.mxu0 0
      %2381 = vmatpush.bf16.msra.mxu0 0
      %2382 = vmatpush.bf16.msra.mxu0 0
      %2383 = vmatpush.bf16.msra.mxu0 0
      %2384 = vmatpush.bf16.msra.mxu0 %v2375
      %2385 = vmatmul.bf16.gmra.mxu0 %v2372
      %v2386 = vpop.f32.mrf.mxu0
      %v2387 = vadd.f32 0.0, %v2386
      %v2388 = vpop.f32.mrf.mxu0
      %2389 = vdwg.mxu0
      %v2390 = vadd.f32 %v2367, %v2387
      %v2391 = vld [vmem:[%s1637] sm:$0xf]
      %2392 = vrot.lane.b32.xlu0 %v2299, 93
      %v2393 = vpop.permute.xlu0 %2392
      %v2395 = vsel %vm727, %v2391, 0
      %v2398 = vsel %vm731, %v2393, 0
      %2400 = vmatpush.bf16.msra.mxu0 0
      %2401 = vmatpush.bf16.msra.mxu0 0
      %2402 = vmatpush.bf16.msra.mxu0 0
      %2403 = vmatpush.bf16.msra.mxu0 0
      %2404 = vmatpush.bf16.msra.mxu0 0
      %2405 = vmatpush.bf16.msra.mxu0 0
      %2406 = vmatpush.bf16.msra.mxu0 0
      %2407 = vmatpush.bf16.msra.mxu0 %v2398
      %2408 = vmatmul.bf16.gmra.mxu0 %v2395
      %v2409 = vpop.f32.mrf.mxu0
      %v2410 = vadd.f32 0.0, %v2409
      %v2411 = vpop.f32.mrf.mxu0
      %2412 = vdwg.mxu0
      %v2413 = vadd.f32 %v2390, %v2410
      %v2414 = vld [vmem:[%s1661] sm:$0xf]
      %2415 = vrot.lane.b32.xlu0 %v2299, 92
      %v2416 = vpop.permute.xlu0 %2415
      %v2418 = vsel %vm727, %v2414, 0
      %v2421 = vsel %vm731, %v2416, 0
      %2423 = vmatpush.bf16.msra.mxu0 0
      %2424 = vmatpush.bf16.msra.mxu0 0
      %2425 = vmatpush.bf16.msra.mxu0 0
      %2426 = vmatpush.bf16.msra.mxu0 0
      %2427 = vmatpush.bf16.msra.mxu0 0
      %2428 = vmatpush.bf16.msra.mxu0 0
      %2429 = vmatpush.bf16.msra.mxu0 0
      %2430 = vmatpush.bf16.msra.mxu0 %v2421
      %2431 = vmatmul.bf16.gmra.mxu0 %v2418
      %v2432 = vpop.f32.mrf.mxu0
      %v2433 = vadd.f32 0.0, %v2432
      %v2434 = vpop.f32.mrf.mxu0
      %2435 = vdwg.mxu0
      %v2436 = vadd.f32 %v2413, %v2433
      %v2437 = vld [vmem:[%s10] sm:$0xff]
      %v2438 = vld [vmem:[%s10 + $0x8] sm:$0xff]
      %v2439 = vld [vmem:[%s10 + $0x10] sm:$0x3]
      %v2441 = vsel %vm1688, %v2436, 0
      %v2444 = vsel %vm1692, %v2439, 0
      %2446 = vmatpush.msra.mxu0 0.0
      %2447 = vmatpush.msra.mxu0 0.0
      %2448 = vmatpush.msra.mxu0 0.0
      %2449 = vmatpush.msra.mxu0 0.0
      %2450 = vmatpush.msra.mxu0 0.0
      %2451 = vmatpush.msra.mxu0 0.0
      %2452 = vmatpush.msra.mxu0 0.0
      %2453 = vmatpush.msra.mxu0 0.0
      %2454 = vmatpush.msra.mxu0 0.0
      %2455 = vmatpush.msra.mxu0 0.0
      %2456 = vmatpush.msra.mxu0 0.0
      %2457 = vmatpush.msra.mxu0 0.0
      %2458 = vmatpush.msra.mxu0 0.0
      %2459 = vmatpush.msra.mxu0 %v2444
      %2460 = vmatpush.msra.mxu0 %v2438
      %2461 = vmatpush.msra.mxu0 %v2437
      %2462 = vmatmul.f32.gmra.mxu0 %v2441
      %v2463 = vpop.f32.mrf.mxu0
      %v2464 = vadd.f32 0.0, %v2463
      %2465 = vdwg.mxu0
      %2467 = vrot.lane.b32.xlu0 %v2464, 24
      %v2468 = vpop.permute.xlu0 %2467
      %vm2470 = vcmask 261312
      %2471 = vst.msk [vmem:[#allocation5] sm:$0xff] %vm2470, %v2468
      %v2472 = vld [vmem:[%s6] sm:$0xf]
      %v2473 = vld [vmem:[#allocation2 + $0x4] sm:$0xf]
      %v2474 = vld [vmem:[%s1470] sm:$0xf]
      %v2476 = vunpack.c.l.b16 %v2473
      %v2477 = vpack.c.b16 %v2476, %v2476
      %2478 = vrot.lane.b32.xlu0 %v2477, 93
      %v2479 = vpop.permute.xlu0 %2478
      %v2481 = vsel %vm727, %v2474, 0
      %v2484 = vsel %vm731, %v2479, 0
      %2486 = vmatpush.bf16.msra.mxu0 0
      %2487 = vmatpush.bf16.msra.mxu0 0
      %2488 = vmatpush.bf16.msra.mxu0 0
      %2489 = vmatpush.bf16.msra.mxu0 0
      %2490 = vmatpush.bf16.msra.mxu0 0
      %2491 = vmatpush.bf16.msra.mxu0 0
      %2492 = vmatpush.bf16.msra.mxu0 0
      %2493 = vmatpush.bf16.msra.mxu0 %v2484
      %2494 = vmatmul.bf16.gmra.mxu0 %v2481
      %v2495 = vpop.f32.mrf.mxu0
      %v2496 = vadd.f32 0.0, %v2495
      %v2497 = vpop.f32.mrf.mxu0
      %2498 = vdwg.mxu0
      %2499 = vrot.lane.b32.xlu0 %v2477, 94
      %v2500 = vpop.permute.xlu0 %2499
      %v2502 = vsel %vm727, %v2472, 0
      %v2505 = vsel %vm731, %v2500, 0
      %2507 = vmatpush.bf16.msra.mxu0 0
      %2508 = vmatpush.bf16.msra.mxu0 0
      %2509 = vmatpush.bf16.msra.mxu0 0
      %2510 = vmatpush.bf16.msra.mxu0 0
      %2511 = vmatpush.bf16.msra.mxu0 0
      %2512 = vmatpush.bf16.msra.mxu0 0
      %2513 = vmatpush.bf16.msra.mxu0 0
      %2514 = vmatpush.bf16.msra.mxu0 %v2505
      %2515 = vmatmul.bf16.gmra.mxu0 %v2502
      %v2516 = vpop.f32.mrf.mxu0
      %v2517 = vadd.f32 %v2496, %v2516
      %v2518 = vpop.f32.mrf.mxu0
      %2519 = vdwg.mxu0
      %v2520 = vld [vmem:[%s1517] sm:$0xf]
      %2521 = vrot.lane.b32.xlu0 %v2477, 92
      %v2522 = vpop.permute.xlu0 %2521
      %v2524 = vsel %vm727, %v2520, 0
      %v2527 = vsel %vm731, %v2522, 0
      %2529 = vmatpush.bf16.msra.mxu0 0
      %2530 = vmatpush.bf16.msra.mxu0 0
      %2531 = vmatpush.bf16.msra.mxu0 0
      %2532 = vmatpush.bf16.msra.mxu0 0
      %2533 = vmatpush.bf16.msra.mxu0 0
      %2534 = vmatpush.bf16.msra.mxu0 0
      %2535 = vmatpush.bf16.msra.mxu0 0
      %2536 = vmatpush.bf16.msra.mxu0 %v2527
      %2537 = vmatmul.bf16.gmra.mxu0 %v2524
      %v2538 = vpop.f32.mrf.mxu0
      %v2539 = vadd.f32 0.0, %v2538
      %v2540 = vpop.f32.mrf.mxu0
      %2541 = vdwg.mxu0
      %v2542 = vadd.f32 %v2517, %v2539
      %v2543 = vld [vmem:[%s1541] sm:$0xf]
      %2544 = vrot.lane.b32.xlu0 %v2477, 76
      %v2545 = vpop.permute.xlu0 %2544
      %v2547 = vsel %vm727, %v2543, 0
      %v2550 = vsel %vm731, %v2545, 0
      %2552 = vmatpush.bf16.msra.mxu0 0
      %2553 = vmatpush.bf16.msra.mxu0 0
      %2554 = vmatpush.bf16.msra.mxu0 0
      %2555 = vmatpush.bf16.msra.mxu0 0
      %2556 = vmatpush.bf16.msra.mxu0 0
      %2557 = vmatpush.bf16.msra.mxu0 0
      %2558 = vmatpush.bf16.msra.mxu0 0
      %2559 = vmatpush.bf16.msra.mxu0 %v2550
      %2560 = vmatmul.bf16.gmra.mxu0 %v2547
      %v2561 = vpop.f32.mrf.mxu0
      %v2562 = vadd.f32 0.0, %v2561
      %v2563 = vpop.f32.mrf.mxu0
      %2564 = vdwg.mxu0
      %v2565 = vadd.f32 %v2542, %v2562
      %v2566 = vld [vmem:[%s1565] sm:$0xf]
      %2567 = vrot.lane.b32.xlu0 %v2477, 75
      %v2568 = vpop.permute.xlu0 %2567
      %v2570 = vsel %vm727, %v2566, 0
      %v2573 = vsel %vm731, %v2568, 0
      %2575 = vmatpush.bf16.msra.mxu0 0
      %2576 = vmatpush.bf16.msra.mxu0 0
      %2577 = vmatpush.bf16.msra.mxu0 0
      %2578 = vmatpush.bf16.msra.mxu0 0
      %2579 = vmatpush.bf16.msra.mxu0 0
      %2580 = vmatpush.bf16.msra.mxu0 0
      %2581 = vmatpush.bf16.msra.mxu0 0
      %2582 = vmatpush.bf16.msra.mxu0 %v2573
      %2583 = vmatmul.bf16.gmra.mxu0 %v2570
      %v2584 = vpop.f32.mrf.mxu0
      %v2585 = vadd.f32 0.0, %v2584
      %v2586 = vpop.f32.mrf.mxu0
      %2587 = vdwg.mxu0
      %v2588 = vadd.f32 %v2565, %v2585
      %v2589 = vld [vmem:[%s1589] sm:$0xf]
      %2590 = vrot.lane.b32.xlu0 %v2477, 74
      %v2591 = vpop.permute.xlu0 %2590
      %v2593 = vsel %vm727, %v2589, 0
      %v2596 = vsel %vm731, %v2591, 0
      %2598 = vmatpush.bf16.msra.mxu0 0
      %2599 = vmatpush.bf16.msra.mxu0 0
      %2600 = vmatpush.bf16.msra.mxu0 0
      %2601 = vmatpush.bf16.msra.mxu0 0
      %2602 = vmatpush.bf16.msra.mxu0 0
      %2603 = vmatpush.bf16.msra.mxu0 0
      %2604 = vmatpush.bf16.msra.mxu0 0
      %2605 = vmatpush.bf16.msra.mxu0 %v2596
      %2606 = vmatmul.bf16.gmra.mxu0 %v2593
      %v2607 = vpop.f32.mrf.mxu0
      %v2608 = vadd.f32 0.0, %v2607
      %v2609 = vpop.f32.mrf.mxu0
      %2610 = vdwg.mxu0
      %v2611 = vadd.f32 %v2588, %v2608
      %v2612 = vld [vmem:[%s1613] sm:$0xf]
      %2613 = vrot.lane.b32.xlu0 %v2477, 58
      %v2614 = vpop.permute.xlu0 %2613
      %v2616 = vsel %vm727, %v2612, 0
      %v2619 = vsel %vm731, %v2614, 0
      %2621 = vmatpush.bf16.msra.mxu0 0
      %2622 = vmatpush.bf16.msra.mxu0 0
      %2623 = vmatpush.bf16.msra.mxu0 0
      %2624 = vmatpush.bf16.msra.mxu0 0
      %2625 = vmatpush.bf16.msra.mxu0 0
      %2626 = vmatpush.bf16.msra.mxu0 0
      %2627 = vmatpush.bf16.msra.mxu0 0
      %2628 = vmatpush.bf16.msra.mxu0 %v2619
      %2629 = vmatmul.bf16.gmra.mxu0 %v2616
      %v2630 = vpop.f32.mrf.mxu0
      %v2631 = vadd.f32 0.0, %v2630
      %v2632 = vpop.f32.mrf.mxu0
      %2633 = vdwg.mxu0
      %v2634 = vadd.f32 %v2611, %v2631
      %v2635 = vld [vmem:[%s1637] sm:$0xf]
      %2636 = vrot.lane.b32.xlu0 %v2477, 57
      %v2637 = vpop.permute.xlu0 %2636
      %v2639 = vsel %vm727, %v2635, 0
      %v2642 = vsel %vm731, %v2637, 0
      %2644 = vmatpush.bf16.msra.mxu0 0
      %2645 = vmatpush.bf16.msra.mxu0 0
      %2646 = vmatpush.bf16.msra.mxu0 0
      %2647 = vmatpush.bf16.msra.mxu0 0
      %2648 = vmatpush.bf16.msra.mxu0 0
      %2649 = vmatpush.bf16.msra.mxu0 0
      %2650 = vmatpush.bf16.msra.mxu0 0
      %2651 = vmatpush.bf16.msra.mxu0 %v2642
      %2652 = vmatmul.bf16.gmra.mxu0 %v2639
      %v2653 = vpop.f32.mrf.mxu0
      %v2654 = vadd.f32 0.0, %v2653
      %v2655 = vpop.f32.mrf.mxu0
      %2656 = vdwg.mxu0
      %v2657 = vadd.f32 %v2634, %v2654
      %v2658 = vld [vmem:[%s1661] sm:$0xf]
      %2659 = vrot.lane.b32.xlu0 %v2477, 56
      %v2660 = vpop.permute.xlu0 %2659
      %v2662 = vsel %vm727, %v2658, 0
      %v2665 = vsel %vm731, %v2660, 0
      %2667 = vmatpush.bf16.msra.mxu0 0
      %2668 = vmatpush.bf16.msra.mxu0 0
      %2669 = vmatpush.bf16.msra.mxu0 0
      %2670 = vmatpush.bf16.msra.mxu0 0
      %2671 = vmatpush.bf16.msra.mxu0 0
      %2672 = vmatpush.bf16.msra.mxu0 0
      %2673 = vmatpush.bf16.msra.mxu0 0
      %2674 = vmatpush.bf16.msra.mxu0 %v2665
      %2675 = vmatmul.bf16.gmra.mxu0 %v2662
      %v2676 = vpop.f32.mrf.mxu0
      %v2677 = vadd.f32 0.0, %v2676
      %v2678 = vpop.f32.mrf.mxu0
      %2679 = vdwg.mxu0
      %v2680 = vadd.f32 %v2657, %v2677
      %v2681 = vld [vmem:[%s10] sm:$0xff]
      %v2682 = vld [vmem:[%s10 + $0x8] sm:$0xff]
      %v2683 = vld [vmem:[%s10 + $0x10] sm:$0x3]
      %v2685 = vsel %vm1688, %v2680, 0
      %v2688 = vsel %vm1692, %v2683, 0
      %2690 = vmatpush.msra.mxu0 0.0
      %2691 = vmatpush.msra.mxu0 0.0
      %2692 = vmatpush.msra.mxu0 0.0
      %2693 = vmatpush.msra.mxu0 0.0
      %2694 = vmatpush.msra.mxu0 0.0
      %2695 = vmatpush.msra.mxu0 0.0
      %2696 = vmatpush.msra.mxu0 0.0
      %2697 = vmatpush.msra.mxu0 0.0
      %2698 = vmatpush.msra.mxu0 0.0
      %2699 = vmatpush.msra.mxu0 0.0
      %2700 = vmatpush.msra.mxu0 0.0
      %2701 = vmatpush.msra.mxu0 0.0
      %2702 = vmatpush.msra.mxu0 0.0
      %2703 = vmatpush.msra.mxu0 %v2688
      %2704 = vmatpush.msra.mxu0 %v2682
      %2705 = vmatpush.msra.mxu0 %v2681
      %2706 = vmatmul.f32.gmra.mxu0 %v2685
      %v2707 = vpop.f32.mrf.mxu0
      %v2708 = vadd.f32 0.0, %v2707
      %2709 = vdwg.mxu0
      %2711 = vrot.lane.b32.xlu0 %v2708, 32
      %v2712 = vpop.permute.xlu0 %2711
      %vm2714 = vcmask 326912
      %2715 = vst.msk [vmem:[#allocation5] sm:$0xff] %vm2714, %v2712
      %v2716 = vld [vmem:[%s6] sm:$0xf]
      %v2717 = vld [vmem:[#allocation2 + $0x4] sm:$0xf]
      %v2718 = vld [vmem:[%s1470] sm:$0xf]
      %v2720 = vunpack.c.l.b16 %v2717
      %v2721 = vpack.c.b16 %v2720, %v2720
      %2722 = vrot.lane.b32.xlu0 %v2721, 57
      %v2723 = vpop.permute.xlu0 %2722
      %v2725 = vsel %vm727, %v2718, 0
      %v2728 = vsel %vm731, %v2723, 0
      %2730 = vmatpush.bf16.msra.mxu0 0
      %2731 = vmatpush.bf16.msra.mxu0 0
      %2732 = vmatpush.bf16.msra.mxu0 0
      %2733 = vmatpush.bf16.msra.mxu0 0
      %2734 = vmatpush.bf16.msra.mxu0 0
      %2735 = vmatpush.bf16.msra.mxu0 0
      %2736 = vmatpush.bf16.msra.mxu0 0
      %2737 = vmatpush.bf16.msra.mxu0 %v2728
      %2738 = vmatmul.bf16.gmra.mxu0 %v2725
      %v2739 = vpop.f32.mrf.mxu0
      %v2740 = vadd.f32 0.0, %v2739
      %v2741 = vpop.f32.mrf.mxu0
      %2742 = vdwg.mxu0
      %2743 = vrot.lane.b32.xlu0 %v2721, 58
      %v2744 = vpop.permute.xlu0 %2743
      %v2746 = vsel %vm727, %v2716, 0
      %v2749 = vsel %vm731, %v2744, 0
      %2751 = vmatpush.bf16.msra.mxu0 0
      %2752 = vmatpush.bf16.msra.mxu0 0
      %2753 = vmatpush.bf16.msra.mxu0 0
      %2754 = vmatpush.bf16.msra.mxu0 0
      %2755 = vmatpush.bf16.msra.mxu0 0
      %2756 = vmatpush.bf16.msra.mxu0 0
      %2757 = vmatpush.bf16.msra.mxu0 0
      %2758 = vmatpush.bf16.msra.mxu0 %v2749
      %2759 = vmatmul.bf16.gmra.mxu0 %v2746
      %v2760 = vpop.f32.mrf.mxu0
      %v2761 = vadd.f32 %v2740, %v2760
      %v2762 = vpop.f32.mrf.mxu0
      %2763 = vdwg.mxu0
      %v2764 = vld [vmem:[%s1517] sm:$0xf]
      %2765 = vrot.lane.b32.xlu0 %v2721, 56
      %v2766 = vpop.permute.xlu0 %2765
      %v2768 = vsel %vm727, %v2764, 0
      %v2771 = vsel %vm731, %v2766, 0
      %2773 = vmatpush.bf16.msra.mxu0 0
      %2774 = vmatpush.bf16.msra.mxu0 0
      %2775 = vmatpush.bf16.msra.mxu0 0
      %2776 = vmatpush.bf16.msra.mxu0 0
      %2777 = vmatpush.bf16.msra.mxu0 0
      %2778 = vmatpush.bf16.msra.mxu0 0
      %2779 = vmatpush.bf16.msra.mxu0 0
      %2780 = vmatpush.bf16.msra.mxu0 %v2771
      %2781 = vmatmul.bf16.gmra.mxu0 %v2768
      %v2782 = vpop.f32.mrf.mxu0
      %v2783 = vadd.f32 0.0, %v2782
      %v2784 = vpop.f32.mrf.mxu0
      %2785 = vdwg.mxu0
      %v2786 = vadd.f32 %v2761, %v2783
      %v2787 = vld [vmem:[%s1541] sm:$0xf]
      %2788 = vrot.lane.b32.xlu0 %v2721, 40
      %v2789 = vpop.permute.xlu0 %2788
      %v2791 = vsel %vm727, %v2787, 0
      %v2794 = vsel %vm731, %v2789, 0
      %2796 = vmatpush.bf16.msra.mxu0 0
      %2797 = vmatpush.bf16.msra.mxu0 0
      %2798 = vmatpush.bf16.msra.mxu0 0
      %2799 = vmatpush.bf16.msra.mxu0 0
      %2800 = vmatpush.bf16.msra.mxu0 0
      %2801 = vmatpush.bf16.msra.mxu0 0
      %2802 = vmatpush.bf16.msra.mxu0 0
      %2803 = vmatpush.bf16.msra.mxu0 %v2794
      %2804 = vmatmul.bf16.gmra.mxu0 %v2791
      %v2805 = vpop.f32.mrf.mxu0
      %v2806 = vadd.f32 0.0, %v2805
      %v2807 = vpop.f32.mrf.mxu0
      %2808 = vdwg.mxu0
      %v2809 = vadd.f32 %v2786, %v2806
      %v2810 = vld [vmem:[%s1565] sm:$0xf]
      %2811 = vrot.lane.b32.xlu0 %v2721, 39
      %v2812 = vpop.permute.xlu0 %2811
      %v2814 = vsel %vm727, %v2810, 0
      %v2817 = vsel %vm731, %v2812, 0
      %2819 = vmatpush.bf16.msra.mxu0 0
      %2820 = vmatpush.bf16.msra.mxu0 0
      %2821 = vmatpush.bf16.msra.mxu0 0
      %2822 = vmatpush.bf16.msra.mxu0 0
      %2823 = vmatpush.bf16.msra.mxu0 0
      %2824 = vmatpush.bf16.msra.mxu0 0
      %2825 = vmatpush.bf16.msra.mxu0 0
      %2826 = vmatpush.bf16.msra.mxu0 %v2817
      %2827 = vmatmul.bf16.gmra.mxu0 %v2814
      %v2828 = vpop.f32.mrf.mxu0
      %v2829 = vadd.f32 0.0, %v2828
      %v2830 = vpop.f32.mrf.mxu0
      %2831 = vdwg.mxu0
      %v2832 = vadd.f32 %v2809, %v2829
      %v2833 = vld [vmem:[%s1589] sm:$0xf]
      %2834 = vrot.lane.b32.xlu0 %v2721, 38
      %v2835 = vpop.permute.xlu0 %2834
      %v2837 = vsel %vm727, %v2833, 0
      %v2840 = vsel %vm731, %v2835, 0
      %2842 = vmatpush.bf16.msra.mxu0 0
      %2843 = vmatpush.bf16.msra.mxu0 0
      %2844 = vmatpush.bf16.msra.mxu0 0
      %2845 = vmatpush.bf16.msra.mxu0 0
      %2846 = vmatpush.bf16.msra.mxu0 0
      %2847 = vmatpush.bf16.msra.mxu0 0
      %2848 = vmatpush.bf16.msra.mxu0 0
      %2849 = vmatpush.bf16.msra.mxu0 %v2840
      %2850 = vmatmul.bf16.gmra.mxu0 %v2837
      %v2851 = vpop.f32.mrf.mxu0
      %v2852 = vadd.f32 0.0, %v2851
      %v2853 = vpop.f32.mrf.mxu0
      %2854 = vdwg.mxu0
      %v2855 = vadd.f32 %v2832, %v2852
      %v2856 = vld [vmem:[%s1613] sm:$0xf]
      %2857 = vrot.lane.b32.xlu0 %v2721, 22
      %v2858 = vpop.permute.xlu0 %2857
      %v2860 = vsel %vm727, %v2856, 0
      %v2863 = vsel %vm731, %v2858, 0
      %2865 = vmatpush.bf16.msra.mxu0 0
      %2866 = vmatpush.bf16.msra.mxu0 0
      %2867 = vmatpush.bf16.msra.mxu0 0
      %2868 = vmatpush.bf16.msra.mxu0 0
      %2869 = vmatpush.bf16.msra.mxu0 0
      %2870 = vmatpush.bf16.msra.mxu0 0
      %2871 = vmatpush.bf16.msra.mxu0 0
      %2872 = vmatpush.bf16.msra.mxu0 %v2863
      %2873 = vmatmul.bf16.gmra.mxu0 %v2860
      %v2874 = vpop.f32.mrf.mxu0
      %v2875 = vadd.f32 0.0, %v2874
      %v2876 = vpop.f32.mrf.mxu0
      %2877 = vdwg.mxu0
      %v2878 = vadd.f32 %v2855, %v2875
      %v2879 = vld [vmem:[%s1637] sm:$0xf]
      %2880 = vrot.lane.b32.xlu0 %v2721, 21
      %v2881 = vpop.permute.xlu0 %2880
      %v2883 = vsel %vm727, %v2879, 0
      %v2886 = vsel %vm731, %v2881, 0
      %2888 = vmatpush.bf16.msra.mxu0 0
      %2889 = vmatpush.bf16.msra.mxu0 0
      %2890 = vmatpush.bf16.msra.mxu0 0
      %2891 = vmatpush.bf16.msra.mxu0 0
      %2892 = vmatpush.bf16.msra.mxu0 0
      %2893 = vmatpush.bf16.msra.mxu0 0
      %2894 = vmatpush.bf16.msra.mxu0 0
      %2895 = vmatpush.bf16.msra.mxu0 %v2886
      %2896 = vmatmul.bf16.gmra.mxu0 %v2883
      %v2897 = vpop.f32.mrf.mxu0
      %v2898 = vadd.f32 0.0, %v2897
      %v2899 = vpop.f32.mrf.mxu0
      %2900 = vdwg.mxu0
      %v2901 = vadd.f32 %v2878, %v2898
      %v2902 = vld [vmem:[%s1661] sm:$0xf]
      %2903 = vrot.lane.b32.xlu0 %v2721, 20
      %v2904 = vpop.permute.xlu0 %2903
      %v2906 = vsel %vm727, %v2902, 0
      %v2909 = vsel %vm731, %v2904, 0
      %2911 = vmatpush.bf16.msra.mxu0 0
      %2912 = vmatpush.bf16.msra.mxu0 0
      %2913 = vmatpush.bf16.msra.mxu0 0
      %2914 = vmatpush.bf16.msra.mxu0 0
      %2915 = vmatpush.bf16.msra.mxu0 0
      %2916 = vmatpush.bf16.msra.mxu0 0
      %2917 = vmatpush.bf16.msra.mxu0 0
      %2918 = vmatpush.bf16.msra.mxu0 %v2909
      %2919 = vmatmul.bf16.gmra.mxu0 %v2906
      %v2920 = vpop.f32.mrf.mxu0
      %v2921 = vadd.f32 0.0, %v2920
      %v2922 = vpop.f32.mrf.mxu0
      %2923 = vdwg.mxu0
      %v2924 = vadd.f32 %v2901, %v2921
      %v2925 = vld [vmem:[%s10] sm:$0xff]
      %v2926 = vld [vmem:[%s10 + $0x8] sm:$0xff]
      %v2927 = vld [vmem:[%s10 + $0x10] sm:$0x3]
      %v2929 = vsel %vm1688, %v2924, 0
      %v2932 = vsel %vm1692, %v2927, 0
      %2934 = vmatpush.msra.mxu0 0.0
      %2935 = vmatpush.msra.mxu0 0.0
      %2936 = vmatpush.msra.mxu0 0.0
      %2937 = vmatpush.msra.mxu0 0.0
      %2938 = vmatpush.msra.mxu0 0.0
      %2939 = vmatpush.msra.mxu0 0.0
      %2940 = vmatpush.msra.mxu0 0.0
      %2941 = vmatpush.msra.mxu0 0.0
      %2942 = vmatpush.msra.mxu0 0.0
      %2943 = vmatpush.msra.mxu0 0.0
      %2944 = vmatpush.msra.mxu0 0.0
      %2945 = vmatpush.msra.mxu0 0.0
      %2946 = vmatpush.msra.mxu0 0.0
      %2947 = vmatpush.msra.mxu0 %v2932
      %2948 = vmatpush.msra.mxu0 %v2926
      %2949 = vmatpush.msra.mxu0 %v2925
      %2950 = vmatmul.f32.gmra.mxu0 %v2929
      %v2951 = vpop.f32.mrf.mxu0
      %v2952 = vadd.f32 0.0, %v2951
      %2953 = vdwg.mxu0
      %2955 = vrot.lane.b32.xlu0 %v2952, 40
      %v2956 = vpop.permute.xlu0 %2955
      %vm2958 = vcmask 392512
      %2959 = vst.msk [vmem:[#allocation5] sm:$0xff] %vm2958, %v2956
      %v2960 = vld [vmem:[%s6] sm:$0xf]
      %v2961 = vld [vmem:[#allocation2 + $0x4] sm:$0xf]
      %v2962 = vld [vmem:[%s1470] sm:$0xf]
      %v2964 = vunpack.c.l.b16 %v2961
      %v2965 = vpack.c.b16 %v2964, %v2964
      %2966 = vrot.lane.b32.xlu0 %v2965, 21
      %v2967 = vpop.permute.xlu0 %2966
      %v2969 = vsel %vm727, %v2962, 0
      %v2972 = vsel %vm731, %v2967, 0
      %2974 = vmatpush.bf16.msra.mxu0 0
      %2975 = vmatpush.bf16.msra.mxu0 0
      %2976 = vmatpush.bf16.msra.mxu0 0
      %2977 = vmatpush.bf16.msra.mxu0 0
      %2978 = vmatpush.bf16.msra.mxu0 0
      %2979 = vmatpush.bf16.msra.mxu0 0
      %2980 = vmatpush.bf16.msra.mxu0 0
      %2981 = vmatpush.bf16.msra.mxu0 %v2972
      %2982 = vmatmul.bf16.gmra.mxu0 %v2969
      %v2983 = vpop.f32.mrf.mxu0
      %v2984 = vadd.f32 0.0, %v2983
      %v2985 = vpop.f32.mrf.mxu0
      %2986 = vdwg.mxu0
      %2987 = vrot.lane.b32.xlu0 %v2965, 22
      %v2988 = vpop.permute.xlu0 %2987
      %v2990 = vsel %vm727, %v2960, 0
      %v2993 = vsel %vm731, %v2988, 0
      %2995 = vmatpush.bf16.msra.mxu0 0
      %2996 = vmatpush.bf16.msra.mxu0 0
      %2997 = vmatpush.bf16.msra.mxu0 0
      %2998 = vmatpush.bf16.msra.mxu0 0
      %2999 = vmatpush.bf16.msra.mxu0 0
      %3000 = vmatpush.bf16.msra.mxu0 0
      %3001 = vmatpush.bf16.msra.mxu0 0
      %3002 = vmatpush.bf16.msra.mxu0 %v2993
      %3003 = vmatmul.bf16.gmra.mxu0 %v2990
      %v3004 = vpop.f32.mrf.mxu0
      %v3005 = vadd.f32 %v2984, %v3004
      %v3006 = vpop.f32.mrf.mxu0
      %3007 = vdwg.mxu0
      %v3008 = vld [vmem:[%s1517] sm:$0xf]
      %3009 = vrot.lane.b32.xlu0 %v2965, 20
      %v3010 = vpop.permute.xlu0 %3009
      %v3012 = vsel %vm727, %v3008, 0
      %v3015 = vsel %vm731, %v3010, 0
      %3017 = vmatpush.bf16.msra.mxu0 0
      %3018 = vmatpush.bf16.msra.mxu0 0
      %3019 = vmatpush.bf16.msra.mxu0 0
      %3020 = vmatpush.bf16.msra.mxu0 0
      %3021 = vmatpush.bf16.msra.mxu0 0
      %3022 = vmatpush.bf16.msra.mxu0 0
      %3023 = vmatpush.bf16.msra.mxu0 0
      %3024 = vmatpush.bf16.msra.mxu0 %v3015
      %3025 = vmatmul.bf16.gmra.mxu0 %v3012
      %v3026 = vpop.f32.mrf.mxu0
      %v3027 = vadd.f32 0.0, %v3026
      %v3028 = vpop.f32.mrf.mxu0
      %3029 = vdwg.mxu0
      %v3030 = vadd.f32 %v3005, %v3027
      %v3031 = vld [vmem:[%s1541] sm:$0xf]
      %v3032 = vld [vmem:[#allocation2 + $0x4] sm:$0xff]
      %v3034 = vunpack.c.l.b16 %v3032
      %v3035 = vunpack.c.h.b16 %v3032
      %v3036 = vpack.c.b16 %v3034, %v3034
      %v3037 = vpack.c.b16 %v3035, %v3035
      %3038 = vrot.lane.b32.xlu0 %v3036, 4
      %v3039 = vpop.permute.xlu0 %3038
      %3040 = vrot.lane.b32.xlu0 %v3037, 4
      %v3041 = vpop.permute.xlu0 %3040
      %vm3042 = vcmask 31744
      %v3043 = vsel %vm3042, %v3039, %v3041
      %v3045 = vsel %vm727, %v3031, 0
      %v3048 = vsel %vm731, %v3043, 0
      %3050 = vmatpush.bf16.msra.mxu0 0
      %3051 = vmatpush.bf16.msra.mxu0 0
      %3052 = vmatpush.bf16.msra.mxu0 0
      %3053 = vmatpush.bf16.msra.mxu0 0
      %3054 = vmatpush.bf16.msra.mxu0 0
      %3055 = vmatpush.bf16.msra.mxu0 0
      %3056 = vmatpush.bf16.msra.mxu0 0
      %3057 = vmatpush.bf16.msra.mxu0 %v3048
      %3058 = vmatmul.bf16.gmra.mxu0 %v3045
      %v3059 = vpop.f32.mrf.mxu0
      %v3060 = vadd.f32 0.0, %v3059
      %v3061 = vpop.f32.mrf.mxu0
      %3062 = vdwg.mxu0
      %v3063 = vadd.f32 %v3030, %v3060
      %v3064 = vld [vmem:[%s1565] sm:$0xf]
      %3065 = vrot.lane.b32.xlu0 %v3036, 3
      %v3066 = vpop.permute.xlu0 %3065
      %3067 = vrot.lane.b32.xlu0 %v3037, 3
      %v3068 = vpop.permute.xlu0 %3067
      %vm3069 = vcmask 23552
      %v3070 = vsel %vm3069, %v3066, %v3068
      %v3072 = vsel %vm727, %v3064, 0
      %v3075 = vsel %vm731, %v3070, 0
      %3077 = vmatpush.bf16.msra.mxu0 0
      %3078 = vmatpush.bf16.msra.mxu0 0
      %3079 = vmatpush.bf16.msra.mxu0 0
      %3080 = vmatpush.bf16.msra.mxu0 0
      %3081 = vmatpush.bf16.msra.mxu0 0
      %3082 = vmatpush.bf16.msra.mxu0 0
      %3083 = vmatpush.bf16.msra.mxu0 0
      %3084 = vmatpush.bf16.msra.mxu0 %v3075
      %3085 = vmatmul.bf16.gmra.mxu0 %v3072
      %v3086 = vpop.f32.mrf.mxu0
      %v3087 = vadd.f32 0.0, %v3086
      %v3088 = vpop.f32.mrf.mxu0
      %3089 = vdwg.mxu0
      %v3090 = vadd.f32 %v3063, %v3087
      %v3091 = vld [vmem:[%s1589] sm:$0xf]
      %3092 = vrot.lane.b32.xlu0 %v3036, 2
      %v3093 = vpop.permute.xlu0 %3092
      %3094 = vrot.lane.b32.xlu0 %v3037, 2
      %v3095 = vpop.permute.xlu0 %3094
      %v3096 = vsel %vm2112, %v3093, %v3095
      %v3098 = vsel %vm727, %v3091, 0
      %v3101 = vsel %vm731, %v3096, 0
      %3103 = vmatpush.bf16.msra.mxu0 0
      %3104 = vmatpush.bf16.msra.mxu0 0
      %3105 = vmatpush.bf16.msra.mxu0 0
      %3106 = vmatpush.bf16.msra.mxu0 0
      %3107 = vmatpush.bf16.msra.mxu0 0
      %3108 = vmatpush.bf16.msra.mxu0 0
      %3109 = vmatpush.bf16.msra.mxu0 0
      %3110 = vmatpush.bf16.msra.mxu0 %v3101
      %3111 = vmatmul.bf16.gmra.mxu0 %v3098
      %v3112 = vpop.f32.mrf.mxu0
      %v3113 = vadd.f32 0.0, %v3112
      %v3114 = vpop.f32.mrf.mxu0
      %3115 = vdwg.mxu0
      %v3116 = vadd.f32 %v3090, %v3113
      %v3117 = vld [vmem:[%s1613] sm:$0xf]
      %v3118 = vld [vmem:[#allocation2 + $0x8] sm:$0xf]
      %v3120 = vunpack.c.l.b16 %v3118
      %v3121 = vpack.c.b16 %v3120, %v3120
      %3122 = vrot.lane.b32.xlu0 %v3121, 114
      %v3123 = vpop.permute.xlu0 %3122
      %v3125 = vsel %vm727, %v3117, 0
      %v3128 = vsel %vm731, %v3123, 0
      %3130 = vmatpush.bf16.msra.mxu0 0
      %3131 = vmatpush.bf16.msra.mxu0 0
      %3132 = vmatpush.bf16.msra.mxu0 0
      %3133 = vmatpush.bf16.msra.mxu0 0
      %3134 = vmatpush.bf16.msra.mxu0 0
      %3135 = vmatpush.bf16.msra.mxu0 0
      %3136 = vmatpush.bf16.msra.mxu0 0
      %3137 = vmatpush.bf16.msra.mxu0 %v3128
      %3138 = vmatmul.bf16.gmra.mxu0 %v3125
      %v3139 = vpop.f32.mrf.mxu0
      %v3140 = vadd.f32 0.0, %v3139
      %v3141 = vpop.f32.mrf.mxu0
      %3142 = vdwg.mxu0
      %v3143 = vadd.f32 %v3116, %v3140
      %v3144 = vld [vmem:[%s1637] sm:$0xf]
      %3145 = vrot.lane.b32.xlu0 %v3121, 113
      %v3146 = vpop.permute.xlu0 %3145
      %v3148 = vsel %vm727, %v3144, 0
      %v3151 = vsel %vm731, %v3146, 0
      %3153 = vmatpush.bf16.msra.mxu0 0
      %3154 = vmatpush.bf16.msra.mxu0 0
      %3155 = vmatpush.bf16.msra.mxu0 0
      %3156 = vmatpush.bf16.msra.mxu0 0
      %3157 = vmatpush.bf16.msra.mxu0 0
      %3158 = vmatpush.bf16.msra.mxu0 0
      %3159 = vmatpush.bf16.msra.mxu0 0
      %3160 = vmatpush.bf16.msra.mxu0 %v3151
      %3161 = vmatmul.bf16.gmra.mxu0 %v3148
      %v3162 = vpop.f32.mrf.mxu0
      %v3163 = vadd.f32 0.0, %v3162
      %v3164 = vpop.f32.mrf.mxu0
      %3165 = vdwg.mxu0
      %v3166 = vadd.f32 %v3143, %v3163
      %v3167 = vld [vmem:[%s1661] sm:$0xf]
      %3168 = vrot.lane.b32.xlu0 %v3121, 112
      %v3169 = vpop.permute.xlu0 %3168
      %v3171 = vsel %vm727, %v3167, 0
      %v3174 = vsel %vm731, %v3169, 0
      %3176 = vmatpush.bf16.msra.mxu0 0
      %3177 = vmatpush.bf16.msra.mxu0 0
      %3178 = vmatpush.bf16.msra.mxu0 0
      %3179 = vmatpush.bf16.msra.mxu0 0
      %3180 = vmatpush.bf16.msra.mxu0 0
      %3181 = vmatpush.bf16.msra.mxu0 0
      %3182 = vmatpush.bf16.msra.mxu0 0
      %3183 = vmatpush.bf16.msra.mxu0 %v3174
      %3184 = vmatmul.bf16.gmra.mxu0 %v3171
      %v3185 = vpop.f32.mrf.mxu0
      %v3186 = vadd.f32 0.0, %v3185
      %v3187 = vpop.f32.mrf.mxu0
      %3188 = vdwg.mxu0
      %v3189 = vadd.f32 %v3166, %v3186
      %v3190 = vld [vmem:[%s10] sm:$0xff]
      %v3191 = vld [vmem:[%s10 + $0x8] sm:$0xff]
      %v3192 = vld [vmem:[%s10 + $0x10] sm:$0x3]
      %v3194 = vsel %vm1688, %v3189, 0
      %v3197 = vsel %vm1692, %v3192, 0
      %3199 = vmatpush.msra.mxu0 0.0
      %3200 = vmatpush.msra.mxu0 0.0
      %3201 = vmatpush.msra.mxu0 0.0
      %3202 = vmatpush.msra.mxu0 0.0
      %3203 = vmatpush.msra.mxu0 0.0
      %3204 = vmatpush.msra.mxu0 0.0
      %3205 = vmatpush.msra.mxu0 0.0
      %3206 = vmatpush.msra.mxu0 0.0
      %3207 = vmatpush.msra.mxu0 0.0
      %3208 = vmatpush.msra.mxu0 0.0
      %3209 = vmatpush.msra.mxu0 0.0
      %3210 = vmatpush.msra.mxu0 0.0
      %3211 = vmatpush.msra.mxu0 0.0
      %3212 = vmatpush.msra.mxu0 %v3197
      %3213 = vmatpush.msra.mxu0 %v3191
      %3214 = vmatpush.msra.mxu0 %v3190
      %3215 = vmatmul.f32.gmra.mxu0 %v3194
      %v3216 = vpop.f32.mrf.mxu0
      %v3217 = vadd.f32 0.0, %v3216
      %3218 = vdwg.mxu0
      %3220 = vrot.lane.b32.xlu0 %v3217, 48
      %v3221 = vpop.permute.xlu0 %3220
      %vm3223 = vcmask 458112
      %3224 = vst.msk [vmem:[#allocation5] sm:$0xff] %vm3223, %v3221
      %v3225 = vld [vmem:[%s6] sm:$0xf]
      %v3226 = vld [vmem:[#allocation2 + $0x8] sm:$0xf]
      %v3227 = vld [vmem:[%s1470] sm:$0xf]
      %v3229 = vunpack.c.l.b16 %v3226
      %v3230 = vpack.c.b16 %v3229, %v3229
      %3231 = vrot.lane.b32.xlu0 %v3230, 113
      %v3232 = vpop.permute.xlu0 %3231
      %v3234 = vsel %vm727, %v3227, 0
      %v3237 = vsel %vm731, %v3232, 0
      %3239 = vmatpush.bf16.msra.mxu0 0
      %3240 = vmatpush.bf16.msra.mxu0 0
      %3241 = vmatpush.bf16.msra.mxu0 0
      %3242 = vmatpush.bf16.msra.mxu0 0
      %3243 = vmatpush.bf16.msra.mxu0 0
      %3244 = vmatpush.bf16.msra.mxu0 0
      %3245 = vmatpush.bf16.msra.mxu0 0
      %3246 = vmatpush.bf16.msra.mxu0 %v3237
      %3247 = vmatmul.bf16.gmra.mxu0 %v3234
      %v3248 = vpop.f32.mrf.mxu0
      %v3249 = vadd.f32 0.0, %v3248
      %v3250 = vpop.f32.mrf.mxu0
      %3251 = vdwg.mxu0
      %3252 = vrot.lane.b32.xlu0 %v3230, 114
      %v3253 = vpop.permute.xlu0 %3252
      %v3255 = vsel %vm727, %v3225, 0
      %v3258 = vsel %vm731, %v3253, 0
      %3260 = vmatpush.bf16.msra.mxu0 0
      %3261 = vmatpush.bf16.msra.mxu0 0
      %3262 = vmatpush.bf16.msra.mxu0 0
      %3263 = vmatpush.bf16.msra.mxu0 0
      %3264 = vmatpush.bf16.msra.mxu0 0
      %3265 = vmatpush.bf16.msra.mxu0 0
      %3266 = vmatpush.bf16.msra.mxu0 0
      %3267 = vmatpush.bf16.msra.mxu0 %v3258
      %3268 = vmatmul.bf16.gmra.mxu0 %v3255
      %v3269 = vpop.f32.mrf.mxu0
      %v3270 = vadd.f32 %v3249, %v3269
      %v3271 = vpop.f32.mrf.mxu0
      %3272 = vdwg.mxu0
      %v3273 = vld [vmem:[%s1517] sm:$0xf]
      %3274 = vrot.lane.b32.xlu0 %v3230, 112
      %v3275 = vpop.permute.xlu0 %3274
      %v3277 = vsel %vm727, %v3273, 0
      %v3280 = vsel %vm731, %v3275, 0
      %3282 = vmatpush.bf16.msra.mxu0 0
      %3283 = vmatpush.bf16.msra.mxu0 0
      %3284 = vmatpush.bf16.msra.mxu0 0
      %3285 = vmatpush.bf16.msra.mxu0 0
      %3286 = vmatpush.bf16.msra.mxu0 0
      %3287 = vmatpush.bf16.msra.mxu0 0
      %3288 = vmatpush.bf16.msra.mxu0 0
      %3289 = vmatpush.bf16.msra.mxu0 %v3280
      %3290 = vmatmul.bf16.gmra.mxu0 %v3277
      %v3291 = vpop.f32.mrf.mxu0
      %v3292 = vadd.f32 0.0, %v3291
      %v3293 = vpop.f32.mrf.mxu0
      %3294 = vdwg.mxu0
      %v3295 = vadd.f32 %v3270, %v3292
      %v3296 = vld [vmem:[%s1541] sm:$0xf]
      %3297 = vrot.lane.b32.xlu0 %v3230, 96
      %v3298 = vpop.permute.xlu0 %3297
      %v3300 = vsel %vm727, %v3296, 0
      %v3303 = vsel %vm731, %v3298, 0
      %3305 = vmatpush.bf16.msra.mxu0 0
      %3306 = vmatpush.bf16.msra.mxu0 0
      %3307 = vmatpush.bf16.msra.mxu0 0
      %3308 = vmatpush.bf16.msra.mxu0 0
      %3309 = vmatpush.bf16.msra.mxu0 0
      %3310 = vmatpush.bf16.msra.mxu0 0
      %3311 = vmatpush.bf16.msra.mxu0 0
      %3312 = vmatpush.bf16.msra.mxu0 %v3303
      %3313 = vmatmul.bf16.gmra.mxu0 %v3300
      %v3314 = vpop.f32.mrf.mxu0
      %v3315 = vadd.f32 0.0, %v3314
      %v3316 = vpop.f32.mrf.mxu0
      %3317 = vdwg.mxu0
      %v3318 = vadd.f32 %v3295, %v3315
      %v3319 = vld [vmem:[%s1565] sm:$0xf]
      %3320 = vrot.lane.b32.xlu0 %v3230, 95
      %v3321 = vpop.permute.xlu0 %3320
      %v3323 = vsel %vm727, %v3319, 0
      %v3326 = vsel %vm731, %v3321, 0
      %3328 = vmatpush.bf16.msra.mxu0 0
      %3329 = vmatpush.bf16.msra.mxu0 0
      %3330 = vmatpush.bf16.msra.mxu0 0
      %3331 = vmatpush.bf16.msra.mxu0 0
      %3332 = vmatpush.bf16.msra.mxu0 0
      %3333 = vmatpush.bf16.msra.mxu0 0
      %3334 = vmatpush.bf16.msra.mxu0 0
      %3335 = vmatpush.bf16.msra.mxu0 %v3326
      %3336 = vmatmul.bf16.gmra.mxu0 %v3323
      %v3337 = vpop.f32.mrf.mxu0
      %v3338 = vadd.f32 0.0, %v3337
      %v3339 = vpop.f32.mrf.mxu0
      %3340 = vdwg.mxu0
      %v3341 = vadd.f32 %v3318, %v3338
      %v3342 = vld [vmem:[%s1589] sm:$0xf]
      %3343 = vrot.lane.b32.xlu0 %v3230, 94
      %v3344 = vpop.permute.xlu0 %3343
      %v3346 = vsel %vm727, %v3342, 0
      %v3349 = vsel %vm731, %v3344, 0
      %3351 = vmatpush.bf16.msra.mxu0 0
      %3352 = vmatpush.bf16.msra.mxu0 0
      %3353 = vmatpush.bf16.msra.mxu0 0
      %3354 = vmatpush.bf16.msra.mxu0 0
      %3355 = vmatpush.bf16.msra.mxu0 0
      %3356 = vmatpush.bf16.msra.mxu0 0
      %3357 = vmatpush.bf16.msra.mxu0 0
      %3358 = vmatpush.bf16.msra.mxu0 %v3349
      %3359 = vmatmul.bf16.gmra.mxu0 %v3346
      %v3360 = vpop.f32.mrf.mxu0
      %v3361 = vadd.f32 0.0, %v3360
      %v3362 = vpop.f32.mrf.mxu0
      %3363 = vdwg.mxu0
      %v3364 = vadd.f32 %v3341, %v3361
      %v3365 = vld [vmem:[%s1613] sm:$0xf]
      %3366 = vrot.lane.b32.xlu0 %v3230, 78
      %v3367 = vpop.permute.xlu0 %3366
      %v3369 = vsel %vm727, %v3365, 0
      %v3372 = vsel %vm731, %v3367, 0
      %3374 = vmatpush.bf16.msra.mxu0 0
      %3375 = vmatpush.bf16.msra.mxu0 0
      %3376 = vmatpush.bf16.msra.mxu0 0
      %3377 = vmatpush.bf16.msra.mxu0 0
      %3378 = vmatpush.bf16.msra.mxu0 0
      %3379 = vmatpush.bf16.msra.mxu0 0
      %3380 = vmatpush.bf16.msra.mxu0 0
      %3381 = vmatpush.bf16.msra.mxu0 %v3372
      %3382 = vmatmul.bf16.gmra.mxu0 %v3369
      %v3383 = vpop.f32.mrf.mxu0
      %v3384 = vadd.f32 0.0, %v3383
      %v3385 = vpop.f32.mrf.mxu0
      %3386 = vdwg.mxu0
      %v3387 = vadd.f32 %v3364, %v3384
      %v3388 = vld [vmem:[%s1637] sm:$0xf]
      %3389 = vrot.lane.b32.xlu0 %v3230, 77
      %v3390 = vpop.permute.xlu0 %3389
      %v3392 = vsel %vm727, %v3388, 0
      %v3395 = vsel %vm731, %v3390, 0
      %3397 = vmatpush.bf16.msra.mxu0 0
      %3398 = vmatpush.bf16.msra.mxu0 0
      %3399 = vmatpush.bf16.msra.mxu0 0
      %3400 = vmatpush.bf16.msra.mxu0 0
      %3401 = vmatpush.bf16.msra.mxu0 0
      %3402 = vmatpush.bf16.msra.mxu0 0
      %3403 = vmatpush.bf16.msra.mxu0 0
      %3404 = vmatpush.bf16.msra.mxu0 %v3395
      %3405 = vmatmul.bf16.gmra.mxu0 %v3392
      %v3406 = vpop.f32.mrf.mxu0
      %v3407 = vadd.f32 0.0, %v3406
      %v3408 = vpop.f32.mrf.mxu0
      %3409 = vdwg.mxu0
      %v3410 = vadd.f32 %v3387, %v3407
      %v3411 = vld [vmem:[%s1661] sm:$0xf]
      %3412 = vrot.lane.b32.xlu0 %v3230, 76
      %v3413 = vpop.permute.xlu0 %3412
      %v3415 = vsel %vm727, %v3411, 0
      %v3418 = vsel %vm731, %v3413, 0
      %3420 = vmatpush.bf16.msra.mxu0 0
      %3421 = vmatpush.bf16.msra.mxu0 0
      %3422 = vmatpush.bf16.msra.mxu0 0
      %3423 = vmatpush.bf16.msra.mxu0 0
      %3424 = vmatpush.bf16.msra.mxu0 0
      %3425 = vmatpush.bf16.msra.mxu0 0
      %3426 = vmatpush.bf16.msra.mxu0 0
      %3427 = vmatpush.bf16.msra.mxu0 %v3418
      %3428 = vmatmul.bf16.gmra.mxu0 %v3415
      %v3429 = vpop.f32.mrf.mxu0
      %v3430 = vadd.f32 0.0, %v3429
      %v3431 = vpop.f32.mrf.mxu0
      %3432 = vdwg.mxu0
      %v3433 = vadd.f32 %v3410, %v3430
      %v3434 = vld [vmem:[%s10] sm:$0xff]
      %v3435 = vld [vmem:[%s10 + $0x8] sm:$0xff]
      %v3436 = vld [vmem:[%s10 + $0x10] sm:$0x3]
      %v3438 = vsel %vm1688, %v3433, 0
      %v3441 = vsel %vm1692, %v3436, 0
      %3443 = vmatpush.msra.mxu0 0.0
      %3444 = vmatpush.msra.mxu0 0.0
      %3445 = vmatpush.msra.mxu0 0.0
      %3446 = vmatpush.msra.mxu0 0.0
      %3447 = vmatpush.msra.mxu0 0.0
      %3448 = vmatpush.msra.mxu0 0.0
      %3449 = vmatpush.msra.mxu0 0.0
      %3450 = vmatpush.msra.mxu0 0.0
      %3451 = vmatpush.msra.mxu0 0.0
      %3452 = vmatpush.msra.mxu0 0.0
      %3453 = vmatpush.msra.mxu0 0.0
      %3454 = vmatpush.msra.mxu0 0.0
      %3455 = vmatpush.msra.mxu0 0.0
      %3456 = vmatpush.msra.mxu0 %v3441
      %3457 = vmatpush.msra.mxu0 %v3435
      %3458 = vmatpush.msra.mxu0 %v3434
      %3459 = vmatmul.f32.gmra.mxu0 %v3438
      %v3460 = vpop.f32.mrf.mxu0
      %v3461 = vadd.f32 0.0, %v3460
      %3462 = vdwg.mxu0
      %3464 = vrot.lane.b32.xlu0 %v3461, 56
      %v3465 = vpop.permute.xlu0 %3464
      %vm3467 = vcmask 523712
      %3468 = vst.msk [vmem:[#allocation5] sm:$0xff] %vm3467, %v3465
      %v3469 = vld [vmem:[#allocation5] sm:$0xff]
      %vm3470 = vcmask 523264
      %v3471 = vsel %vm3470, %v3469, 0.0
      %3472 = vadd.xlane.f32.xlu0 %v3471
      %v3473 = vpop.xlane.xlu0 %3472
      %v3474 = vmul.f32 %v3469, %v3469
      %v3475 = vsel %vm3470, %v3474, 0.0
      %3476 = vadd.xlane.f32.xlu0 %v3475
      %v3477 = vpop.xlane.xlu0 %3476
      %v3478 = vmul.f32 %v1465, 64.0
      %v3479 = vadd.f32 %v3473, %v3478
      %v3480 = vmul.f32 %v1465, 2.0
      %v3481 = vmul.f32 %v3480, %v3473
      %v3482 = vadd.f32 %v3477, %v3481
      %v3483 = vmul.f32 %v3478, %v1465
      %v3484 = vadd.f32 %v3482, %v3483
      %v3485 = vmul.f32 %v3479, %v700
      %v3486 = vsel %vm1320, %v3485, 0.0
      %3487 = vadd.xlane.f32.xlu0 %v3486
      %v3488 = vpop.xlane.xlu0 %3487
      %v3489 = vrot.slane %v3488, 4
      %v3490 = vadd.f32 %v3488, %v3489
      %v3491 = vrot.slane %v3490, 2
      %v3492 = vadd.f32 %v3490, %v3491
      %v3493 = vrot.slane %v3492, 1
      %v3494 = vadd.f32 %v3492, %v3493
      %s3495 = vtos %v3494
      %v3496 = vstv %s3495
      %v3497 = vmul.f32 %v3479, %v701
      %v3498 = vsel %vm1320, %v3497, 0.0
      %3499 = vadd.xlane.f32.xlu0 %v3498
      %v3500 = vpop.xlane.xlu0 %3499
      %v3501 = vrot.slane %v3500, 4
      %v3502 = vadd.f32 %v3500, %v3501
      %v3503 = vrot.slane %v3502, 2
      %v3504 = vadd.f32 %v3502, %v3503
      %v3505 = vrot.slane %v3504, 1
      %v3506 = vadd.f32 %v3504, %v3505
      %s3507 = vtos %v3506
      %v3508 = vstv %s3507
      %v3509 = vmul.f32 %v3484, %v700
      %v3510 = vsel %vm1320, %v3509, 0.0
      %3511 = vadd.xlane.f32.xlu0 %v3510
      %v3512 = vpop.xlane.xlu0 %3511
      %v3513 = vrot.slane %v3512, 4
      %v3514 = vadd.f32 %v3512, %v3513
      %v3515 = vrot.slane %v3514, 2
      %v3516 = vadd.f32 %v3514, %v3515
      %v3517 = vrot.slane %v3516, 1
      %v3518 = vadd.f32 %v3516, %v3517
      %s3519 = vtos %v3518
      %v3520 = vstv %s3519
      %v3521 = vmul.f32 %v3484, %v701
      %v3522 = vsel %vm1320, %v3521, 0.0
      %3523 = vadd.xlane.f32.xlu0 %v3522
      %v3524 = vpop.xlane.xlu0 %3523
      %v3525 = vrot.slane %v3524, 4
      %v3526 = vadd.f32 %v3524, %v3525
      %v3527 = vrot.slane %v3526, 2
      %v3528 = vadd.f32 %v3526, %v3527
      %v3529 = vrot.slane %v3528, 1
      %v3530 = vadd.f32 %v3528, %v3529
      %s3531 = vtos %v3530
      %v3532 = vstv %s3531
      %v3533 = vmul.f32 %v3496, 0.00390625
      %v3534 = vmul.f32 %v3508, 0.00390625
      %v3535 = vmul.f32 %v3520, 0.00390625
      %v3536 = vmul.f32 %v3533, %v3533
      %v3537 = vsub.f32 %v3535, %v3536
      %v3538 = vmax.f32 %v3537, 0.0
      %v3539 = vmul.f32 %v3532, 0.00390625
      %v3540 = vmul.f32 %v3534, %v3534
      %v3541 = vsub.f32 %v3539, %v3540
      %v3542 = vmax.f32 %v3541, 0.0
      %v3543 = vadd.f32 %v3538, 1e-05
      %v3544 = vrsqrt.pop %v3543
      %v3545 = vmul.f32 %v3544, %v3543
      %v3546 = vmul.f32 %v3545, %v3544
      %v3547 = vmul.f32 0.5, %v3546
      %v3548 = vsub.f32 1.5, %v3547
      %v3549 = vmul.f32 %v3544, %v3548
      %vm3550 = vweird.f32 %v3543
      %vm3551 = vweird.f32 %v3544
      %vm3552 = vmor %vm3550, %vm3551
      %v3553 = vsel %vm3552, %v3544, %v3549
      %v3554 = vadd.f32 %v3542, 1e-05
      %v3555 = vrsqrt.pop %v3554
      %v3556 = vmul.f32 %v3555, %v3554
      %v3557 = vmul.f32 %v3556, %v3555
      %v3558 = vmul.f32 0.5, %v3557
      %v3559 = vsub.f32 1.5, %v3558
      %v3560 = vmul.f32 %v3555, %v3559
      %vm3561 = vweird.f32 %v3554
      %vm3562 = vweird.f32 %v3555
      %vm3563 = vmor %vm3561, %vm3562
      %v3564 = vsel %vm3563, %v3555, %v3560
      %v3565 = vmul.f32 %v700, %v3533
      %v3566 = vmul.f32 %v701, %v3534
      %v3567 = vadd.f32 %v3565, %v3566
      %v3568 = vmul.f32 %v700, %v3553
      %v3569 = vmul.f32 %v701, %v3564
      %v3570 = vadd.f32 %v3568, %v3569
      %v3571 = vmul.f32 %v3570, %v1466
      %v3572 = vsub.f32 %v1465, %v3567
      %v3573 = vmul.f32 %v3572, %v3571
      %v3574 = vadd.f32 %v3573, %v1467
      %3576 = vset.pattern.permute.xlu0 0
      %3577 = vperm.xlu0 %3576, %v3571
      %v3578 = vpop.permute.xlu0 %3577
      %v3580 = vmul.f32 %v3469, %v3578
      %3582 = vset.pattern.permute.xlu0 0
      %3583 = vperm.xlu0 %3582, %v3574
      %v3584 = vpop.permute.xlu0 %3583
      %v3586 = vadd.f32 %v3580, %v3584
      %vm3587 = vcmp.gt.f32.partialorder %v3586, 0.0
      %v3588 = vmul.f32 %v3586, 0.2
      %v3589 = vsel %vm3587, %v3586, %v3588
      %vm3590 = vcmask 994304
      %3591 = vst.msk [vmem:[#allocation3] sm:$0xf] %vm3590, 0
      %v3592 = vpack.c.bf16 %v3589, %v3589
      %3594 = vrot.lane.b32.xlu0 %v3592, 22
      %v3595 = vpop.permute.xlu0 %3594
      %vm3597 = vcmask 240816
      %3598 = vst.msk [vmem:[#allocation3] sm:$0xf] %vm3597, %v3595
      %3599 = vrot.lane.b32.xlu0 %v3592, 24
      %v3600 = vpop.permute.xlu0 %3599
      %vm3602 = vcmask 322816
      %3603 = vst.msk [vmem:[#allocation3] sm:$0xf] %vm3602, %v3600
      %3604 = vrot.lane.b32.xlu0 %v3592, 26
      %v3605 = vpop.permute.xlu0 %3604
      %vm3607 = vcmask 404816
      %3608 = vst.msk [vmem:[#allocation3] sm:$0xf] %vm3607, %v3605
      %3609 = vrot.lane.b32.xlu0 %v3592, 28
      %v3610 = vpop.permute.xlu0 %3609
      %vm3612 = vcmask 486816
      %3613 = vst.msk [vmem:[#allocation3] sm:$0xf] %vm3612, %v3610
      %3614 = vrot.lane.b32.xlu0 %v3592, 30
      %v3615 = vpop.permute.xlu0 %3614
      %vm3617 = vcmask 568816
      %3618 = vst.msk [vmem:[#allocation3] sm:$0xf] %vm3617, %v3615
      %3619 = vrot.lane.b32.xlu0 %v3592, 32
      %v3620 = vpop.permute.xlu0 %3619
      %vm3622 = vcmask 650816
      %3623 = vst.msk [vmem:[#allocation3] sm:$0xf] %vm3622, %v3620
      %3624 = vrot.lane.b32.xlu0 %v3592, 34
      %v3625 = vpop.permute.xlu0 %3624
      %vm3627 = vcmask 732816
      %3628 = vst.msk [vmem:[#allocation3] sm:$0xf] %vm3627, %v3625
      %3629 = vrot.lane.b32.xlu0 %v3592, 36
      %v3630 = vpop.permute.xlu0 %3629
      %vm3632 = vcmask 814816
      %3633 = vst.msk [vmem:[#allocation3] sm:$0xf] %vm3632, %v3630
      %v3634 = vld [vmem:[%s12] sm:$0xff]
      %v3635 = vld [vmem:[%s13] sm:$0xff]
      %v3636 = vld [vmem:[%s14] sm:$0xff]
      %v3637 = vld [vmem:[%s11] sm:$0xf]
      %v3638 = vld [vmem:[#allocation3] sm:$0xf]
      %s3639 = scalar_lea.vmem %s11, 4
      %v3640 = vld [vmem:[%s3639] sm:$0xf]
      %v3642 = vunpack.c.l.b16 %v3638
      %v3643 = vpack.c.b16 %v3642, %v3642
      %3644 = vrot.lane.b32.xlu0 %v3643, 127
      %v3645 = vpop.permute.xlu0 %3644
      %v3647 = vsel %vm727, %v3640, 0
      %v3650 = vsel %vm731, %v3645, 0
      %3652 = vmatpush.bf16.msra.mxu0 0
      %3653 = vmatpush.bf16.msra.mxu0 0
      %3654 = vmatpush.bf16.msra.mxu0 0
      %3655 = vmatpush.bf16.msra.mxu0 0
      %3656 = vmatpush.bf16.msra.mxu0 0
      %3657 = vmatpush.bf16.msra.mxu0 0
      %3658 = vmatpush.bf16.msra.mxu0 0
      %3659 = vmatpush.bf16.msra.mxu0 %v3650
      %3660 = vmatmul.bf16.gmra.mxu0 %v3647
      %v3661 = vpop.f32.mrf.mxu0
      %v3662 = vadd.f32 0.0, %v3661
      %v3663 = vpop.f32.mrf.mxu0
      %3664 = vdwg.mxu0
      %v3666 = vsel %vm727, %v3637, 0
      %v3669 = vsel %vm731, %v3638, 0
      %3671 = vmatpush.bf16.msra.mxu0 0
      %3672 = vmatpush.bf16.msra.mxu0 0
      %3673 = vmatpush.bf16.msra.mxu0 0
      %3674 = vmatpush.bf16.msra.mxu0 0
      %3675 = vmatpush.bf16.msra.mxu0 0
      %3676 = vmatpush.bf16.msra.mxu0 0
      %3677 = vmatpush.bf16.msra.mxu0 0
      %3678 = vmatpush.bf16.msra.mxu0 %v3669
      %3679 = vmatmul.bf16.gmra.mxu0 %v3666
      %v3680 = vpop.f32.mrf.mxu0
      %v3681 = vadd.f32 %v3662, %v3680
      %v3682 = vpop.f32.mrf.mxu0
      %3683 = vdwg.mxu0
      %s3684 = scalar_lea.vmem %s11, 8
      %v3685 = vld [vmem:[%s3684] sm:$0xf]
      %3686 = vrot.lane.b32.xlu0 %v3643, 126
      %v3687 = vpop.permute.xlu0 %3686
      %v3689 = vsel %vm727, %v3685, 0
      %v3692 = vsel %vm731, %v3687, 0
      %3694 = vmatpush.bf16.msra.mxu0 0
      %3695 = vmatpush.bf16.msra.mxu0 0
      %3696 = vmatpush.bf16.msra.mxu0 0
      %3697 = vmatpush.bf16.msra.mxu0 0
      %3698 = vmatpush.bf16.msra.mxu0 0
      %3699 = vmatpush.bf16.msra.mxu0 0
      %3700 = vmatpush.bf16.msra.mxu0 0
      %3701 = vmatpush.bf16.msra.mxu0 %v3692
      %3702 = vmatmul.bf16.gmra.mxu0 %v3689
      %v3703 = vpop.f32.mrf.mxu0
      %v3704 = vadd.f32 0.0, %v3703
      %v3705 = vpop.f32.mrf.mxu0
      %3706 = vdwg.mxu0
      %v3707 = vadd.f32 %v3681, %v3704
      %s3708 = scalar_lea.vmem %s11, 12
      %v3709 = vld [vmem:[%s3708] sm:$0xf]
      %3710 = vrot.lane.b32.xlu0 %v3643, 118
      %v3711 = vpop.permute.xlu0 %3710
      %v3713 = vsel %vm727, %v3709, 0
      %v3716 = vsel %vm731, %v3711, 0
      %3718 = vmatpush.bf16.msra.mxu0 0
      %3719 = vmatpush.bf16.msra.mxu0 0
      %3720 = vmatpush.bf16.msra.mxu0 0
      %3721 = vmatpush.bf16.msra.mxu0 0
      %3722 = vmatpush.bf16.msra.mxu0 0
      %3723 = vmatpush.bf16.msra.mxu0 0
      %3724 = vmatpush.bf16.msra.mxu0 0
      %3725 = vmatpush.bf16.msra.mxu0 %v3716
      %3726 = vmatmul.bf16.gmra.mxu0 %v3713
      %v3727 = vpop.f32.mrf.mxu0
      %v3728 = vadd.f32 0.0, %v3727
      %v3729 = vpop.f32.mrf.mxu0
      %3730 = vdwg.mxu0
      %v3731 = vadd.f32 %v3707, %v3728
      %s3732 = scalar_lea.vmem %s11, 16
      %v3733 = vld [vmem:[%s3732] sm:$0xf]
      %3734 = vrot.lane.b32.xlu0 %v3643, 117
      %v3735 = vpop.permute.xlu0 %3734
      %v3737 = vsel %vm727, %v3733, 0
      %v3740 = vsel %vm731, %v3735, 0
      %3742 = vmatpush.bf16.msra.mxu0 0
      %3743 = vmatpush.bf16.msra.mxu0 0
      %3744 = vmatpush.bf16.msra.mxu0 0
      %3745 = vmatpush.bf16.msra.mxu0 0
      %3746 = vmatpush.bf16.msra.mxu0 0
      %3747 = vmatpush.bf16.msra.mxu0 0
      %3748 = vmatpush.bf16.msra.mxu0 0
      %3749 = vmatpush.bf16.msra.mxu0 %v3740
      %3750 = vmatmul.bf16.gmra.mxu0 %v3737
      %v3751 = vpop.f32.mrf.mxu0
      %v3752 = vadd.f32 0.0, %v3751
      %v3753 = vpop.f32.mrf.mxu0
      %3754 = vdwg.mxu0
      %v3755 = vadd.f32 %v3731, %v3752
      %s3756 = scalar_lea.vmem %s11, 20
      %v3757 = vld [vmem:[%s3756] sm:$0xf]
      %3758 = vrot.lane.b32.xlu0 %v3643, 116
      %v3759 = vpop.permute.xlu0 %3758
      %v3761 = vsel %vm727, %v3757, 0
      %v3764 = vsel %vm731, %v3759, 0
      %3766 = vmatpush.bf16.msra.mxu0 0
      %3767 = vmatpush.bf16.msra.mxu0 0
      %3768 = vmatpush.bf16.msra.mxu0 0
      %3769 = vmatpush.bf16.msra.mxu0 0
      %3770 = vmatpush.bf16.msra.mxu0 0
      %3771 = vmatpush.bf16.msra.mxu0 0
      %3772 = vmatpush.bf16.msra.mxu0 0
      %3773 = vmatpush.bf16.msra.mxu0 %v3764
      %3774 = vmatmul.bf16.gmra.mxu0 %v3761
      %v3775 = vpop.f32.mrf.mxu0
      %v3776 = vadd.f32 0.0, %v3775
      %v3777 = vpop.f32.mrf.mxu0
      %3778 = vdwg.mxu0
      %v3779 = vadd.f32 %v3755, %v3776
      %s3780 = scalar_lea.vmem %s11, 24
      %v3781 = vld [vmem:[%s3780] sm:$0xf]
      %3782 = vrot.lane.b32.xlu0 %v3643, 108
      %v3783 = vpop.permute.xlu0 %3782
      %v3785 = vsel %vm727, %v3781, 0
      %v3788 = vsel %vm731, %v3783, 0
      %3790 = vmatpush.bf16.msra.mxu0 0
      %3791 = vmatpush.bf16.msra.mxu0 0
      %3792 = vmatpush.bf16.msra.mxu0 0
      %3793 = vmatpush.bf16.msra.mxu0 0
      %3794 = vmatpush.bf16.msra.mxu0 0
      %3795 = vmatpush.bf16.msra.mxu0 0
      %3796 = vmatpush.bf16.msra.mxu0 0
      %3797 = vmatpush.bf16.msra.mxu0 %v3788
      %3798 = vmatmul.bf16.gmra.mxu0 %v3785
      %v3799 = vpop.f32.mrf.mxu0
      %v3800 = vadd.f32 0.0, %v3799
      %v3801 = vpop.f32.mrf.mxu0
      %3802 = vdwg.mxu0
      %v3803 = vadd.f32 %v3779, %v3800
      %s3804 = scalar_lea.vmem %s11, 28
      %v3805 = vld [vmem:[%s3804] sm:$0xf]
      %3806 = vrot.lane.b32.xlu0 %v3643, 107
      %v3807 = vpop.permute.xlu0 %3806
      %v3809 = vsel %vm727, %v3805, 0
      %v3812 = vsel %vm731, %v3807, 0
      %3814 = vmatpush.bf16.msra.mxu0 0
      %3815 = vmatpush.bf16.msra.mxu0 0
      %3816 = vmatpush.bf16.msra.mxu0 0
      %3817 = vmatpush.bf16.msra.mxu0 0
      %3818 = vmatpush.bf16.msra.mxu0 0
      %3819 = vmatpush.bf16.msra.mxu0 0
      %3820 = vmatpush.bf16.msra.mxu0 0
      %3821 = vmatpush.bf16.msra.mxu0 %v3812
      %3822 = vmatmul.bf16.gmra.mxu0 %v3809
      %v3823 = vpop.f32.mrf.mxu0
      %v3824 = vadd.f32 0.0, %v3823
      %v3825 = vpop.f32.mrf.mxu0
      %3826 = vdwg.mxu0
      %v3827 = vadd.f32 %v3803, %v3824
      %s3828 = scalar_lea.vmem %s11, 32
      %v3829 = vld [vmem:[%s3828] sm:$0xf]
      %3830 = vrot.lane.b32.xlu0 %v3643, 106
      %v3831 = vpop.permute.xlu0 %3830
      %v3833 = vsel %vm727, %v3829, 0
      %v3836 = vsel %vm731, %v3831, 0
      %3838 = vmatpush.bf16.msra.mxu0 0
      %3839 = vmatpush.bf16.msra.mxu0 0
      %3840 = vmatpush.bf16.msra.mxu0 0
      %3841 = vmatpush.bf16.msra.mxu0 0
      %3842 = vmatpush.bf16.msra.mxu0 0
      %3843 = vmatpush.bf16.msra.mxu0 0
      %3844 = vmatpush.bf16.msra.mxu0 0
      %3845 = vmatpush.bf16.msra.mxu0 %v3836
      %3846 = vmatmul.bf16.gmra.mxu0 %v3833
      %v3847 = vpop.f32.mrf.mxu0
      %v3848 = vadd.f32 0.0, %v3847
      %v3849 = vpop.f32.mrf.mxu0
      %3850 = vdwg.mxu0
      %v3851 = vadd.f32 %v3827, %v3848
      %v3852 = vld [vmem:[%s15] sm:$0x1]
      %vm3853 = vcmp.gt.f32.partialorder %v3852, 0.5
      %v3854 = vsel %vm3853, 1, 0
      %v3855 = vperm.slane %v3854, 0
      %vm3856 = vcmp.eq.s32.totalorder %v3855, 1
      %v3857 = vsel %vm3856, %v3851, 0.0
      %vm3858 = vcmask 818176
      %v3859 = vsel %vm3858, %v3857, 0.0
      %3860 = vadd.xlane.f32.xlu0 %v3859
      %v3861 = vpop.xlane.xlu0 %3860
      %v3862 = vmul.f32 %v3857, %v3857
      %v3863 = vsel %vm3858, %v3862, 0.0
      %3864 = vadd.xlane.f32.xlu0 %v3863
      %v3865 = vpop.xlane.xlu0 %3864
      %v3866 = vmul.f32 %v3634, 64.0
      %v3867 = vadd.f32 %v3861, %v3866
      %v3868 = vmul.f32 %v3634, 2.0
      %v3869 = vmul.f32 %v3868, %v3861
      %v3870 = vadd.f32 %v3865, %v3869
      %v3871 = vmul.f32 %v3866, %v3634
      %v3872 = vadd.f32 %v3870, %v3871
      %v3873 = vmul.f32 %v3867, %v700
      %v3874 = vsel %vm1320, %v3873, 0.0
      %3875 = vadd.xlane.f32.xlu0 %v3874
      %v3876 = vpop.xlane.xlu0 %3875
      %v3877 = vrot.slane %v3876, 4
      %v3878 = vadd.f32 %v3876, %v3877
      %v3879 = vrot.slane %v3878, 2
      %v3880 = vadd.f32 %v3878, %v3879
      %v3881 = vrot.slane %v3880, 1
      %v3882 = vadd.f32 %v3880, %v3881
      %s3883 = vtos %v3882
      %v3884 = vstv %s3883
      %v3885 = vmul.f32 %v3867, %v701
      %v3886 = vsel %vm1320, %v3885, 0.0
      %3887 = vadd.xlane.f32.xlu0 %v3886
      %v3888 = vpop.xlane.xlu0 %3887
      %v3889 = vrot.slane %v3888, 4
      %v3890 = vadd.f32 %v3888, %v3889
      %v3891 = vrot.slane %v3890, 2
      %v3892 = vadd.f32 %v3890, %v3891
      %v3893 = vrot.slane %v3892, 1
      %v3894 = vadd.f32 %v3892, %v3893
      %s3895 = vtos %v3894
      %v3896 = vstv %s3895
      %v3897 = vmul.f32 %v3872, %v700
      %v3898 = vsel %vm1320, %v3897, 0.0
      %3899 = vadd.xlane.f32.xlu0 %v3898
      %v3900 = vpop.xlane.xlu0 %3899
      %v3901 = vrot.slane %v3900, 4
      %v3902 = vadd.f32 %v3900, %v3901
      %v3903 = vrot.slane %v3902, 2
      %v3904 = vadd.f32 %v3902, %v3903
      %v3905 = vrot.slane %v3904, 1
      %v3906 = vadd.f32 %v3904, %v3905
      %s3907 = vtos %v3906
      %v3908 = vstv %s3907
      %v3909 = vmul.f32 %v3872, %v701
      %v3910 = vsel %vm1320, %v3909, 0.0
      %3911 = vadd.xlane.f32.xlu0 %v3910
      %v3912 = vpop.xlane.xlu0 %3911
      %v3913 = vrot.slane %v3912, 4
      %v3914 = vadd.f32 %v3912, %v3913
      %v3915 = vrot.slane %v3914, 2
      %v3916 = vadd.f32 %v3914, %v3915
      %v3917 = vrot.slane %v3916, 1
      %v3918 = vadd.f32 %v3916, %v3917
      %s3919 = vtos %v3918
      %v3920 = vstv %s3919
      %v3921 = vmul.f32 %v3884, 0.00390625
      %v3922 = vmul.f32 %v3896, 0.00390625
      %v3923 = vmul.f32 %v3908, 0.00390625
      %v3924 = vmul.f32 %v3921, %v3921
      %v3925 = vsub.f32 %v3923, %v3924
      %v3926 = vmax.f32 %v3925, 0.0
      %v3927 = vmul.f32 %v3920, 0.00390625
      %v3928 = vmul.f32 %v3922, %v3922
      %v3929 = vsub.f32 %v3927, %v3928
      %v3930 = vmax.f32 %v3929, 0.0
      %v3931 = vadd.f32 %v3926, 1e-05
      %v3932 = vrsqrt.pop %v3931
      %v3933 = vmul.f32 %v3932, %v3931
      %v3934 = vmul.f32 %v3933, %v3932
      %v3935 = vmul.f32 0.5, %v3934
      %v3936 = vsub.f32 1.5, %v3935
      %v3937 = vmul.f32 %v3932, %v3936
      %vm3938 = vweird.f32 %v3931
      %vm3939 = vweird.f32 %v3932
      %vm3940 = vmor %vm3938, %vm3939
      %v3941 = vsel %vm3940, %v3932, %v3937
      %v3942 = vadd.f32 %v3930, 1e-05
      %v3943 = vrsqrt.pop %v3942
      %v3944 = vmul.f32 %v3943, %v3942
      %v3945 = vmul.f32 %v3944, %v3943
      %v3946 = vmul.f32 0.5, %v3945
      %v3947 = vsub.f32 1.5, %v3946
      %v3948 = vmul.f32 %v3943, %v3947
      %vm3949 = vweird.f32 %v3942
      %vm3950 = vweird.f32 %v3943
      %vm3951 = vmor %vm3949, %vm3950
      %v3952 = vsel %vm3951, %v3943, %v3948
      %v3953 = vmul.f32 %v700, %v3921
      %v3954 = vmul.f32 %v701, %v3922
      %v3955 = vadd.f32 %v3953, %v3954
      %v3956 = vmul.f32 %v700, %v3941
      %v3957 = vmul.f32 %v701, %v3952
      %v3958 = vadd.f32 %v3956, %v3957
      %v3959 = vmul.f32 %v3958, %v3635
      %v3960 = vsub.f32 %v3634, %v3955
      %v3961 = vmul.f32 %v3960, %v3959
      %v3962 = vadd.f32 %v3961, %v3636
      %3964 = vset.pattern.permute.xlu0 0
      %3965 = vperm.xlu0 %3964, %v3959
      %v3966 = vpop.permute.xlu0 %3965
      %v3968 = vmul.f32 %v3851, %v3966
      %3970 = vset.pattern.permute.xlu0 0
      %3971 = vperm.xlu0 %3970, %v3962
      %v3972 = vpop.permute.xlu0 %3971
      %v3974 = vadd.f32 %v3968, %v3972
      %vm3975 = vcmp.gt.f32.partialorder %v3974, 0.0
      %v3976 = vmul.f32 %v3974, 0.2
      %v3977 = vsel %vm3975, %v3974, %v3976
      %v3978 = vsel %vm3856, %v3977, 0.0
      %vm3979 = vcmask 84992
      %3980 = vst.msk [vmem:[#allocation4] sm:$0xf] %vm3979, 0
      %vm3981 = vcmask 995192
      %3982 = vst.msk [vmem:[#allocation4] sm:$0xf] %vm3981, 0
      %v3983 = vpack.c.bf16 %v3978, %v3978
      %3985 = vrot.lane.b32.xlu0 %v3983, 11
      %v3986 = vpop.permute.xlu0 %3985
      %vm3988 = vcmask 904280
      %3989 = vst.msk [vmem:[#allocation4] sm:$0xf] %vm3988, %v3986
      %v3990 = vld [vmem:[%s17] sm:$0xff]
      %v3991 = vld [vmem:[%s18] sm:$0xff]
      %v3992 = vld [vmem:[%s19] sm:$0xff]
      %v3993 = vld [vmem:[%s16] sm:$0xf]
      %v3994 = vld [vmem:[#allocation4] sm:$0xf]
      %s3995 = scalar_lea.vmem %s16, 4
      %v3996 = vld [vmem:[%s3995] sm:$0xf]
      %v3998 = vunpack.c.l.b16 %v3994
      %v3999 = vpack.c.b16 %v3998, %v3998
      %4000 = vrot.lane.b32.xlu0 %v3999, 117
      %v4001 = vpop.permute.xlu0 %4000
      %v4003 = vsel %vm727, %v3996, 0
      %v4006 = vsel %vm731, %v4001, 0
      %4008 = vmatpush.bf16.msra.mxu0 0
      %4009 = vmatpush.bf16.msra.mxu0 0
      %4010 = vmatpush.bf16.msra.mxu0 0
      %4011 = vmatpush.bf16.msra.mxu0 0
      %4012 = vmatpush.bf16.msra.mxu0 0
      %4013 = vmatpush.bf16.msra.mxu0 0
      %4014 = vmatpush.bf16.msra.mxu0 0
      %4015 = vmatpush.bf16.msra.mxu0 %v4006
      %4016 = vmatmul.bf16.gmra.mxu0 %v4003
      %v4017 = vpop.f32.mrf.mxu0
      %v4018 = vadd.f32 0.0, %v4017
      %v4019 = vpop.f32.mrf.mxu0
      %4020 = vdwg.mxu0
      %4021 = vrot.lane.b32.xlu0 %v3999, 118
      %v4022 = vpop.permute.xlu0 %4021
      %v4024 = vsel %vm727, %v3993, 0
      %v4027 = vsel %vm731, %v4022, 0
      %4029 = vmatpush.bf16.msra.mxu0 0
      %4030 = vmatpush.bf16.msra.mxu0 0
      %4031 = vmatpush.bf16.msra.mxu0 0
      %4032 = vmatpush.bf16.msra.mxu0 0
      %4033 = vmatpush.bf16.msra.mxu0 0
      %4034 = vmatpush.bf16.msra.mxu0 0
      %4035 = vmatpush.bf16.msra.mxu0 0
      %4036 = vmatpush.bf16.msra.mxu0 %v4027
      %4037 = vmatmul.bf16.gmra.mxu0 %v4024
      %v4038 = vpop.f32.mrf.mxu0
      %v4039 = vadd.f32 %v4018, %v4038
      %v4040 = vpop.f32.mrf.mxu0
      %4041 = vdwg.mxu0
      %s4042 = scalar_lea.vmem %s16, 8
      %v4043 = vld [vmem:[%s4042] sm:$0xf]
      %4044 = vrot.lane.b32.xlu0 %v3999, 116
      %v4045 = vpop.permute.xlu0 %4044
      %v4047 = vsel %vm727, %v4043, 0
      %v4050 = vsel %vm731, %v4045, 0
      %4052 = vmatpush.bf16.msra.mxu0 0
      %4053 = vmatpush.bf16.msra.mxu0 0
      %4054 = vmatpush.bf16.msra.mxu0 0
      %4055 = vmatpush.bf16.msra.mxu0 0
      %4056 = vmatpush.bf16.msra.mxu0 0
      %4057 = vmatpush.bf16.msra.mxu0 0
      %4058 = vmatpush.bf16.msra.mxu0 0
      %4059 = vmatpush.bf16.msra.mxu0 %v4050
      %4060 = vmatmul.bf16.gmra.mxu0 %v4047
      %v4061 = vpop.f32.mrf.mxu0
      %v4062 = vadd.f32 0.0, %v4061
      %v4063 = vpop.f32.mrf.mxu0
      %4064 = vdwg.mxu0
      %v4065 = vadd.f32 %v4039, %v4062
      %s4066 = scalar_lea.vmem %s16, 12
      %v4067 = vld [vmem:[%s4066] sm:$0xf]
      %4068 = vrot.lane.b32.xlu0 %v3999, 108
      %v4069 = vpop.permute.xlu0 %4068
      %v4071 = vsel %vm727, %v4067, 0
      %v4074 = vsel %vm731, %v4069, 0
      %4076 = vmatpush.bf16.msra.mxu0 0
      %4077 = vmatpush.bf16.msra.mxu0 0
      %4078 = vmatpush.bf16.msra.mxu0 0
      %4079 = vmatpush.bf16.msra.mxu0 0
      %4080 = vmatpush.bf16.msra.mxu0 0
      %4081 = vmatpush.bf16.msra.mxu0 0
      %4082 = vmatpush.bf16.msra.mxu0 0
      %4083 = vmatpush.bf16.msra.mxu0 %v4074
      %4084 = vmatmul.bf16.gmra.mxu0 %v4071
      %v4085 = vpop.f32.mrf.mxu0
      %v4086 = vadd.f32 0.0, %v4085
      %v4087 = vpop.f32.mrf.mxu0
      %4088 = vdwg.mxu0
      %v4089 = vadd.f32 %v4065, %v4086
      %s4090 = scalar_lea.vmem %s16, 16
      %v4091 = vld [vmem:[%s4090] sm:$0xf]
      %4092 = vrot.lane.b32.xlu0 %v3999, 107
      %v4093 = vpop.permute.xlu0 %4092
      %v4095 = vsel %vm727, %v4091, 0
      %v4098 = vsel %vm731, %v4093, 0
      %4100 = vmatpush.bf16.msra.mxu0 0
      %4101 = vmatpush.bf16.msra.mxu0 0
      %4102 = vmatpush.bf16.msra.mxu0 0
      %4103 = vmatpush.bf16.msra.mxu0 0
      %4104 = vmatpush.bf16.msra.mxu0 0
      %4105 = vmatpush.bf16.msra.mxu0 0
      %4106 = vmatpush.bf16.msra.mxu0 0
      %4107 = vmatpush.bf16.msra.mxu0 %v4098
      %4108 = vmatmul.bf16.gmra.mxu0 %v4095
      %v4109 = vpop.f32.mrf.mxu0
      %v4110 = vadd.f32 0.0, %v4109
      %v4111 = vpop.f32.mrf.mxu0
      %4112 = vdwg.mxu0
      %v4113 = vadd.f32 %v4089, %v4110
      %s4114 = scalar_lea.vmem %s16, 20
      %v4115 = vld [vmem:[%s4114] sm:$0xf]
      %4116 = vrot.lane.b32.xlu0 %v3999, 106
      %v4117 = vpop.permute.xlu0 %4116
      %v4119 = vsel %vm727, %v4115, 0
      %v4122 = vsel %vm731, %v4117, 0
      %4124 = vmatpush.bf16.msra.mxu0 0
      %4125 = vmatpush.bf16.msra.mxu0 0
      %4126 = vmatpush.bf16.msra.mxu0 0
      %4127 = vmatpush.bf16.msra.mxu0 0
      %4128 = vmatpush.bf16.msra.mxu0 0
      %4129 = vmatpush.bf16.msra.mxu0 0
      %4130 = vmatpush.bf16.msra.mxu0 0
      %4131 = vmatpush.bf16.msra.mxu0 %v4122
      %4132 = vmatmul.bf16.gmra.mxu0 %v4119
      %v4133 = vpop.f32.mrf.mxu0
      %v4134 = vadd.f32 0.0, %v4133
      %v4135 = vpop.f32.mrf.mxu0
      %4136 = vdwg.mxu0
      %v4137 = vadd.f32 %v4113, %v4134
      %s4138 = scalar_lea.vmem %s16, 24
      %v4139 = vld [vmem:[%s4138] sm:$0xf]
      %4140 = vrot.lane.b32.xlu0 %v3999, 98
      %v4141 = vpop.permute.xlu0 %4140
      %v4143 = vsel %vm727, %v4139, 0
      %v4146 = vsel %vm731, %v4141, 0
      %4148 = vmatpush.bf16.msra.mxu0 0
      %4149 = vmatpush.bf16.msra.mxu0 0
      %4150 = vmatpush.bf16.msra.mxu0 0
      %4151 = vmatpush.bf16.msra.mxu0 0
      %4152 = vmatpush.bf16.msra.mxu0 0
      %4153 = vmatpush.bf16.msra.mxu0 0
      %4154 = vmatpush.bf16.msra.mxu0 0
      %4155 = vmatpush.bf16.msra.mxu0 %v4146
      %4156 = vmatmul.bf16.gmra.mxu0 %v4143
      %v4157 = vpop.f32.mrf.mxu0
      %v4158 = vadd.f32 0.0, %v4157
      %v4159 = vpop.f32.mrf.mxu0
      %4160 = vdwg.mxu0
      %v4161 = vadd.f32 %v4137, %v4158
      %s4162 = scalar_lea.vmem %s16, 28
      %v4163 = vld [vmem:[%s4162] sm:$0xf]
      %4164 = vrot.lane.b32.xlu0 %v3999, 97
      %v4165 = vpop.permute.xlu0 %4164
      %v4167 = vsel %vm727, %v4163, 0
      %v4170 = vsel %vm731, %v4165, 0
      %4172 = vmatpush.bf16.msra.mxu0 0
      %4173 = vmatpush.bf16.msra.mxu0 0
      %4174 = vmatpush.bf16.msra.mxu0 0
      %4175 = vmatpush.bf16.msra.mxu0 0
      %4176 = vmatpush.bf16.msra.mxu0 0
      %4177 = vmatpush.bf16.msra.mxu0 0
      %4178 = vmatpush.bf16.msra.mxu0 0
      %4179 = vmatpush.bf16.msra.mxu0 %v4170
      %4180 = vmatmul.bf16.gmra.mxu0 %v4167
      %v4181 = vpop.f32.mrf.mxu0
      %v4182 = vadd.f32 0.0, %v4181
      %v4183 = vpop.f32.mrf.mxu0
      %4184 = vdwg.mxu0
      %v4185 = vadd.f32 %v4161, %v4182
      %s4186 = scalar_lea.vmem %s16, 32
      %v4187 = vld [vmem:[%s4186] sm:$0xf]
      %4188 = vrot.lane.b32.xlu0 %v3999, 96
      %v4189 = vpop.permute.xlu0 %4188
      %v4191 = vsel %vm727, %v4187, 0
      %v4194 = vsel %vm731, %v4189, 0
      %4196 = vmatpush.bf16.msra.mxu0 0
      %4197 = vmatpush.bf16.msra.mxu0 0
      %4198 = vmatpush.bf16.msra.mxu0 0
      %4199 = vmatpush.bf16.msra.mxu0 0
      %4200 = vmatpush.bf16.msra.mxu0 0
      %4201 = vmatpush.bf16.msra.mxu0 0
      %4202 = vmatpush.bf16.msra.mxu0 0
      %4203 = vmatpush.bf16.msra.mxu0 %v4194
      %4204 = vmatmul.bf16.gmra.mxu0 %v4191
      %v4205 = vpop.f32.mrf.mxu0
      %v4206 = vadd.f32 0.0, %v4205
      %v4207 = vpop.f32.mrf.mxu0
      %4208 = vdwg.mxu0
      %v4209 = vadd.f32 %v4185, %v4206
      %v4210 = vld [vmem:[%s20] sm:$0xff]
      %v4211 = vld [vmem:[%s20 + $0x8] sm:$0x3]
      %vm4212 = vcmask 80896
      %v4214 = vsel %vm4212, %v4209, 0
      %v4217 = vsel %vm1692, %v4211, 0
      %4219 = vmatpush.msra.mxu0 0.0
      %4220 = vmatpush.msra.mxu0 0.0
      %4221 = vmatpush.msra.mxu0 0.0
      %4222 = vmatpush.msra.mxu0 0.0
      %4223 = vmatpush.msra.mxu0 0.0
      %4224 = vmatpush.msra.mxu0 0.0
      %4225 = vmatpush.msra.mxu0 0.0
      %4226 = vmatpush.msra.mxu0 0.0
      %4227 = vmatpush.msra.mxu0 0.0
      %4228 = vmatpush.msra.mxu0 0.0
      %4229 = vmatpush.msra.mxu0 0.0
      %4230 = vmatpush.msra.mxu0 0.0
      %4231 = vmatpush.msra.mxu0 0.0
      %4232 = vmatpush.msra.mxu0 0.0
      %4233 = vmatpush.msra.mxu0 %v4217
      %4234 = vmatpush.msra.mxu0 %v4210
      %4235 = vmatmul.f32.gmra.mxu0 %v4214
      %v4236 = vpop.f32.mrf.mxu0
      %v4237 = vadd.f32 0.0, %v4236
      %4238 = vdwg.mxu0
      %vm4239 = vcmask 31744
      %4240 = vst.msk [vmem:[#allocation5] sm:$0xff] %vm4239, %v4237
      %v4241 = vld [vmem:[%s16] sm:$0xf]
      %v4242 = vld [vmem:[#allocation4] sm:$0xf]
      %v4243 = vld [vmem:[%s3995] sm:$0xf]
      %v4245 = vunpack.c.l.b16 %v4242
      %v4246 = vpack.c.b16 %v4245, %v4245
      %4247 = vrot.lane.b32.xlu0 %v4246, 97
      %v4248 = vpop.permute.xlu0 %4247
      %v4250 = vsel %vm727, %v4243, 0
      %v4253 = vsel %vm731, %v4248, 0
      %4255 = vmatpush.bf16.msra.mxu0 0
      %4256 = vmatpush.bf16.msra.mxu0 0
      %4257 = vmatpush.bf16.msra.mxu0 0
      %4258 = vmatpush.bf16.msra.mxu0 0
      %4259 = vmatpush.bf16.msra.mxu0 0
      %4260 = vmatpush.bf16.msra.mxu0 0
      %4261 = vmatpush.bf16.msra.mxu0 0
      %4262 = vmatpush.bf16.msra.mxu0 %v4253
      %4263 = vmatmul.bf16.gmra.mxu0 %v4250
      %v4264 = vpop.f32.mrf.mxu0
      %v4265 = vadd.f32 0.0, %v4264
      %v4266 = vpop.f32.mrf.mxu0
      %4267 = vdwg.mxu0
      %4268 = vrot.lane.b32.xlu0 %v4246, 98
      %v4269 = vpop.permute.xlu0 %4268
      %v4271 = vsel %vm727, %v4241, 0
      %v4274 = vsel %vm731, %v4269, 0
      %4276 = vmatpush.bf16.msra.mxu0 0
      %4277 = vmatpush.bf16.msra.mxu0 0
      %4278 = vmatpush.bf16.msra.mxu0 0
      %4279 = vmatpush.bf16.msra.mxu0 0
      %4280 = vmatpush.bf16.msra.mxu0 0
      %4281 = vmatpush.bf16.msra.mxu0 0
      %4282 = vmatpush.bf16.msra.mxu0 0
      %4283 = vmatpush.bf16.msra.mxu0 %v4274
      %4284 = vmatmul.bf16.gmra.mxu0 %v4271
      %v4285 = vpop.f32.mrf.mxu0
      %v4286 = vadd.f32 %v4265, %v4285
      %v4287 = vpop.f32.mrf.mxu0
      %4288 = vdwg.mxu0
      %v4289 = vld [vmem:[%s4042] sm:$0xf]
      %4290 = vrot.lane.b32.xlu0 %v4246, 96
      %v4291 = vpop.permute.xlu0 %4290
      %v4293 = vsel %vm727, %v4289, 0
      %v4296 = vsel %vm731, %v4291, 0
      %4298 = vmatpush.bf16.msra.mxu0 0
      %4299 = vmatpush.bf16.msra.mxu0 0
      %4300 = vmatpush.bf16.msra.mxu0 0
      %4301 = vmatpush.bf16.msra.mxu0 0
      %4302 = vmatpush.bf16.msra.mxu0 0
      %4303 = vmatpush.bf16.msra.mxu0 0
      %4304 = vmatpush.bf16.msra.mxu0 0
      %4305 = vmatpush.bf16.msra.mxu0 %v4296
      %4306 = vmatmul.bf16.gmra.mxu0 %v4293
      %v4307 = vpop.f32.mrf.mxu0
      %v4308 = vadd.f32 0.0, %v4307
      %v4309 = vpop.f32.mrf.mxu0
      %4310 = vdwg.mxu0
      %v4311 = vadd.f32 %v4286, %v4308
      %v4312 = vld [vmem:[%s4066] sm:$0xf]
      %4313 = vrot.lane.b32.xlu0 %v4246, 88
      %v4314 = vpop.permute.xlu0 %4313
      %v4316 = vsel %vm727, %v4312, 0
      %v4319 = vsel %vm731, %v4314, 0
      %4321 = vmatpush.bf16.msra.mxu0 0
      %4322 = vmatpush.bf16.msra.mxu0 0
      %4323 = vmatpush.bf16.msra.mxu0 0
      %4324 = vmatpush.bf16.msra.mxu0 0
      %4325 = vmatpush.bf16.msra.mxu0 0
      %4326 = vmatpush.bf16.msra.mxu0 0
      %4327 = vmatpush.bf16.msra.mxu0 0
      %4328 = vmatpush.bf16.msra.mxu0 %v4319
      %4329 = vmatmul.bf16.gmra.mxu0 %v4316
      %v4330 = vpop.f32.mrf.mxu0
      %v4331 = vadd.f32 0.0, %v4330
      %v4332 = vpop.f32.mrf.mxu0
      %4333 = vdwg.mxu0
      %v4334 = vadd.f32 %v4311, %v4331
      %v4335 = vld [vmem:[%s4090] sm:$0xf]
      %4336 = vrot.lane.b32.xlu0 %v4246, 87
      %v4337 = vpop.permute.xlu0 %4336
      %v4339 = vsel %vm727, %v4335, 0
      %v4342 = vsel %vm731, %v4337, 0
      %4344 = vmatpush.bf16.msra.mxu0 0
      %4345 = vmatpush.bf16.msra.mxu0 0
      %4346 = vmatpush.bf16.msra.mxu0 0
      %4347 = vmatpush.bf16.msra.mxu0 0
      %4348 = vmatpush.bf16.msra.mxu0 0
      %4349 = vmatpush.bf16.msra.mxu0 0
      %4350 = vmatpush.bf16.msra.mxu0 0
      %4351 = vmatpush.bf16.msra.mxu0 %v4342
      %4352 = vmatmul.bf16.gmra.mxu0 %v4339
      %v4353 = vpop.f32.mrf.mxu0
      %v4354 = vadd.f32 0.0, %v4353
      %v4355 = vpop.f32.mrf.mxu0
      %4356 = vdwg.mxu0
      %v4357 = vadd.f32 %v4334, %v4354
      %v4358 = vld [vmem:[%s4114] sm:$0xf]
      %4359 = vrot.lane.b32.xlu0 %v4246, 86
      %v4360 = vpop.permute.xlu0 %4359
      %v4362 = vsel %vm727, %v4358, 0
      %v4365 = vsel %vm731, %v4360, 0
      %4367 = vmatpush.bf16.msra.mxu0 0
      %4368 = vmatpush.bf16.msra.mxu0 0
      %4369 = vmatpush.bf16.msra.mxu0 0
      %4370 = vmatpush.bf16.msra.mxu0 0
      %4371 = vmatpush.bf16.msra.mxu0 0
      %4372 = vmatpush.bf16.msra.mxu0 0
      %4373 = vmatpush.bf16.msra.mxu0 0
      %4374 = vmatpush.bf16.msra.mxu0 %v4365
      %4375 = vmatmul.bf16.gmra.mxu0 %v4362
      %v4376 = vpop.f32.mrf.mxu0
      %v4377 = vadd.f32 0.0, %v4376
      %v4378 = vpop.f32.mrf.mxu0
      %4379 = vdwg.mxu0
      %v4380 = vadd.f32 %v4357, %v4377
      %v4381 = vld [vmem:[%s4138] sm:$0xf]
      %4382 = vrot.lane.b32.xlu0 %v4246, 78
      %v4383 = vpop.permute.xlu0 %4382
      %v4385 = vsel %vm727, %v4381, 0
      %v4388 = vsel %vm731, %v4383, 0
      %4390 = vmatpush.bf16.msra.mxu0 0
      %4391 = vmatpush.bf16.msra.mxu0 0
      %4392 = vmatpush.bf16.msra.mxu0 0
      %4393 = vmatpush.bf16.msra.mxu0 0
      %4394 = vmatpush.bf16.msra.mxu0 0
      %4395 = vmatpush.bf16.msra.mxu0 0
      %4396 = vmatpush.bf16.msra.mxu0 0
      %4397 = vmatpush.bf16.msra.mxu0 %v4388
      %4398 = vmatmul.bf16.gmra.mxu0 %v4385
      %v4399 = vpop.f32.mrf.mxu0
      %v4400 = vadd.f32 0.0, %v4399
      %v4401 = vpop.f32.mrf.mxu0
      %4402 = vdwg.mxu0
      %v4403 = vadd.f32 %v4380, %v4400
      %v4404 = vld [vmem:[%s4162] sm:$0xf]
      %4405 = vrot.lane.b32.xlu0 %v4246, 77
      %v4406 = vpop.permute.xlu0 %4405
      %v4408 = vsel %vm727, %v4404, 0
      %v4411 = vsel %vm731, %v4406, 0
      %4413 = vmatpush.bf16.msra.mxu0 0
      %4414 = vmatpush.bf16.msra.mxu0 0
      %4415 = vmatpush.bf16.msra.mxu0 0
      %4416 = vmatpush.bf16.msra.mxu0 0
      %4417 = vmatpush.bf16.msra.mxu0 0
      %4418 = vmatpush.bf16.msra.mxu0 0
      %4419 = vmatpush.bf16.msra.mxu0 0
      %4420 = vmatpush.bf16.msra.mxu0 %v4411
      %4421 = vmatmul.bf16.gmra.mxu0 %v4408
      %v4422 = vpop.f32.mrf.mxu0
      %v4423 = vadd.f32 0.0, %v4422
      %v4424 = vpop.f32.mrf.mxu0
      %4425 = vdwg.mxu0
      %v4426 = vadd.f32 %v4403, %v4423
      %v4427 = vld [vmem:[%s4186] sm:$0xf]
      %4428 = vrot.lane.b32.xlu0 %v4246, 76
      %v4429 = vpop.permute.xlu0 %4428
      %v4431 = vsel %vm727, %v4427, 0
      %v4434 = vsel %vm731, %v4429, 0
      %4436 = vmatpush.bf16.msra.mxu0 0
      %4437 = vmatpush.bf16.msra.mxu0 0
      %4438 = vmatpush.bf16.msra.mxu0 0
      %4439 = vmatpush.bf16.msra.mxu0 0
      %4440 = vmatpush.bf16.msra.mxu0 0
      %4441 = vmatpush.bf16.msra.mxu0 0
      %4442 = vmatpush.bf16.msra.mxu0 0
      %4443 = vmatpush.bf16.msra.mxu0 %v4434
      %4444 = vmatmul.bf16.gmra.mxu0 %v4431
      %v4445 = vpop.f32.mrf.mxu0
      %v4446 = vadd.f32 0.0, %v4445
      %v4447 = vpop.f32.mrf.mxu0
      %4448 = vdwg.mxu0
      %v4449 = vadd.f32 %v4426, %v4446
      %v4450 = vld [vmem:[%s20] sm:$0xff]
      %v4451 = vld [vmem:[%s20 + $0x8] sm:$0x3]
      %v4453 = vsel %vm4212, %v4449, 0
      %v4456 = vsel %vm1692, %v4451, 0
      %4458 = vmatpush.msra.mxu0 0.0
      %4459 = vmatpush.msra.mxu0 0.0
      %4460 = vmatpush.msra.mxu0 0.0
      %4461 = vmatpush.msra.mxu0 0.0
      %4462 = vmatpush.msra.mxu0 0.0
      %4463 = vmatpush.msra.mxu0 0.0
      %4464 = vmatpush.msra.mxu0 0.0
      %4465 = vmatpush.msra.mxu0 0.0
      %4466 = vmatpush.msra.mxu0 0.0
      %4467 = vmatpush.msra.mxu0 0.0
      %4468 = vmatpush.msra.mxu0 0.0
      %4469 = vmatpush.msra.mxu0 0.0
      %4470 = vmatpush.msra.mxu0 0.0
      %4471 = vmatpush.msra.mxu0 0.0
      %4472 = vmatpush.msra.mxu0 %v4456
      %4473 = vmatpush.msra.mxu0 %v4450
      %4474 = vmatmul.f32.gmra.mxu0 %v4453
      %v4475 = vpop.f32.mrf.mxu0
      %v4476 = vadd.f32 0.0, %v4475
      %4477 = vdwg.mxu0
      %4479 = vrot.lane.b32.xlu0 %v4476, 4
      %v4480 = vpop.permute.xlu0 %4479
      %vm4482 = vcmask 64544
      %4483 = vst.msk [vmem:[#allocation5] sm:$0xff] %vm4482, %v4480
      %v4484 = vld [vmem:[%s16] sm:$0xf]
      %v4485 = vld [vmem:[#allocation4] sm:$0xf]
      %v4486 = vld [vmem:[%s3995] sm:$0xf]
      %v4488 = vunpack.c.l.b16 %v4485
      %v4489 = vpack.c.b16 %v4488, %v4488
      %4490 = vrot.lane.b32.xlu0 %v4489, 77
      %v4491 = vpop.permute.xlu0 %4490
      %v4493 = vsel %vm727, %v4486, 0
      %v4496 = vsel %vm731, %v4491, 0
      %4498 = vmatpush.bf16.msra.mxu0 0
      %4499 = vmatpush.bf16.msra.mxu0 0
      %4500 = vmatpush.bf16.msra.mxu0 0
      %4501 = vmatpush.bf16.msra.mxu0 0
      %4502 = vmatpush.bf16.msra.mxu0 0
      %4503 = vmatpush.bf16.msra.mxu0 0
      %4504 = vmatpush.bf16.msra.mxu0 0
      %4505 = vmatpush.bf16.msra.mxu0 %v4496
      %4506 = vmatmul.bf16.gmra.mxu0 %v4493
      %v4507 = vpop.f32.mrf.mxu0
      %v4508 = vadd.f32 0.0, %v4507
      %v4509 = vpop.f32.mrf.mxu0
      %4510 = vdwg.mxu0
      %4511 = vrot.lane.b32.xlu0 %v4489, 78
      %v4512 = vpop.permute.xlu0 %4511
      %v4514 = vsel %vm727, %v4484, 0
      %v4517 = vsel %vm731, %v4512, 0
      %4519 = vmatpush.bf16.msra.mxu0 0
      %4520 = vmatpush.bf16.msra.mxu0 0
      %4521 = vmatpush.bf16.msra.mxu0 0
      %4522 = vmatpush.bf16.msra.mxu0 0
      %4523 = vmatpush.bf16.msra.mxu0 0
      %4524 = vmatpush.bf16.msra.mxu0 0
      %4525 = vmatpush.bf16.msra.mxu0 0
      %4526 = vmatpush.bf16.msra.mxu0 %v4517
      %4527 = vmatmul.bf16.gmra.mxu0 %v4514
      %v4528 = vpop.f32.mrf.mxu0
      %v4529 = vadd.f32 %v4508, %v4528
      %v4530 = vpop.f32.mrf.mxu0
      %4531 = vdwg.mxu0
      %v4532 = vld [vmem:[%s4042] sm:$0xf]
      %4533 = vrot.lane.b32.xlu0 %v4489, 76
      %v4534 = vpop.permute.xlu0 %4533
      %v4536 = vsel %vm727, %v4532, 0
      %v4539 = vsel %vm731, %v4534, 0
      %4541 = vmatpush.bf16.msra.mxu0 0
      %4542 = vmatpush.bf16.msra.mxu0 0
      %4543 = vmatpush.bf16.msra.mxu0 0
      %4544 = vmatpush.bf16.msra.mxu0 0
      %4545 = vmatpush.bf16.msra.mxu0 0
      %4546 = vmatpush.bf16.msra.mxu0 0
      %4547 = vmatpush.bf16.msra.mxu0 0
      %4548 = vmatpush.bf16.msra.mxu0 %v4539
      %4549 = vmatmul.bf16.gmra.mxu0 %v4536
      %v4550 = vpop.f32.mrf.mxu0
      %v4551 = vadd.f32 0.0, %v4550
      %v4552 = vpop.f32.mrf.mxu0
      %4553 = vdwg.mxu0
      %v4554 = vadd.f32 %v4529, %v4551
      %v4555 = vld [vmem:[%s4066] sm:$0xf]
      %4556 = vrot.lane.b32.xlu0 %v4489, 68
      %v4557 = vpop.permute.xlu0 %4556
      %v4559 = vsel %vm727, %v4555, 0
      %v4562 = vsel %vm731, %v4557, 0
      %4564 = vmatpush.bf16.msra.mxu0 0
      %4565 = vmatpush.bf16.msra.mxu0 0
      %4566 = vmatpush.bf16.msra.mxu0 0
      %4567 = vmatpush.bf16.msra.mxu0 0
      %4568 = vmatpush.bf16.msra.mxu0 0
      %4569 = vmatpush.bf16.msra.mxu0 0
      %4570 = vmatpush.bf16.msra.mxu0 0
      %4571 = vmatpush.bf16.msra.mxu0 %v4562
      %4572 = vmatmul.bf16.gmra.mxu0 %v4559
      %v4573 = vpop.f32.mrf.mxu0
      %v4574 = vadd.f32 0.0, %v4573
      %v4575 = vpop.f32.mrf.mxu0
      %4576 = vdwg.mxu0
      %v4577 = vadd.f32 %v4554, %v4574
      %v4578 = vld [vmem:[%s4090] sm:$0xf]
      %4579 = vrot.lane.b32.xlu0 %v4489, 67
      %v4580 = vpop.permute.xlu0 %4579
      %v4582 = vsel %vm727, %v4578, 0
      %v4585 = vsel %vm731, %v4580, 0
      %4587 = vmatpush.bf16.msra.mxu0 0
      %4588 = vmatpush.bf16.msra.mxu0 0
      %4589 = vmatpush.bf16.msra.mxu0 0
      %4590 = vmatpush.bf16.msra.mxu0 0
      %4591 = vmatpush.bf16.msra.mxu0 0
      %4592 = vmatpush.bf16.msra.mxu0 0
      %4593 = vmatpush.bf16.msra.mxu0 0
      %4594 = vmatpush.bf16.msra.mxu0 %v4585
      %4595 = vmatmul.bf16.gmra.mxu0 %v4582
      %v4596 = vpop.f32.mrf.mxu0
      %v4597 = vadd.f32 0.0, %v4596
      %v4598 = vpop.f32.mrf.mxu0
      %4599 = vdwg.mxu0
      %v4600 = vadd.f32 %v4577, %v4597
      %v4601 = vld [vmem:[%s4114] sm:$0xf]
      %4602 = vrot.lane.b32.xlu0 %v4489, 66
      %v4603 = vpop.permute.xlu0 %4602
      %v4605 = vsel %vm727, %v4601, 0
      %v4608 = vsel %vm731, %v4603, 0
      %4610 = vmatpush.bf16.msra.mxu0 0
      %4611 = vmatpush.bf16.msra.mxu0 0
      %4612 = vmatpush.bf16.msra.mxu0 0
      %4613 = vmatpush.bf16.msra.mxu0 0
      %4614 = vmatpush.bf16.msra.mxu0 0
      %4615 = vmatpush.bf16.msra.mxu0 0
      %4616 = vmatpush.bf16.msra.mxu0 0
      %4617 = vmatpush.bf16.msra.mxu0 %v4608
      %4618 = vmatmul.bf16.gmra.mxu0 %v4605
      %v4619 = vpop.f32.mrf.mxu0
      %v4620 = vadd.f32 0.0, %v4619
      %v4621 = vpop.f32.mrf.mxu0
      %4622 = vdwg.mxu0
      %v4623 = vadd.f32 %v4600, %v4620
      %v4624 = vld [vmem:[%s4138] sm:$0xf]
      %4625 = vrot.lane.b32.xlu0 %v4489, 58
      %v4626 = vpop.permute.xlu0 %4625
      %v4628 = vsel %vm727, %v4624, 0
      %v4631 = vsel %vm731, %v4626, 0
      %4633 = vmatpush.bf16.msra.mxu0 0
      %4634 = vmatpush.bf16.msra.mxu0 0
      %4635 = vmatpush.bf16.msra.mxu0 0
      %4636 = vmatpush.bf16.msra.mxu0 0
      %4637 = vmatpush.bf16.msra.mxu0 0
      %4638 = vmatpush.bf16.msra.mxu0 0
      %4639 = vmatpush.bf16.msra.mxu0 0
      %4640 = vmatpush.bf16.msra.mxu0 %v4631
      %4641 = vmatmul.bf16.gmra.mxu0 %v4628
      %v4642 = vpop.f32.mrf.mxu0
      %v4643 = vadd.f32 0.0, %v4642
      %v4644 = vpop.f32.mrf.mxu0
      %4645 = vdwg.mxu0
      %v4646 = vadd.f32 %v4623, %v4643
      %v4647 = vld [vmem:[%s4162] sm:$0xf]
      %4648 = vrot.lane.b32.xlu0 %v4489, 57
      %v4649 = vpop.permute.xlu0 %4648
      %v4651 = vsel %vm727, %v4647, 0
      %v4654 = vsel %vm731, %v4649, 0
      %4656 = vmatpush.bf16.msra.mxu0 0
      %4657 = vmatpush.bf16.msra.mxu0 0
      %4658 = vmatpush.bf16.msra.mxu0 0
      %4659 = vmatpush.bf16.msra.mxu0 0
      %4660 = vmatpush.bf16.msra.mxu0 0
      %4661 = vmatpush.bf16.msra.mxu0 0
      %4662 = vmatpush.bf16.msra.mxu0 0
      %4663 = vmatpush.bf16.msra.mxu0 %v4654
      %4664 = vmatmul.bf16.gmra.mxu0 %v4651
      %v4665 = vpop.f32.mrf.mxu0
      %v4666 = vadd.f32 0.0, %v4665
      %v4667 = vpop.f32.mrf.mxu0
      %4668 = vdwg.mxu0
      %v4669 = vadd.f32 %v4646, %v4666
      %v4670 = vld [vmem:[%s4186] sm:$0xf]
      %4671 = vrot.lane.b32.xlu0 %v4489, 56
      %v4672 = vpop.permute.xlu0 %4671
      %v4674 = vsel %vm727, %v4670, 0
      %v4677 = vsel %vm731, %v4672, 0
      %4679 = vmatpush.bf16.msra.mxu0 0
      %4680 = vmatpush.bf16.msra.mxu0 0
      %4681 = vmatpush.bf16.msra.mxu0 0
      %4682 = vmatpush.bf16.msra.mxu0 0
      %4683 = vmatpush.bf16.msra.mxu0 0
      %4684 = vmatpush.bf16.msra.mxu0 0
      %4685 = vmatpush.bf16.msra.mxu0 0
      %4686 = vmatpush.bf16.msra.mxu0 %v4677
      %4687 = vmatmul.bf16.gmra.mxu0 %v4674
      %v4688 = vpop.f32.mrf.mxu0
      %v4689 = vadd.f32 0.0, %v4688
      %v4690 = vpop.f32.mrf.mxu0
      %4691 = vdwg.mxu0
      %v4692 = vadd.f32 %v4669, %v4689
      %v4693 = vld [vmem:[%s20] sm:$0xff]
      %v4694 = vld [vmem:[%s20 + $0x8] sm:$0x3]
      %v4696 = vsel %vm4212, %v4692, 0
      %v4699 = vsel %vm1692, %v4694, 0
      %4701 = vmatpush.msra.mxu0 0.0
      %4702 = vmatpush.msra.mxu0 0.0
      %4703 = vmatpush.msra.mxu0 0.0
      %4704 = vmatpush.msra.mxu0 0.0
      %4705 = vmatpush.msra.mxu0 0.0
      %4706 = vmatpush.msra.mxu0 0.0
      %4707 = vmatpush.msra.mxu0 0.0
      %4708 = vmatpush.msra.mxu0 0.0
      %4709 = vmatpush.msra.mxu0 0.0
      %4710 = vmatpush.msra.mxu0 0.0
      %4711 = vmatpush.msra.mxu0 0.0
      %4712 = vmatpush.msra.mxu0 0.0
      %4713 = vmatpush.msra.mxu0 0.0
      %4714 = vmatpush.msra.mxu0 0.0
      %4715 = vmatpush.msra.mxu0 %v4699
      %4716 = vmatpush.msra.mxu0 %v4693
      %4717 = vmatmul.f32.gmra.mxu0 %v4696
      %v4718 = vpop.f32.mrf.mxu0
      %v4719 = vadd.f32 0.0, %v4718
      %4720 = vdwg.mxu0
      %4722 = vrot.lane.b32.xlu0 %v4719, 8
      %v4723 = vpop.permute.xlu0 %4722
      %vm4725 = vcmask 97344
      %4726 = vst.msk [vmem:[#allocation5] sm:$0xff] %vm4725, %v4723
      %v4727 = vld [vmem:[%s16] sm:$0xf]
      %v4728 = vld [vmem:[#allocation4] sm:$0xf]
      %v4729 = vld [vmem:[%s3995] sm:$0xf]
      %v4731 = vunpack.c.l.b16 %v4728
      %v4732 = vpack.c.b16 %v4731, %v4731
      %4733 = vrot.lane.b32.xlu0 %v4732, 57
      %v4734 = vpop.permute.xlu0 %4733
      %v4736 = vsel %vm727, %v4729, 0
      %v4739 = vsel %vm731, %v4734, 0
      %4741 = vmatpush.bf16.msra.mxu0 0
      %4742 = vmatpush.bf16.msra.mxu0 0
      %4743 = vmatpush.bf16.msra.mxu0 0
      %4744 = vmatpush.bf16.msra.mxu0 0
      %4745 = vmatpush.bf16.msra.mxu0 0
      %4746 = vmatpush.bf16.msra.mxu0 0
      %4747 = vmatpush.bf16.msra.mxu0 0
      %4748 = vmatpush.bf16.msra.mxu0 %v4739
      %4749 = vmatmul.bf16.gmra.mxu0 %v4736
      %v4750 = vpop.f32.mrf.mxu0
      %v4751 = vadd.f32 0.0, %v4750
      %v4752 = vpop.f32.mrf.mxu0
      %4753 = vdwg.mxu0
      %4754 = vrot.lane.b32.xlu0 %v4732, 58
      %v4755 = vpop.permute.xlu0 %4754
      %v4757 = vsel %vm727, %v4727, 0
      %v4760 = vsel %vm731, %v4755, 0
      %4762 = vmatpush.bf16.msra.mxu0 0
      %4763 = vmatpush.bf16.msra.mxu0 0
      %4764 = vmatpush.bf16.msra.mxu0 0
      %4765 = vmatpush.bf16.msra.mxu0 0
      %4766 = vmatpush.bf16.msra.mxu0 0
      %4767 = vmatpush.bf16.msra.mxu0 0
      %4768 = vmatpush.bf16.msra.mxu0 0
      %4769 = vmatpush.bf16.msra.mxu0 %v4760
      %4770 = vmatmul.bf16.gmra.mxu0 %v4757
      %v4771 = vpop.f32.mrf.mxu0
      %v4772 = vadd.f32 %v4751, %v4771
      %v4773 = vpop.f32.mrf.mxu0
      %4774 = vdwg.mxu0
      %v4775 = vld [vmem:[%s4042] sm:$0xf]
      %4776 = vrot.lane.b32.xlu0 %v4732, 56
      %v4777 = vpop.permute.xlu0 %4776
      %v4779 = vsel %vm727, %v4775, 0
      %v4782 = vsel %vm731, %v4777, 0
      %4784 = vmatpush.bf16.msra.mxu0 0
      %4785 = vmatpush.bf16.msra.mxu0 0
      %4786 = vmatpush.bf16.msra.mxu0 0
      %4787 = vmatpush.bf16.msra.mxu0 0
      %4788 = vmatpush.bf16.msra.mxu0 0
      %4789 = vmatpush.bf16.msra.mxu0 0
      %4790 = vmatpush.bf16.msra.mxu0 0
      %4791 = vmatpush.bf16.msra.mxu0 %v4782
      %4792 = vmatmul.bf16.gmra.mxu0 %v4779
      %v4793 = vpop.f32.mrf.mxu0
      %v4794 = vadd.f32 0.0, %v4793
      %v4795 = vpop.f32.mrf.mxu0
      %4796 = vdwg.mxu0
      %v4797 = vadd.f32 %v4772, %v4794
      %v4798 = vld [vmem:[%s4066] sm:$0xf]
      %4799 = vrot.lane.b32.xlu0 %v4732, 48
      %v4800 = vpop.permute.xlu0 %4799
      %v4802 = vsel %vm727, %v4798, 0
      %v4805 = vsel %vm731, %v4800, 0
      %4807 = vmatpush.bf16.msra.mxu0 0
      %4808 = vmatpush.bf16.msra.mxu0 0
      %4809 = vmatpush.bf16.msra.mxu0 0
      %4810 = vmatpush.bf16.msra.mxu0 0
      %4811 = vmatpush.bf16.msra.mxu0 0
      %4812 = vmatpush.bf16.msra.mxu0 0
      %4813 = vmatpush.bf16.msra.mxu0 0
      %4814 = vmatpush.bf16.msra.mxu0 %v4805
      %4815 = vmatmul.bf16.gmra.mxu0 %v4802
      %v4816 = vpop.f32.mrf.mxu0
      %v4817 = vadd.f32 0.0, %v4816
      %v4818 = vpop.f32.mrf.mxu0
      %4819 = vdwg.mxu0
      %v4820 = vadd.f32 %v4797, %v4817
      %v4821 = vld [vmem:[%s4090] sm:$0xf]
      %4822 = vrot.lane.b32.xlu0 %v4732, 47
      %v4823 = vpop.permute.xlu0 %4822
      %v4825 = vsel %vm727, %v4821, 0
      %v4828 = vsel %vm731, %v4823, 0
      %4830 = vmatpush.bf16.msra.mxu0 0
      %4831 = vmatpush.bf16.msra.mxu0 0
      %4832 = vmatpush.bf16.msra.mxu0 0
      %4833 = vmatpush.bf16.msra.mxu0 0
      %4834 = vmatpush.bf16.msra.mxu0 0
      %4835 = vmatpush.bf16.msra.mxu0 0
      %4836 = vmatpush.bf16.msra.mxu0 0
      %4837 = vmatpush.bf16.msra.mxu0 %v4828
      %4838 = vmatmul.bf16.gmra.mxu0 %v4825
      %v4839 = vpop.f32.mrf.mxu0
      %v4840 = vadd.f32 0.0, %v4839
      %v4841 = vpop.f32.mrf.mxu0
      %4842 = vdwg.mxu0
      %v4843 = vadd.f32 %v4820, %v4840
      %v4844 = vld [vmem:[%s4114] sm:$0xf]
      %4845 = vrot.lane.b32.xlu0 %v4732, 46
      %v4846 = vpop.permute.xlu0 %4845
      %v4848 = vsel %vm727, %v4844, 0
      %v4851 = vsel %vm731, %v4846, 0
      %4853 = vmatpush.bf16.msra.mxu0 0
      %4854 = vmatpush.bf16.msra.mxu0 0
      %4855 = vmatpush.bf16.msra.mxu0 0
      %4856 = vmatpush.bf16.msra.mxu0 0
      %4857 = vmatpush.bf16.msra.mxu0 0
      %4858 = vmatpush.bf16.msra.mxu0 0
      %4859 = vmatpush.bf16.msra.mxu0 0
      %4860 = vmatpush.bf16.msra.mxu0 %v4851
      %4861 = vmatmul.bf16.gmra.mxu0 %v4848
      %v4862 = vpop.f32.mrf.mxu0
      %v4863 = vadd.f32 0.0, %v4862
      %v4864 = vpop.f32.mrf.mxu0
      %4865 = vdwg.mxu0
      %v4866 = vadd.f32 %v4843, %v4863
      %v4867 = vld [vmem:[%s4138] sm:$0xf]
      %4868 = vrot.lane.b32.xlu0 %v4732, 38
      %v4869 = vpop.permute.xlu0 %4868
      %v4871 = vsel %vm727, %v4867, 0
      %v4874 = vsel %vm731, %v4869, 0
      %4876 = vmatpush.bf16.msra.mxu0 0
      %4877 = vmatpush.bf16.msra.mxu0 0
      %4878 = vmatpush.bf16.msra.mxu0 0
      %4879 = vmatpush.bf16.msra.mxu0 0
      %4880 = vmatpush.bf16.msra.mxu0 0
      %4881 = vmatpush.bf16.msra.mxu0 0
      %4882 = vmatpush.bf16.msra.mxu0 0
      %4883 = vmatpush.bf16.msra.mxu0 %v4874
      %4884 = vmatmul.bf16.gmra.mxu0 %v4871
      %v4885 = vpop.f32.mrf.mxu0
      %v4886 = vadd.f32 0.0, %v4885
      %v4887 = vpop.f32.mrf.mxu0
      %4888 = vdwg.mxu0
      %v4889 = vadd.f32 %v4866, %v4886
      %v4890 = vld [vmem:[%s4162] sm:$0xf]
      %4891 = vrot.lane.b32.xlu0 %v4732, 37
      %v4892 = vpop.permute.xlu0 %4891
      %v4894 = vsel %vm727, %v4890, 0
      %v4897 = vsel %vm731, %v4892, 0
      %4899 = vmatpush.bf16.msra.mxu0 0
      %4900 = vmatpush.bf16.msra.mxu0 0
      %4901 = vmatpush.bf16.msra.mxu0 0
      %4902 = vmatpush.bf16.msra.mxu0 0
      %4903 = vmatpush.bf16.msra.mxu0 0
      %4904 = vmatpush.bf16.msra.mxu0 0
      %4905 = vmatpush.bf16.msra.mxu0 0
      %4906 = vmatpush.bf16.msra.mxu0 %v4897
      %4907 = vmatmul.bf16.gmra.mxu0 %v4894
      %v4908 = vpop.f32.mrf.mxu0
      %v4909 = vadd.f32 0.0, %v4908
      %v4910 = vpop.f32.mrf.mxu0
      %4911 = vdwg.mxu0
      %v4912 = vadd.f32 %v4889, %v4909
      %v4913 = vld [vmem:[%s4186] sm:$0xf]
      %4914 = vrot.lane.b32.xlu0 %v4732, 36
      %v4915 = vpop.permute.xlu0 %4914
      %v4917 = vsel %vm727, %v4913, 0
      %v4920 = vsel %vm731, %v4915, 0
      %4922 = vmatpush.bf16.msra.mxu0 0
      %4923 = vmatpush.bf16.msra.mxu0 0
      %4924 = vmatpush.bf16.msra.mxu0 0
      %4925 = vmatpush.bf16.msra.mxu0 0
      %4926 = vmatpush.bf16.msra.mxu0 0
      %4927 = vmatpush.bf16.msra.mxu0 0
      %4928 = vmatpush.bf16.msra.mxu0 0
      %4929 = vmatpush.bf16.msra.mxu0 %v4920
      %4930 = vmatmul.bf16.gmra.mxu0 %v4917
      %v4931 = vpop.f32.mrf.mxu0
      %v4932 = vadd.f32 0.0, %v4931
      %v4933 = vpop.f32.mrf.mxu0
      %4934 = vdwg.mxu0
      %v4935 = vadd.f32 %v4912, %v4932
      %v4936 = vld [vmem:[%s20] sm:$0xff]
      %v4937 = vld [vmem:[%s20 + $0x8] sm:$0x3]
      %v4939 = vsel %vm4212, %v4935, 0
      %v4942 = vsel %vm1692, %v4937, 0
      %4944 = vmatpush.msra.mxu0 0.0
      %4945 = vmatpush.msra.mxu0 0.0
      %4946 = vmatpush.msra.mxu0 0.0
      %4947 = vmatpush.msra.mxu0 0.0
      %4948 = vmatpush.msra.mxu0 0.0
      %4949 = vmatpush.msra.mxu0 0.0
      %4950 = vmatpush.msra.mxu0 0.0
      %4951 = vmatpush.msra.mxu0 0.0
      %4952 = vmatpush.msra.mxu0 0.0
      %4953 = vmatpush.msra.mxu0 0.0
      %4954 = vmatpush.msra.mxu0 0.0
      %4955 = vmatpush.msra.mxu0 0.0
      %4956 = vmatpush.msra.mxu0 0.0
      %4957 = vmatpush.msra.mxu0 0.0
      %4958 = vmatpush.msra.mxu0 %v4942
      %4959 = vmatpush.msra.mxu0 %v4936
      %4960 = vmatmul.f32.gmra.mxu0 %v4939
      %v4961 = vpop.f32.mrf.mxu0
      %v4962 = vadd.f32 0.0, %v4961
      %4963 = vdwg.mxu0
      %4965 = vrot.lane.b32.xlu0 %v4962, 12
      %v4966 = vpop.permute.xlu0 %4965
      %vm4968 = vcmask 130144
      %4969 = vst.msk [vmem:[#allocation5] sm:$0xff] %vm4968, %v4966
      %v4970 = vld [vmem:[#allocation5] sm:$0xff]
      %vm4971 = vcmask 130048
      %v4972 = vsel %vm4971, %v4970, 0.0
      %4973 = vadd.xlane.f32.xlu0 %v4972
      %v4974 = vpop.xlane.xlu0 %4973
      %v4975 = vmul.f32 %v4970, %v4970
      %v4976 = vsel %vm4971, %v4975, 0.0
      %4977 = vadd.xlane.f32.xlu0 %v4976
      %v4978 = vpop.xlane.xlu0 %4977
      %v4979 = vmul.f32 %v3990, 16.0
      %v4980 = vadd.f32 %v4974, %v4979
      %v4981 = vmul.f32 %v3990, 2.0
      %v4982 = vmul.f32 %v4981, %v4974
      %v4983 = vadd.f32 %v4978, %v4982
      %v4984 = vmul.f32 %v4979, %v3990
      %v4985 = vadd.f32 %v4983, %v4984
      %v4986 = vmul.f32 %v4980, %v700
      %v4987 = vsel %vm1320, %v4986, 0.0
      %4988 = vadd.xlane.f32.xlu0 %v4987
      %v4989 = vpop.xlane.xlu0 %4988
      %v4990 = vrot.slane %v4989, 4
      %v4991 = vadd.f32 %v4989, %v4990
      %v4992 = vrot.slane %v4991, 2
      %v4993 = vadd.f32 %v4991, %v4992
      %v4994 = vrot.slane %v4993, 1
      %v4995 = vadd.f32 %v4993, %v4994
      %s4996 = vtos %v4995
      %v4997 = vstv %s4996
      %v4998 = vmul.f32 %v4980, %v701
      %v4999 = vsel %vm1320, %v4998, 0.0
      %5000 = vadd.xlane.f32.xlu0 %v4999
      %v5001 = vpop.xlane.xlu0 %5000
      %v5002 = vrot.slane %v5001, 4
      %v5003 = vadd.f32 %v5001, %v5002
      %v5004 = vrot.slane %v5003, 2
      %v5005 = vadd.f32 %v5003, %v5004
      %v5006 = vrot.slane %v5005, 1
      %v5007 = vadd.f32 %v5005, %v5006
      %s5008 = vtos %v5007
      %v5009 = vstv %s5008
      %v5010 = vmul.f32 %v4985, %v700
      %v5011 = vsel %vm1320, %v5010, 0.0
      %5012 = vadd.xlane.f32.xlu0 %v5011
      %v5013 = vpop.xlane.xlu0 %5012
      %v5014 = vrot.slane %v5013, 4
      %v5015 = vadd.f32 %v5013, %v5014
      %v5016 = vrot.slane %v5015, 2
      %v5017 = vadd.f32 %v5015, %v5016
      %v5018 = vrot.slane %v5017, 1
      %v5019 = vadd.f32 %v5017, %v5018
      %s5020 = vtos %v5019
      %v5021 = vstv %s5020
      %v5022 = vmul.f32 %v4985, %v701
      %v5023 = vsel %vm1320, %v5022, 0.0
      %5024 = vadd.xlane.f32.xlu0 %v5023
      %v5025 = vpop.xlane.xlu0 %5024
      %v5026 = vrot.slane %v5025, 4
      %v5027 = vadd.f32 %v5025, %v5026
      %v5028 = vrot.slane %v5027, 2
      %v5029 = vadd.f32 %v5027, %v5028
      %v5030 = vrot.slane %v5029, 1
      %v5031 = vadd.f32 %v5029, %v5030
      %s5032 = vtos %v5031
      %v5033 = vstv %s5032
      %v5034 = vmul.f32 %v4997, 0.015625
      %v5035 = vmul.f32 %v5009, 0.015625
      %v5036 = vmul.f32 %v5021, 0.015625
      %v5037 = vmul.f32 %v5034, %v5034
      %v5038 = vsub.f32 %v5036, %v5037
      %v5039 = vmax.f32 %v5038, 0.0
      %v5040 = vmul.f32 %v5033, 0.015625
      %v5041 = vmul.f32 %v5035, %v5035
      %v5042 = vsub.f32 %v5040, %v5041
      %v5043 = vmax.f32 %v5042, 0.0
      %v5044 = vadd.f32 %v5039, 1e-05
      %v5045 = vrsqrt.pop %v5044
      %v5046 = vmul.f32 %v5045, %v5044
      %v5047 = vmul.f32 %v5046, %v5045
      %v5048 = vmul.f32 0.5, %v5047
      %v5049 = vsub.f32 1.5, %v5048
      %v5050 = vmul.f32 %v5045, %v5049
      %vm5051 = vweird.f32 %v5044
      %vm5052 = vweird.f32 %v5045
      %vm5053 = vmor %vm5051, %vm5052
      %v5054 = vsel %vm5053, %v5045, %v5050
      %v5055 = vadd.f32 %v5043, 1e-05
      %v5056 = vrsqrt.pop %v5055
      %v5057 = vmul.f32 %v5056, %v5055
      %v5058 = vmul.f32 %v5057, %v5056
      %v5059 = vmul.f32 0.5, %v5058
      %v5060 = vsub.f32 1.5, %v5059
      %v5061 = vmul.f32 %v5056, %v5060
      %vm5062 = vweird.f32 %v5055
      %vm5063 = vweird.f32 %v5056
      %vm5064 = vmor %vm5062, %vm5063
      %v5065 = vsel %vm5064, %v5056, %v5061
      %v5066 = vmul.f32 %v700, %v5034
      %v5067 = vmul.f32 %v701, %v5035
      %v5068 = vadd.f32 %v5066, %v5067
      %v5069 = vmul.f32 %v700, %v5054
      %v5070 = vmul.f32 %v701, %v5065
      %v5071 = vadd.f32 %v5069, %v5070
      %v5072 = vmul.f32 %v5071, %v3991
      %v5073 = vsub.f32 %v3990, %v5068
      %v5074 = vmul.f32 %v5073, %v5072
      %v5075 = vadd.f32 %v5074, %v3992
      %5077 = vset.pattern.permute.xlu0 0
      %5078 = vperm.xlu0 %5077, %v5072
      %v5079 = vpop.permute.xlu0 %5078
      %v5081 = vmul.f32 %v4970, %v5079
      %5083 = vset.pattern.permute.xlu0 0
      %5084 = vperm.xlu0 %5083, %v5075
      %v5085 = vpop.permute.xlu0 %5084
      %v5087 = vadd.f32 %v5081, %v5085
      %vm5088 = vcmp.gt.f32.partialorder %v5087, 0.0
      %v5089 = vmul.f32 %v5087, 0.2
      %v5090 = vsel %vm5088, %v5087, %v5089
      %5091 = vst.msk [vmem:[%s694] sm:$0xff] %vm4971, %v5090
      %p5092 = scmp.lt.s32.totalorder %s34, 1
      %s5093 = scalar_select %p5092, %s34, 1
      %s5094 = smul.addr %s5093, 3
      %s5095 = smul.addr %s5094, 8
      %s5096 = scalar_lea.vmem %s21, %s5095
      %p5097 = scmp.lt.s32.totalorder %s34, 1
      %s5098 = scalar_select %p5097, %s34, 1
      %s5099 = smul.addr %s5098, 8
      %s5100 = scalar_lea.vmem %s22, %s5099
      // Predicated region
      $region105: #{simvp_encoder.1} parent=103 // pred_check
        %p5101 = pneg %p498
      $region106: #{simvp_encoder.1} parent=103 // pred_check_branch
        %5103 = sbr.rel (%p5101) target = $region108
      $region107: #{simvp_encoder.1} parent=103 // pred_region
        _
      $region108: #{simvp_encoder.1} parent=103 // pred_fallthru
        _
      // Predicated region
      $region109: #{simvp_encoder.1} parent=103 // pred_check
        %p5104 = pneg %p524
      $region110: #{simvp_encoder.1} parent=103 // pred_check_branch
        %5106 = sbr.rel (%p5104) target = $region112
      $region111: #{simvp_encoder.1} parent=103 // pred_region
        _
      $region112: #{simvp_encoder.1} parent=103 // pred_fallthru
        _
    $region104: #{simvp_encoder.1} parent=5 // pred_fallthru
      _
    %p5107 = scmp.le.s32.totalorder 2, %s29
    // Predicated region
    $region113: #{simvp_encoder.1} parent=5 // pred_check
      %p5108 = pneg %p5107
    $region114: #{simvp_encoder.1} parent=5 // pred_check_branch
      %5110 = sbr.rel (%p5108) target = $region116
    $region115: #{simvp_encoder.1} parent=5 // pred_region
      %s5111 = ssub.s32 %s29, 2
      // Predicated region
      $region117: #{simvp_encoder.1} parent=115 // pred_check
        %p5112 = pneg %p504
      $region118: #{simvp_encoder.1} parent=115 // pred_check_branch
        %5114 = sbr.rel (%p5112) target = $region120
      $region119: #{simvp_encoder.1} parent=115 // pred_region
        %p5115 = scmp.lt.s32.totalorder %s35, 1
        %s5116 = scalar_select %p5115, %s35, 1
        %s5117 = smul.addr %s5116, 3
        %s5118 = smul.addr %s5117, 8
        %s5119 = scalar_lea.vmem %s21, %s5118
      $region120: #{simvp_encoder.1} parent=115 // pred_fallthru
        _
      // Predicated region
      $region121: #{simvp_encoder.1} parent=115 // pred_check
        %p5120 = pneg %p530
      $region122: #{simvp_encoder.1} parent=115 // pred_check_branch
        %5122 = sbr.rel (%p5120) target = $region124
      $region123: #{simvp_encoder.1} parent=115 // pred_region
        %p5123 = scmp.lt.s32.totalorder %s35, 1
        %s5124 = scalar_select %p5123, %s35, 1
        %s5125 = smul.addr %s5124, 8
        %s5126 = scalar_lea.vmem %s22, %s5125
      $region124: #{simvp_encoder.1} parent=115 // pred_fallthru
        _
    $region116: #{simvp_encoder.1} parent=5 // pred_fallthru
      _
  $region6: #{simvp_encoder.1} parent=0 // loop_footer
    %s33 = sadd.s32 1, %s29
  $region7: #{simvp_encoder.1} parent=0 // loop_footer_branch
    %28 = sbr.rel target = $region3
  $region8: #{simvp_encoder.1} parent=0 // loop_exit
    _

</llo_original>
